<compile_context>
chip_gen: v7x
topology: tpu7x:2x2x1
jax: 0.10.0
libtpu: 0.0.40
codegen_flags: <defaults>
</compile_context>

<pallas_src>
import functools

import jax
import jax.numpy as jnp
from jax.experimental import pallas as pl
from jax.experimental.pallas import tpu as pltpu

NUM_HEADS = 4
RW_HIDDEN2 = 64          # reweight net second hidden width (reference: Linear(mlp_dim, 64))
OUT_W = 128              # packed, lane-dense output slab width

# packed (B, OUT_W) output column layout
_COL_CLS = 0             # classify_pred
_COL_TDW = 1             # td_rationale_weight
_COL_CSW = 2             # cs_rationale_weight
_COL_TDU = 3             # td_rationale_useful_pred
_COL_CSU = 4             # cs_rationale_useful_pred
_COL_TDJ = 5             # td_judge_pred (3 cols)
_COL_CSJ = 8             # cs_judge_pred (3 cols)

# w_small (2*MLP_H, 256) bf16 column offsets
_WS_RW2 = 0                          # block-diag reweight second layers (2*MH, 2*RW2)
_WS_JUDGE = 2 * RW_HIDDEN2           # 128: block-diag judge second layers (2*MH, 6)
_WS_AGG = _WS_JUDGE + 16             # 144: feature-agg att_fc1 (D, D)
_WS_CLS = _WS_AGG + 32               # 176: classifier fc1 (D, MH)
_WS_COLS = 256

# fvec (16, 256) f32 row layout (all biases / LN params / row vectors / scalars)
(_FV_BPC, _FV_BPR, _FV_BOA, _FV_BOB, _FV_APW2, _FV_SCAL, _FV_BTAIL, _FV_SW2,
 _FV_LN1, _FV_RB2, _FV_LN2G, _FV_LN2B, _FV_RW3, _FV_BMISC) = range(14)
_FV_ROWS, _FV_COLS = 16, 256

# fvec scalar-row columns
_SC_APB2_TD, _SC_APB2_CS, _SC_APB2_C, _SC_APB2_AGG = 0, 1, 2, 3
_SC_SB2_TDU, _SC_SB2_CSU, _SC_SB2_CLS = 4, 5, 6
_SC_RB3_TD, _SC_RB3_CS = 7, 8
_SC_JB2_TD, _SC_JB2_CS = 16, 19


# ----------------------------------------------------------------------------
# The single fused kernel
# ----------------------------------------------------------------------------

def _arg_fused_kernel(cid_ref, tid_ref, sid_ref, cmask_ref, tmask_ref, smask_ref,
                      emb_ref, wpc_ref, wpr_ref, wo_ref, wtail_ref, wsmall_ref,
                      fvec_ref, out_ref, *, B, Lc, Lr, D, H, MH, VOCAB):
    f32 = jnp.float32
    bf16 = jnp.bfloat16
    dh = D // H
    RW2 = RW_HIDDEN2

    fv = fvec_ref[...]                       # (16, 256) f32 packed small params
    wsm = wsmall_ref[...]                    # (2*MH, 256) bf16
    wo_all = wo_ref[...]                     # (4, D, D) bf16 [td2c, cs2c, c2td, c2cs]

    def sc(col):                             # (1,1) scalar from the scalar row
        return fv[_FV_SCAL:_FV_SCAL + 1, col:col + 1]

    def rowvec3(row, c0):                    # (1,1,D) row vector from fvec
        return fv[row:row + 1, c0:c0 + D].reshape(1, 1, D)

    def pair_b1d(row, c0, c1):               # (2B,1,D) pair-broadcast of two fvec slices
        return jnp.concatenate(
            [jnp.broadcast_to(rowvec3(row, c0), (B, 1, D)),
             jnp.broadcast_to(rowvec3(row, c1), (B, 1, D))], axis=0)

    # ---- embedding lookup: one-hot matmul (frozen BERT encoders replaced) ----
    iota_v = jax.lax.broadcasted_iota(jnp.int32, (1, VOCAB), 1)

    def onehot(ids):                          # ids (N,1) int32 -> (N, VOCAB) bf16
        return jnp.where(ids == iota_v, 1.0, 0.0).astype(bf16)

    cflat = jnp.dot(onehot(cid_ref[...]), emb_ref[0],
                    preferred_element_type=f32)                         # (B*Lc, D)
    oh_r = jnp.concatenate([onehot(tid_ref[...]), onehot(sid_ref[...])], axis=0)
    rfeat = jnp.dot(oh_r, emb_ref[1], preferred_element_type=f32)       # (2*B*Lr, D)
    tflat = rfeat[0:B * Lr]
    sflat = rfeat[B * Lr:2 * B * Lr]

    # ---- masks / additive key biases (hoisted) -------------------------------
    cmask = cmask_ref[...]                    # (B,1,Lc) f32 {0,1}
    tmask = tmask_ref[...]                    # (B,1,Lr)
    smask = smask_ref[...]                    # (B,1,Lr)
    neg = f32(-1e9)
    cbias = jnp.where(cmask > 0, f32(0.0), neg)
    tbias = jnp.where(tmask > 0, f32(0.0), neg)
    sbias = jnp.where(smask > 0, f32(0.0), neg)

    # ---- fused projections (bf16 in / f32 acc) -------------------------------
    # content cols: [Q_c2td|Q_c2cs|K_td2c|V_td2c|K_cs2c|V_cs2c|APc_fc1]
    pc = jnp.dot(cflat.astype(bf16), wpc_ref[...],
                 preferred_element_type=f32) + fv[_FV_BPC:_FV_BPC + 1, 0:7 * D]
    # td|cs block-diag cols: td:[Q_td2c|K_c2td|V_c2td|APtd] cs:[Q_cs2c|K_c2cs|V_c2cs|APcs]
    x_r = jnp.concatenate([tflat, sflat], axis=-1).astype(bf16)          # (B*Lr, 2D)
    pr = jnp.dot(x_r, wpr_ref[...],
                 preferred_element_type=f32) + fv[_FV_BPR:_FV_BPR + 1, 0:8 * D]

    def seq3(x_flat, L):
        return x_flat.reshape(B, L, D)

    # ---- paired multi-head cross attention ------------------------------------
    scale = f32(1.0 / (dh ** 0.5))

    def mha_pair(Q, K, V, bias, wo2, bo_row, Lq, Lk):
        # Q (2B,Lq,D), K/V (2B,Lk,D) f32, bias (2B,1,Lk), wo2 (2,D,D) bf16
        Qb, Kb, Vb = Q.astype(bf16), K.astype(bf16), V.astype(bf16)
        heads = []
        for h in range(H):                                   # static unroll (H=4)
            s0, s1 = h * dh, (h + 1) * dh
            s = jnp.einsum('bqd,bkd->bqk', Qb[:, :, s0:s1], Kb[:, :, s0:s1],
                           preferred_element_type=f32) * scale + bias
            s = s - jnp.max(s, axis=-1, keepdims=True)
            p = jnp.exp(s)
            p = p / jnp.sum(p, axis=-1, keepdims=True)
            heads.append(jnp.einsum('bqk,bkd->bqd', p.astype(bf16), Vb[:, :, s0:s1],
                                    preferred_element_type=f32))
        ctx = jnp.concatenate(heads, axis=-1)                # (2B,Lq,D)
        o = jnp.einsum('pmd,pdn->pmn',
                       ctx.reshape(2, B * Lq, D).astype(bf16), wo2,
                       preferred_element_type=f32)           # (2, B*Lq, D)
        return o.reshape(2 * B, Lq, D) + pair_b1d(bo_row, 0, D)

    # pair A: rationales -> content (td2c, cs2c)
    QA = jnp.concatenate([seq3(pr[:, 0:D], Lr), seq3(pr[:, 4 * D:5 * D], Lr)], axis=0)
    KA = jnp.concatenate([seq3(pc[:, 2 * D:3 * D], Lc), seq3(pc[:, 4 * D:5 * D], Lc)], axis=0)
    VA = jnp.concatenate([seq3(pc[:, 3 * D:4 * D], Lc), seq3(pc[:, 5 * D:6 * D], Lc)], axis=0)
    featA = mha_pair(QA, KA, VA, jnp.concatenate([cbias, cbias], axis=0),
                     wo_all[0:2], _FV_BOA, Lr, Lc)           # (2B,Lr,D) [td2c|cs2c]

    # pair B: content -> rationales (c2td, c2cs)
    QB = jnp.concatenate([seq3(pc[:, 0:D], Lc), seq3(pc[:, D:2 * D], Lc)], axis=0)
    KB = jnp.concatenate([seq3(pr[:, D:2 * D], Lr), seq3(pr[:, 5 * D:6 * D], Lr)], axis=0)
    VB = jnp.concatenate([seq3(pr[:, 2 * D:3 * D], Lr), seq3(pr[:, 6 * D:7 * D], Lr)], axis=0)
    featB = mha_pair(QB, KB, VB, jnp.concatenate([tbias, sbias], axis=0),
                     wo_all[2:4], _FV_BOB, Lc, Lr)           # (2B,Lc,D) [c2td|c2cs]

    # ---- masked average pooling (paired, exact division) ----------------------
    mA = jnp.concatenate([tmask, smask], axis=0)             # (2B,1,Lr)
    mB = jnp.concatenate([cmask, cmask], axis=0)             # (2B,1,Lc)
    numA = jnp.einsum('bql,bld->bqd', mA.astype(bf16), featA.astype(bf16),
                      preferred_element_type=f32)
    poolA = (numA / jnp.sum(mA, axis=-1, keepdims=True)).reshape(2 * B, D)
    numB = jnp.einsum('bql,bld->bqd', mB.astype(bf16), featB.astype(bf16),
                      preferred_element_type=f32)
    poolB = (numB / jnp.sum(mB, axis=-1, keepdims=True)).reshape(2 * B, D)
    td2c_pool, cs2c_pool = poolA[0:B], poolA[B:2 * B]
    c2td_pool, c2cs_pool = poolB[0:B], poolB[B:2 * B]

    # ---- attention pooling over masked sequences ------------------------------
    def attn_pool(e_seq, x_seq, mask, w2, b2):
        logit = jnp.einsum('bqd,bkd->bqk', w2.astype(bf16), e_seq.astype(bf16),
                           preferred_element_type=f32) + b2            # (nb,1,L)
        logit = logit - jnp.max(logit, axis=-1, keepdims=True)
        alpha = jnp.exp(logit) * mask
        alpha = alpha / (jnp.sum(alpha, axis=-1, keepdims=True) + 1e-8)
        pooled = jnp.einsum('bql,bld->bqd', alpha.astype(bf16), x_seq.astype(bf16),
                            preferred_element_type=f32)                # (nb,1,D)
        return pooled.reshape(pooled.shape[0], D)

    # td/cs attention pooling (paired), fc1 already in the projection dot
    eR = jnp.concatenate([seq3(jnp.tanh(pr[:, 3 * D:4 * D]), Lr),
                          seq3(jnp.tanh(pr[:, 7 * D:8 * D]), Lr)], axis=0)
    xR = jnp.concatenate([seq3(tflat, Lr), seq3(sflat, Lr)], axis=0)
    w2R = pair_b1d(_FV_APW2, 0, D)
    b2R = jnp.concatenate(
        [jnp.broadcast_to(sc(_SC_APB2_TD).reshape(1, 1, 1), (B, 1, 1)),
         jnp.broadcast_to(sc(_SC_APB2_CS).reshape(1, 1, 1), (B, 1, 1))], axis=0)
    poolR = attn_pool(eR, xR, mA, w2R, b2R)                  # (2B, D)
    td_ap, cs_ap = poolR[0:B], poolR[B:2 * B]

    # content attention pooling
    eC = seq3(jnp.tanh(pc[:, 6 * D:7 * D]), Lc)
    w2C = jnp.broadcast_to(rowvec3(_FV_APW2, 2 * D), (B, 1, D))
    content_ap = attn_pool(eC, seq3(cflat, Lc), cmask, w2C, sc(_SC_APB2_C))

    # ---- fused tail heads: one block-diagonal matmul --------------------------
    # x_tail lanes: [c2td_pool | c2cs_pool | td_ap | cs_ap]
    x_tail = jnp.concatenate([c2td_pool, c2cs_pool, td_ap, cs_ap], axis=-1).astype(bf16)
    h_tail = jnp.dot(x_tail, wtail_ref[...],
                     preferred_element_type=f32) + fv[_FV_BTAIL:_FV_BTAIL + 1, 0:6 * MH]
    h_tdu = jnp.maximum(h_tail[:, 0:MH], 0.0)
    h_tdr = h_tail[:, MH:2 * MH]
    h_csu = jnp.maximum(h_tail[:, 2 * MH:3 * MH], 0.0)
    h_csr = h_tail[:, 3 * MH:4 * MH]
    h_tdj = jnp.maximum(h_tail[:, 4 * MH:5 * MH], 0.0)
    h_csj = jnp.maximum(h_tail[:, 5 * MH:6 * MH], 0.0)

    sw2 = fv[_FV_SW2:_FV_SW2 + 1, :]
    td_useful = jax.nn.sigmoid(
        jnp.sum(h_tdu * sw2[:, 0:MH], axis=-1, keepdims=True) + sc(_SC_SB2_TDU))
    cs_useful = jax.nn.sigmoid(
        jnp.sum(h_csu * sw2[:, MH:2 * MH], axis=-1, keepdims=True) + sc(_SC_SB2_CSU))

    # judge heads: block-diag second layer
    h_j = jnp.concatenate([h_tdj, h_csj], axis=-1).astype(bf16)        # (B, 2*MH)
    jout = jnp.dot(h_j, wsm[:, _WS_JUDGE:_WS_JUDGE + 6], preferred_element_type=f32)
    td_judge = jout[:, 0:3] + fv[_FV_SCAL:_FV_SCAL + 1, _SC_JB2_TD:_SC_JB2_TD + 3]
    cs_judge = jout[:, 3:6] + fv[_FV_SCAL:_FV_SCAL + 1, _SC_JB2_CS:_SC_JB2_CS + 3]

    # ---- reweight nets (dropout = identity in eval mode) -----------------------
    def layer_norm(h, g, b):
        mu = jnp.mean(h, axis=-1, keepdims=True)
        var = jnp.mean(jnp.square(h - mu), axis=-1, keepdims=True)
        return (h - mu) * jax.lax.rsqrt(var + 1e-5) * g + b

    ln1 = fv[_FV_LN1:_FV_LN1 + 1, :]
    h1_td = jnp.maximum(layer_norm(h_tdr, ln1[:, 0:MH], ln1[:, 2 * MH:3 * MH]), 0.0)
    h1_cs = jnp.maximum(layer_norm(h_csr, ln1[:, MH:2 * MH], ln1[:, 3 * MH:4 * MH]), 0.0)
    x_rw = jnp.concatenate([h1_td, h1_cs], axis=-1).astype(bf16)        # (B, 2*MH)
    h2 = jnp.dot(x_rw, wsm[:, _WS_RW2:_WS_RW2 + 2 * RW2],
                 preferred_element_type=f32) + fv[_FV_RB2:_FV_RB2 + 1, 0:2 * RW2]
    ln2g = fv[_FV_LN2G:_FV_LN2G + 1, :]
    ln2b = fv[_FV_LN2B:_FV_LN2B + 1, :]
    h2_td = jnp.maximum(layer_norm(h2[:, 0:RW2], ln2g[:, 0:RW2], ln2b[:, 0:RW2]), 0.0)
    h2_cs = jnp.maximum(layer_norm(h2[:, RW2:2 * RW2],
                                   ln2g[:, RW2:2 * RW2], ln2b[:, RW2:2 * RW2]), 0.0)
    rw3 = fv[_FV_RW3:_FV_RW3 + 1, :]
    td_w = jax.nn.sigmoid(
        jnp.sum(h2_td * rw3[:, 0:RW2], axis=-1, keepdims=True) + sc(_SC_RB3_TD))
    cs_w = jax.nn.sigmoid(
        jnp.sum(h2_cs * rw3[:, RW2:2 * RW2], axis=-1, keepdims=True) + sc(_SC_RB3_CS))

    td2c_wt = td_w * td2c_pool
    cs2c_wt = cs_w * cs2c_pool

    # ---- feature aggregation: attention pooling over 3 tokens ------------------
    x3 = jnp.concatenate([content_ap, td2c_wt, cs2c_wt], axis=0).astype(bf16)  # (3B, D)
    e3 = jnp.tanh(jnp.dot(x3, wsm[0:D, _WS_AGG:_WS_AGG + D],
                          preferred_element_type=f32) + fv[_FV_BMISC:_FV_BMISC + 1, 0:D])
    logit3 = jnp.sum(e3 * fv[_FV_APW2:_FV_APW2 + 1, 3 * D:4 * D],
                     axis=-1, keepdims=True) + sc(_SC_APB2_AGG)                # (3B, 1)
    a0, a1, a2 = logit3[0:B], logit3[B:2 * B], logit3[2 * B:3 * B]
    m3 = jnp.maximum(jnp.maximum(a0, a1), a2)
    e0, e1, e2 = jnp.exp(a0 - m3), jnp.exp(a1 - m3), jnp.exp(a2 - m3)
    inv3 = 1.0 / (e0 + e1 + e2 + 1e-8)
    agg = (e0 * content_ap + e1 * td2c_wt + e2 * cs2c_wt) * inv3               # (B, D)

    # ---- classifier -------------------------------------------------------------
    h_cls = jnp.maximum(
        jnp.dot(agg.astype(bf16), wsm[0:D, _WS_CLS:_WS_CLS + MH],
                preferred_element_type=f32) + fv[_FV_BMISC:_FV_BMISC + 1, D:D + MH], 0.0)
    classify = jax.nn.sigmoid(
        jnp.sum(h_cls * sw2[:, 2 * MH:3 * MH], axis=-1, keepdims=True) + sc(_SC_SB2_CLS))

    # ---- pack into one lane-dense (B, OUT_W) output slab ------------------------
    pad = jnp.zeros((B, OUT_W - 11), f32)
    out_ref[...] = jnp.concatenate(
        [classify, td_w, cs_w, td_useful, cs_useful, td_judge, cs_judge, pad],
        axis=-1).astype(out_ref.dtype)


# ----------------------------------------------------------------------------
# Wrapper
# ----------------------------------------------------------------------------

def arg_forward(packed, content, content_mask,
                td_rationale, td_rationale_mask,
                cs_rationale, cs_rationale_mask):
    B, Lc = content.shape
    Lr = td_rationale.shape[1]
    D = packed['emb'].shape[-1]
    VOCAB = packed['emb'].shape[1]
    MH = packed['w_tail'].shape[1] // 6

    cid = content.reshape(B * Lc, 1).astype(jnp.int32)
    tid = td_rationale.reshape(B * Lr, 1).astype(jnp.int32)
    sid = cs_rationale.reshape(B * Lr, 1).astype(jnp.int32)
    cmask = content_mask.reshape(B, 1, Lc).astype(jnp.float32)
    tmask = td_rationale_mask.reshape(B, 1, Lr).astype(jnp.float32)
    smask = cs_rationale_mask.reshape(B, 1, Lr).astype(jnp.float32)

    out = pl.pallas_call(
        functools.partial(_arg_fused_kernel, B=B, Lc=Lc, Lr=Lr, D=D,
                          H=NUM_HEADS, MH=MH, VOCAB=VOCAB),
        out_shape=jax.ShapeDtypeStruct((B, OUT_W), jnp.float32),
        compiler_params=pltpu.CompilerParams(vmem_limit_bytes=64 * 1024 * 1024),
    )(cid, tid, sid, cmask, tmask, smask,
      packed['emb'], packed['w_proj_c'], packed['w_proj_r'], packed['wo'],
      packed['w_tail'], packed['w_small'], packed['fvec'])

    return {
        'classify_pred': out[:, _COL_CLS],
        'td_rationale_weight': out[:, _COL_TDW:_COL_TDW + 1],
        'cs_rationale_weight': out[:, _COL_CSW:_COL_CSW + 1],
        'td_rationale_useful_pred': out[:, _COL_TDU],
        'cs_rationale_useful_pred': out[:, _COL_CSU],
        'td_judge_pred': out[:, _COL_TDJ:_COL_TDJ + 3],
        'cs_judge_pred': out[:, _COL_CSJ:_COL_CSJ + 3],
    }


# ----------------------------------------------------------------------------
# Parameter init (per-module, mirroring the PyTorch structure) + packing
# ----------------------------------------------------------------------------

def init_params(key, vocab, D, mlp_hidden):
    keys = iter(jax.random.split(key, 128))

    def linear(din, dout):
        w = jax.random.normal(next(keys), (din, dout), jnp.float32) * (1.0 / (din ** 0.5))
        b = jax.random.normal(next(keys), (1, dout), jnp.float32) * 0.02
        return w, b

    def cross_attn():
        return {'wq': linear(D, D), 'wk': linear(D, D), 'wv': linear(D, D), 'wo': linear(D, D)}

    def attn_pool():
        return {'att_fc1': linear(D, D), 'att_fc2': linear(D, 1)}

    def mlp2(dout):
        return {'l1': linear(D, mlp_hidden), 'l2': linear(mlp_hidden, dout)}

    def reweight():
        return {'l1': linear(D, mlp_hidden),
                'ln1': (jnp.ones((1, mlp_hidden), jnp.float32),
                        jnp.zeros((1, mlp_hidden), jnp.float32)),
                'l2': linear(mlp_hidden, RW_HIDDEN2),
                'ln2': (jnp.ones((1, RW_HIDDEN2), jnp.float32),
                        jnp.zeros((1, RW_HIDDEN2), jnp.float32)),
                'l3': linear(RW_HIDDEN2, 1)}

    return {
        'content_emb': jax.random.normal(next(keys), (vocab, D), jnp.float32) * 0.1,
        'rationale_emb': jax.random.normal(next(keys), (vocab, D), jnp.float32) * 0.1,
        'td_r2c': cross_attn(), 'cs_r2c': cross_attn(),
        'c2td': cross_attn(), 'c2cs': cross_attn(),
        'td_useful': mlp2(1), 'cs_useful': mlp2(1),
        'td_judge': mlp2(3), 'cs_judge': mlp2(3),
        'td_attn_pool': attn_pool(), 'cs_attn_pool': attn_pool(),
        'content_attn_pool': attn_pool(), 'feature_agg': attn_pool(),
        'td_reweight': reweight(), 'cs_reweight': reweight(),
        'classifier': mlp2(1),
    }


def pack_params(p, D, mlp_h):
    """Pack per-module f32 params into the fused-kernel operand layout (bf16 MXU weights)."""
    MH = mlp_h
    RW2 = RW_HIDDEN2
    assert D <= 32 and MH <= 32 and D <= 2 * MH, "packed layout sized for demo dims"
    bf = jnp.bfloat16

    # content projection (D, 7D): [Qc2td|Qc2cs|Ktd2c|Vtd2c|Kcs2c|Vcs2c|APc_fc1]
    w_proj_c = jnp.concatenate([
        p['c2td']['wq'][0], p['c2cs']['wq'][0],
        p['td_r2c']['wk'][0], p['td_r2c']['wv'][0],
        p['cs_r2c']['wk'][0], p['cs_r2c']['wv'][0],
        p['content_attn_pool']['att_fc1'][0]], axis=1)
    b_proj_c = jnp.concatenate([
        p['c2td']['wq'][1], p['c2cs']['wq'][1],
        p['td_r2c']['wk'][1], p['td_r2c']['wv'][1],
        p['cs_r2c']['wk'][1], p['cs_r2c']['wv'][1],
        p['content_attn_pool']['att_fc1'][1]], axis=1)

    # td|cs block-diagonal projection (2D, 8D)
    td_blk = jnp.concatenate([p['td_r2c']['wq'][0], p['c2td']['wk'][0],
                              p['c2td']['wv'][0], p['td_attn_pool']['att_fc1'][0]], axis=1)
    cs_blk = jnp.concatenate([p['cs_r2c']['wq'][0], p['c2cs']['wk'][0],
                              p['c2cs']['wv'][0], p['cs_attn_pool']['att_fc1'][0]], axis=1)
    w_proj_r = jnp.concatenate([
        jnp.concatenate([td_blk, jnp.zeros_like(cs_blk)], axis=1),
        jnp.concatenate([jnp.zeros_like(td_blk), cs_blk], axis=1)], axis=0)
    b_proj_r = jnp.concatenate([
        p['td_r2c']['wq'][1], p['c2td']['wk'][1], p['c2td']['wv'][1],
        p['td_attn_pool']['att_fc1'][1],
        p['cs_r2c']['wq'][1], p['c2cs']['wk'][1], p['c2cs']['wv'][1],
        p['cs_attn_pool']['att_fc1'][1]], axis=1)

    wo = jnp.stack([p['td_r2c']['wo'][0], p['cs_r2c']['wo'][0],
                    p['c2td']['wo'][0], p['c2cs']['wo'][0]])            # (4,D,D)

    # tail block-diag (4D, 6*MH); input lanes [c2td_pool|c2cs_pool|td_ap|cs_ap]
    w_tail = jnp.zeros((4 * D, 6 * MH), jnp.float32)
    w_tail = w_tail.at[0:D, 0:MH].set(p['td_useful']['l1'][0])
    w_tail = w_tail.at[0:D, MH:2 * MH].set(p['td_reweight']['l1'][0])
    w_tail = w_tail.at[D:2 * D, 2 * MH:3 * MH].set(p['cs_useful']['l1'][0])
    w_tail = w_tail.at[D:2 * D, 3 * MH:4 * MH].set(p['cs_reweight']['l1'][0])
    w_tail = w_tail.at[2 * D:3 * D, 4 * MH:5 * MH].set(p['td_judge']['l1'][0])
    w_tail = w_tail.at[3 * D:4 * D, 5 * MH:6 * MH].set(p['cs_judge']['l1'][0])
    b_tail = jnp.concatenate([p['td_useful']['l1'][1], p['td_reweight']['l1'][1],
                              p['cs_useful']['l1'][1], p['cs_reweight']['l1'][1],
                              p['td_judge']['l1'][1], p['cs_judge']['l1'][1]], axis=1)

    # small second-stage weights (2*MH, 256)
    w_small = jnp.zeros((2 * MH, _WS_COLS), jnp.float32)
    w_small = w_small.at[0:MH, _WS_RW2:_WS_RW2 + RW2].set(p['td_reweight']['l2'][0])
    w_small = w_small.at[MH:2 * MH, _WS_RW2 + RW2:_WS_RW2 + 2 * RW2].set(p['cs_reweight']['l2'][0])
    w_small = w_small.at[0:MH, _WS_JUDGE:_WS_JUDGE + 3].set(p['td_judge']['l2'][0])
    w_small = w_small.at[MH:2 * MH, _WS_JUDGE + 3:_WS_JUDGE + 6].set(p['cs_judge']['l2'][0])
    w_small = w_small.at[0:D, _WS_AGG:_WS_AGG + D].set(p['feature_agg']['att_fc1'][0])
    w_small = w_small.at[0:D, _WS_CLS:_WS_CLS + MH].set(p['classifier']['l1'][0])

    # all small f32 params in one slab
    fvec = jnp.zeros((_FV_ROWS, _FV_COLS), jnp.float32)
    fvec = fvec.at[_FV_BPC, 0:7 * D].set(b_proj_c[0])
    fvec = fvec.at[_FV_BPR, 0:8 * D].set(b_proj_r[0])
    fvec = fvec.at[_FV_BOA, 0:D].set(p['td_r2c']['wo'][1][0])
    fvec = fvec.at[_FV_BOA, D:2 * D].set(p['cs_r2c']['wo'][1][0])
    fvec = fvec.at[_FV_BOB, 0:D].set(p['c2td']['wo'][1][0])
    fvec = fvec.at[_FV_BOB, D:2 * D].set(p['c2cs']['wo'][1][0])
    fvec = fvec.at[_FV_APW2, 0:D].set(p['td_attn_pool']['att_fc2'][0][:, 0])
    fvec = fvec.at[_FV_APW2, D:2 * D].set(p['cs_attn_pool']['att_fc2'][0][:, 0])
    fvec = fvec.at[_FV_APW2, 2 * D:3 * D].set(p['content_attn_pool']['att_fc2'][0][:, 0])
    fvec = fvec.at[_FV_APW2, 3 * D:4 * D].set(p['feature_agg']['att_fc2'][0][:, 0])
    fvec = fvec.at[_FV_SCAL, _SC_APB2_TD].set(p['td_attn_pool']['att_fc2'][1][0, 0])
    fvec = fvec.at[_FV_SCAL, _SC_APB2_CS].set(p['cs_attn_pool']['att_fc2'][1][0, 0])
    fvec = fvec.at[_FV_SCAL, _SC_APB2_C].set(p['content_attn_pool']['att_fc2'][1][0, 0])
    fvec = fvec.at[_FV_SCAL, _SC_APB2_AGG].set(p['feature_agg']['att_fc2'][1][0, 0])
    fvec = fvec.at[_FV_SCAL, _SC_SB2_TDU].set(p['td_useful']['l2'][1][0, 0])
    fvec = fvec.at[_FV_SCAL, _SC_SB2_CSU].set(p['cs_useful']['l2'][1][0, 0])
    fvec = fvec.at[_FV_SCAL, _SC_SB2_CLS].set(p['classifier']['l2'][1][0, 0])
    fvec = fvec.at[_FV_SCAL, _SC_RB3_TD].set(p['td_reweight']['l3'][1][0, 0])
    fvec = fvec.at[_FV_SCAL, _SC_RB3_CS].set(p['cs_reweight']['l3'][1][0, 0])
    fvec = fvec.at[_FV_SCAL, _SC_JB2_TD:_SC_JB2_TD + 3].set(p['td_judge']['l2'][1][0])
    fvec = fvec.at[_FV_SCAL, _SC_JB2_CS:_SC_JB2_CS + 3].set(p['cs_judge']['l2'][1][0])
    fvec = fvec.at[_FV_BTAIL, 0:6 * MH].set(b_tail[0])
    fvec = fvec.at[_FV_SW2, 0:MH].set(p['td_useful']['l2'][0][:, 0])
    fvec = fvec.at[_FV_SW2, MH:2 * MH].set(p['cs_useful']['l2'][0][:, 0])
    fvec = fvec.at[_FV_SW2, 2 * MH:3 * MH].set(p['classifier']['l2'][0][:, 0])
    fvec = fvec.at[_FV_LN1, 0:MH].set(p['td_reweight']['ln1'][0][0])
    fvec = fvec.at[_FV_LN1, MH:2 * MH].set(p['cs_reweight']['ln1'][0][0])
    fvec = fvec.at[_FV_LN1, 2 * MH:3 * MH].set(p['td_reweight']['ln1'][1][0])
    fvec = fvec.at[_FV_LN1, 3 * MH:4 * MH].set(p['cs_reweight']['ln1'][1][0])
    fvec = fvec.at[_FV_RB2, 0:RW2].set(p['td_reweight']['l2'][1][0])
    fvec = fvec.at[_FV_RB2, RW2:2 * RW2].set(p['cs_reweight']['l2'][1][0])
    fvec = fvec.at[_FV_LN2G, 0:RW2].set(p['td_reweight']['ln2'][0][0])
    fvec = fvec.at[_FV_LN2G, RW2:2 * RW2].set(p['cs_reweight']['ln2'][0][0])
    fvec = fvec.at[_FV_LN2B, 0:RW2].set(p['td_reweight']['ln2'][1][0])
    fvec = fvec.at[_FV_LN2B, RW2:2 * RW2].set(p['cs_reweight']['ln2'][1][0])
    fvec = fvec.at[_FV_RW3, 0:RW2].set(p['td_reweight']['l3'][0][:, 0])
    fvec = fvec.at[_FV_RW3, RW2:2 * RW2].set(p['cs_reweight']['l3'][0][:, 0])
    fvec = fvec.at[_FV_BMISC, 0:D].set(p['feature_agg']['att_fc1'][1][0])
    fvec = fvec.at[_FV_BMISC, D:D + MH].set(p['classifier']['l1'][1][0])

    emb = jnp.stack([p['content_emb'], p['rationale_emb']]).astype(bf)

    return {'emb': emb,
            'w_proj_c': w_proj_c.astype(bf),
            'w_proj_r': w_proj_r.astype(bf),
            'wo': wo.astype(bf),
            'w_tail': w_tail.astype(bf),
            'w_small': w_small.astype(bf),
            'fvec': fvec}


# ----------------------------------------------------------------------------
# Main
# ----------------------------------------------------------------------------

if __name__ == '__main__':
    B, Lc, Lr = 2, 16, 8            # batch, content seq len, rationale seq len
    D, MLP_H, VOCAB = 32, 32, 128   # emb_dim, mlp.dims[-1], synthetic vocab

    root = jax.random.PRNGKey(0)
    pkey, dkey = jax.random.split(root)
    params = init_params(pkey, VOCAB, D, MLP_H)
    packed = pack_params(params, D, MLP_H)

    k1, k2, k3 = jax.random.split(dkey, 3)
    content = jax.random.randint(k1, (B, Lc), 0, VOCAB, dtype=jnp.int32)
    td_rationale = jax.random.randint(k2, (B, Lr), 0, VOCAB, dtype=jnp.int32)
    cs_rationale = jax.random.randint(k3, (B, Lr), 0, VOCAB, dtype=jnp.int32)

    def length_mask(lengths, L):
        pos = jnp.arange(L)[None, :]
        return (pos < jnp.asarray(lengths)[:, None]).astype(jnp.float32)

    content_mask = length_mask([Lc, Lc - 4], Lc)
    td_rationale_mask = length_mask([Lr, Lr - 2], Lr)
    cs_rationale_mask = length_mask([Lr - 1, Lr], Lr)

    fwd = jax.jit(arg_forward)
    out = fwd(packed, content, content_mask,
              td_rationale, td_rationale_mask,
              cs_rationale, cs_rationale_mask)
    out = jax.block_until_ready(out)

    assert out['classify_pred'].shape == (B,)
    assert out['td_rationale_weight'].shape == (B, 1)
    assert out['cs_rationale_weight'].shape == (B, 1)
    assert out['td_rationale_useful_pred'].shape == (B,)
    assert out['cs_rationale_useful_pred'].shape == (B,)
    assert out['td_judge_pred'].shape == (B, 3)
    assert out['cs_judge_pred'].shape == (B, 3)
    assert bool(jnp.all(jnp.isfinite(out['classify_pred'])))
    assert bool(jnp.all(jnp.isfinite(out['td_judge_pred'])))

    print("KERNEL_OK")
</pallas_src>

<mosaic_0001>
module attributes {stable_mosaic.version = 11 : i64} {
  func.func @_arg_fused_kernel(%arg0: memref<32x1xi32, #tpu.memory_space<vmem>>, %arg1: memref<16x1xi32, #tpu.memory_space<vmem>>, %arg2: memref<16x1xi32, #tpu.memory_space<vmem>>, %arg3: memref<2x1x16xf32, #tpu.memory_space<vmem>>, %arg4: memref<2x1x8xf32, #tpu.memory_space<vmem>>, %arg5: memref<2x1x8xf32, #tpu.memory_space<vmem>>, %arg6: memref<2x128x32xbf16, #tpu.memory_space<vmem>>, %arg7: memref<32x224xbf16, #tpu.memory_space<vmem>>, %arg8: memref<64x256xbf16, #tpu.memory_space<vmem>>, %arg9: memref<4x32x32xbf16, #tpu.memory_space<vmem>>, %arg10: memref<128x192xbf16, #tpu.memory_space<vmem>>, %arg11: memref<64x256xbf16, #tpu.memory_space<vmem>>, %arg12: memref<16x256xf32, #tpu.memory_space<vmem>>, %arg13: memref<2x128xf32, #tpu.memory_space<vmem>>) attributes {dimension_semantics = [], scalar_prefetch = 0 : i64, scratch_operands = 0 : i64, tpu.core_type = #tpu.core_type<tc>} {
    %c0 = arith.constant 0 : index
    %c0_0 = arith.constant 0 : index
    %0 = vector.load %arg12[%c0, %c0_0] : memref<16x256xf32, #tpu.memory_space<vmem>>, vector<16x256xf32>
    %c0_1 = arith.constant 0 : index
    %c0_2 = arith.constant 0 : index
    %1 = vector.load %arg11[%c0_1, %c0_2] : memref<64x256xbf16, #tpu.memory_space<vmem>>, vector<64x256xbf16>
    %c0_3 = arith.constant 0 : index
    %c0_4 = arith.constant 0 : index
    %c0_5 = arith.constant 0 : index
    %2 = vector.load %arg9[%c0_3, %c0_4, %c0_5] : memref<4x32x32xbf16, #tpu.memory_space<vmem>>, vector<4x32x32xbf16>
    %3 = tpu.iota {dimensions = array<i32: 1>} : vector<1x128xi32>
    %c0_6 = arith.constant 0 : index
    %c0_7 = arith.constant 0 : index
    %4 = vector.load %arg0[%c0_6, %c0_7] : memref<32x1xi32, #tpu.memory_space<vmem>>, vector<32x1xi32>
    %5 = vector.broadcast %4 : vector<32x1xi32> to vector<32x128xi32>
    %6 = vector.broadcast %3 : vector<1x128xi32> to vector<32x128xi32>
    %7 = arith.cmpi eq, %5, %6 : vector<32x128xi32>
    %cst = arith.constant 1.000000e+00 : f32
    %cst_8 = arith.constant 0.000000e+00 : f32
    %8 = vector.broadcast %cst : f32 to vector<32x128xf32>
    %9 = vector.broadcast %cst_8 : f32 to vector<32x128xf32>
    %10 = arith.select %7, %8, %9 : vector<32x128xi1>, vector<32x128xf32>
    %11 = arith.truncf %10 : vector<32x128xf32> to vector<32x128xbf16>
    %c0_9 = arith.constant 0 : index
    %c0_10 = arith.constant 0 : index
    %c0_11 = arith.constant 0 : index
    %12 = vector.load %arg6[%c0_9, %c0_10, %c0_11] : memref<2x128x32xbf16, #tpu.memory_space<vmem>>, vector<1x128x32xbf16>
    %13 = vector.shape_cast %12 : vector<1x128x32xbf16> to vector<128x32xbf16>
    %cst_12 = arith.constant dense<0.000000e+00> : vector<32x32xf32>
    %14 = tpu.matmul %11, %13, %cst_12 {dimension_numbers = #tpu.dot_dimension_numbers<[1], [0], [0], [1], [0, 0, 1, 1], [], []>} : vector<32x128xbf16>, vector<128x32xbf16>, vector<32x32xf32> -> vector<32x32xf32>
    %c0_13 = arith.constant 0 : index
    %c0_14 = arith.constant 0 : index
    %15 = vector.load %arg1[%c0_13, %c0_14] : memref<16x1xi32, #tpu.memory_space<vmem>>, vector<16x1xi32>
    %16 = vector.broadcast %15 : vector<16x1xi32> to vector<16x128xi32>
    %17 = vector.broadcast %3 : vector<1x128xi32> to vector<16x128xi32>
    %18 = arith.cmpi eq, %16, %17 : vector<16x128xi32>
    %cst_15 = arith.constant 1.000000e+00 : f32
    %cst_16 = arith.constant 0.000000e+00 : f32
    %19 = vector.broadcast %cst_15 : f32 to vector<16x128xf32>
    %20 = vector.broadcast %cst_16 : f32 to vector<16x128xf32>
    %21 = arith.select %18, %19, %20 : vector<16x128xi1>, vector<16x128xf32>
    %22 = arith.truncf %21 : vector<16x128xf32> to vector<16x128xbf16>
    %c0_17 = arith.constant 0 : index
    %c0_18 = arith.constant 0 : index
    %23 = vector.load %arg2[%c0_17, %c0_18] : memref<16x1xi32, #tpu.memory_space<vmem>>, vector<16x1xi32>
    %24 = vector.broadcast %23 : vector<16x1xi32> to vector<16x128xi32>
    %25 = vector.broadcast %3 : vector<1x128xi32> to vector<16x128xi32>
    %26 = arith.cmpi eq, %24, %25 : vector<16x128xi32>
    %cst_19 = arith.constant 1.000000e+00 : f32
    %cst_20 = arith.constant 0.000000e+00 : f32
    %27 = vector.broadcast %cst_19 : f32 to vector<16x128xf32>
    %28 = vector.broadcast %cst_20 : f32 to vector<16x128xf32>
    %29 = arith.select %26, %27, %28 : vector<16x128xi1>, vector<16x128xf32>
    %30 = arith.truncf %29 : vector<16x128xf32> to vector<16x128xbf16>
    %31 = tpu.concatenate %22, %30 in 0 : vector<16x128xbf16>, vector<16x128xbf16> -> vector<32x128xbf16>
    %c1 = arith.constant 1 : index
    %c0_21 = arith.constant 0 : index
    %c0_22 = arith.constant 0 : index
    %32 = vector.load %arg6[%c1, %c0_21, %c0_22] : memref<2x128x32xbf16, #tpu.memory_space<vmem>>, vector<1x128x32xbf16>
    %33 = vector.shape_cast %32 : vector<1x128x32xbf16> to vector<128x32xbf16>
    %cst_23 = arith.constant dense<0.000000e+00> : vector<32x32xf32>
    %34 = tpu.matmul %31, %33, %cst_23 {dimension_numbers = #tpu.dot_dimension_numbers<[1], [0], [0], [1], [0, 0, 1, 1], [], []>} : vector<32x128xbf16>, vector<128x32xbf16>, vector<32x32xf32> -> vector<32x32xf32>
    %35 = vector.extract_strided_slice %34 {offsets = [0, 0], sizes = [16, 32], strides = [1, 1]} : vector<32x32xf32> to vector<16x32xf32>
    %36 = vector.extract_strided_slice %34 {offsets = [16, 0], sizes = [16, 32], strides = [1, 1]} : vector<32x32xf32> to vector<16x32xf32>
    %c0_24 = arith.constant 0 : index
    %c0_25 = arith.constant 0 : index
    %c0_26 = arith.constant 0 : index
    %37 = vector.load %arg3[%c0_24, %c0_25, %c0_26] : memref<2x1x16xf32, #tpu.memory_space<vmem>>, vector<2x1x16xf32>
    %c0_27 = arith.constant 0 : index
    %c0_28 = arith.constant 0 : index
    %c0_29 = arith.constant 0 : index
    %38 = vector.load %arg4[%c0_27, %c0_28, %c0_29] : memref<2x1x8xf32, #tpu.memory_space<vmem>>, vector<2x1x8xf32>
    %c0_30 = arith.constant 0 : index
    %c0_31 = arith.constant 0 : index
    %c0_32 = arith.constant 0 : index
    %39 = vector.load %arg5[%c0_30, %c0_31, %c0_32] : memref<2x1x8xf32, #tpu.memory_space<vmem>>, vector<2x1x8xf32>
    %cst_33 = arith.constant 0.000000e+00 : f32
    %40 = vector.broadcast %cst_33 : f32 to vector<2x1x16xf32>
    %41 = arith.cmpf ogt, %37, %40 : vector<2x1x16xf32>
    %cst_34 = arith.constant 0.000000e+00 : f32
    %cst_35 = arith.constant -1.000000e+09 : f32
    %42 = vector.broadcast %cst_34 : f32 to vector<2x1x16xf32>
    %43 = vector.broadcast %cst_35 : f32 to vector<2x1x16xf32>
    %44 = arith.select %41, %42, %43 : vector<2x1x16xi1>, vector<2x1x16xf32>
    %cst_36 = arith.constant 0.000000e+00 : f32
    %45 = vector.broadcast %cst_36 : f32 to vector<2x1x8xf32>
    %46 = arith.cmpf ogt, %38, %45 : vector<2x1x8xf32>
    %cst_37 = arith.constant 0.000000e+00 : f32
    %cst_38 = arith.constant -1.000000e+09 : f32
    %47 = vector.broadcast %cst_37 : f32 to vector<2x1x8xf32>
    %48 = vector.broadcast %cst_38 : f32 to vector<2x1x8xf32>
    %49 = arith.select %46, %47, %48 : vector<2x1x8xi1>, vector<2x1x8xf32>
    %cst_39 = arith.constant 0.000000e+00 : f32
    %50 = vector.broadcast %cst_39 : f32 to vector<2x1x8xf32>
    %51 = arith.cmpf ogt, %39, %50 : vector<2x1x8xf32>
    %cst_40 = arith.constant 0.000000e+00 : f32
    %cst_41 = arith.constant -1.000000e+09 : f32
    %52 = vector.broadcast %cst_40 : f32 to vector<2x1x8xf32>
    %53 = vector.broadcast %cst_41 : f32 to vector<2x1x8xf32>
    %54 = arith.select %51, %52, %53 : vector<2x1x8xi1>, vector<2x1x8xf32>
    %55 = arith.truncf %14 : vector<32x32xf32> to vector<32x32xbf16>
    %c0_42 = arith.constant 0 : index
    %c0_43 = arith.constant 0 : index
    %56 = vector.load %arg7[%c0_42, %c0_43] : memref<32x224xbf16, #tpu.memory_space<vmem>>, vector<32x224xbf16>
    %cst_44 = arith.constant dense<0.000000e+00> : vector<32x224xf32>
    %57 = tpu.matmul %55, %56, %cst_44 {dimension_numbers = #tpu.dot_dimension_numbers<[1], [0], [0], [1], [0, 0, 1, 1], [], []>} : vector<32x32xbf16>, vector<32x224xbf16>, vector<32x224xf32> -> vector<32x224xf32>
    %58 = vector.extract_strided_slice %0 {offsets = [0, 0], sizes = [1, 224], strides = [1, 1]} : vector<16x256xf32> to vector<1x224xf32>
    %59 = vector.broadcast %58 : vector<1x224xf32> to vector<32x224xf32>
    %60 = arith.addf %57, %59 : vector<32x224xf32>
    %61 = tpu.concatenate %35, %36 in 1 : vector<16x32xf32>, vector<16x32xf32> -> vector<16x64xf32>
    %62 = arith.truncf %61 : vector<16x64xf32> to vector<16x64xbf16>
    %c0_45 = arith.constant 0 : index
    %c0_46 = arith.constant 0 : index
    %63 = vector.load %arg8[%c0_45, %c0_46] : memref<64x256xbf16, #tpu.memory_space<vmem>>, vector<64x256xbf16>
    %cst_47 = arith.constant dense<0.000000e+00> : vector<16x256xf32>
    %64 = tpu.matmul %62, %63, %cst_47 {dimension_numbers = #tpu.dot_dimension_numbers<[1], [0], [0], [1], [0, 0, 1, 1], [], []>} : vector<16x64xbf16>, vector<64x256xbf16>, vector<16x256xf32> -> vector<16x256xf32>
    %65 = vector.extract_strided_slice %0 {offsets = [1, 0], sizes = [1, 256], strides = [1, 1]} : vector<16x256xf32> to vector<1x256xf32>
    %66 = vector.broadcast %65 : vector<1x256xf32> to vector<16x256xf32>
    %67 = arith.addf %64, %66 : vector<16x256xf32>
    %68 = vector.extract_strided_slice %67 {offsets = [0, 0], sizes = [16, 32], strides = [1, 1]} : vector<16x256xf32> to vector<16x32xf32>
    %69 = vector.shape_cast %68 : vector<16x32xf32> to vector<2x8x32xf32>
    %70 = vector.extract_strided_slice %67 {offsets = [0, 128], sizes = [16, 32], strides = [1, 1]} : vector<16x256xf32> to vector<16x32xf32>
    %71 = vector.shape_cast %70 : vector<16x32xf32> to vector<2x8x32xf32>
    %72 = tpu.concatenate %69, %71 in 0 : vector<2x8x32xf32>, vector<2x8x32xf32> -> vector<4x8x32xf32>
    %73 = vector.extract_strided_slice %60 {offsets = [0, 64], sizes = [32, 32], strides = [1, 1]} : vector<32x224xf32> to vector<32x32xf32>
    %74 = vector.shape_cast %73 : vector<32x32xf32> to vector<2x16x32xf32>
    %75 = vector.extract_strided_slice %60 {offsets = [0, 128], sizes = [32, 32], strides = [1, 1]} : vector<32x224xf32> to vector<32x32xf32>
    %76 = vector.shape_cast %75 : vector<32x32xf32> to vector<2x16x32xf32>
    %77 = tpu.concatenate %74, %76 in 0 : vector<2x16x32xf32>, vector<2x16x32xf32> -> vector<4x16x32xf32>
    %78 = vector.extract_strided_slice %60 {offsets = [0, 96], sizes = [32, 32], strides = [1, 1]} : vector<32x224xf32> to vector<32x32xf32>
    %79 = vector.shape_cast %78 : vector<32x32xf32> to vector<2x16x32xf32>
    %80 = vector.extract_strided_slice %60 {offsets = [0, 160], sizes = [32, 32], strides = [1, 1]} : vector<32x224xf32> to vector<32x32xf32>
    %81 = vector.shape_cast %80 : vector<32x32xf32> to vector<2x16x32xf32>
    %82 = tpu.concatenate %79, %81 in 0 : vector<2x16x32xf32>, vector<2x16x32xf32> -> vector<4x16x32xf32>
    %83 = tpu.concatenate %44, %44 in 0 : vector<2x1x16xf32>, vector<2x1x16xf32> -> vector<4x1x16xf32>
    %84 = vector.extract_strided_slice %2 {offsets = [0, 0, 0], sizes = [2, 32, 32], strides = [1, 1, 1]} : vector<4x32x32xbf16> to vector<2x32x32xbf16>
    %85 = arith.truncf %72 : vector<4x8x32xf32> to vector<4x8x32xbf16>
    %86 = arith.truncf %77 : vector<4x16x32xf32> to vector<4x16x32xbf16>
    %87 = arith.truncf %82 : vector<4x16x32xf32> to vector<4x16x32xbf16>
    %88 = vector.extract_strided_slice %85 {offsets = [0, 0, 0], sizes = [4, 8, 8], strides = [1, 1, 1]} : vector<4x8x32xbf16> to vector<4x8x8xbf16>
    %89 = vector.extract_strided_slice %86 {offsets = [0, 0, 0], sizes = [4, 16, 8], strides = [1, 1, 1]} : vector<4x16x32xbf16> to vector<4x16x8xbf16>
    "tpu.trace_start"() <{level = 10 : i32, message = "bqd,bkd->bqk"}> : () -> ()
    %cst_48 = arith.constant dense<0.000000e+00> : vector<4x8x16xf32>
    %90 = tpu.matmul %88, %89, %cst_48 {dimension_numbers = #tpu.dot_dimension_numbers<[2], [2], [1], [1], [0, 0, 0, 1, 1, 1], [0], [0]>} : vector<4x8x8xbf16>, vector<4x16x8xbf16>, vector<4x8x16xf32> -> vector<4x8x16xf32>
    "tpu.trace_stop"() : () -> ()
    %cst_49 = arith.constant 0.353553385 : f32
    %91 = vector.broadcast %cst_49 : f32 to vector<4x8x16xf32>
    %92 = arith.mulf %90, %91 : vector<4x8x16xf32>
    %93 = vector.broadcast %83 : vector<4x1x16xf32> to vector<4x8x16xf32>
    %94 = arith.addf %92, %93 : vector<4x8x16xf32>
    %cst_50 = arith.constant dense<0xFF800000> : vector<4x8xf32>
    %95 = vector.multi_reduction <maximumf>, %94, %cst_50 [2] : vector<4x8x16xf32> to vector<4x8xf32>
    %96 = vector.shape_cast %95 : vector<4x8xf32> to vector<4x8x1xf32>
    %97 = vector.broadcast %96 : vector<4x8x1xf32> to vector<4x8x16xf32>
    %98 = arith.subf %94, %97 : vector<4x8x16xf32>
    %99 = math.exp %98 : vector<4x8x16xf32>
    %cst_51 = arith.constant dense<0.000000e+00> : vector<4x8xf32>
    %100 = vector.multi_reduction <add>, %99, %cst_51 [2] : vector<4x8x16xf32> to vector<4x8xf32>
    %101 = vector.shape_cast %100 : vector<4x8xf32> to vector<4x8x1xf32>
    %102 = vector.broadcast %101 : vector<4x8x1xf32> to vector<4x8x16xf32>
    %103 = arith.divf %99, %102 : vector<4x8x16xf32>
    %104 = arith.truncf %103 : vector<4x8x16xf32> to vector<4x8x16xbf16>
    %105 = vector.extract_strided_slice %87 {offsets = [0, 0, 0], sizes = [4, 16, 8], strides = [1, 1, 1]} : vector<4x16x32xbf16> to vector<4x16x8xbf16>
    "tpu.trace_start"() <{level = 10 : i32, message = "bqk,bkd->bqd"}> : () -> ()
    %cst_52 = arith.constant dense<0.000000e+00> : vector<4x8x8xf32>
    %106 = tpu.matmul %104, %105, %cst_52 {dimension_numbers = #tpu.dot_dimension_numbers<[2], [1], [1], [2], [0, 0, 0, 1, 1, 2], [0], [0]>} : vector<4x8x16xbf16>, vector<4x16x8xbf16>, vector<4x8x8xf32> -> vector<4x8x8xf32>
    "tpu.trace_stop"() : () -> ()
    %107 = vector.extract_strided_slice %85 {offsets = [0, 0, 8], sizes = [4, 8, 8], strides = [1, 1, 1]} : vector<4x8x32xbf16> to vector<4x8x8xbf16>
    %108 = vector.extract_strided_slice %86 {offsets = [0, 0, 8], sizes = [4, 16, 8], strides = [1, 1, 1]} : vector<4x16x32xbf16> to vector<4x16x8xbf16>
    "tpu.trace_start"() <{level = 10 : i32, message = "bqd,bkd->bqk"}> : () -> ()
    %cst_53 = arith.constant dense<0.000000e+00> : vector<4x8x16xf32>
    %109 = tpu.matmul %107, %108, %cst_53 {dimension_numbers = #tpu.dot_dimension_numbers<[2], [2], [1], [1], [0, 0, 0, 1, 1, 1], [0], [0]>} : vector<4x8x8xbf16>, vector<4x16x8xbf16>, vector<4x8x16xf32> -> vector<4x8x16xf32>
    "tpu.trace_stop"() : () -> ()
    %cst_54 = arith.constant 0.353553385 : f32
    %110 = vector.broadcast %cst_54 : f32 to vector<4x8x16xf32>
    %111 = arith.mulf %109, %110 : vector<4x8x16xf32>
    %112 = vector.broadcast %83 : vector<4x1x16xf32> to vector<4x8x16xf32>
    %113 = arith.addf %111, %112 : vector<4x8x16xf32>
    %cst_55 = arith.constant dense<0xFF800000> : vector<4x8xf32>
    %114 = vector.multi_reduction <maximumf>, %113, %cst_55 [2] : vector<4x8x16xf32> to vector<4x8xf32>
    %115 = vector.shape_cast %114 : vector<4x8xf32> to vector<4x8x1xf32>
    %116 = vector.broadcast %115 : vector<4x8x1xf32> to vector<4x8x16xf32>
    %117 = arith.subf %113, %116 : vector<4x8x16xf32>
    %118 = math.exp %117 : vector<4x8x16xf32>
    %cst_56 = arith.constant dense<0.000000e+00> : vector<4x8xf32>
    %119 = vector.multi_reduction <add>, %118, %cst_56 [2] : vector<4x8x16xf32> to vector<4x8xf32>
    %120 = vector.shape_cast %119 : vector<4x8xf32> to vector<4x8x1xf32>
    %121 = vector.broadcast %120 : vector<4x8x1xf32> to vector<4x8x16xf32>
    %122 = arith.divf %118, %121 : vector<4x8x16xf32>
    %123 = arith.truncf %122 : vector<4x8x16xf32> to vector<4x8x16xbf16>
    %124 = vector.extract_strided_slice %87 {offsets = [0, 0, 8], sizes = [4, 16, 8], strides = [1, 1, 1]} : vector<4x16x32xbf16> to vector<4x16x8xbf16>
    "tpu.trace_start"() <{level = 10 : i32, message = "bqk,bkd->bqd"}> : () -> ()
    %cst_57 = arith.constant dense<0.000000e+00> : vector<4x8x8xf32>
    %125 = tpu.matmul %123, %124, %cst_57 {dimension_numbers = #tpu.dot_dimension_numbers<[2], [1], [1], [2], [0, 0, 0, 1, 1, 2], [0], [0]>} : vector<4x8x16xbf16>, vector<4x16x8xbf16>, vector<4x8x8xf32> -> vector<4x8x8xf32>
    "tpu.trace_stop"() : () -> ()
    %126 = vector.extract_strided_slice %85 {offsets = [0, 0, 16], sizes = [4, 8, 8], strides = [1, 1, 1]} : vector<4x8x32xbf16> to vector<4x8x8xbf16>
    %127 = vector.extract_strided_slice %86 {offsets = [0, 0, 16], sizes = [4, 16, 8], strides = [1, 1, 1]} : vector<4x16x32xbf16> to vector<4x16x8xbf16>
    "tpu.trace_start"() <{level = 10 : i32, message = "bqd,bkd->bqk"}> : () -> ()
    %cst_58 = arith.constant dense<0.000000e+00> : vector<4x8x16xf32>
    %128 = tpu.matmul %126, %127, %cst_58 {dimension_numbers = #tpu.dot_dimension_numbers<[2], [2], [1], [1], [0, 0, 0, 1, 1, 1], [0], [0]>} : vector<4x8x8xbf16>, vector<4x16x8xbf16>, vector<4x8x16xf32> -> vector<4x8x16xf32>
    "tpu.trace_stop"() : () -> ()
    %cst_59 = arith.constant 0.353553385 : f32
    %129 = vector.broadcast %cst_59 : f32 to vector<4x8x16xf32>
    %130 = arith.mulf %128, %129 : vector<4x8x16xf32>
    %131 = vector.broadcast %83 : vector<4x1x16xf32> to vector<4x8x16xf32>
    %132 = arith.addf %130, %131 : vector<4x8x16xf32>
    %cst_60 = arith.constant dense<0xFF800000> : vector<4x8xf32>
    %133 = vector.multi_reduction <maximumf>, %132, %cst_60 [2] : vector<4x8x16xf32> to vector<4x8xf32>
    %134 = vector.shape_cast %133 : vector<4x8xf32> to vector<4x8x1xf32>
    %135 = vector.broadcast %134 : vector<4x8x1xf32> to vector<4x8x16xf32>
    %136 = arith.subf %132, %135 : vector<4x8x16xf32>
    %137 = math.exp %136 : vector<4x8x16xf32>
    %cst_61 = arith.constant dense<0.000000e+00> : vector<4x8xf32>
    %138 = vector.multi_reduction <add>, %137, %cst_61 [2] : vector<4x8x16xf32> to vector<4x8xf32>
    %139 = vector.shape_cast %138 : vector<4x8xf32> to vector<4x8x1xf32>
    %140 = vector.broadcast %139 : vector<4x8x1xf32> to vector<4x8x16xf32>
    %141 = arith.divf %137, %140 : vector<4x8x16xf32>
    %142 = arith.truncf %141 : vector<4x8x16xf32> to vector<4x8x16xbf16>
    %143 = vector.extract_strided_slice %87 {offsets = [0, 0, 16], sizes = [4, 16, 8], strides = [1, 1, 1]} : vector<4x16x32xbf16> to vector<4x16x8xbf16>
    "tpu.trace_start"() <{level = 10 : i32, message = "bqk,bkd->bqd"}> : () -> ()
    %cst_62 = arith.constant dense<0.000000e+00> : vector<4x8x8xf32>
    %144 = tpu.matmul %142, %143, %cst_62 {dimension_numbers = #tpu.dot_dimension_numbers<[2], [1], [1], [2], [0, 0, 0, 1, 1, 2], [0], [0]>} : vector<4x8x16xbf16>, vector<4x16x8xbf16>, vector<4x8x8xf32> -> vector<4x8x8xf32>
    "tpu.trace_stop"() : () -> ()
    %145 = vector.extract_strided_slice %85 {offsets = [0, 0, 24], sizes = [4, 8, 8], strides = [1, 1, 1]} : vector<4x8x32xbf16> to vector<4x8x8xbf16>
    %146 = vector.extract_strided_slice %86 {offsets = [0, 0, 24], sizes = [4, 16, 8], strides = [1, 1, 1]} : vector<4x16x32xbf16> to vector<4x16x8xbf16>
    "tpu.trace_start"() <{level = 10 : i32, message = "bqd,bkd->bqk"}> : () -> ()
    %cst_63 = arith.constant dense<0.000000e+00> : vector<4x8x16xf32>
    %147 = tpu.matmul %145, %146, %cst_63 {dimension_numbers = #tpu.dot_dimension_numbers<[2], [2], [1], [1], [0, 0, 0, 1, 1, 1], [0], [0]>} : vector<4x8x8xbf16>, vector<4x16x8xbf16>, vector<4x8x16xf32> -> vector<4x8x16xf32>
    "tpu.trace_stop"() : () -> ()
    %cst_64 = arith.constant 0.353553385 : f32
    %148 = vector.broadcast %cst_64 : f32 to vector<4x8x16xf32>
    %149 = arith.mulf %147, %148 : vector<4x8x16xf32>
    %150 = vector.broadcast %83 : vector<4x1x16xf32> to vector<4x8x16xf32>
    %151 = arith.addf %149, %150 : vector<4x8x16xf32>
    %cst_65 = arith.constant dense<0xFF800000> : vector<4x8xf32>
    %152 = vector.multi_reduction <maximumf>, %151, %cst_65 [2] : vector<4x8x16xf32> to vector<4x8xf32>
    %153 = vector.shape_cast %152 : vector<4x8xf32> to vector<4x8x1xf32>
    %154 = vector.broadcast %153 : vector<4x8x1xf32> to vector<4x8x16xf32>
    %155 = arith.subf %151, %154 : vector<4x8x16xf32>
    %156 = math.exp %155 : vector<4x8x16xf32>
    %cst_66 = arith.constant dense<0.000000e+00> : vector<4x8xf32>
    %157 = vector.multi_reduction <add>, %156, %cst_66 [2] : vector<4x8x16xf32> to vector<4x8xf32>
    %158 = vector.shape_cast %157 : vector<4x8xf32> to vector<4x8x1xf32>
    %159 = vector.broadcast %158 : vector<4x8x1xf32> to vector<4x8x16xf32>
    %160 = arith.divf %156, %159 : vector<4x8x16xf32>
    %161 = arith.truncf %160 : vector<4x8x16xf32> to vector<4x8x16xbf16>
    %162 = vector.extract_strided_slice %87 {offsets = [0, 0, 24], sizes = [4, 16, 8], strides = [1, 1, 1]} : vector<4x16x32xbf16> to vector<4x16x8xbf16>
    "tpu.trace_start"() <{level = 10 : i32, message = "bqk,bkd->bqd"}> : () -> ()
    %cst_67 = arith.constant dense<0.000000e+00> : vector<4x8x8xf32>
    %163 = tpu.matmul %161, %162, %cst_67 {dimension_numbers = #tpu.dot_dimension_numbers<[2], [1], [1], [2], [0, 0, 0, 1, 1, 2], [0], [0]>} : vector<4x8x16xbf16>, vector<4x16x8xbf16>, vector<4x8x8xf32> -> vector<4x8x8xf32>
    "tpu.trace_stop"() : () -> ()
    %164 = tpu.concatenate %106, %125, %144, %163 in 2 : vector<4x8x8xf32>, vector<4x8x8xf32>, vector<4x8x8xf32>, vector<4x8x8xf32> -> vector<4x8x32xf32>
    %165 = vector.shape_cast %164 : vector<4x8x32xf32> to vector<2x16x32xf32>
    %166 = arith.truncf %165 : vector<2x16x32xf32> to vector<2x16x32xbf16>
    "tpu.trace_start"() <{level = 10 : i32, message = "pmd,pdn->pmn"}> : () -> ()
    %cst_68 = arith.constant dense<0.000000e+00> : vector<2x16x32xf32>
    %167 = tpu.matmul %166, %84, %cst_68 {dimension_numbers = #tpu.dot_dimension_numbers<[2], [1], [1], [2], [0, 0, 0, 1, 1, 2], [0], [0]>} : vector<2x16x32xbf16>, vector<2x32x32xbf16>, vector<2x16x32xf32> -> vector<2x16x32xf32>
    "tpu.trace_stop"() : () -> ()
    %168 = vector.shape_cast %167 : vector<2x16x32xf32> to vector<4x8x32xf32>
    %169 = vector.extract_strided_slice %0 {offsets = [2, 0], sizes = [1, 32], strides = [1, 1]} : vector<16x256xf32> to vector<1x32xf32>
    %170 = vector.shape_cast %169 : vector<1x32xf32> to vector<1x1x32xf32>
    %171 = vector.shape_cast %170 : vector<1x1x32xf32> to vector<1x1x32xf32>
    %172 = vector.broadcast %171 : vector<1x1x32xf32> to vector<2x1x32xf32>
    %173 = vector.extract_strided_slice %0 {offsets = [2, 32], sizes = [1, 32], strides = [1, 1]} : vector<16x256xf32> to vector<1x32xf32>
    %174 = vector.shape_cast %173 : vector<1x32xf32> to vector<1x1x32xf32>
    %175 = vector.shape_cast %174 : vector<1x1x32xf32> to vector<1x1x32xf32>
    %176 = vector.broadcast %175 : vector<1x1x32xf32> to vector<2x1x32xf32>
    %177 = tpu.concatenate %172, %176 in 0 : vector<2x1x32xf32>, vector<2x1x32xf32> -> vector<4x1x32xf32>
    %178 = vector.broadcast %177 : vector<4x1x32xf32> to vector<4x8x32xf32>
    %179 = arith.addf %168, %178 : vector<4x8x32xf32>
    %180 = vector.extract_strided_slice %60 {offsets = [0, 0], sizes = [32, 32], strides = [1, 1]} : vector<32x224xf32> to vector<32x32xf32>
    %181 = vector.shape_cast %180 : vector<32x32xf32> to vector<2x16x32xf32>
    %182 = vector.extract_strided_slice %60 {offsets = [0, 32], sizes = [32, 32], strides = [1, 1]} : vector<32x224xf32> to vector<32x32xf32>
    %183 = vector.shape_cast %182 : vector<32x32xf32> to vector<2x16x32xf32>
    %184 = tpu.concatenate %181, %183 in 0 : vector<2x16x32xf32>, vector<2x16x32xf32> -> vector<4x16x32xf32>
    %185 = vector.extract_strided_slice %67 {offsets = [0, 32], sizes = [16, 32], strides = [1, 1]} : vector<16x256xf32> to vector<16x32xf32>
    %186 = vector.shape_cast %185 : vector<16x32xf32> to vector<2x8x32xf32>
    %187 = vector.extract_strided_slice %67 {offsets = [0, 160], sizes = [16, 32], strides = [1, 1]} : vector<16x256xf32> to vector<16x32xf32>
    %188 = vector.shape_cast %187 : vector<16x32xf32> to vector<2x8x32xf32>
    %189 = tpu.concatenate %186, %188 in 0 : vector<2x8x32xf32>, vector<2x8x32xf32> -> vector<4x8x32xf32>
    %190 = vector.extract_strided_slice %67 {offsets = [0, 64], sizes = [16, 32], strides = [1, 1]} : vector<16x256xf32> to vector<16x32xf32>
    %191 = vector.shape_cast %190 : vector<16x32xf32> to vector<2x8x32xf32>
    %192 = vector.extract_strided_slice %67 {offsets = [0, 192], sizes = [16, 32], strides = [1, 1]} : vector<16x256xf32> to vector<16x32xf32>
    %193 = vector.shape_cast %192 : vector<16x32xf32> to vector<2x8x32xf32>
    %194 = tpu.concatenate %191, %193 in 0 : vector<2x8x32xf32>, vector<2x8x32xf32> -> vector<4x8x32xf32>
    %195 = tpu.concatenate %49, %54 in 0 : vector<2x1x8xf32>, vector<2x1x8xf32> -> vector<4x1x8xf32>
    %196 = vector.extract_strided_slice %2 {offsets = [2, 0, 0], sizes = [2, 32, 32], strides = [1, 1, 1]} : vector<4x32x32xbf16> to vector<2x32x32xbf16>
    %197 = arith.truncf %184 : vector<4x16x32xf32> to vector<4x16x32xbf16>
    %198 = arith.truncf %189 : vector<4x8x32xf32> to vector<4x8x32xbf16>
    %199 = arith.truncf %194 : vector<4x8x32xf32> to vector<4x8x32xbf16>
    %200 = vector.extract_strided_slice %197 {offsets = [0, 0, 0], sizes = [4, 16, 8], strides = [1, 1, 1]} : vector<4x16x32xbf16> to vector<4x16x8xbf16>
    %201 = vector.extract_strided_slice %198 {offsets = [0, 0, 0], sizes = [4, 8, 8], strides = [1, 1, 1]} : vector<4x8x32xbf16> to vector<4x8x8xbf16>
    "tpu.trace_start"() <{level = 10 : i32, message = "bqd,bkd->bqk"}> : () -> ()
    %cst_69 = arith.constant dense<0.000000e+00> : vector<4x16x8xf32>
    %202 = tpu.matmul %200, %201, %cst_69 {dimension_numbers = #tpu.dot_dimension_numbers<[2], [2], [1], [1], [0, 0, 0, 1, 1, 1], [0], [0]>} : vector<4x16x8xbf16>, vector<4x8x8xbf16>, vector<4x16x8xf32> -> vector<4x16x8xf32>
    "tpu.trace_stop"() : () -> ()
    %cst_70 = arith.constant 0.353553385 : f32
    %203 = vector.broadcast %cst_70 : f32 to vector<4x16x8xf32>
    %204 = arith.mulf %202, %203 : vector<4x16x8xf32>
    %205 = vector.broadcast %195 : vector<4x1x8xf32> to vector<4x16x8xf32>
    %206 = arith.addf %204, %205 : vector<4x16x8xf32>
    %cst_71 = arith.constant dense<0xFF800000> : vector<4x16xf32>
    %207 = vector.multi_reduction <maximumf>, %206, %cst_71 [2] : vector<4x16x8xf32> to vector<4x16xf32>
    %208 = vector.shape_cast %207 : vector<4x16xf32> to vector<4x16x1xf32>
    %209 = vector.broadcast %208 : vector<4x16x1xf32> to vector<4x16x8xf32>
    %210 = arith.subf %206, %209 : vector<4x16x8xf32>
    %211 = math.exp %210 : vector<4x16x8xf32>
    %cst_72 = arith.constant dense<0.000000e+00> : vector<4x16xf32>
    %212 = vector.multi_reduction <add>, %211, %cst_72 [2] : vector<4x16x8xf32> to vector<4x16xf32>
    %213 = vector.shape_cast %212 : vector<4x16xf32> to vector<4x16x1xf32>
    %214 = vector.broadcast %213 : vector<4x16x1xf32> to vector<4x16x8xf32>
    %215 = arith.divf %211, %214 : vector<4x16x8xf32>
    %216 = arith.truncf %215 : vector<4x16x8xf32> to vector<4x16x8xbf16>
    %217 = vector.extract_strided_slice %199 {offsets = [0, 0, 0], sizes = [4, 8, 8], strides = [1, 1, 1]} : vector<4x8x32xbf16> to vector<4x8x8xbf16>
    "tpu.trace_start"() <{level = 10 : i32, message = "bqk,bkd->bqd"}> : () -> ()
    %cst_73 = arith.constant dense<0.000000e+00> : vector<4x16x8xf32>
    %218 = tpu.matmul %216, %217, %cst_73 {dimension_numbers = #tpu.dot_dimension_numbers<[2], [1], [1], [2], [0, 0, 0, 1, 1, 2], [0], [0]>} : vector<4x16x8xbf16>, vector<4x8x8xbf16>, vector<4x16x8xf32> -> vector<4x16x8xf32>
    "tpu.trace_stop"() : () -> ()
    %219 = vector.extract_strided_slice %197 {offsets = [0, 0, 8], sizes = [4, 16, 8], strides = [1, 1, 1]} : vector<4x16x32xbf16> to vector<4x16x8xbf16>
    %220 = vector.extract_strided_slice %198 {offsets = [0, 0, 8], sizes = [4, 8, 8], strides = [1, 1, 1]} : vector<4x8x32xbf16> to vector<4x8x8xbf16>
    "tpu.trace_start"() <{level = 10 : i32, message = "bqd,bkd->bqk"}> : () -> ()
    %cst_74 = arith.constant dense<0.000000e+00> : vector<4x16x8xf32>
    %221 = tpu.matmul %219, %220, %cst_74 {dimension_numbers = #tpu.dot_dimension_numbers<[2], [2], [1], [1], [0, 0, 0, 1, 1, 1], [0], [0]>} : vector<4x16x8xbf16>, vector<4x8x8xbf16>, vector<4x16x8xf32> -> vector<4x16x8xf32>
    "tpu.trace_stop"() : () -> ()
    %cst_75 = arith.constant 0.353553385 : f32
    %222 = vector.broadcast %cst_75 : f32 to vector<4x16x8xf32>
    %223 = arith.mulf %221, %222 : vector<4x16x8xf32>
    %224 = vector.broadcast %195 : vector<4x1x8xf32> to vector<4x16x8xf32>
    %225 = arith.addf %223, %224 : vector<4x16x8xf32>
    %cst_76 = arith.constant dense<0xFF800000> : vector<4x16xf32>
    %226 = vector.multi_reduction <maximumf>, %225, %cst_76 [2] : vector<4x16x8xf32> to vector<4x16xf32>
    %227 = vector.shape_cast %226 : vector<4x16xf32> to vector<4x16x1xf32>
    %228 = vector.broadcast %227 : vector<4x16x1xf32> to vector<4x16x8xf32>
    %229 = arith.subf %225, %228 : vector<4x16x8xf32>
    %230 = math.exp %229 : vector<4x16x8xf32>
    %cst_77 = arith.constant dense<0.000000e+00> : vector<4x16xf32>
    %231 = vector.multi_reduction <add>, %230, %cst_77 [2] : vector<4x16x8xf32> to vector<4x16xf32>
    %232 = vector.shape_cast %231 : vector<4x16xf32> to vector<4x16x1xf32>
    %233 = vector.broadcast %232 : vector<4x16x1xf32> to vector<4x16x8xf32>
    %234 = arith.divf %230, %233 : vector<4x16x8xf32>
    %235 = arith.truncf %234 : vector<4x16x8xf32> to vector<4x16x8xbf16>
    %236 = vector.extract_strided_slice %199 {offsets = [0, 0, 8], sizes = [4, 8, 8], strides = [1, 1, 1]} : vector<4x8x32xbf16> to vector<4x8x8xbf16>
    "tpu.trace_start"() <{level = 10 : i32, message = "bqk,bkd->bqd"}> : () -> ()
    %cst_78 = arith.constant dense<0.000000e+00> : vector<4x16x8xf32>
    %237 = tpu.matmul %235, %236, %cst_78 {dimension_numbers = #tpu.dot_dimension_numbers<[2], [1], [1], [2], [0, 0, 0, 1, 1, 2], [0], [0]>} : vector<4x16x8xbf16>, vector<4x8x8xbf16>, vector<4x16x8xf32> -> vector<4x16x8xf32>
    "tpu.trace_stop"() : () -> ()
    %238 = vector.extract_strided_slice %197 {offsets = [0, 0, 16], sizes = [4, 16, 8], strides = [1, 1, 1]} : vector<4x16x32xbf16> to vector<4x16x8xbf16>
    %239 = vector.extract_strided_slice %198 {offsets = [0, 0, 16], sizes = [4, 8, 8], strides = [1, 1, 1]} : vector<4x8x32xbf16> to vector<4x8x8xbf16>
    "tpu.trace_start"() <{level = 10 : i32, message = "bqd,bkd->bqk"}> : () -> ()
    %cst_79 = arith.constant dense<0.000000e+00> : vector<4x16x8xf32>
    %240 = tpu.matmul %238, %239, %cst_79 {dimension_numbers = #tpu.dot_dimension_numbers<[2], [2], [1], [1], [0, 0, 0, 1, 1, 1], [0], [0]>} : vector<4x16x8xbf16>, vector<4x8x8xbf16>, vector<4x16x8xf32> -> vector<4x16x8xf32>
    "tpu.trace_stop"() : () -> ()
    %cst_80 = arith.constant 0.353553385 : f32
    %241 = vector.broadcast %cst_80 : f32 to vector<4x16x8xf32>
    %242 = arith.mulf %240, %241 : vector<4x16x8xf32>
    %243 = vector.broadcast %195 : vector<4x1x8xf32> to vector<4x16x8xf32>
    %244 = arith.addf %242, %243 : vector<4x16x8xf32>
    %cst_81 = arith.constant dense<0xFF800000> : vector<4x16xf32>
    %245 = vector.multi_reduction <maximumf>, %244, %cst_81 [2] : vector<4x16x8xf32> to vector<4x16xf32>
    %246 = vector.shape_cast %245 : vector<4x16xf32> to vector<4x16x1xf32>
    %247 = vector.broadcast %246 : vector<4x16x1xf32> to vector<4x16x8xf32>
    %248 = arith.subf %244, %247 : vector<4x16x8xf32>
    %249 = math.exp %248 : vector<4x16x8xf32>
    %cst_82 = arith.constant dense<0.000000e+00> : vector<4x16xf32>
    %250 = vector.multi_reduction <add>, %249, %cst_82 [2] : vector<4x16x8xf32> to vector<4x16xf32>
    %251 = vector.shape_cast %250 : vector<4x16xf32> to vector<4x16x1xf32>
    %252 = vector.broadcast %251 : vector<4x16x1xf32> to vector<4x16x8xf32>
    %253 = arith.divf %249, %252 : vector<4x16x8xf32>
    %254 = arith.truncf %253 : vector<4x16x8xf32> to vector<4x16x8xbf16>
    %255 = vector.extract_strided_slice %199 {offsets = [0, 0, 16], sizes = [4, 8, 8], strides = [1, 1, 1]} : vector<4x8x32xbf16> to vector<4x8x8xbf16>
    "tpu.trace_start"() <{level = 10 : i32, message = "bqk,bkd->bqd"}> : () -> ()
    %cst_83 = arith.constant dense<0.000000e+00> : vector<4x16x8xf32>
    %256 = tpu.matmul %254, %255, %cst_83 {dimension_numbers = #tpu.dot_dimension_numbers<[2], [1], [1], [2], [0, 0, 0, 1, 1, 2], [0], [0]>} : vector<4x16x8xbf16>, vector<4x8x8xbf16>, vector<4x16x8xf32> -> vector<4x16x8xf32>
    "tpu.trace_stop"() : () -> ()
    %257 = vector.extract_strided_slice %197 {offsets = [0, 0, 24], sizes = [4, 16, 8], strides = [1, 1, 1]} : vector<4x16x32xbf16> to vector<4x16x8xbf16>
    %258 = vector.extract_strided_slice %198 {offsets = [0, 0, 24], sizes = [4, 8, 8], strides = [1, 1, 1]} : vector<4x8x32xbf16> to vector<4x8x8xbf16>
    "tpu.trace_start"() <{level = 10 : i32, message = "bqd,bkd->bqk"}> : () -> ()
    %cst_84 = arith.constant dense<0.000000e+00> : vector<4x16x8xf32>
    %259 = tpu.matmul %257, %258, %cst_84 {dimension_numbers = #tpu.dot_dimension_numbers<[2], [2], [1], [1], [0, 0, 0, 1, 1, 1], [0], [0]>} : vector<4x16x8xbf16>, vector<4x8x8xbf16>, vector<4x16x8xf32> -> vector<4x16x8xf32>
    "tpu.trace_stop"() : () -> ()
    %cst_85 = arith.constant 0.353553385 : f32
    %260 = vector.broadcast %cst_85 : f32 to vector<4x16x8xf32>
    %261 = arith.mulf %259, %260 : vector<4x16x8xf32>
    %262 = vector.broadcast %195 : vector<4x1x8xf32> to vector<4x16x8xf32>
    %263 = arith.addf %261, %262 : vector<4x16x8xf32>
    %cst_86 = arith.constant dense<0xFF800000> : vector<4x16xf32>
    %264 = vector.multi_reduction <maximumf>, %263, %cst_86 [2] : vector<4x16x8xf32> to vector<4x16xf32>
    %265 = vector.shape_cast %264 : vector<4x16xf32> to vector<4x16x1xf32>
    %266 = vector.broadcast %265 : vector<4x16x1xf32> to vector<4x16x8xf32>
    %267 = arith.subf %263, %266 : vector<4x16x8xf32>
    %268 = math.exp %267 : vector<4x16x8xf32>
    %cst_87 = arith.constant dense<0.000000e+00> : vector<4x16xf32>
    %269 = vector.multi_reduction <add>, %268, %cst_87 [2] : vector<4x16x8xf32> to vector<4x16xf32>
    %270 = vector.shape_cast %269 : vector<4x16xf32> to vector<4x16x1xf32>
    %271 = vector.broadcast %270 : vector<4x16x1xf32> to vector<4x16x8xf32>
    %272 = arith.divf %268, %271 : vector<4x16x8xf32>
    %273 = arith.truncf %272 : vector<4x16x8xf32> to vector<4x16x8xbf16>
    %274 = vector.extract_strided_slice %199 {offsets = [0, 0, 24], sizes = [4, 8, 8], strides = [1, 1, 1]} : vector<4x8x32xbf16> to vector<4x8x8xbf16>
    "tpu.trace_start"() <{level = 10 : i32, message = "bqk,bkd->bqd"}> : () -> ()
    %cst_88 = arith.constant dense<0.000000e+00> : vector<4x16x8xf32>
    %275 = tpu.matmul %273, %274, %cst_88 {dimension_numbers = #tpu.dot_dimension_numbers<[2], [1], [1], [2], [0, 0, 0, 1, 1, 2], [0], [0]>} : vector<4x16x8xbf16>, vector<4x8x8xbf16>, vector<4x16x8xf32> -> vector<4x16x8xf32>
    "tpu.trace_stop"() : () -> ()
    %276 = tpu.concatenate %218, %237, %256, %275 in 2 : vector<4x16x8xf32>, vector<4x16x8xf32>, vector<4x16x8xf32>, vector<4x16x8xf32> -> vector<4x16x32xf32>
    %277 = vector.shape_cast %276 : vector<4x16x32xf32> to vector<2x32x32xf32>
    %278 = arith.truncf %277 : vector<2x32x32xf32> to vector<2x32x32xbf16>
    "tpu.trace_start"() <{level = 10 : i32, message = "pmd,pdn->pmn"}> : () -> ()
    %cst_89 = arith.constant dense<0.000000e+00> : vector<2x32x32xf32>
    %279 = tpu.matmul %278, %196, %cst_89 {dimension_numbers = #tpu.dot_dimension_numbers<[2], [1], [1], [2], [0, 0, 0, 1, 1, 2], [0], [0]>} : vector<2x32x32xbf16>, vector<2x32x32xbf16>, vector<2x32x32xf32> -> vector<2x32x32xf32>
    "tpu.trace_stop"() : () -> ()
    %280 = vector.shape_cast %279 : vector<2x32x32xf32> to vector<4x16x32xf32>
    %281 = vector.extract_strided_slice %0 {offsets = [3, 0], sizes = [1, 32], strides = [1, 1]} : vector<16x256xf32> to vector<1x32xf32>
    %282 = vector.shape_cast %281 : vector<1x32xf32> to vector<1x1x32xf32>
    %283 = vector.shape_cast %282 : vector<1x1x32xf32> to vector<1x1x32xf32>
    %284 = vector.broadcast %283 : vector<1x1x32xf32> to vector<2x1x32xf32>
    %285 = vector.extract_strided_slice %0 {offsets = [3, 32], sizes = [1, 32], strides = [1, 1]} : vector<16x256xf32> to vector<1x32xf32>
    %286 = vector.shape_cast %285 : vector<1x32xf32> to vector<1x1x32xf32>
    %287 = vector.shape_cast %286 : vector<1x1x32xf32> to vector<1x1x32xf32>
    %288 = vector.broadcast %287 : vector<1x1x32xf32> to vector<2x1x32xf32>
    %289 = tpu.concatenate %284, %288 in 0 : vector<2x1x32xf32>, vector<2x1x32xf32> -> vector<4x1x32xf32>
    %290 = vector.broadcast %289 : vector<4x1x32xf32> to vector<4x16x32xf32>
    %291 = arith.addf %280, %290 : vector<4x16x32xf32>
    %292 = tpu.concatenate %38, %39 in 0 : vector<2x1x8xf32>, vector<2x1x8xf32> -> vector<4x1x8xf32>
    %293 = tpu.concatenate %37, %37 in 0 : vector<2x1x16xf32>, vector<2x1x16xf32> -> vector<4x1x16xf32>
    %294 = arith.truncf %292 : vector<4x1x8xf32> to vector<4x1x8xbf16>
    %295 = arith.truncf %179 : vector<4x8x32xf32> to vector<4x8x32xbf16>
    "tpu.trace_start"() <{level = 10 : i32, message = "bql,bld->bqd"}> : () -> ()
    %cst_90 = arith.constant dense<0.000000e+00> : vector<4x1x32xf32>
    %296 = tpu.matmul %294, %295, %cst_90 {dimension_numbers = #tpu.dot_dimension_numbers<[2], [1], [1], [2], [0, 0, 0, 1, 1, 2], [0], [0]>} : vector<4x1x8xbf16>, vector<4x8x32xbf16>, vector<4x1x32xf32> -> vector<4x1x32xf32>
    "tpu.trace_stop"() : () -> ()
    %cst_91 = arith.constant dense<0.000000e+00> : vector<4x1xf32>
    %297 = vector.multi_reduction <add>, %292, %cst_91 [2] : vector<4x1x8xf32> to vector<4x1xf32>
    %298 = vector.shape_cast %297 : vector<4x1xf32> to vector<4x1x1xf32>
    %299 = vector.broadcast %298 : vector<4x1x1xf32> to vector<4x1x32xf32>
    %300 = arith.divf %296, %299 : vector<4x1x32xf32>
    %301 = vector.shape_cast %300 : vector<4x1x32xf32> to vector<4x32xf32>
    %302 = arith.truncf %293 : vector<4x1x16xf32> to vector<4x1x16xbf16>
    %303 = arith.truncf %291 : vector<4x16x32xf32> to vector<4x16x32xbf16>
    "tpu.trace_start"() <{level = 10 : i32, message = "bql,bld->bqd"}> : () -> ()
    %cst_92 = arith.constant dense<0.000000e+00> : vector<4x1x32xf32>
    %304 = tpu.matmul %302, %303, %cst_92 {dimension_numbers = #tpu.dot_dimension_numbers<[2], [1], [1], [2], [0, 0, 0, 1, 1, 2], [0], [0]>} : vector<4x1x16xbf16>, vector<4x16x32xbf16>, vector<4x1x32xf32> -> vector<4x1x32xf32>
    "tpu.trace_stop"() : () -> ()
    %cst_93 = arith.constant dense<0.000000e+00> : vector<4x1xf32>
    %305 = vector.multi_reduction <add>, %293, %cst_93 [2] : vector<4x1x16xf32> to vector<4x1xf32>
    %306 = vector.shape_cast %305 : vector<4x1xf32> to vector<4x1x1xf32>
    %307 = vector.broadcast %306 : vector<4x1x1xf32> to vector<4x1x32xf32>
    %308 = arith.divf %304, %307 : vector<4x1x32xf32>
    %309 = vector.shape_cast %308 : vector<4x1x32xf32> to vector<4x32xf32>
    %310 = vector.extract_strided_slice %301 {offsets = [0, 0], sizes = [2, 32], strides = [1, 1]} : vector<4x32xf32> to vector<2x32xf32>
    %311 = vector.extract_strided_slice %301 {offsets = [2, 0], sizes = [2, 32], strides = [1, 1]} : vector<4x32xf32> to vector<2x32xf32>
    %312 = vector.extract_strided_slice %309 {offsets = [0, 0], sizes = [2, 32], strides = [1, 1]} : vector<4x32xf32> to vector<2x32xf32>
    %313 = vector.extract_strided_slice %309 {offsets = [2, 0], sizes = [2, 32], strides = [1, 1]} : vector<4x32xf32> to vector<2x32xf32>
    %314 = vector.extract_strided_slice %67 {offsets = [0, 96], sizes = [16, 32], strides = [1, 1]} : vector<16x256xf32> to vector<16x32xf32>
    %315 = math.tanh %314 : vector<16x32xf32>
    %316 = vector.shape_cast %315 : vector<16x32xf32> to vector<2x8x32xf32>
    %317 = vector.extract_strided_slice %67 {offsets = [0, 224], sizes = [16, 32], strides = [1, 1]} : vector<16x256xf32> to vector<16x32xf32>
    %318 = math.tanh %317 : vector<16x32xf32>
    %319 = vector.shape_cast %318 : vector<16x32xf32> to vector<2x8x32xf32>
    %320 = tpu.concatenate %316, %319 in 0 : vector<2x8x32xf32>, vector<2x8x32xf32> -> vector<4x8x32xf32>
    %321 = vector.shape_cast %35 : vector<16x32xf32> to vector<2x8x32xf32>
    %322 = vector.shape_cast %36 : vector<16x32xf32> to vector<2x8x32xf32>
    %323 = tpu.concatenate %321, %322 in 0 : vector<2x8x32xf32>, vector<2x8x32xf32> -> vector<4x8x32xf32>
    %324 = vector.extract_strided_slice %0 {offsets = [4, 0], sizes = [1, 32], strides = [1, 1]} : vector<16x256xf32> to vector<1x32xf32>
    %325 = vector.shape_cast %324 : vector<1x32xf32> to vector<1x1x32xf32>
    %326 = vector.shape_cast %325 : vector<1x1x32xf32> to vector<1x1x32xf32>
    %327 = vector.broadcast %326 : vector<1x1x32xf32> to vector<2x1x32xf32>
    %328 = vector.extract_strided_slice %0 {offsets = [4, 32], sizes = [1, 32], strides = [1, 1]} : vector<16x256xf32> to vector<1x32xf32>
    %329 = vector.shape_cast %328 : vector<1x32xf32> to vector<1x1x32xf32>
    %330 = vector.shape_cast %329 : vector<1x1x32xf32> to vector<1x1x32xf32>
    %331 = vector.broadcast %330 : vector<1x1x32xf32> to vector<2x1x32xf32>
    %332 = tpu.concatenate %327, %331 in 0 : vector<2x1x32xf32>, vector<2x1x32xf32> -> vector<4x1x32xf32>
    %333 = vector.extract_strided_slice %0 {offsets = [5, 0], sizes = [1, 1], strides = [1, 1]} : vector<16x256xf32> to vector<1x1xf32>
    %334 = vector.shape_cast %333 : vector<1x1xf32> to vector<1x1x1xf32>
    %335 = vector.shape_cast %334 : vector<1x1x1xf32> to vector<1x1x1xf32>
    %336 = vector.broadcast %335 : vector<1x1x1xf32> to vector<2x1x1xf32>
    %337 = vector.extract_strided_slice %0 {offsets = [5, 1], sizes = [1, 1], strides = [1, 1]} : vector<16x256xf32> to vector<1x1xf32>
    %338 = vector.shape_cast %337 : vector<1x1xf32> to vector<1x1x1xf32>
    %339 = vector.shape_cast %338 : vector<1x1x1xf32> to vector<1x1x1xf32>
    %340 = vector.broadcast %339 : vector<1x1x1xf32> to vector<2x1x1xf32>
    %341 = tpu.concatenate %336, %340 in 0 : vector<2x1x1xf32>, vector<2x1x1xf32> -> vector<4x1x1xf32>
    %342 = arith.truncf %332 : vector<4x1x32xf32> to vector<4x1x32xbf16>
    %343 = arith.truncf %320 : vector<4x8x32xf32> to vector<4x8x32xbf16>
    "tpu.trace_start"() <{level = 10 : i32, message = "bqd,bkd->bqk"}> : () -> ()
    %cst_94 = arith.constant dense<0.000000e+00> : vector<4x1x8xf32>
    %344 = tpu.matmul %342, %343, %cst_94 {dimension_numbers = #tpu.dot_dimension_numbers<[2], [2], [1], [1], [0, 0, 0, 1, 1, 1], [0], [0]>} : vector<4x1x32xbf16>, vector<4x8x32xbf16>, vector<4x1x8xf32> -> vector<4x1x8xf32>
    "tpu.trace_stop"() : () -> ()
    %345 = vector.broadcast %341 : vector<4x1x1xf32> to vector<4x1x8xf32>
    %346 = arith.addf %344, %345 : vector<4x1x8xf32>
    %cst_95 = arith.constant dense<0xFF800000> : vector<4x1xf32>
    %347 = vector.multi_reduction <maximumf>, %346, %cst_95 [2] : vector<4x1x8xf32> to vector<4x1xf32>
    %348 = vector.shape_cast %347 : vector<4x1xf32> to vector<4x1x1xf32>
    %349 = vector.broadcast %348 : vector<4x1x1xf32> to vector<4x1x8xf32>
    %350 = arith.subf %346, %349 : vector<4x1x8xf32>
    %351 = math.exp %350 : vector<4x1x8xf32>
    %352 = arith.mulf %351, %292 : vector<4x1x8xf32>
    %cst_96 = arith.constant dense<0.000000e+00> : vector<4x1xf32>
    %353 = vector.multi_reduction <add>, %352, %cst_96 [2] : vector<4x1x8xf32> to vector<4x1xf32>
    %354 = vector.shape_cast %353 : vector<4x1xf32> to vector<4x1x1xf32>
    %cst_97 = arith.constant 9.99999993E-9 : f32
    %355 = vector.broadcast %cst_97 : f32 to vector<4x1x1xf32>
    %356 = arith.addf %354, %355 : vector<4x1x1xf32>
    %357 = vector.broadcast %356 : vector<4x1x1xf32> to vector<4x1x8xf32>
    %358 = arith.divf %352, %357 : vector<4x1x8xf32>
    %359 = arith.truncf %358 : vector<4x1x8xf32> to vector<4x1x8xbf16>
    %360 = arith.truncf %323 : vector<4x8x32xf32> to vector<4x8x32xbf16>
    "tpu.trace_start"() <{level = 10 : i32, message = "bql,bld->bqd"}> : () -> ()
    %cst_98 = arith.constant dense<0.000000e+00> : vector<4x1x32xf32>
    %361 = tpu.matmul %359, %360, %cst_98 {dimension_numbers = #tpu.dot_dimension_numbers<[2], [1], [1], [2], [0, 0, 0, 1, 1, 2], [0], [0]>} : vector<4x1x8xbf16>, vector<4x8x32xbf16>, vector<4x1x32xf32> -> vector<4x1x32xf32>
    "tpu.trace_stop"() : () -> ()
    %362 = vector.shape_cast %361 : vector<4x1x32xf32> to vector<4x32xf32>
    %363 = vector.extract_strided_slice %362 {offsets = [0, 0], sizes = [2, 32], strides = [1, 1]} : vector<4x32xf32> to vector<2x32xf32>
    %364 = vector.extract_strided_slice %362 {offsets = [2, 0], sizes = [2, 32], strides = [1, 1]} : vector<4x32xf32> to vector<2x32xf32>
    %365 = vector.extract_strided_slice %60 {offsets = [0, 192], sizes = [32, 32], strides = [1, 1]} : vector<32x224xf32> to vector<32x32xf32>
    %366 = math.tanh %365 : vector<32x32xf32>
    %367 = vector.shape_cast %366 : vector<32x32xf32> to vector<2x16x32xf32>
    %368 = vector.extract_strided_slice %0 {offsets = [4, 64], sizes = [1, 32], strides = [1, 1]} : vector<16x256xf32> to vector<1x32xf32>
    %369 = vector.shape_cast %368 : vector<1x32xf32> to vector<1x1x32xf32>
    %370 = vector.shape_cast %369 : vector<1x1x32xf32> to vector<1x1x32xf32>
    %371 = vector.broadcast %370 : vector<1x1x32xf32> to vector<2x1x32xf32>
    %372 = vector.shape_cast %14 : vector<32x32xf32> to vector<2x16x32xf32>
    %373 = vector.extract_strided_slice %0 {offsets = [5, 2], sizes = [1, 1], strides = [1, 1]} : vector<16x256xf32> to vector<1x1xf32>
    %374 = arith.truncf %371 : vector<2x1x32xf32> to vector<2x1x32xbf16>
    %375 = arith.truncf %367 : vector<2x16x32xf32> to vector<2x16x32xbf16>
    "tpu.trace_start"() <{level = 10 : i32, message = "bqd,bkd->bqk"}> : () -> ()
    %cst_99 = arith.constant dense<0.000000e+00> : vector<2x1x16xf32>
    %376 = tpu.matmul %374, %375, %cst_99 {dimension_numbers = #tpu.dot_dimension_numbers<[2], [2], [1], [1], [0, 0, 0, 1, 1, 1], [0], [0]>} : vector<2x1x32xbf16>, vector<2x16x32xbf16>, vector<2x1x16xf32> -> vector<2x1x16xf32>
    "tpu.trace_stop"() : () -> ()
    %377 = vector.shape_cast %373 : vector<1x1xf32> to vector<1x1x1xf32>
    %378 = vector.broadcast %377 : vector<1x1x1xf32> to vector<2x1x16xf32>
    %379 = arith.addf %376, %378 : vector<2x1x16xf32>
    %cst_100 = arith.constant dense<0xFF800000> : vector<2x1xf32>
    %380 = vector.multi_reduction <maximumf>, %379, %cst_100 [2] : vector<2x1x16xf32> to vector<2x1xf32>
    %381 = vector.shape_cast %380 : vector<2x1xf32> to vector<2x1x1xf32>
    %382 = vector.broadcast %381 : vector<2x1x1xf32> to vector<2x1x16xf32>
    %383 = arith.subf %379, %382 : vector<2x1x16xf32>
    %384 = math.exp %383 : vector<2x1x16xf32>
    %385 = arith.mulf %384, %37 : vector<2x1x16xf32>
    %cst_101 = arith.constant dense<0.000000e+00> : vector<2x1xf32>
    %386 = vector.multi_reduction <add>, %385, %cst_101 [2] : vector<2x1x16xf32> to vector<2x1xf32>
    %387 = vector.shape_cast %386 : vector<2x1xf32> to vector<2x1x1xf32>
    %cst_102 = arith.constant 9.99999993E-9 : f32
    %388 = vector.broadcast %cst_102 : f32 to vector<2x1x1xf32>
    %389 = arith.addf %387, %388 : vector<2x1x1xf32>
    %390 = vector.broadcast %389 : vector<2x1x1xf32> to vector<2x1x16xf32>
    %391 = arith.divf %385, %390 : vector<2x1x16xf32>
    %392 = arith.truncf %391 : vector<2x1x16xf32> to vector<2x1x16xbf16>
    %393 = arith.truncf %372 : vector<2x16x32xf32> to vector<2x16x32xbf16>
    "tpu.trace_start"() <{level = 10 : i32, message = "bql,bld->bqd"}> : () -> ()
    %cst_103 = arith.constant dense<0.000000e+00> : vector<2x1x32xf32>
    %394 = tpu.matmul %392, %393, %cst_103 {dimension_numbers = #tpu.dot_dimension_numbers<[2], [1], [1], [2], [0, 0, 0, 1, 1, 2], [0], [0]>} : vector<2x1x16xbf16>, vector<2x16x32xbf16>, vector<2x1x32xf32> -> vector<2x1x32xf32>
    "tpu.trace_stop"() : () -> ()
    %395 = vector.shape_cast %394 : vector<2x1x32xf32> to vector<2x32xf32>
    %396 = tpu.concatenate %312, %313, %363, %364 in 1 : vector<2x32xf32>, vector<2x32xf32>, vector<2x32xf32>, vector<2x32xf32> -> vector<2x128xf32>
    %397 = arith.truncf %396 : vector<2x128xf32> to vector<2x128xbf16>
    %c0_104 = arith.constant 0 : index
    %c0_105 = arith.constant 0 : index
    %398 = vector.load %arg10[%c0_104, %c0_105] : memref<128x192xbf16, #tpu.memory_space<vmem>>, vector<128x192xbf16>
    %cst_106 = arith.constant dense<0.000000e+00> : vector<2x192xf32>
    %399 = tpu.matmul %397, %398, %cst_106 {dimension_numbers = #tpu.dot_dimension_numbers<[1], [0], [0], [1], [0, 0, 1, 1], [], []>} : vector<2x128xbf16>, vector<128x192xbf16>, vector<2x192xf32> -> vector<2x192xf32>
    %400 = vector.extract_strided_slice %0 {offsets = [6, 0], sizes = [1, 192], strides = [1, 1]} : vector<16x256xf32> to vector<1x192xf32>
    %401 = vector.broadcast %400 : vector<1x192xf32> to vector<2x192xf32>
    %402 = arith.addf %399, %401 : vector<2x192xf32>
    %403 = vector.extract_strided_slice %402 {offsets = [0, 0], sizes = [2, 32], strides = [1, 1]} : vector<2x192xf32> to vector<2x32xf32>
    %cst_107 = arith.constant 0.000000e+00 : f32
    %404 = vector.broadcast %cst_107 : f32 to vector<2x32xf32>
    %405 = arith.maximumf %403, %404 : vector<2x32xf32>
    %406 = vector.extract_strided_slice %402 {offsets = [0, 32], sizes = [2, 32], strides = [1, 1]} : vector<2x192xf32> to vector<2x32xf32>
    %407 = vector.extract_strided_slice %402 {offsets = [0, 64], sizes = [2, 32], strides = [1, 1]} : vector<2x192xf32> to vector<2x32xf32>
    %cst_108 = arith.constant 0.000000e+00 : f32
    %408 = vector.broadcast %cst_108 : f32 to vector<2x32xf32>
    %409 = arith.maximumf %407, %408 : vector<2x32xf32>
    %410 = vector.extract_strided_slice %402 {offsets = [0, 96], sizes = [2, 32], strides = [1, 1]} : vector<2x192xf32> to vector<2x32xf32>
    %411 = vector.extract_strided_slice %402 {offsets = [0, 128], sizes = [2, 32], strides = [1, 1]} : vector<2x192xf32> to vector<2x32xf32>
    %cst_109 = arith.constant 0.000000e+00 : f32
    %412 = vector.broadcast %cst_109 : f32 to vector<2x32xf32>
    %413 = arith.maximumf %411, %412 : vector<2x32xf32>
    %414 = vector.extract_strided_slice %402 {offsets = [0, 160], sizes = [2, 32], strides = [1, 1]} : vector<2x192xf32> to vector<2x32xf32>
    %cst_110 = arith.constant 0.000000e+00 : f32
    %415 = vector.broadcast %cst_110 : f32 to vector<2x32xf32>
    %416 = arith.maximumf %414, %415 : vector<2x32xf32>
    %417 = vector.extract_strided_slice %0 {offsets = [7, 0], sizes = [1, 256], strides = [1, 1]} : vector<16x256xf32> to vector<1x256xf32>
    %418 = vector.extract_strided_slice %417 {offsets = [0, 0], sizes = [1, 32], strides = [1, 1]} : vector<1x256xf32> to vector<1x32xf32>
    %419 = vector.broadcast %418 : vector<1x32xf32> to vector<2x32xf32>
    %420 = arith.mulf %405, %419 : vector<2x32xf32>
    %cst_111 = arith.constant dense<0.000000e+00> : vector<2xf32>
    %421 = vector.multi_reduction <add>, %420, %cst_111 [1] : vector<2x32xf32> to vector<2xf32>
    %422 = vector.shape_cast %421 : vector<2xf32> to vector<2x1xf32>
    %423 = vector.extract_strided_slice %0 {offsets = [5, 4], sizes = [1, 1], strides = [1, 1]} : vector<16x256xf32> to vector<1x1xf32>
    %424 = vector.broadcast %423 : vector<1x1xf32> to vector<2x1xf32>
    %425 = arith.addf %422, %424 : vector<2x1xf32>
    %426 = arith.negf %425 : vector<2x1xf32>
    %427 = math.exp %426 : vector<2x1xf32>
    %cst_112 = arith.constant 1.000000e+00 : f32
    %428 = vector.broadcast %cst_112 : f32 to vector<2x1xf32>
    %429 = arith.addf %428, %427 : vector<2x1xf32>
    %430 = arith.divf %428, %429 : vector<2x1xf32>
    %431 = vector.extract_strided_slice %417 {offsets = [0, 32], sizes = [1, 32], strides = [1, 1]} : vector<1x256xf32> to vector<1x32xf32>
    %432 = vector.broadcast %431 : vector<1x32xf32> to vector<2x32xf32>
    %433 = arith.mulf %409, %432 : vector<2x32xf32>
    %cst_113 = arith.constant dense<0.000000e+00> : vector<2xf32>
    %434 = vector.multi_reduction <add>, %433, %cst_113 [1] : vector<2x32xf32> to vector<2xf32>
    %435 = vector.shape_cast %434 : vector<2xf32> to vector<2x1xf32>
    %436 = vector.extract_strided_slice %0 {offsets = [5, 5], sizes = [1, 1], strides = [1, 1]} : vector<16x256xf32> to vector<1x1xf32>
    %437 = vector.broadcast %436 : vector<1x1xf32> to vector<2x1xf32>
    %438 = arith.addf %435, %437 : vector<2x1xf32>
    %439 = arith.negf %438 : vector<2x1xf32>
    %440 = math.exp %439 : vector<2x1xf32>
    %cst_114 = arith.constant 1.000000e+00 : f32
    %441 = vector.broadcast %cst_114 : f32 to vector<2x1xf32>
    %442 = arith.addf %441, %440 : vector<2x1xf32>
    %443 = arith.divf %441, %442 : vector<2x1xf32>
    %444 = tpu.concatenate %413, %416 in 1 : vector<2x32xf32>, vector<2x32xf32> -> vector<2x64xf32>
    %445 = arith.truncf %444 : vector<2x64xf32> to vector<2x64xbf16>
    %446 = vector.extract_strided_slice %1 {offsets = [0, 128], sizes = [64, 6], strides = [1, 1]} : vector<64x256xbf16> to vector<64x6xbf16>
    %cst_115 = arith.constant dense<0.000000e+00> : vector<2x6xf32>
    %447 = tpu.matmul %445, %446, %cst_115 {dimension_numbers = #tpu.dot_dimension_numbers<[1], [0], [0], [1], [0, 0, 1, 1], [], []>} : vector<2x64xbf16>, vector<64x6xbf16>, vector<2x6xf32> -> vector<2x6xf32>
    %448 = vector.extract_strided_slice %447 {offsets = [0, 0], sizes = [2, 3], strides = [1, 1]} : vector<2x6xf32> to vector<2x3xf32>
    %449 = vector.extract_strided_slice %0 {offsets = [5, 16], sizes = [1, 3], strides = [1, 1]} : vector<16x256xf32> to vector<1x3xf32>
    %450 = vector.broadcast %449 : vector<1x3xf32> to vector<2x3xf32>
    %451 = arith.addf %448, %450 : vector<2x3xf32>
    %452 = vector.extract_strided_slice %447 {offsets = [0, 3], sizes = [2, 3], strides = [1, 1]} : vector<2x6xf32> to vector<2x3xf32>
    %453 = vector.extract_strided_slice %0 {offsets = [5, 19], sizes = [1, 3], strides = [1, 1]} : vector<16x256xf32> to vector<1x3xf32>
    %454 = vector.broadcast %453 : vector<1x3xf32> to vector<2x3xf32>
    %455 = arith.addf %452, %454 : vector<2x3xf32>
    %456 = vector.extract_strided_slice %0 {offsets = [8, 0], sizes = [1, 256], strides = [1, 1]} : vector<16x256xf32> to vector<1x256xf32>
    %457 = vector.extract_strided_slice %456 {offsets = [0, 0], sizes = [1, 32], strides = [1, 1]} : vector<1x256xf32> to vector<1x32xf32>
    %458 = vector.extract_strided_slice %456 {offsets = [0, 64], sizes = [1, 32], strides = [1, 1]} : vector<1x256xf32> to vector<1x32xf32>
    %cst_116 = arith.constant dense<0.000000e+00> : vector<2xf32>
    %459 = vector.multi_reduction <add>, %406, %cst_116 [1] : vector<2x32xf32> to vector<2xf32>
    %460 = vector.shape_cast %459 : vector<2xf32> to vector<2x1xf32>
    %cst_117 = arith.constant 3.200000e+01 : f32
    %461 = vector.broadcast %cst_117 : f32 to vector<2x1xf32>
    %462 = arith.divf %460, %461 : vector<2x1xf32>
    %463 = vector.broadcast %462 : vector<2x1xf32> to vector<2x32xf32>
    %464 = arith.subf %406, %463 : vector<2x32xf32>
    %465 = arith.mulf %464, %464 : vector<2x32xf32>
    %cst_118 = arith.constant dense<0.000000e+00> : vector<2xf32>
    %466 = vector.multi_reduction <add>, %465, %cst_118 [1] : vector<2x32xf32> to vector<2xf32>
    %467 = vector.shape_cast %466 : vector<2xf32> to vector<2x1xf32>
    %cst_119 = arith.constant 3.200000e+01 : f32
    %468 = vector.broadcast %cst_119 : f32 to vector<2x1xf32>
    %469 = arith.divf %467, %468 : vector<2x1xf32>
    %470 = vector.broadcast %462 : vector<2x1xf32> to vector<2x32xf32>
    %471 = arith.subf %406, %470 : vector<2x32xf32>
    %cst_120 = arith.constant 9.99999974E-6 : f32
    %472 = vector.broadcast %cst_120 : f32 to vector<2x1xf32>
    %473 = arith.addf %469, %472 : vector<2x1xf32>
    %474 = math.rsqrt %473 : vector<2x1xf32>
    %475 = vector.broadcast %474 : vector<2x1xf32> to vector<2x32xf32>
    %476 = arith.mulf %471, %475 : vector<2x32xf32>
    %477 = vector.broadcast %457 : vector<1x32xf32> to vector<2x32xf32>
    %478 = arith.mulf %476, %477 : vector<2x32xf32>
    %479 = vector.broadcast %458 : vector<1x32xf32> to vector<2x32xf32>
    %480 = arith.addf %478, %479 : vector<2x32xf32>
    %cst_121 = arith.constant 0.000000e+00 : f32
    %481 = vector.broadcast %cst_121 : f32 to vector<2x32xf32>
    %482 = arith.maximumf %480, %481 : vector<2x32xf32>
    %483 = vector.extract_strided_slice %456 {offsets = [0, 32], sizes = [1, 32], strides = [1, 1]} : vector<1x256xf32> to vector<1x32xf32>
    %484 = vector.extract_strided_slice %456 {offsets = [0, 96], sizes = [1, 32], strides = [1, 1]} : vector<1x256xf32> to vector<1x32xf32>
    %cst_122 = arith.constant dense<0.000000e+00> : vector<2xf32>
    %485 = vector.multi_reduction <add>, %410, %cst_122 [1] : vector<2x32xf32> to vector<2xf32>
    %486 = vector.shape_cast %485 : vector<2xf32> to vector<2x1xf32>
    %cst_123 = arith.constant 3.200000e+01 : f32
    %487 = vector.broadcast %cst_123 : f32 to vector<2x1xf32>
    %488 = arith.divf %486, %487 : vector<2x1xf32>
    %489 = vector.broadcast %488 : vector<2x1xf32> to vector<2x32xf32>
    %490 = arith.subf %410, %489 : vector<2x32xf32>
    %491 = arith.mulf %490, %490 : vector<2x32xf32>
    %cst_124 = arith.constant dense<0.000000e+00> : vector<2xf32>
    %492 = vector.multi_reduction <add>, %491, %cst_124 [1] : vector<2x32xf32> to vector<2xf32>
    %493 = vector.shape_cast %492 : vector<2xf32> to vector<2x1xf32>
    %cst_125 = arith.constant 3.200000e+01 : f32
    %494 = vector.broadcast %cst_125 : f32 to vector<2x1xf32>
    %495 = arith.divf %493, %494 : vector<2x1xf32>
    %496 = vector.broadcast %488 : vector<2x1xf32> to vector<2x32xf32>
    %497 = arith.subf %410, %496 : vector<2x32xf32>
    %cst_126 = arith.constant 9.99999974E-6 : f32
    %498 = vector.broadcast %cst_126 : f32 to vector<2x1xf32>
    %499 = arith.addf %495, %498 : vector<2x1xf32>
    %500 = math.rsqrt %499 : vector<2x1xf32>
    %501 = vector.broadcast %500 : vector<2x1xf32> to vector<2x32xf32>
    %502 = arith.mulf %497, %501 : vector<2x32xf32>
    %503 = vector.broadcast %483 : vector<1x32xf32> to vector<2x32xf32>
    %504 = arith.mulf %502, %503 : vector<2x32xf32>
    %505 = vector.broadcast %484 : vector<1x32xf32> to vector<2x32xf32>
    %506 = arith.addf %504, %505 : vector<2x32xf32>
    %cst_127 = arith.constant 0.000000e+00 : f32
    %507 = vector.broadcast %cst_127 : f32 to vector<2x32xf32>
    %508 = arith.maximumf %506, %507 : vector<2x32xf32>
    %509 = tpu.concatenate %482, %508 in 1 : vector<2x32xf32>, vector<2x32xf32> -> vector<2x64xf32>
    %510 = arith.truncf %509 : vector<2x64xf32> to vector<2x64xbf16>
    %511 = vector.extract_strided_slice %1 {offsets = [0, 0], sizes = [64, 128], strides = [1, 1]} : vector<64x256xbf16> to vector<64x128xbf16>
    %cst_128 = arith.constant dense<0.000000e+00> : vector<2x128xf32>
    %512 = tpu.matmul %510, %511, %cst_128 {dimension_numbers = #tpu.dot_dimension_numbers<[1], [0], [0], [1], [0, 0, 1, 1], [], []>} : vector<2x64xbf16>, vector<64x128xbf16>, vector<2x128xf32> -> vector<2x128xf32>
    %513 = vector.extract_strided_slice %0 {offsets = [9, 0], sizes = [1, 128], strides = [1, 1]} : vector<16x256xf32> to vector<1x128xf32>
    %514 = vector.broadcast %513 : vector<1x128xf32> to vector<2x128xf32>
    %515 = arith.addf %512, %514 : vector<2x128xf32>
    %516 = vector.extract_strided_slice %0 {offsets = [10, 0], sizes = [1, 256], strides = [1, 1]} : vector<16x256xf32> to vector<1x256xf32>
    %517 = vector.extract_strided_slice %0 {offsets = [11, 0], sizes = [1, 256], strides = [1, 1]} : vector<16x256xf32> to vector<1x256xf32>
    %518 = vector.extract_strided_slice %515 {offsets = [0, 0], sizes = [2, 64], strides = [1, 1]} : vector<2x128xf32> to vector<2x64xf32>
    %519 = vector.extract_strided_slice %516 {offsets = [0, 0], sizes = [1, 64], strides = [1, 1]} : vector<1x256xf32> to vector<1x64xf32>
    %520 = vector.extract_strided_slice %517 {offsets = [0, 0], sizes = [1, 64], strides = [1, 1]} : vector<1x256xf32> to vector<1x64xf32>
    %cst_129 = arith.constant dense<0.000000e+00> : vector<2xf32>
    %521 = vector.multi_reduction <add>, %518, %cst_129 [1] : vector<2x64xf32> to vector<2xf32>
    %522 = vector.shape_cast %521 : vector<2xf32> to vector<2x1xf32>
    %cst_130 = arith.constant 6.400000e+01 : f32
    %523 = vector.broadcast %cst_130 : f32 to vector<2x1xf32>
    %524 = arith.divf %522, %523 : vector<2x1xf32>
    %525 = vector.broadcast %524 : vector<2x1xf32> to vector<2x64xf32>
    %526 = arith.subf %518, %525 : vector<2x64xf32>
    %527 = arith.mulf %526, %526 : vector<2x64xf32>
    %cst_131 = arith.constant dense<0.000000e+00> : vector<2xf32>
    %528 = vector.multi_reduction <add>, %527, %cst_131 [1] : vector<2x64xf32> to vector<2xf32>
    %529 = vector.shape_cast %528 : vector<2xf32> to vector<2x1xf32>
    %cst_132 = arith.constant 6.400000e+01 : f32
    %530 = vector.broadcast %cst_132 : f32 to vector<2x1xf32>
    %531 = arith.divf %529, %530 : vector<2x1xf32>
    %532 = vector.broadcast %524 : vector<2x1xf32> to vector<2x64xf32>
    %533 = arith.subf %518, %532 : vector<2x64xf32>
    %cst_133 = arith.constant 9.99999974E-6 : f32
    %534 = vector.broadcast %cst_133 : f32 to vector<2x1xf32>
    %535 = arith.addf %531, %534 : vector<2x1xf32>
    %536 = math.rsqrt %535 : vector<2x1xf32>
    %537 = vector.broadcast %536 : vector<2x1xf32> to vector<2x64xf32>
    %538 = arith.mulf %533, %537 : vector<2x64xf32>
    %539 = vector.broadcast %519 : vector<1x64xf32> to vector<2x64xf32>
    %540 = arith.mulf %538, %539 : vector<2x64xf32>
    %541 = vector.broadcast %520 : vector<1x64xf32> to vector<2x64xf32>
    %542 = arith.addf %540, %541 : vector<2x64xf32>
    %cst_134 = arith.constant 0.000000e+00 : f32
    %543 = vector.broadcast %cst_134 : f32 to vector<2x64xf32>
    %544 = arith.maximumf %542, %543 : vector<2x64xf32>
    %545 = vector.extract_strided_slice %515 {offsets = [0, 64], sizes = [2, 64], strides = [1, 1]} : vector<2x128xf32> to vector<2x64xf32>
    %546 = vector.extract_strided_slice %516 {offsets = [0, 64], sizes = [1, 64], strides = [1, 1]} : vector<1x256xf32> to vector<1x64xf32>
    %547 = vector.extract_strided_slice %517 {offsets = [0, 64], sizes = [1, 64], strides = [1, 1]} : vector<1x256xf32> to vector<1x64xf32>
    %cst_135 = arith.constant dense<0.000000e+00> : vector<2xf32>
    %548 = vector.multi_reduction <add>, %545, %cst_135 [1] : vector<2x64xf32> to vector<2xf32>
    %549 = vector.shape_cast %548 : vector<2xf32> to vector<2x1xf32>
    %cst_136 = arith.constant 6.400000e+01 : f32
    %550 = vector.broadcast %cst_136 : f32 to vector<2x1xf32>
    %551 = arith.divf %549, %550 : vector<2x1xf32>
    %552 = vector.broadcast %551 : vector<2x1xf32> to vector<2x64xf32>
    %553 = arith.subf %545, %552 : vector<2x64xf32>
    %554 = arith.mulf %553, %553 : vector<2x64xf32>
    %cst_137 = arith.constant dense<0.000000e+00> : vector<2xf32>
    %555 = vector.multi_reduction <add>, %554, %cst_137 [1] : vector<2x64xf32> to vector<2xf32>
    %556 = vector.shape_cast %555 : vector<2xf32> to vector<2x1xf32>
    %cst_138 = arith.constant 6.400000e+01 : f32
    %557 = vector.broadcast %cst_138 : f32 to vector<2x1xf32>
    %558 = arith.divf %556, %557 : vector<2x1xf32>
    %559 = vector.broadcast %551 : vector<2x1xf32> to vector<2x64xf32>
    %560 = arith.subf %545, %559 : vector<2x64xf32>
    %cst_139 = arith.constant 9.99999974E-6 : f32
    %561 = vector.broadcast %cst_139 : f32 to vector<2x1xf32>
    %562 = arith.addf %558, %561 : vector<2x1xf32>
    %563 = math.rsqrt %562 : vector<2x1xf32>
    %564 = vector.broadcast %563 : vector<2x1xf32> to vector<2x64xf32>
    %565 = arith.mulf %560, %564 : vector<2x64xf32>
    %566 = vector.broadcast %546 : vector<1x64xf32> to vector<2x64xf32>
    %567 = arith.mulf %565, %566 : vector<2x64xf32>
    %568 = vector.broadcast %547 : vector<1x64xf32> to vector<2x64xf32>
    %569 = arith.addf %567, %568 : vector<2x64xf32>
    %cst_140 = arith.constant 0.000000e+00 : f32
    %570 = vector.broadcast %cst_140 : f32 to vector<2x64xf32>
    %571 = arith.maximumf %569, %570 : vector<2x64xf32>
    %572 = vector.extract_strided_slice %0 {offsets = [12, 0], sizes = [1, 256], strides = [1, 1]} : vector<16x256xf32> to vector<1x256xf32>
    %573 = vector.extract_strided_slice %572 {offsets = [0, 0], sizes = [1, 64], strides = [1, 1]} : vector<1x256xf32> to vector<1x64xf32>
    %574 = vector.broadcast %573 : vector<1x64xf32> to vector<2x64xf32>
    %575 = arith.mulf %544, %574 : vector<2x64xf32>
    %cst_141 = arith.constant dense<0.000000e+00> : vector<2xf32>
    %576 = vector.multi_reduction <add>, %575, %cst_141 [1] : vector<2x64xf32> to vector<2xf32>
    %577 = vector.shape_cast %576 : vector<2xf32> to vector<2x1xf32>
    %578 = vector.extract_strided_slice %0 {offsets = [5, 7], sizes = [1, 1], strides = [1, 1]} : vector<16x256xf32> to vector<1x1xf32>
    %579 = vector.broadcast %578 : vector<1x1xf32> to vector<2x1xf32>
    %580 = arith.addf %577, %579 : vector<2x1xf32>
    %581 = arith.negf %580 : vector<2x1xf32>
    %582 = math.exp %581 : vector<2x1xf32>
    %cst_142 = arith.constant 1.000000e+00 : f32
    %583 = vector.broadcast %cst_142 : f32 to vector<2x1xf32>
    %584 = arith.addf %583, %582 : vector<2x1xf32>
    %585 = arith.divf %583, %584 : vector<2x1xf32>
    %586 = vector.extract_strided_slice %572 {offsets = [0, 64], sizes = [1, 64], strides = [1, 1]} : vector<1x256xf32> to vector<1x64xf32>
    %587 = vector.broadcast %586 : vector<1x64xf32> to vector<2x64xf32>
    %588 = arith.mulf %571, %587 : vector<2x64xf32>
    %cst_143 = arith.constant dense<0.000000e+00> : vector<2xf32>
    %589 = vector.multi_reduction <add>, %588, %cst_143 [1] : vector<2x64xf32> to vector<2xf32>
    %590 = vector.shape_cast %589 : vector<2xf32> to vector<2x1xf32>
    %591 = vector.extract_strided_slice %0 {offsets = [5, 8], sizes = [1, 1], strides = [1, 1]} : vector<16x256xf32> to vector<1x1xf32>
    %592 = vector.broadcast %591 : vector<1x1xf32> to vector<2x1xf32>
    %593 = arith.addf %590, %592 : vector<2x1xf32>
    %594 = arith.negf %593 : vector<2x1xf32>
    %595 = math.exp %594 : vector<2x1xf32>
    %cst_144 = arith.constant 1.000000e+00 : f32
    %596 = vector.broadcast %cst_144 : f32 to vector<2x1xf32>
    %597 = arith.addf %596, %595 : vector<2x1xf32>
    %598 = arith.divf %596, %597 : vector<2x1xf32>
    %599 = vector.broadcast %585 : vector<2x1xf32> to vector<2x32xf32>
    %600 = arith.mulf %599, %310 : vector<2x32xf32>
    %601 = vector.broadcast %598 : vector<2x1xf32> to vector<2x32xf32>
    %602 = arith.mulf %601, %311 : vector<2x32xf32>
    %603 = tpu.concatenate %395, %600, %602 in 0 : vector<2x32xf32>, vector<2x32xf32>, vector<2x32xf32> -> vector<6x32xf32>
    %604 = arith.truncf %603 : vector<6x32xf32> to vector<6x32xbf16>
    %605 = vector.extract_strided_slice %1 {offsets = [0, 144], sizes = [32, 32], strides = [1, 1]} : vector<64x256xbf16> to vector<32x32xbf16>
    %cst_145 = arith.constant dense<0.000000e+00> : vector<6x32xf32>
    %606 = tpu.matmul %604, %605, %cst_145 {dimension_numbers = #tpu.dot_dimension_numbers<[1], [0], [0], [1], [0, 0, 1, 1], [], []>} : vector<6x32xbf16>, vector<32x32xbf16>, vector<6x32xf32> -> vector<6x32xf32>
    %607 = vector.extract_strided_slice %0 {offsets = [13, 0], sizes = [1, 32], strides = [1, 1]} : vector<16x256xf32> to vector<1x32xf32>
    %608 = vector.broadcast %607 : vector<1x32xf32> to vector<6x32xf32>
    %609 = arith.addf %606, %608 : vector<6x32xf32>
    %610 = math.tanh %609 : vector<6x32xf32>
    %611 = vector.extract_strided_slice %0 {offsets = [4, 96], sizes = [1, 32], strides = [1, 1]} : vector<16x256xf32> to vector<1x32xf32>
    %612 = vector.broadcast %611 : vector<1x32xf32> to vector<6x32xf32>
    %613 = arith.mulf %610, %612 : vector<6x32xf32>
    %cst_146 = arith.constant dense<0.000000e+00> : vector<6xf32>
    %614 = vector.multi_reduction <add>, %613, %cst_146 [1] : vector<6x32xf32> to vector<6xf32>
    %615 = vector.shape_cast %614 : vector<6xf32> to vector<6x1xf32>
    %616 = vector.extract_strided_slice %0 {offsets = [5, 3], sizes = [1, 1], strides = [1, 1]} : vector<16x256xf32> to vector<1x1xf32>
    %617 = vector.broadcast %616 : vector<1x1xf32> to vector<6x1xf32>
    %618 = arith.addf %615, %617 : vector<6x1xf32>
    %619 = vector.extract_strided_slice %618 {offsets = [0, 0], sizes = [2, 1], strides = [1, 1]} : vector<6x1xf32> to vector<2x1xf32>
    %620 = vector.extract_strided_slice %618 {offsets = [2, 0], sizes = [2, 1], strides = [1, 1]} : vector<6x1xf32> to vector<2x1xf32>
    %621 = vector.extract_strided_slice %618 {offsets = [4, 0], sizes = [2, 1], strides = [1, 1]} : vector<6x1xf32> to vector<2x1xf32>
    %622 = arith.maximumf %619, %620 : vector<2x1xf32>
    %623 = arith.maximumf %622, %621 : vector<2x1xf32>
    %624 = arith.subf %619, %623 : vector<2x1xf32>
    %625 = math.exp %624 : vector<2x1xf32>
    %626 = arith.subf %620, %623 : vector<2x1xf32>
    %627 = math.exp %626 : vector<2x1xf32>
    %628 = arith.subf %621, %623 : vector<2x1xf32>
    %629 = math.exp %628 : vector<2x1xf32>
    %630 = arith.addf %625, %627 : vector<2x1xf32>
    %631 = arith.addf %630, %629 : vector<2x1xf32>
    %cst_147 = arith.constant 9.99999993E-9 : f32
    %632 = vector.broadcast %cst_147 : f32 to vector<2x1xf32>
    %633 = arith.addf %631, %632 : vector<2x1xf32>
    %cst_148 = arith.constant 1.000000e+00 : f32
    %634 = vector.broadcast %cst_148 : f32 to vector<2x1xf32>
    %635 = arith.divf %634, %633 : vector<2x1xf32>
    %636 = vector.broadcast %625 : vector<2x1xf32> to vector<2x32xf32>
    %637 = arith.mulf %636, %395 : vector<2x32xf32>
    %638 = vector.broadcast %627 : vector<2x1xf32> to vector<2x32xf32>
    %639 = arith.mulf %638, %600 : vector<2x32xf32>
    %640 = arith.addf %637, %639 : vector<2x32xf32>
    %641 = vector.broadcast %629 : vector<2x1xf32> to vector<2x32xf32>
    %642 = arith.mulf %641, %602 : vector<2x32xf32>
    %643 = arith.addf %640, %642 : vector<2x32xf32>
    %644 = vector.broadcast %635 : vector<2x1xf32> to vector<2x32xf32>
    %645 = arith.mulf %643, %644 : vector<2x32xf32>
    %646 = arith.truncf %645 : vector<2x32xf32> to vector<2x32xbf16>
    %647 = vector.extract_strided_slice %1 {offsets = [0, 176], sizes = [32, 32], strides = [1, 1]} : vector<64x256xbf16> to vector<32x32xbf16>
    %cst_149 = arith.constant dense<0.000000e+00> : vector<2x32xf32>
    %648 = tpu.matmul %646, %647, %cst_149 {dimension_numbers = #tpu.dot_dimension_numbers<[1], [0], [0], [1], [0, 0, 1, 1], [], []>} : vector<2x32xbf16>, vector<32x32xbf16>, vector<2x32xf32> -> vector<2x32xf32>
    %649 = vector.extract_strided_slice %0 {offsets = [13, 32], sizes = [1, 32], strides = [1, 1]} : vector<16x256xf32> to vector<1x32xf32>
    %650 = vector.broadcast %649 : vector<1x32xf32> to vector<2x32xf32>
    %651 = arith.addf %648, %650 : vector<2x32xf32>
    %cst_150 = arith.constant 0.000000e+00 : f32
    %652 = vector.broadcast %cst_150 : f32 to vector<2x32xf32>
    %653 = arith.maximumf %651, %652 : vector<2x32xf32>
    %654 = vector.extract_strided_slice %417 {offsets = [0, 64], sizes = [1, 32], strides = [1, 1]} : vector<1x256xf32> to vector<1x32xf32>
    %655 = vector.broadcast %654 : vector<1x32xf32> to vector<2x32xf32>
    %656 = arith.mulf %653, %655 : vector<2x32xf32>
    %cst_151 = arith.constant dense<0.000000e+00> : vector<2xf32>
    %657 = vector.multi_reduction <add>, %656, %cst_151 [1] : vector<2x32xf32> to vector<2xf32>
    %658 = vector.shape_cast %657 : vector<2xf32> to vector<2x1xf32>
    %659 = vector.extract_strided_slice %0 {offsets = [5, 6], sizes = [1, 1], strides = [1, 1]} : vector<16x256xf32> to vector<1x1xf32>
    %660 = vector.broadcast %659 : vector<1x1xf32> to vector<2x1xf32>
    %661 = arith.addf %658, %660 : vector<2x1xf32>
    %662 = arith.negf %661 : vector<2x1xf32>
    %663 = math.exp %662 : vector<2x1xf32>
    %cst_152 = arith.constant 1.000000e+00 : f32
    %664 = vector.broadcast %cst_152 : f32 to vector<2x1xf32>
    %665 = arith.addf %664, %663 : vector<2x1xf32>
    %666 = arith.divf %664, %665 : vector<2x1xf32>
    %cst_153 = arith.constant 0.000000e+00 : f32
    %667 = vector.broadcast %cst_153 : f32 to vector<2x117xf32>
    %668 = tpu.concatenate %666, %585, %598, %430, %443, %451, %455, %667 in 1 : vector<2x1xf32>, vector<2x1xf32>, vector<2x1xf32>, vector<2x1xf32>, vector<2x1xf32>, vector<2x3xf32>, vector<2x3xf32>, vector<2x117xf32> -> vector<2x128xf32>
    %c0_154 = arith.constant 0 : index
    %c0_155 = arith.constant 0 : index
    %669 = vector.load %arg13[%c0_154, %c0_155] : memref<2x128xf32, #tpu.memory_space<vmem>>, vector<2x128xf32>
    tpu.vector_store %arg13[%c0_154, %c0_155], %668 {strides = array<i32>} : memref<2x128xf32, #tpu.memory_space<vmem>>, vector<2x128xf32>,
    return
  }
}

</mosaic_0001>

<llo_original>
// kernel: arg_forward.1
$region0: #{arg_forward.1}
  #allocation0 [shape = 'u32[]', space=smem, size = 0x4, offset = 0x4, fixed_abs, tag = 'smem constant byte address 0x4 - core index']
  #allocation1 [shape = 'u32[144,128]{1,0:T(1,128)}', space=vmem, size = 0x12000, scoped, tag = 'internal scratch']
  %s0 = inlined_call_operand.hbm [shape: s32[32,1], index: 0, kind: input, shape index: {}]
  %s1 = inlined_call_operand.hbm [shape: s32[16,1], index: 1, kind: input, shape index: {}]
  %s2 = inlined_call_operand.hbm [shape: s32[16,1], index: 2, kind: input, shape index: {}]
  %s3 = inlined_call_operand.hbm [shape: f32[2,1,16], index: 3, kind: input, shape index: {}]
  %s4 = inlined_call_operand.hbm [shape: f32[2,1,8], index: 4, kind: input, shape index: {}]
  %s5 = inlined_call_operand.hbm [shape: f32[2,1,8], index: 5, kind: input, shape index: {}]
  %s6 = inlined_call_operand.hbm [shape: bf16[2,128,32], index: 6, kind: input, shape index: {}]
  %s7 = inlined_call_operand.hbm [shape: bf16[32,224], index: 7, kind: input, shape index: {}]
  %s8 = inlined_call_operand.hbm [shape: bf16[64,256], index: 8, kind: input, shape index: {}]
  %s9 = inlined_call_operand.hbm [shape: bf16[4,32,32], index: 9, kind: input, shape index: {}]
  %s10 = inlined_call_operand.hbm [shape: bf16[128,192], index: 10, kind: input, shape index: {}]
  %s11 = inlined_call_operand.hbm [shape: bf16[64,256], index: 11, kind: input, shape index: {}]
  %s12 = inlined_call_operand.hbm [shape: f32[16,256], index: 12, kind: input, shape index: {}]
  %s13 = inlined_call_operand.hbm [shape: f32[2,128], index: 13, kind: output, shape index: {}]
  %s14 = sld [smem:[#allocation0]]
  $region114: #{arg_forward.1} parent=0
    _
  %s16 = ssub.s32 1, %s14
  %s17 = scalar_select 0, %s16, %s14
  $region1: #{arg_forward.1} parent=0
    #allocation2 [shape = 'u8[16384]{0}', space=vmem, size = 0x4000, scoped, tag = 'input window, operand 0, single buffered']
    #allocation3 [shape = 's32[1]{0}', space=sflag, size = 0x4, scoped, tag = 'scoped memory for arg_forward.1']
    #allocation4 [shape = 's32[1]{0}', space=sflag, size = 0x4, scoped, tag = 'scoped memory for arg_forward.1']
    #allocation5 [shape = 'u8[8192]{0}', space=vmem, size = 0x2000, scoped, tag = 'input window, operand 1, single buffered']
    #allocation6 [shape = 's32[1]{0}', space=sflag, size = 0x4, scoped, tag = 'scoped memory for arg_forward.1']
    #allocation7 [shape = 'u8[8192]{0}', space=vmem, size = 0x2000, scoped, tag = 'input window, operand 2, single buffered']
    #allocation8 [shape = 'u8[1024]{0}', space=vmem, size = 0x400, scoped, tag = 'input window, operand 3, single buffered']
    #allocation9 [shape = 's32[1]{0}', space=sflag, size = 0x4, scoped, tag = 'scoped memory for arg_forward.1']
    #allocation10 [shape = 'u8[1024]{0}', space=vmem, size = 0x400, scoped, tag = 'input window, operand 4, single buffered']
    #allocation11 [shape = 'u8[1024]{0}', space=vmem, size = 0x400, scoped, tag = 'input window, operand 5, single buffered']
    #allocation12 [shape = 's32[1]{0}', space=sflag, size = 0x4, scoped, tag = 'scoped memory for arg_forward.1']
    #allocation13 [shape = 'u8[65536]{0}', space=vmem, size = 0x10000, scoped, tag = 'input window, operand 6, single buffered']
    #allocation14 [shape = 'u8[16384]{0}', space=vmem, size = 0x4000, scoped, tag = 'input window, operand 7, single buffered']
    #allocation15 [shape = 's32[1]{0}', space=sflag, size = 0x4, scoped, tag = 'scoped memory for arg_forward.1']
    #allocation16 [shape = 'u8[32768]{0}', space=vmem, size = 0x8000, scoped, tag = 'input window, operand 8, single buffered']
    #allocation17 [shape = 'u8[32768]{0}', space=vmem, size = 0x8000, scoped, tag = 'input window, operand 9, single buffered']
    #allocation18 [shape = 's32[1]{0}', space=sflag, size = 0x4, scoped, tag = 'scoped memory for arg_forward.1']
    #allocation19 [shape = 'u8[65536]{0}', space=vmem, size = 0x10000, scoped, tag = 'input window, operand 10, single buffered']
    #allocation20 [shape = 'u8[32768]{0}', space=vmem, size = 0x8000, scoped, tag = 'input window, operand 11, single buffered']
    #allocation21 [shape = 's32[1]{0}', space=sflag, size = 0x4, scoped, tag = 'scoped memory for arg_forward.1']
    #allocation22 [shape = 'u8[16384]{0}', space=vmem, size = 0x4000, scoped, tag = 'input window, operand 12, single buffered']
    #allocation23 [shape = 'u8[1024]{0}', space=vmem, size = 0x400, scoped, tag = 'output window, operand 0, single buffered']
    %18 = vsyncpa [#allocation3], 0
    %19 = vsyncpa [#allocation6], 0
    %20 = vsyncpa [#allocation9], 0
    %21 = vsyncpa [#allocation12], 0
    %22 = vsyncpa [#allocation15], 0
    %23 = vsyncpa [#allocation18], 0
    %24 = vsyncpa [#allocation21], 0
    %25 = vsyncpa [#allocation4], 0
    // Predicated region
    $region2: #{arg_forward.1} parent=1 // pred_check
      _
    $region3: #{arg_forward.1} parent=1 // pred_check_branch
      %27 = sbr.rel (0) target = $region5
    $region4: #{arg_forward.1} parent=1 // pred_region
      %s29 = ssub.s32 512, 512
      %30 = vsyncadd [#allocation3], %s29
      %s31 = sshll.u32 [#allocation2], 4
      %s32 = int_to_ptr.vmem [resolvable:$true] %s31
      %37 = dma.hbm_to_vmem [thread:$0]  %s0, 512, %s32, [#allocation3], 128, 128, 8
    $region5: #{arg_forward.1} parent=1 // pred_fallthru
      _
    // Predicated region
    $region6: #{arg_forward.1} parent=1 // pred_check
      _
    $region7: #{arg_forward.1} parent=1 // pred_check_branch
      %39 = sbr.rel (0) target = $region9
    $region8: #{arg_forward.1} parent=1 // pred_region
      %s41 = ssub.s32 256, 256
      %42 = vsyncadd [#allocation6], %s41
      %s43 = sshll.u32 [#allocation5], 4
      %s44 = int_to_ptr.vmem [resolvable:$true] %s43
      %49 = dma.hbm_to_vmem [thread:$0]  %s1, 256, %s44, [#allocation6], 128, 128, 8
    $region9: #{arg_forward.1} parent=1 // pred_fallthru
      _
    // Predicated region
    $region10: #{arg_forward.1} parent=1 // pred_check
      _
    $region11: #{arg_forward.1} parent=1 // pred_check_branch
      %51 = sbr.rel (0) target = $region13
    $region12: #{arg_forward.1} parent=1 // pred_region
      %s53 = ssub.s32 256, 256
      %54 = vsyncadd [#allocation6], %s53
      %s55 = sshll.u32 [#allocation7], 4
      %s56 = int_to_ptr.vmem [resolvable:$true] %s55
      %61 = dma.hbm_to_vmem [thread:$0]  %s2, 256, %s56, [#allocation6], 128, 128, 8
    $region13: #{arg_forward.1} parent=1 // pred_fallthru
      _
    // Predicated region
    $region14: #{arg_forward.1} parent=1 // pred_check
      _
    $region15: #{arg_forward.1} parent=1 // pred_check_branch
      %63 = sbr.rel (0) target = $region17
    $region16: #{arg_forward.1} parent=1 // pred_region
      %s65 = ssub.s32 32, 32
      %66 = vsyncadd [#allocation9], %s65
      %s67 = sshll.u32 [#allocation8], 4
      %s68 = int_to_ptr.vmem [resolvable:$true] %s67
      %73 = dma.hbm_to_vmem [thread:$0]  %s3, 32, %s68, [#allocation9], 16, 16, 1
    $region17: #{arg_forward.1} parent=1 // pred_fallthru
      _
    // Predicated region
    $region18: #{arg_forward.1} parent=1 // pred_check
      _
    $region19: #{arg_forward.1} parent=1 // pred_check_branch
      %75 = sbr.rel (0) target = $region21
    $region20: #{arg_forward.1} parent=1 // pred_region
      %s77 = ssub.s32 32, 32
      %78 = vsyncadd [#allocation9], %s77
      %s79 = sshll.u32 [#allocation10], 4
      %s80 = int_to_ptr.vmem [resolvable:$true] %s79
      %85 = dma.hbm_to_vmem [thread:$0]  %s4, 32, %s80, [#allocation9], 16, 16, 1
    $region21: #{arg_forward.1} parent=1 // pred_fallthru
      _
    // Predicated region
    $region22: #{arg_forward.1} parent=1 // pred_check
      _
    $region23: #{arg_forward.1} parent=1 // pred_check_branch
      %87 = sbr.rel (0) target = $region25
    $region24: #{arg_forward.1} parent=1 // pred_region
      %s89 = ssub.s32 32, 32
      %90 = vsyncadd [#allocation12], %s89
      %s91 = sshll.u32 [#allocation11], 4
      %s92 = int_to_ptr.vmem [resolvable:$true] %s91
      %97 = dma.hbm_to_vmem [thread:$0]  %s5, 32, %s92, [#allocation12], 16, 16, 1
    $region25: #{arg_forward.1} parent=1 // pred_fallthru
      _
    // Predicated region
    $region26: #{arg_forward.1} parent=1 // pred_check
      _
    $region27: #{arg_forward.1} parent=1 // pred_check_branch
      %99 = sbr.rel (0) target = $region29
    $region28: #{arg_forward.1} parent=1 // pred_region
      %s101 = ssub.s32 2048, 2048
      %102 = vsyncadd [#allocation12], %s101
      %s103 = sshll.u32 [#allocation13], 4
      %s104 = int_to_ptr.vmem [resolvable:$true] %s103
      %109 = dma.hbm_to_vmem [thread:$0]  %s6, 2048, %s104, [#allocation12], 64, 64, 4
    $region29: #{arg_forward.1} parent=1 // pred_fallthru
      _
    // Predicated region
    $region30: #{arg_forward.1} parent=1 // pred_check
      _
    $region31: #{arg_forward.1} parent=1 // pred_check_branch
      %111 = sbr.rel (0) target = $region33
    $region32: #{arg_forward.1} parent=1 // pred_region
      %s113 = ssub.s32 512, 512
      %114 = vsyncadd [#allocation15], %s113
      %s115 = sshll.u32 [#allocation14], 4
      %s116 = int_to_ptr.vmem [resolvable:$true] %s115
      %121 = dma.hbm_to_vmem [thread:$0]  %s7, 512, %s116, [#allocation15], 128, 128, 8
    $region33: #{arg_forward.1} parent=1 // pred_fallthru
      _
    // Predicated region
    $region34: #{arg_forward.1} parent=1 // pred_check
      _
    $region35: #{arg_forward.1} parent=1 // pred_check_branch
      %123 = sbr.rel (0) target = $region37
    $region36: #{arg_forward.1} parent=1 // pred_region
      %s125 = ssub.s32 1024, 1024
      %126 = vsyncadd [#allocation15], %s125
      %s127 = sshll.u32 [#allocation16], 4
      %s128 = int_to_ptr.vmem [resolvable:$true] %s127
      %133 = dma.hbm_to_vmem [thread:$0]  %s8, 1024, %s128, [#allocation15], 128, 128, 8
    $region37: #{arg_forward.1} parent=1 // pred_fallthru
      _
    // Predicated region
    $region38: #{arg_forward.1} parent=1 // pred_check
      _
    $region39: #{arg_forward.1} parent=1 // pred_check_branch
      %135 = sbr.rel (0) target = $region41
    $region40: #{arg_forward.1} parent=1 // pred_region
      %s137 = ssub.s32 1024, 1024
      %138 = vsyncadd [#allocation18], %s137
      %s139 = sshll.u32 [#allocation17], 4
      %s140 = int_to_ptr.vmem [resolvable:$true] %s139
      %145 = dma.hbm_to_vmem [thread:$0]  %s9, 1024, %s140, [#allocation18], 64, 64, 4
    $region41: #{arg_forward.1} parent=1 // pred_fallthru
      _
    // Predicated region
    $region42: #{arg_forward.1} parent=1 // pred_check
      _
    $region43: #{arg_forward.1} parent=1 // pred_check_branch
      %147 = sbr.rel (0) target = $region45
    $region44: #{arg_forward.1} parent=1 // pred_region
      %s149 = ssub.s32 2048, 2048
      %150 = vsyncadd [#allocation18], %s149
      %s151 = sshll.u32 [#allocation19], 4
      %s152 = int_to_ptr.vmem [resolvable:$true] %s151
      %157 = dma.hbm_to_vmem [thread:$0]  %s10, 2048, %s152, [#allocation18], 128, 128, 8
    $region45: #{arg_forward.1} parent=1 // pred_fallthru
      _
    // Predicated region
    $region46: #{arg_forward.1} parent=1 // pred_check
      _
    $region47: #{arg_forward.1} parent=1 // pred_check_branch
      %159 = sbr.rel (0) target = $region49
    $region48: #{arg_forward.1} parent=1 // pred_region
      %s161 = ssub.s32 1024, 1024
      %162 = vsyncadd [#allocation21], %s161
      %s163 = sshll.u32 [#allocation20], 4
      %s164 = int_to_ptr.vmem [resolvable:$true] %s163
      %169 = dma.hbm_to_vmem [thread:$0]  %s11, 1024, %s164, [#allocation21], 128, 128, 8
    $region49: #{arg_forward.1} parent=1 // pred_fallthru
      _
    // Predicated region
    $region50: #{arg_forward.1} parent=1 // pred_check
      _
    $region51: #{arg_forward.1} parent=1 // pred_check_branch
      %171 = sbr.rel (0) target = $region53
    $region52: #{arg_forward.1} parent=1 // pred_region
      %s173 = ssub.s32 512, 512
      %174 = vsyncadd [#allocation21], %s173
      %s175 = sshll.u32 [#allocation22], 4
      %s176 = int_to_ptr.vmem [resolvable:$true] %s175
      %181 = dma.hbm_to_vmem [thread:$0]  %s12, 512, %s176, [#allocation21], 256, 256, 16
    $region53: #{arg_forward.1} parent=1 // pred_fallthru
      _
    // Predicated region
    $region54: #{arg_forward.1} parent=1 // pred_check
      _
    $region55: #{arg_forward.1} parent=1 // pred_check_branch
      %183 = sbr.rel (0) target = $region57
    $region56: #{arg_forward.1} parent=1 // pred_region
      %184 = dma.done [#allocation3], 512
    $region57: #{arg_forward.1} parent=1 // pred_fallthru
      _
    // Predicated region
    $region58: #{arg_forward.1} parent=1 // pred_check
      _
    $region59: #{arg_forward.1} parent=1 // pred_check_branch
      %186 = sbr.rel (0) target = $region61
    $region60: #{arg_forward.1} parent=1 // pred_region
      %187 = dma.done [#allocation6], 256
    $region61: #{arg_forward.1} parent=1 // pred_fallthru
      _
    // Predicated region
    $region62: #{arg_forward.1} parent=1 // pred_check
      _
    $region63: #{arg_forward.1} parent=1 // pred_check_branch
      %189 = sbr.rel (0) target = $region65
    $region64: #{arg_forward.1} parent=1 // pred_region
      %190 = dma.done [#allocation6], 256
    $region65: #{arg_forward.1} parent=1 // pred_fallthru
      _
    // Predicated region
    $region66: #{arg_forward.1} parent=1 // pred_check
      _
    $region67: #{arg_forward.1} parent=1 // pred_check_branch
      %192 = sbr.rel (0) target = $region69
    $region68: #{arg_forward.1} parent=1 // pred_region
      %193 = dma.done [#allocation9], 32
    $region69: #{arg_forward.1} parent=1 // pred_fallthru
      _
    // Predicated region
    $region70: #{arg_forward.1} parent=1 // pred_check
      _
    $region71: #{arg_forward.1} parent=1 // pred_check_branch
      %195 = sbr.rel (0) target = $region73
    $region72: #{arg_forward.1} parent=1 // pred_region
      %196 = dma.done [#allocation9], 32
    $region73: #{arg_forward.1} parent=1 // pred_fallthru
      _
    // Predicated region
    $region74: #{arg_forward.1} parent=1 // pred_check
      _
    $region75: #{arg_forward.1} parent=1 // pred_check_branch
      %198 = sbr.rel (0) target = $region77
    $region76: #{arg_forward.1} parent=1 // pred_region
      %199 = dma.done [#allocation12], 32
    $region77: #{arg_forward.1} parent=1 // pred_fallthru
      _
    // Predicated region
    $region78: #{arg_forward.1} parent=1 // pred_check
      _
    $region79: #{arg_forward.1} parent=1 // pred_check_branch
      %201 = sbr.rel (0) target = $region81
    $region80: #{arg_forward.1} parent=1 // pred_region
      %202 = dma.done [#allocation12], 2048
    $region81: #{arg_forward.1} parent=1 // pred_fallthru
      _
    // Predicated region
    $region82: #{arg_forward.1} parent=1 // pred_check
      _
    $region83: #{arg_forward.1} parent=1 // pred_check_branch
      %204 = sbr.rel (0) target = $region85
    $region84: #{arg_forward.1} parent=1 // pred_region
      %205 = dma.done [#allocation15], 512
    $region85: #{arg_forward.1} parent=1 // pred_fallthru
      _
    // Predicated region
    $region86: #{arg_forward.1} parent=1 // pred_check
      _
    $region87: #{arg_forward.1} parent=1 // pred_check_branch
      %207 = sbr.rel (0) target = $region89
    $region88: #{arg_forward.1} parent=1 // pred_region
      %208 = dma.done [#allocation15], 1024
    $region89: #{arg_forward.1} parent=1 // pred_fallthru
      _
    // Predicated region
    $region90: #{arg_forward.1} parent=1 // pred_check
      _
    $region91: #{arg_forward.1} parent=1 // pred_check_branch
      %210 = sbr.rel (0) target = $region93
    $region92: #{arg_forward.1} parent=1 // pred_region
      %211 = dma.done [#allocation18], 1024
    $region93: #{arg_forward.1} parent=1 // pred_fallthru
      _
    // Predicated region
    $region94: #{arg_forward.1} parent=1 // pred_check
      _
    $region95: #{arg_forward.1} parent=1 // pred_check_branch
      %213 = sbr.rel (0) target = $region97
    $region96: #{arg_forward.1} parent=1 // pred_region
      %214 = dma.done [#allocation18], 2048
    $region97: #{arg_forward.1} parent=1 // pred_fallthru
      _
    // Predicated region
    $region98: #{arg_forward.1} parent=1 // pred_check
      _
    $region99: #{arg_forward.1} parent=1 // pred_check_branch
      %216 = sbr.rel (0) target = $region101
    $region100: #{arg_forward.1} parent=1 // pred_region
      %217 = dma.done [#allocation21], 1024
    $region101: #{arg_forward.1} parent=1 // pred_fallthru
      _
    // Predicated region
    $region102: #{arg_forward.1} parent=1 // pred_check
      _
    $region103: #{arg_forward.1} parent=1 // pred_check_branch
      %219 = sbr.rel (0) target = $region105
    $region104: #{arg_forward.1} parent=1 // pred_region
      %220 = dma.done [#allocation21], 512
    $region105: #{arg_forward.1} parent=1 // pred_fallthru
      _
    %v222 = vld [vmem:[#allocation22] sm:$0xff]
    %v223 = vld [vmem:[#allocation22 + $0x8] sm:$0xff]
    %v224 = vld [vmem:[#allocation22 + $0x10] sm:$0xff]
    %v225 = vld [vmem:[#allocation20] sm:$0xff]
    %v226 = vld [vmem:[#allocation20 + $0x8] sm:$0xff]
    %v227 = vld [vmem:[#allocation20 + $0x10] sm:$0xff]
    %v228 = vld [vmem:[#allocation20 + $0x18] sm:$0xff]
    %v229 = vld [vmem:[#allocation20 + $0x20] sm:$0xff]
    %v230 = vld [vmem:[#allocation20 + $0x28] sm:$0xff]
    %v231 = vld [vmem:[#allocation20 + $0x30] sm:$0xff]
    %v232 = vld [vmem:[#allocation20 + $0x38] sm:$0xff]
    %v233 = vld [vmem:[#allocation17] sm:$0xf]
    %v234 = vld [vmem:[#allocation17 + $0x4] sm:$0xf]
    %v235 = vld [vmem:[#allocation17 + $0x8] sm:$0xf]
    %v236 = vld [vmem:[#allocation17 + $0xc] sm:$0xf]
    %v237 = vld [vmem:[#allocation17 + $0x10] sm:$0xf]
    %v238 = vld [vmem:[#allocation17 + $0x14] sm:$0xf]
    %v239 = vld [vmem:[#allocation17 + $0x18] sm:$0xf]
    %v240 = vld [vmem:[#allocation17 + $0x1c] sm:$0xf]
    %v241 = vld [vmem:[#allocation17 + $0x20] sm:$0xf]
    %v242 = vld [vmem:[#allocation17 + $0x24] sm:$0xf]
    %v243 = vld [vmem:[#allocation17 + $0x28] sm:$0xf]
    %v244 = vld [vmem:[#allocation17 + $0x2c] sm:$0xf]
    %v245 = vld [vmem:[#allocation17 + $0x30] sm:$0xf]
    %v246 = vld [vmem:[#allocation17 + $0x34] sm:$0xf]
    %v247 = vld [vmem:[#allocation17 + $0x38] sm:$0xf]
    %v248 = vld [vmem:[#allocation17 + $0x3c] sm:$0xf]
    %v249 = vlaneseq
    %v250 = vand.u32 %v249, 127
    %v251 = vld [vmem:[#allocation2] sm:$0xff]
    %v252 = vld [vmem:[#allocation2 + $0x8] sm:$0xff]
    %v253 = vld [vmem:[#allocation2 + $0x10] sm:$0xff]
    %v254 = vld [vmem:[#allocation2 + $0x18] sm:$0xff]
    %255 = vset.pattern.permute.xlu0 0
    %256 = vperm.xlu0 %255, %v251
    %v257 = vpop.permute.xlu0 %256
    %258 = vset.pattern.permute.xlu0 0
    %259 = vperm.xlu0 %258, %v252
    %v260 = vpop.permute.xlu0 %259
    %261 = vset.pattern.permute.xlu0 0
    %262 = vperm.xlu0 %261, %v253
    %v263 = vpop.permute.xlu0 %262
    %264 = vset.pattern.permute.xlu0 0
    %265 = vperm.xlu0 %264, %v254
    %v266 = vpop.permute.xlu0 %265
    %vm267 = vcmp.eq.s32.totalorder %v257, %v250
    %vm268 = vcmp.eq.s32.totalorder %v260, %v250
    %vm269 = vcmp.eq.s32.totalorder %v263, %v250
    %vm270 = vcmp.eq.s32.totalorder %v266, %v250
    %v271 = vsel %vm267, 1.0, 0.0
    %v272 = vsel %vm268, 1.0, 0.0
    %v273 = vsel %vm269, 1.0, 0.0
    %v274 = vsel %vm270, 1.0, 0.0
    %v275 = vpack.c.bf16 %v272, %v271
    %v276 = vpack.c.bf16 %v274, %v273
    %v277 = vld [vmem:[#allocation13] sm:$0xf]
    %v278 = vld [vmem:[#allocation13 + $0x4] sm:$0xf]
    %v279 = vld [vmem:[#allocation13 + $0x8] sm:$0xf]
    %v280 = vld [vmem:[#allocation13 + $0xc] sm:$0xf]
    %v281 = vld [vmem:[#allocation13 + $0x10] sm:$0xf]
    %v282 = vld [vmem:[#allocation13 + $0x14] sm:$0xf]
    %v283 = vld [vmem:[#allocation13 + $0x18] sm:$0xf]
    %v284 = vld [vmem:[#allocation13 + $0x1c] sm:$0xf]
    %v285 = vld [vmem:[#allocation13 + $0x20] sm:$0xf]
    %v286 = vld [vmem:[#allocation13 + $0x24] sm:$0xf]
    %v287 = vld [vmem:[#allocation13 + $0x28] sm:$0xf]
    %v288 = vld [vmem:[#allocation13 + $0x2c] sm:$0xf]
    %v289 = vld [vmem:[#allocation13 + $0x30] sm:$0xf]
    %v290 = vld [vmem:[#allocation13 + $0x34] sm:$0xf]
    %v291 = vld [vmem:[#allocation13 + $0x38] sm:$0xf]
    %v292 = vld [vmem:[#allocation13 + $0x3c] sm:$0xf]
    %v309 = vunpack.c.l.b16 %v277
    %v310 = vunpack.c.l.b16 %v278
    %v311 = vunpack.c.l.b16 %v279
    %v312 = vunpack.c.l.b16 %v280
    %v313 = vunpack.c.l.b16 %v281
    %v314 = vunpack.c.l.b16 %v282
    %v315 = vunpack.c.l.b16 %v283
    %v316 = vunpack.c.l.b16 %v284
    %v317 = vunpack.c.l.b16 %v285
    %v318 = vunpack.c.l.b16 %v286
    %v319 = vunpack.c.l.b16 %v287
    %v320 = vunpack.c.l.b16 %v288
    %v321 = vunpack.c.l.b16 %v289
    %v322 = vunpack.c.l.b16 %v290
    %v323 = vunpack.c.l.b16 %v291
    %v324 = vunpack.c.l.b16 %v292
    %v325 = vpack.c.b16 %v310, %v309
    %v326 = vpack.c.b16 %v312, %v311
    %v327 = vpack.c.b16 %v314, %v313
    %v328 = vpack.c.b16 %v316, %v315
    %v329 = vpack.c.b16 %v318, %v317
    %v330 = vpack.c.b16 %v320, %v319
    %v331 = vpack.c.b16 %v322, %v321
    %v332 = vpack.c.b16 %v324, %v323
    %341 = vmatprep.subr.bf16.mxu0 0
    %342 = vmatpush1.bf16.msra.mxu0 %v325
    %343 = vmatprep.subr.bf16.mxu0 0
    %344 = vmatpush1.bf16.msra.mxu0 %v326
    %345 = vmatprep.subr.bf16.mxu0 0
    %346 = vmatpush1.bf16.msra.mxu0 %v327
    %347 = vmatprep.subr.bf16.mxu0 0
    %348 = vmatpush1.bf16.msra.mxu0 %v328
    %349 = vmatprep.subr.bf16.mxu0 0
    %350 = vmatpush1.bf16.msra.mxu0 %v329
    %351 = vmatprep.subr.bf16.mxu0 0
    %352 = vmatpush1.bf16.msra.mxu0 %v330
    %353 = vmatprep.subr.bf16.mxu0 0
    %354 = vmatpush1.bf16.msra.mxu0 %v331
    %355 = vmatprep.subr.bf16.mxu0 0
    %356 = vmatpush1.bf16.msra.mxu0 %v332
    %357 = vmatprep.subr.bf16.mxu0 0
    %358 = vmatpush1.bf16.msra.mxu0 0
    %359 = vmatprep.subr.bf16.mxu0 0
    %360 = vmatpush1.bf16.msra.mxu0 0
    %361 = vmatprep.subr.bf16.mxu0 0
    %362 = vmatpush1.bf16.msra.mxu0 0
    %363 = vmatprep.subr.bf16.mxu0 0
    %364 = vmatpush1.bf16.msra.mxu0 0
    %365 = vmatprep.subr.bf16.mxu0 0
    %366 = vmatpush1.bf16.msra.mxu0 0
    %367 = vmatprep.subr.bf16.mxu0 0
    %368 = vmatpush1.bf16.msra.mxu0 0
    %369 = vmatprep.subr.bf16.mxu0 0
    %370 = vmatpush1.bf16.msra.mxu0 0
    %371 = vmatprep.subr.bf16.mxu0 0
    %372 = vmatpush1.bf16.msra.mxu0 0
    %373 = vmatprep.mubr.bf16.mxu0 0
    %374 = vmatmul.mubr.bf16.gmra.mrb[0].mxu0 %v275
    %v375 = vpop.f32.mrb[0].mxu0
    %v376 = vadd.f32 0.0, %v375
    %v377 = vpop.f32.mrb[0].mxu0
    %v378 = vpop.f32.mrb[0].mxu0
    %v379 = vadd.f32 0.0, %v378
    %v380 = vpop.f32.mrb[0].mxu0
    %381 = vmatprep.mubr.bf16.mxu0 0
    %382 = vmatmul.mubr.bf16.gmra.mrb[0].mxu0 %v276
    %v383 = vpop.f32.mrb[0].mxu0
    %v384 = vadd.f32 0.0, %v383
    %v385 = vpop.f32.mrb[0].mxu0
    %v386 = vpop.f32.mrb[0].mxu0
    %v387 = vadd.f32 0.0, %v386
    %v388 = vpop.f32.mrb[0].mxu0
    %389 = vdwg.mxu0
    %v390 = vld [vmem:[#allocation5] sm:$0xff]
    %v391 = vld [vmem:[#allocation5 + $0x8] sm:$0xff]
    %392 = vset.pattern.permute.xlu0 0
    %393 = vperm.xlu0 %392, %v390
    %v394 = vpop.permute.xlu0 %393
    %395 = vset.pattern.permute.xlu0 0
    %396 = vperm.xlu0 %395, %v391
    %v397 = vpop.permute.xlu0 %396
    %vm398 = vcmp.eq.s32.totalorder %v394, %v250
    %vm399 = vcmp.eq.s32.totalorder %v397, %v250
    %v400 = vsel %vm398, 1.0, 0.0
    %v401 = vsel %vm399, 1.0, 0.0
    %v402 = vpack.c.bf16 %v401, %v400
    %v403 = vld [vmem:[#allocation7] sm:$0xff]
    %v404 = vld [vmem:[#allocation7 + $0x8] sm:$0xff]
    %405 = vset.pattern.permute.xlu0 0
    %406 = vperm.xlu0 %405, %v403
    %v407 = vpop.permute.xlu0 %406
    %408 = vset.pattern.permute.xlu0 0
    %409 = vperm.xlu0 %408, %v404
    %v410 = vpop.permute.xlu0 %409
    %vm411 = vcmp.eq.s32.totalorder %v407, %v250
    %vm412 = vcmp.eq.s32.totalorder %v410, %v250
    %v413 = vsel %vm411, 1.0, 0.0
    %v414 = vsel %vm412, 1.0, 0.0
    %v415 = vpack.c.bf16 %v414, %v413
    %s416 = scalar_lea.vmem [#allocation13], 64
    %v417 = vld [vmem:[%s416] sm:$0xf]
    %v418 = vld [vmem:[%s416 + $0x4] sm:$0xf]
    %v419 = vld [vmem:[%s416 + $0x8] sm:$0xf]
    %v420 = vld [vmem:[%s416 + $0xc] sm:$0xf]
    %v421 = vld [vmem:[%s416 + $0x10] sm:$0xf]
    %v422 = vld [vmem:[%s416 + $0x14] sm:$0xf]
    %v423 = vld [vmem:[%s416 + $0x18] sm:$0xf]
    %v424 = vld [vmem:[%s416 + $0x1c] sm:$0xf]
    %v425 = vld [vmem:[%s416 + $0x20] sm:$0xf]
    %v426 = vld [vmem:[%s416 + $0x24] sm:$0xf]
    %v427 = vld [vmem:[%s416 + $0x28] sm:$0xf]
    %v428 = vld [vmem:[%s416 + $0x2c] sm:$0xf]
    %v429 = vld [vmem:[%s416 + $0x30] sm:$0xf]
    %v430 = vld [vmem:[%s416 + $0x34] sm:$0xf]
    %v431 = vld [vmem:[%s416 + $0x38] sm:$0xf]
    %v432 = vld [vmem:[%s416 + $0x3c] sm:$0xf]
    %v449 = vunpack.c.l.b16 %v417
    %v450 = vunpack.c.l.b16 %v418
    %v451 = vunpack.c.l.b16 %v419
    %v452 = vunpack.c.l.b16 %v420
    %v453 = vunpack.c.l.b16 %v421
    %v454 = vunpack.c.l.b16 %v422
    %v455 = vunpack.c.l.b16 %v423
    %v456 = vunpack.c.l.b16 %v424
    %v457 = vunpack.c.l.b16 %v425
    %v458 = vunpack.c.l.b16 %v426
    %v459 = vunpack.c.l.b16 %v427
    %v460 = vunpack.c.l.b16 %v428
    %v461 = vunpack.c.l.b16 %v429
    %v462 = vunpack.c.l.b16 %v430
    %v463 = vunpack.c.l.b16 %v431
    %v464 = vunpack.c.l.b16 %v432
    %v465 = vpack.c.b16 %v450, %v449
    %v466 = vpack.c.b16 %v452, %v451
    %v467 = vpack.c.b16 %v454, %v453
    %v468 = vpack.c.b16 %v456, %v455
    %v469 = vpack.c.b16 %v458, %v457
    %v470 = vpack.c.b16 %v460, %v459
    %v471 = vpack.c.b16 %v462, %v461
    %v472 = vpack.c.b16 %v464, %v463
    %481 = vmatprep.subr.bf16.mxu0 0
    %482 = vmatpush1.bf16.msra.mxu0 %v465
    %483 = vmatprep.subr.bf16.mxu0 0
    %484 = vmatpush1.bf16.msra.mxu0 %v466
    %485 = vmatprep.subr.bf16.mxu0 0
    %486 = vmatpush1.bf16.msra.mxu0 %v467
    %487 = vmatprep.subr.bf16.mxu0 0
    %488 = vmatpush1.bf16.msra.mxu0 %v468
    %489 = vmatprep.subr.bf16.mxu0 0
    %490 = vmatpush1.bf16.msra.mxu0 %v469
    %491 = vmatprep.subr.bf16.mxu0 0
    %492 = vmatpush1.bf16.msra.mxu0 %v470
    %493 = vmatprep.subr.bf16.mxu0 0
    %494 = vmatpush1.bf16.msra.mxu0 %v471
    %495 = vmatprep.subr.bf16.mxu0 0
    %496 = vmatpush1.bf16.msra.mxu0 %v472
    %497 = vmatprep.subr.bf16.mxu0 0
    %498 = vmatpush1.bf16.msra.mxu0 0
    %499 = vmatprep.subr.bf16.mxu0 0
    %500 = vmatpush1.bf16.msra.mxu0 0
    %501 = vmatprep.subr.bf16.mxu0 0
    %502 = vmatpush1.bf16.msra.mxu0 0
    %503 = vmatprep.subr.bf16.mxu0 0
    %504 = vmatpush1.bf16.msra.mxu0 0
    %505 = vmatprep.subr.bf16.mxu0 0
    %506 = vmatpush1.bf16.msra.mxu0 0
    %507 = vmatprep.subr.bf16.mxu0 0
    %508 = vmatpush1.bf16.msra.mxu0 0
    %509 = vmatprep.subr.bf16.mxu0 0
    %510 = vmatpush1.bf16.msra.mxu0 0
    %511 = vmatprep.subr.bf16.mxu0 0
    %512 = vmatpush1.bf16.msra.mxu0 0
    %513 = vmatprep.mubr.bf16.mxu0 0
    %514 = vmatmul.mubr.bf16.gmra.mrb[0].mxu0 %v402
    %v515 = vpop.f32.mrb[0].mxu0
    %v516 = vadd.f32 0.0, %v515
    %v517 = vpop.f32.mrb[0].mxu0
    %v518 = vpop.f32.mrb[0].mxu0
    %v519 = vadd.f32 0.0, %v518
    %v520 = vpop.f32.mrb[0].mxu0
    %521 = vmatprep.mubr.bf16.mxu0 0
    %522 = vmatmul.mubr.bf16.gmra.mrb[0].mxu0 %v415
    %v523 = vpop.f32.mrb[0].mxu0
    %v524 = vadd.f32 0.0, %v523
    %v525 = vpop.f32.mrb[0].mxu0
    %v526 = vpop.f32.mrb[0].mxu0
    %v527 = vadd.f32 0.0, %v526
    %v528 = vpop.f32.mrb[0].mxu0
    %529 = vdwg.mxu0
    %v530 = vld [vmem:[#allocation8] sm:$0x1]
    %v531 = vld [vmem:[#allocation8 + $0x1] sm:$0x1]
    %v532 = vld [vmem:[#allocation10] sm:$0x1]
    %v533 = vld [vmem:[#allocation10 + $0x1] sm:$0x1]
    %v534 = vld [vmem:[#allocation11] sm:$0x1]
    %v535 = vld [vmem:[#allocation11 + $0x1] sm:$0x1]
    %vm536 = vcmp.gt.f32.partialorder %v530, 0.0
    %vm537 = vcmp.gt.f32.partialorder %v531, 0.0
    %v538 = vsel %vm536, 0.0, -1e+09
    %v539 = vsel %vm537, 0.0, -1e+09
    %vm540 = vcmp.gt.f32.partialorder %v532, 0.0
    %vm541 = vcmp.gt.f32.partialorder %v533, 0.0
    %v542 = vsel %vm540, 0.0, -1e+09
    %v543 = vsel %vm541, 0.0, -1e+09
    %vm544 = vcmp.gt.f32.partialorder %v534, 0.0
    %vm545 = vcmp.gt.f32.partialorder %v535, 0.0
    %v546 = vsel %vm544, 0.0, -1e+09
    %v547 = vsel %vm545, 0.0, -1e+09
    %v548 = vpack.c.bf16 %v379, %v376
    %v549 = vpack.c.bf16 %v387, %v384
    %v550 = vld [vmem:[#allocation14] sm:$0xff]
    %v551 = vld [vmem:[#allocation14 + $0x8] sm:$0xff]
    %v552 = vld [vmem:[#allocation14 + $0x10] sm:$0xff]
    %v553 = vld [vmem:[#allocation14 + $0x18] sm:$0xff]
    %v554 = vlaneseq
    %v555 = vshrl.u32 %v554, 7
    %v556 = vsub.s32 0, %v555
    %v557 = vrot.slane %v222, %v556
    %v558 = vlaneseq
    %v559 = vshrl.u32 %v558, 7
    %v560 = vsub.s32 0, %v559
    %v561 = vrot.slane %v223, %v560
    %v566 = vunpack.c.l.b16 %v550
    %v567 = vunpack.c.h.b16 %v550
    %v568 = vunpack.c.l.b16 %v551
    %v569 = vunpack.c.h.b16 %v551
    %v570 = vunpack.c.l.b16 %v552
    %v571 = vunpack.c.h.b16 %v552
    %v572 = vunpack.c.l.b16 %v553
    %v573 = vunpack.c.h.b16 %v553
    %v574 = vpack.c.b16 %v568, %v566
    %v575 = vpack.c.b16 %v569, %v567
    %v576 = vpack.c.b16 %v572, %v570
    %v577 = vpack.c.b16 %v573, %v571
    %vm582 = vcmask 261120
    %v584 = vsel %vm582, %v548, 0
    %v587 = vsel %vm582, %v549, 0
    %589 = vmatprep.subr.bf16.mxu0 %v575
    %590 = vmatpush1.bf16.msra.mxu0 %v574
    %591 = vmatprep.subr.bf16.mxu0 %v577
    %592 = vmatpush1.bf16.msra.mxu0 %v576
    %593 = vmatprep.subr.bf16.mxu0 0
    %594 = vmatpush1.bf16.msra.mxu0 0
    %595 = vmatprep.subr.bf16.mxu0 0
    %596 = vmatpush1.bf16.msra.mxu0 0
    %597 = vmatprep.subr.bf16.mxu0 0
    %598 = vmatpush1.bf16.msra.mxu0 0
    %599 = vmatprep.subr.bf16.mxu0 0
    %600 = vmatpush1.bf16.msra.mxu0 0
    %601 = vmatprep.subr.bf16.mxu0 0
    %602 = vmatpush1.bf16.msra.mxu0 0
    %603 = vmatprep.subr.bf16.mxu0 0
    %604 = vmatpush1.bf16.msra.mxu0 0
    %605 = vmatprep.subr.bf16.mxu0 0
    %606 = vmatpush1.bf16.msra.mxu0 0
    %607 = vmatprep.subr.bf16.mxu0 0
    %608 = vmatpush1.bf16.msra.mxu0 0
    %609 = vmatprep.subr.bf16.mxu0 0
    %610 = vmatpush1.bf16.msra.mxu0 0
    %611 = vmatprep.subr.bf16.mxu0 0
    %612 = vmatpush1.bf16.msra.mxu0 0
    %613 = vmatprep.subr.bf16.mxu0 0
    %614 = vmatpush1.bf16.msra.mxu0 0
    %615 = vmatprep.subr.bf16.mxu0 0
    %616 = vmatpush1.bf16.msra.mxu0 0
    %617 = vmatprep.subr.bf16.mxu0 0
    %618 = vmatpush1.bf16.msra.mxu0 0
    %619 = vmatprep.subr.bf16.mxu0 0
    %620 = vmatpush1.bf16.msra.mxu0 0
    %621 = vmatprep.mubr.bf16.mxu0 0
    %622 = vmatmul.mubr.bf16.gmra.mrb[0].mxu0 %v584
    %v623 = vpop.f32.mrb[0].mxu0
    %v624 = vadd.f32 %v557, %v623
    %v625 = vpop.f32.mrb[0].mxu0
    %v626 = vadd.f32 %v561, %v625
    %v627 = vpop.f32.mrb[0].mxu0
    %v628 = vadd.f32 %v557, %v627
    %v629 = vpop.f32.mrb[0].mxu0
    %v630 = vadd.f32 %v561, %v629
    %631 = vmatprep.mubr.bf16.mxu0 0
    %632 = vmatmul.mubr.bf16.gmra.mrb[0].mxu0 %v587
    %v633 = vpop.f32.mrb[0].mxu0
    %v634 = vadd.f32 %v557, %v633
    %v635 = vpop.f32.mrb[0].mxu0
    %v636 = vadd.f32 %v561, %v635
    %v637 = vpop.f32.mrb[0].mxu0
    %v638 = vadd.f32 %v557, %v637
    %v639 = vpop.f32.mrb[0].mxu0
    %v640 = vadd.f32 %v561, %v639
    %641 = vdwg.mxu0
    %644 = vrot.lane.b32.xlu0 %v524, 32
    %v645 = vpop.permute.xlu0 %644
    %646 = vrot.lane.b32.xlu0 %v527, 32
    %v647 = vpop.permute.xlu0 %646
    %v650 = vsel %vm582, %v516, %v645
    %v651 = vsel %vm582, %v519, %v647
    %v652 = vpack.c.bf16 %v651, %v650
    %v653 = vld [vmem:[#allocation16] sm:$0xff]
    %v654 = vld [vmem:[#allocation16 + $0x8] sm:$0xff]
    %v655 = vld [vmem:[#allocation16 + $0x10] sm:$0xff]
    %v656 = vld [vmem:[#allocation16 + $0x18] sm:$0xff]
    %v657 = vld [vmem:[#allocation16 + $0x20] sm:$0xff]
    %v658 = vld [vmem:[#allocation16 + $0x28] sm:$0xff]
    %v659 = vld [vmem:[#allocation16 + $0x30] sm:$0xff]
    %v660 = vld [vmem:[#allocation16 + $0x38] sm:$0xff]
    %v661 = vlaneseq
    %v662 = vshrl.u32 %v661, 7
    %v663 = vsub.s32 1, %v662
    %v664 = vrot.slane %v222, %v663
    %v665 = vlaneseq
    %v666 = vshrl.u32 %v665, 7
    %v667 = vsub.s32 1, %v666
    %v668 = vrot.slane %v223, %v667
    %v677 = vunpack.c.l.b16 %v653
    %v678 = vunpack.c.h.b16 %v653
    %v679 = vunpack.c.l.b16 %v654
    %v680 = vunpack.c.h.b16 %v654
    %v681 = vunpack.c.l.b16 %v655
    %v682 = vunpack.c.h.b16 %v655
    %v683 = vunpack.c.l.b16 %v656
    %v684 = vunpack.c.h.b16 %v656
    %v685 = vunpack.c.l.b16 %v657
    %v686 = vunpack.c.h.b16 %v657
    %v687 = vunpack.c.l.b16 %v658
    %v688 = vunpack.c.h.b16 %v658
    %v689 = vunpack.c.l.b16 %v659
    %v690 = vunpack.c.h.b16 %v659
    %v691 = vunpack.c.l.b16 %v660
    %v692 = vunpack.c.h.b16 %v660
    %v693 = vpack.c.b16 %v679, %v677
    %v694 = vpack.c.b16 %v680, %v678
    %v695 = vpack.c.b16 %v683, %v681
    %v696 = vpack.c.b16 %v684, %v682
    %v697 = vpack.c.b16 %v687, %v685
    %v698 = vpack.c.b16 %v688, %v686
    %v699 = vpack.c.b16 %v691, %v689
    %v700 = vpack.c.b16 %v692, %v690
    %vm709 = vcmask 523264
    %v711 = vsel %vm709, %v652, 0
    %713 = vmatprep.subr.bf16.mxu0 %v694
    %714 = vmatpush1.bf16.msra.mxu0 %v693
    %715 = vmatprep.subr.bf16.mxu0 %v696
    %716 = vmatpush1.bf16.msra.mxu0 %v695
    %717 = vmatprep.subr.bf16.mxu0 %v698
    %718 = vmatpush1.bf16.msra.mxu0 %v697
    %719 = vmatprep.subr.bf16.mxu0 %v700
    %720 = vmatpush1.bf16.msra.mxu0 %v699
    %721 = vmatprep.subr.bf16.mxu0 0
    %722 = vmatpush1.bf16.msra.mxu0 0
    %723 = vmatprep.subr.bf16.mxu0 0
    %724 = vmatpush1.bf16.msra.mxu0 0
    %725 = vmatprep.subr.bf16.mxu0 0
    %726 = vmatpush1.bf16.msra.mxu0 0
    %727 = vmatprep.subr.bf16.mxu0 0
    %728 = vmatpush1.bf16.msra.mxu0 0
    %729 = vmatprep.subr.bf16.mxu0 0
    %730 = vmatpush1.bf16.msra.mxu0 0
    %731 = vmatprep.subr.bf16.mxu0 0
    %732 = vmatpush1.bf16.msra.mxu0 0
    %733 = vmatprep.subr.bf16.mxu0 0
    %734 = vmatpush1.bf16.msra.mxu0 0
    %735 = vmatprep.subr.bf16.mxu0 0
    %736 = vmatpush1.bf16.msra.mxu0 0
    %737 = vmatprep.subr.bf16.mxu0 0
    %738 = vmatpush1.bf16.msra.mxu0 0
    %739 = vmatprep.subr.bf16.mxu0 0
    %740 = vmatpush1.bf16.msra.mxu0 0
    %741 = vmatprep.subr.bf16.mxu0 0
    %742 = vmatpush1.bf16.msra.mxu0 0
    %743 = vmatprep.subr.bf16.mxu0 0
    %744 = vmatpush1.bf16.msra.mxu0 0
    %745 = vmatprep.mubr.bf16.mxu0 0
    %746 = vmatmul.mubr.bf16.gmra.mrb[0].mxu0 %v711
    %v747 = vpop.f32.mrb[0].mxu0
    %v748 = vadd.f32 %v664, %v747
    %v749 = vpop.f32.mrb[0].mxu0
    %v750 = vadd.f32 %v668, %v749
    %v751 = vpop.f32.mrb[0].mxu0
    %v752 = vadd.f32 %v664, %v751
    %v753 = vpop.f32.mrb[0].mxu0
    %v754 = vadd.f32 %v668, %v753
    %755 = vdwg.mxu0
    %760 = vrot.lane.b32.xlu0 %v626, 64
    %v761 = vpop.permute.xlu0 %760
    %762 = vrot.lane.b32.xlu0 %v630, 64
    %v763 = vpop.permute.xlu0 %762
    %764 = vrot.lane.b32.xlu0 %v636, 64
    %v765 = vpop.permute.xlu0 %764
    %766 = vrot.lane.b32.xlu0 %v640, 64
    %v767 = vpop.permute.xlu0 %766
    %v772 = vpack.c.bf16 %v748, %v748
    %v773 = vpack.c.bf16 %v752, %v752
    %v774 = vpack.c.bf16 %v750, %v750
    %v775 = vpack.c.bf16 %v754, %v754
    %v776 = vpack.c.bf16 %v628, %v624
    %v777 = vpack.c.bf16 %v638, %v634
    %v778 = vpack.c.bf16 %v763, %v761
    %v779 = vpack.c.bf16 %v767, %v765
    %781 = vrot.lane.b32.xlu0 %v776, 64
    %v782 = vpop.permute.xlu0 %781
    %vm783 = vcmask 64512
    %v785 = vsel %vm783, %v772, 0
    %v788 = vsel %vm783, %v782, 0
    %790 = vmatprep.subr.bf16.mxu0 0
    %791 = vmatpush1.bf16.xpose.msra.mxu0 %v788
    %792 = vmatprep.subr.bf16.mxu0 0
    %793 = vmatpush1.bf16.xpose.msra.mxu0 0
    %794 = vmatprep.subr.bf16.mxu0 0
    %795 = vmatpush1.bf16.xpose.msra.mxu0 0
    %796 = vmatprep.subr.bf16.mxu0 0
    %797 = vmatpush1.bf16.xpose.msra.mxu0 0
    %798 = vmatprep.subr.bf16.mxu0 0
    %799 = vmatpush1.bf16.xpose.msra.mxu0 0
    %800 = vmatprep.subr.bf16.mxu0 0
    %801 = vmatpush1.bf16.xpose.msra.mxu0 0
    %802 = vmatprep.subr.bf16.mxu0 0
    %803 = vmatpush1.bf16.xpose.msra.mxu0 0
    %804 = vmatprep.subr.bf16.mxu0 0
    %805 = vmatpush1.bf16.xpose.msra.mxu0 0
    %806 = vmatprep.subr.bf16.mxu0 0
    %807 = vmatpush1.bf16.xpose.msra.mxu0 0
    %808 = vmatprep.subr.bf16.mxu0 0
    %809 = vmatpush1.bf16.xpose.msra.mxu0 0
    %810 = vmatprep.subr.bf16.mxu0 0
    %811 = vmatpush1.bf16.xpose.msra.mxu0 0
    %812 = vmatprep.subr.bf16.mxu0 0
    %813 = vmatpush1.bf16.xpose.msra.mxu0 0
    %814 = vmatprep.subr.bf16.mxu0 0
    %815 = vmatpush1.bf16.xpose.msra.mxu0 0
    %816 = vmatprep.subr.bf16.mxu0 0
    %817 = vmatpush1.bf16.xpose.msra.mxu0 0
    %818 = vmatprep.subr.bf16.mxu0 0
    %819 = vmatpush1.bf16.xpose.msra.mxu0 0
    %820 = vmatprep.subr.bf16.mxu0 0
    %821 = vmatpush1.bf16.xpose.msra.mxu0 0
    %822 = vmatprep.mubr.bf16.mxu0 0
    %823 = vmatmul.mubr.bf16.gmra.mrb[0].mxu0 %v785
    %v824 = vpop.f32.mrb[0].mxu0
    %v825 = vadd.f32 0.0, %v824
    %v826 = vpop.f32.mrb[0].mxu0
    %v827 = vpop.f32.mrb[0].mxu0
    %v828 = vpop.f32.mrb[0].mxu0
    %829 = vdwg.mxu0
    %831 = vrot.lane.b32.xlu0 %v777, 64
    %v832 = vpop.permute.xlu0 %831
    %v834 = vsel %vm783, %v773, 0
    %v837 = vsel %vm783, %v832, 0
    %839 = vmatprep.subr.bf16.mxu0 0
    %840 = vmatpush1.bf16.xpose.msra.mxu0 %v837
    %841 = vmatprep.subr.bf16.mxu0 0
    %842 = vmatpush1.bf16.xpose.msra.mxu0 0
    %843 = vmatprep.subr.bf16.mxu0 0
    %844 = vmatpush1.bf16.xpose.msra.mxu0 0
    %845 = vmatprep.subr.bf16.mxu0 0
    %846 = vmatpush1.bf16.xpose.msra.mxu0 0
    %847 = vmatprep.subr.bf16.mxu0 0
    %848 = vmatpush1.bf16.xpose.msra.mxu0 0
    %849 = vmatprep.subr.bf16.mxu0 0
    %850 = vmatpush1.bf16.xpose.msra.mxu0 0
    %851 = vmatprep.subr.bf16.mxu0 0
    %852 = vmatpush1.bf16.xpose.msra.mxu0 0
    %853 = vmatprep.subr.bf16.mxu0 0
    %854 = vmatpush1.bf16.xpose.msra.mxu0 0
    %855 = vmatprep.subr.bf16.mxu0 0
    %856 = vmatpush1.bf16.xpose.msra.mxu0 0
    %857 = vmatprep.subr.bf16.mxu0 0
    %858 = vmatpush1.bf16.xpose.msra.mxu0 0
    %859 = vmatprep.subr.bf16.mxu0 0
    %860 = vmatpush1.bf16.xpose.msra.mxu0 0
    %861 = vmatprep.subr.bf16.mxu0 0
    %862 = vmatpush1.bf16.xpose.msra.mxu0 0
    %863 = vmatprep.subr.bf16.mxu0 0
    %864 = vmatpush1.bf16.xpose.msra.mxu0 0
    %865 = vmatprep.subr.bf16.mxu0 0
    %866 = vmatpush1.bf16.xpose.msra.mxu0 0
    %867 = vmatprep.subr.bf16.mxu0 0
    %868 = vmatpush1.bf16.xpose.msra.mxu0 0
    %869 = vmatprep.subr.bf16.mxu0 0
    %870 = vmatpush1.bf16.xpose.msra.mxu0 0
    %871 = vmatprep.mubr.bf16.mxu0 0
    %872 = vmatmul.mubr.bf16.gmra.mrb[0].mxu0 %v834
    %v873 = vpop.f32.mrb[0].mxu0
    %v874 = vadd.f32 0.0, %v873
    %v875 = vpop.f32.mrb[0].mxu0
    %v876 = vpop.f32.mrb[0].mxu0
    %v877 = vpop.f32.mrb[0].mxu0
    %878 = vdwg.mxu0
    %880 = vrot.lane.b32.xlu0 %v778, 64
    %v881 = vpop.permute.xlu0 %880
    %v883 = vsel %vm783, %v774, 0
    %v886 = vsel %vm783, %v881, 0
    %888 = vmatprep.subr.bf16.mxu0 0
    %889 = vmatpush1.bf16.xpose.msra.mxu0 %v886
    %890 = vmatprep.subr.bf16.mxu0 0
    %891 = vmatpush1.bf16.xpose.msra.mxu0 0
    %892 = vmatprep.subr.bf16.mxu0 0
    %893 = vmatpush1.bf16.xpose.msra.mxu0 0
    %894 = vmatprep.subr.bf16.mxu0 0
    %895 = vmatpush1.bf16.xpose.msra.mxu0 0
    %896 = vmatprep.subr.bf16.mxu0 0
    %897 = vmatpush1.bf16.xpose.msra.mxu0 0
    %898 = vmatprep.subr.bf16.mxu0 0
    %899 = vmatpush1.bf16.xpose.msra.mxu0 0
    %900 = vmatprep.subr.bf16.mxu0 0
    %901 = vmatpush1.bf16.xpose.msra.mxu0 0
    %902 = vmatprep.subr.bf16.mxu0 0
    %903 = vmatpush1.bf16.xpose.msra.mxu0 0
    %904 = vmatprep.subr.bf16.mxu0 0
    %905 = vmatpush1.bf16.xpose.msra.mxu0 0
    %906 = vmatprep.subr.bf16.mxu0 0
    %907 = vmatpush1.bf16.xpose.msra.mxu0 0
    %908 = vmatprep.subr.bf16.mxu0 0
    %909 = vmatpush1.bf16.xpose.msra.mxu0 0
    %910 = vmatprep.subr.bf16.mxu0 0
    %911 = vmatpush1.bf16.xpose.msra.mxu0 0
    %912 = vmatprep.subr.bf16.mxu0 0
    %913 = vmatpush1.bf16.xpose.msra.mxu0 0
    %914 = vmatprep.subr.bf16.mxu0 0
    %915 = vmatpush1.bf16.xpose.msra.mxu0 0
    %916 = vmatprep.subr.bf16.mxu0 0
    %917 = vmatpush1.bf16.xpose.msra.mxu0 0
    %918 = vmatprep.subr.bf16.mxu0 0
    %919 = vmatpush1.bf16.xpose.msra.mxu0 0
    %920 = vmatprep.mubr.bf16.mxu0 0
    %921 = vmatmul.mubr.bf16.gmra.mrb[0].mxu0 %v883
    %v922 = vpop.f32.mrb[0].mxu0
    %v923 = vadd.f32 0.0, %v922
    %v924 = vpop.f32.mrb[0].mxu0
    %v925 = vpop.f32.mrb[0].mxu0
    %v926 = vpop.f32.mrb[0].mxu0
    %927 = vdwg.mxu0
    %929 = vrot.lane.b32.xlu0 %v779, 64
    %v930 = vpop.permute.xlu0 %929
    %v932 = vsel %vm783, %v775, 0
    %v935 = vsel %vm783, %v930, 0
    %937 = vmatprep.subr.bf16.mxu0 0
    %938 = vmatpush1.bf16.xpose.msra.mxu0 %v935
    %939 = vmatprep.subr.bf16.mxu0 0
    %940 = vmatpush1.bf16.xpose.msra.mxu0 0
    %941 = vmatprep.subr.bf16.mxu0 0
    %942 = vmatpush1.bf16.xpose.msra.mxu0 0
    %943 = vmatprep.subr.bf16.mxu0 0
    %944 = vmatpush1.bf16.xpose.msra.mxu0 0
    %945 = vmatprep.subr.bf16.mxu0 0
    %946 = vmatpush1.bf16.xpose.msra.mxu0 0
    %947 = vmatprep.subr.bf16.mxu0 0
    %948 = vmatpush1.bf16.xpose.msra.mxu0 0
    %949 = vmatprep.subr.bf16.mxu0 0
    %950 = vmatpush1.bf16.xpose.msra.mxu0 0
    %951 = vmatprep.subr.bf16.mxu0 0
    %952 = vmatpush1.bf16.xpose.msra.mxu0 0
    %953 = vmatprep.subr.bf16.mxu0 0
    %954 = vmatpush1.bf16.xpose.msra.mxu0 0
    %955 = vmatprep.subr.bf16.mxu0 0
    %956 = vmatpush1.bf16.xpose.msra.mxu0 0
    %957 = vmatprep.subr.bf16.mxu0 0
    %958 = vmatpush1.bf16.xpose.msra.mxu0 0
    %959 = vmatprep.subr.bf16.mxu0 0
    %960 = vmatpush1.bf16.xpose.msra.mxu0 0
    %961 = vmatprep.subr.bf16.mxu0 0
    %962 = vmatpush1.bf16.xpose.msra.mxu0 0
    %963 = vmatprep.subr.bf16.mxu0 0
    %964 = vmatpush1.bf16.xpose.msra.mxu0 0
    %965 = vmatprep.subr.bf16.mxu0 0
    %966 = vmatpush1.bf16.xpose.msra.mxu0 0
    %967 = vmatprep.subr.bf16.mxu0 0
    %968 = vmatpush1.bf16.xpose.msra.mxu0 0
    %969 = vmatprep.mubr.bf16.mxu0 0
    %970 = vmatmul.mubr.bf16.gmra.mrb[0].mxu0 %v932
    %v971 = vpop.f32.mrb[0].mxu0
    %v972 = vadd.f32 0.0, %v971
    %v973 = vpop.f32.mrb[0].mxu0
    %v974 = vpop.f32.mrb[0].mxu0
    %v975 = vpop.f32.mrb[0].mxu0
    %976 = vdwg.mxu0
    %v977 = vmul.f32 %v825, 0.35355338
    %v978 = vmul.f32 %v874, 0.35355338
    %v979 = vmul.f32 %v923, 0.35355338
    %v980 = vmul.f32 %v972, 0.35355338
    %v983 = vlaneseq
    %v984 = vshrl.u32 %v983, 7
    %v985 = vsub.s32 0, %v984
    %v986 = vrot.slane %v538, %v985
    %v987 = vlaneseq
    %v988 = vshrl.u32 %v987, 7
    %v989 = vsub.s32 0, %v988
    %v990 = vrot.slane %v539, %v989
    %v993 = vadd.f32 %v977, %v986
    %v994 = vadd.f32 %v978, %v990
    %v995 = vadd.f32 %v979, %v986
    %v996 = vadd.f32 %v980, %v990
    %vm997 = vcmask 130048
    %v998 = vsel %vm997, %v993, -inf
    %999 = vmax.xlane.f32.xlu0 %v998
    %v1000 = vpop.xlane.xlu0 %999
    %v1001 = vsel %vm997, %v994, -inf
    %1002 = vmax.xlane.f32.xlu0 %v1001
    %v1003 = vpop.xlane.xlu0 %1002
    %v1004 = vsel %vm997, %v995, -inf
    %1005 = vmax.xlane.f32.xlu0 %v1004
    %v1006 = vpop.xlane.xlu0 %1005
    %v1007 = vsel %vm997, %v996, -inf
    %1008 = vmax.xlane.f32.xlu0 %v1007
    %v1009 = vpop.xlane.xlu0 %1008
    %v1010 = vsub.f32 %v993, %v1000
    %v1011 = vsub.f32 %v994, %v1003
    %v1012 = vsub.f32 %v995, %v1006
    %v1013 = vsub.f32 %v996, %v1009
    %v1014 = vmul.f32 %v1010, 1.442695
    %v1015 = vpow.pop %v1014
    %v1016 = vmul.f32 %v1011, 1.442695
    %v1017 = vpow.pop %v1016
    %v1018 = vmul.f32 %v1012, 1.442695
    %v1019 = vpow.pop %v1018
    %v1020 = vmul.f32 %v1013, 1.442695
    %v1021 = vpow.pop %v1020
    %v1022 = vsel %vm997, %v1015, 0.0
    %1023 = vadd.xlane.f32.xlu0 %v1022
    %v1024 = vpop.xlane.xlu0 %1023
    %v1025 = vsel %vm997, %v1017, 0.0
    %1026 = vadd.xlane.f32.xlu0 %v1025
    %v1027 = vpop.xlane.xlu0 %1026
    %v1028 = vsel %vm997, %v1019, 0.0
    %1029 = vadd.xlane.f32.xlu0 %v1028
    %v1030 = vpop.xlane.xlu0 %1029
    %v1031 = vsel %vm997, %v1021, 0.0
    %1032 = vadd.xlane.f32.xlu0 %v1031
    %v1033 = vpop.xlane.xlu0 %1032
    %v1034 = vrcp.pop %v1024
    %v1035 = vmul.f32 %v1015, %v1034
    %v1036 = vrcp.pop %v1027
    %v1037 = vmul.f32 %v1017, %v1036
    %v1038 = vrcp.pop %v1030
    %v1039 = vmul.f32 %v1019, %v1038
    %v1040 = vrcp.pop %v1033
    %v1041 = vmul.f32 %v1021, %v1040
    %v1042 = vpack.c.bf16 %v1035, %v1035
    %v1043 = vpack.c.bf16 %v1037, %v1037
    %v1044 = vpack.c.bf16 %v1039, %v1039
    %v1045 = vpack.c.bf16 %v1041, %v1041
    %1046 = vrot.lane.b32.xlu0 %v776, 32
    %v1047 = vpop.permute.xlu0 %1046
    %v1050 = vsel %vm997, %v1042, 0
    %1052 = vmatprep.subr.bf16.mxu0 0
    %1053 = vmatpush1.bf16.msra.mxu0 %v1047
    %1054 = vmatprep.subr.bf16.mxu0 0
    %1055 = vmatpush1.bf16.msra.mxu0 0
    %1056 = vmatprep.subr.bf16.mxu0 0
    %1057 = vmatpush1.bf16.msra.mxu0 0
    %1058 = vmatprep.subr.bf16.mxu0 0
    %1059 = vmatpush1.bf16.msra.mxu0 0
    %1060 = vmatprep.subr.bf16.mxu0 0
    %1061 = vmatpush1.bf16.msra.mxu0 0
    %1062 = vmatprep.subr.bf16.mxu0 0
    %1063 = vmatpush1.bf16.msra.mxu0 0
    %1064 = vmatprep.subr.bf16.mxu0 0
    %1065 = vmatpush1.bf16.msra.mxu0 0
    %1066 = vmatprep.subr.bf16.mxu0 0
    %1067 = vmatpush1.bf16.msra.mxu0 0
    %1068 = vmatprep.subr.bf16.mxu0 0
    %1069 = vmatpush1.bf16.msra.mxu0 0
    %1070 = vmatprep.subr.bf16.mxu0 0
    %1071 = vmatpush1.bf16.msra.mxu0 0
    %1072 = vmatprep.subr.bf16.mxu0 0
    %1073 = vmatpush1.bf16.msra.mxu0 0
    %1074 = vmatprep.subr.bf16.mxu0 0
    %1075 = vmatpush1.bf16.msra.mxu0 0
    %1076 = vmatprep.subr.bf16.mxu0 0
    %1077 = vmatpush1.bf16.msra.mxu0 0
    %1078 = vmatprep.subr.bf16.mxu0 0
    %1079 = vmatpush1.bf16.msra.mxu0 0
    %1080 = vmatprep.subr.bf16.mxu0 0
    %1081 = vmatpush1.bf16.msra.mxu0 0
    %1082 = vmatprep.subr.bf16.mxu0 0
    %1083 = vmatpush1.bf16.msra.mxu0 0
    %1084 = vmatprep.mubr.bf16.mxu0 0
    %1085 = vmatmul.mubr.bf16.gmra.mrb[0].mxu0 %v1050
    %v1086 = vpop.f32.mrb[0].mxu0
    %v1087 = vadd.f32 0.0, %v1086
    %v1088 = vpop.f32.mrb[0].mxu0
    %v1089 = vpop.f32.mrb[0].mxu0
    %v1090 = vpop.f32.mrb[0].mxu0
    %1091 = vdwg.mxu0
    %1092 = vrot.lane.b32.xlu0 %v777, 32
    %v1093 = vpop.permute.xlu0 %1092
    %v1096 = vsel %vm997, %v1043, 0
    %1098 = vmatprep.subr.bf16.mxu0 0
    %1099 = vmatpush1.bf16.msra.mxu0 %v1093
    %1100 = vmatprep.subr.bf16.mxu0 0
    %1101 = vmatpush1.bf16.msra.mxu0 0
    %1102 = vmatprep.subr.bf16.mxu0 0
    %1103 = vmatpush1.bf16.msra.mxu0 0
    %1104 = vmatprep.subr.bf16.mxu0 0
    %1105 = vmatpush1.bf16.msra.mxu0 0
    %1106 = vmatprep.subr.bf16.mxu0 0
    %1107 = vmatpush1.bf16.msra.mxu0 0
    %1108 = vmatprep.subr.bf16.mxu0 0
    %1109 = vmatpush1.bf16.msra.mxu0 0
    %1110 = vmatprep.subr.bf16.mxu0 0
    %1111 = vmatpush1.bf16.msra.mxu0 0
    %1112 = vmatprep.subr.bf16.mxu0 0
    %1113 = vmatpush1.bf16.msra.mxu0 0
    %1114 = vmatprep.subr.bf16.mxu0 0
    %1115 = vmatpush1.bf16.msra.mxu0 0
    %1116 = vmatprep.subr.bf16.mxu0 0
    %1117 = vmatpush1.bf16.msra.mxu0 0
    %1118 = vmatprep.subr.bf16.mxu0 0
    %1119 = vmatpush1.bf16.msra.mxu0 0
    %1120 = vmatprep.subr.bf16.mxu0 0
    %1121 = vmatpush1.bf16.msra.mxu0 0
    %1122 = vmatprep.subr.bf16.mxu0 0
    %1123 = vmatpush1.bf16.msra.mxu0 0
    %1124 = vmatprep.subr.bf16.mxu0 0
    %1125 = vmatpush1.bf16.msra.mxu0 0
    %1126 = vmatprep.subr.bf16.mxu0 0
    %1127 = vmatpush1.bf16.msra.mxu0 0
    %1128 = vmatprep.subr.bf16.mxu0 0
    %1129 = vmatpush1.bf16.msra.mxu0 0
    %1130 = vmatprep.mubr.bf16.mxu0 0
    %1131 = vmatmul.mubr.bf16.gmra.mrb[0].mxu0 %v1096
    %v1132 = vpop.f32.mrb[0].mxu0
    %v1133 = vadd.f32 0.0, %v1132
    %v1134 = vpop.f32.mrb[0].mxu0
    %v1135 = vpop.f32.mrb[0].mxu0
    %v1136 = vpop.f32.mrb[0].mxu0
    %1137 = vdwg.mxu0
    %1138 = vrot.lane.b32.xlu0 %v778, 32
    %v1139 = vpop.permute.xlu0 %1138
    %v1142 = vsel %vm997, %v1044, 0
    %1144 = vmatprep.subr.bf16.mxu0 0
    %1145 = vmatpush1.bf16.msra.mxu0 %v1139
    %1146 = vmatprep.subr.bf16.mxu0 0
    %1147 = vmatpush1.bf16.msra.mxu0 0
    %1148 = vmatprep.subr.bf16.mxu0 0
    %1149 = vmatpush1.bf16.msra.mxu0 0
    %1150 = vmatprep.subr.bf16.mxu0 0
    %1151 = vmatpush1.bf16.msra.mxu0 0
    %1152 = vmatprep.subr.bf16.mxu0 0
    %1153 = vmatpush1.bf16.msra.mxu0 0
    %1154 = vmatprep.subr.bf16.mxu0 0
    %1155 = vmatpush1.bf16.msra.mxu0 0
    %1156 = vmatprep.subr.bf16.mxu0 0
    %1157 = vmatpush1.bf16.msra.mxu0 0
    %1158 = vmatprep.subr.bf16.mxu0 0
    %1159 = vmatpush1.bf16.msra.mxu0 0
    %1160 = vmatprep.subr.bf16.mxu0 0
    %1161 = vmatpush1.bf16.msra.mxu0 0
    %1162 = vmatprep.subr.bf16.mxu0 0
    %1163 = vmatpush1.bf16.msra.mxu0 0
    %1164 = vmatprep.subr.bf16.mxu0 0
    %1165 = vmatpush1.bf16.msra.mxu0 0
    %1166 = vmatprep.subr.bf16.mxu0 0
    %1167 = vmatpush1.bf16.msra.mxu0 0
    %1168 = vmatprep.subr.bf16.mxu0 0
    %1169 = vmatpush1.bf16.msra.mxu0 0
    %1170 = vmatprep.subr.bf16.mxu0 0
    %1171 = vmatpush1.bf16.msra.mxu0 0
    %1172 = vmatprep.subr.bf16.mxu0 0
    %1173 = vmatpush1.bf16.msra.mxu0 0
    %1174 = vmatprep.subr.bf16.mxu0 0
    %1175 = vmatpush1.bf16.msra.mxu0 0
    %1176 = vmatprep.mubr.bf16.mxu0 0
    %1177 = vmatmul.mubr.bf16.gmra.mrb[0].mxu0 %v1142
    %v1178 = vpop.f32.mrb[0].mxu0
    %v1179 = vadd.f32 0.0, %v1178
    %v1180 = vpop.f32.mrb[0].mxu0
    %v1181 = vpop.f32.mrb[0].mxu0
    %v1182 = vpop.f32.mrb[0].mxu0
    %1183 = vdwg.mxu0
    %1184 = vrot.lane.b32.xlu0 %v779, 32
    %v1185 = vpop.permute.xlu0 %1184
    %v1188 = vsel %vm997, %v1045, 0
    %1190 = vmatprep.subr.bf16.mxu0 0
    %1191 = vmatpush1.bf16.msra.mxu0 %v1185
    %1192 = vmatprep.subr.bf16.mxu0 0
    %1193 = vmatpush1.bf16.msra.mxu0 0
    %1194 = vmatprep.subr.bf16.mxu0 0
    %1195 = vmatpush1.bf16.msra.mxu0 0
    %1196 = vmatprep.subr.bf16.mxu0 0
    %1197 = vmatpush1.bf16.msra.mxu0 0
    %1198 = vmatprep.subr.bf16.mxu0 0
    %1199 = vmatpush1.bf16.msra.mxu0 0
    %1200 = vmatprep.subr.bf16.mxu0 0
    %1201 = vmatpush1.bf16.msra.mxu0 0
    %1202 = vmatprep.subr.bf16.mxu0 0
    %1203 = vmatpush1.bf16.msra.mxu0 0
    %1204 = vmatprep.subr.bf16.mxu0 0
    %1205 = vmatpush1.bf16.msra.mxu0 0
    %1206 = vmatprep.subr.bf16.mxu0 0
    %1207 = vmatpush1.bf16.msra.mxu0 0
    %1208 = vmatprep.subr.bf16.mxu0 0
    %1209 = vmatpush1.bf16.msra.mxu0 0
    %1210 = vmatprep.subr.bf16.mxu0 0
    %1211 = vmatpush1.bf16.msra.mxu0 0
    %1212 = vmatprep.subr.bf16.mxu0 0
    %1213 = vmatpush1.bf16.msra.mxu0 0
    %1214 = vmatprep.subr.bf16.mxu0 0
    %1215 = vmatpush1.bf16.msra.mxu0 0
    %1216 = vmatprep.subr.bf16.mxu0 0
    %1217 = vmatpush1.bf16.msra.mxu0 0
    %1218 = vmatprep.subr.bf16.mxu0 0
    %1219 = vmatpush1.bf16.msra.mxu0 0
    %1220 = vmatprep.subr.bf16.mxu0 0
    %1221 = vmatpush1.bf16.msra.mxu0 0
    %1222 = vmatprep.mubr.bf16.mxu0 0
    %1223 = vmatmul.mubr.bf16.gmra.mrb[0].mxu0 %v1188
    %v1224 = vpop.f32.mrb[0].mxu0
    %v1225 = vadd.f32 0.0, %v1224
    %v1226 = vpop.f32.mrb[0].mxu0
    %v1227 = vpop.f32.mrb[0].mxu0
    %v1228 = vpop.f32.mrb[0].mxu0
    %1229 = vdwg.mxu0
    %1231 = vrot.lane.b32.xlu0 %v772, 120
    %v1232 = vpop.permute.xlu0 %1231
    %1233 = vrot.lane.b32.xlu0 %v776, 56
    %v1234 = vpop.permute.xlu0 %1233
    %v1236 = vsel %vm783, %v1232, 0
    %v1239 = vsel %vm783, %v1234, 0
    %1241 = vmatprep.subr.bf16.mxu0 0
    %1242 = vmatpush1.bf16.xpose.msra.mxu0 %v1239
    %1243 = vmatprep.subr.bf16.mxu0 0
    %1244 = vmatpush1.bf16.xpose.msra.mxu0 0
    %1245 = vmatprep.subr.bf16.mxu0 0
    %1246 = vmatpush1.bf16.xpose.msra.mxu0 0
    %1247 = vmatprep.subr.bf16.mxu0 0
    %1248 = vmatpush1.bf16.xpose.msra.mxu0 0
    %1249 = vmatprep.subr.bf16.mxu0 0
    %1250 = vmatpush1.bf16.xpose.msra.mxu0 0
    %1251 = vmatprep.subr.bf16.mxu0 0
    %1252 = vmatpush1.bf16.xpose.msra.mxu0 0
    %1253 = vmatprep.subr.bf16.mxu0 0
    %1254 = vmatpush1.bf16.xpose.msra.mxu0 0
    %1255 = vmatprep.subr.bf16.mxu0 0
    %1256 = vmatpush1.bf16.xpose.msra.mxu0 0
    %1257 = vmatprep.subr.bf16.mxu0 0
    %1258 = vmatpush1.bf16.xpose.msra.mxu0 0
    %1259 = vmatprep.subr.bf16.mxu0 0
    %1260 = vmatpush1.bf16.xpose.msra.mxu0 0
    %1261 = vmatprep.subr.bf16.mxu0 0
    %1262 = vmatpush1.bf16.xpose.msra.mxu0 0
    %1263 = vmatprep.subr.bf16.mxu0 0
    %1264 = vmatpush1.bf16.xpose.msra.mxu0 0
    %1265 = vmatprep.subr.bf16.mxu0 0
    %1266 = vmatpush1.bf16.xpose.msra.mxu0 0
    %1267 = vmatprep.subr.bf16.mxu0 0
    %1268 = vmatpush1.bf16.xpose.msra.mxu0 0
    %1269 = vmatprep.subr.bf16.mxu0 0
    %1270 = vmatpush1.bf16.xpose.msra.mxu0 0
    %1271 = vmatprep.subr.bf16.mxu0 0
    %1272 = vmatpush1.bf16.xpose.msra.mxu0 0
    %1273 = vmatprep.mubr.bf16.mxu0 0
    %1274 = vmatmul.mubr.bf16.gmra.mrb[0].mxu0 %v1236
    %v1275 = vpop.f32.mrb[0].mxu0
    %v1276 = vadd.f32 0.0, %v1275
    %v1277 = vpop.f32.mrb[0].mxu0
    %v1278 = vpop.f32.mrb[0].mxu0
    %v1279 = vpop.f32.mrb[0].mxu0
    %1280 = vdwg.mxu0
    %1282 = vrot.lane.b32.xlu0 %v773, 120
    %v1283 = vpop.permute.xlu0 %1282
    %1284 = vrot.lane.b32.xlu0 %v777, 56
    %v1285 = vpop.permute.xlu0 %1284
    %v1287 = vsel %vm783, %v1283, 0
    %v1290 = vsel %vm783, %v1285, 0
    %1292 = vmatprep.subr.bf16.mxu0 0
    %1293 = vmatpush1.bf16.xpose.msra.mxu0 %v1290
    %1294 = vmatprep.subr.bf16.mxu0 0
    %1295 = vmatpush1.bf16.xpose.msra.mxu0 0
    %1296 = vmatprep.subr.bf16.mxu0 0
    %1297 = vmatpush1.bf16.xpose.msra.mxu0 0
    %1298 = vmatprep.subr.bf16.mxu0 0
    %1299 = vmatpush1.bf16.xpose.msra.mxu0 0
    %1300 = vmatprep.subr.bf16.mxu0 0
    %1301 = vmatpush1.bf16.xpose.msra.mxu0 0
    %1302 = vmatprep.subr.bf16.mxu0 0
    %1303 = vmatpush1.bf16.xpose.msra.mxu0 0
    %1304 = vmatprep.subr.bf16.mxu0 0
    %1305 = vmatpush1.bf16.xpose.msra.mxu0 0
    %1306 = vmatprep.subr.bf16.mxu0 0
    %1307 = vmatpush1.bf16.xpose.msra.mxu0 0
    %1308 = vmatprep.subr.bf16.mxu0 0
    %1309 = vmatpush1.bf16.xpose.msra.mxu0 0
    %1310 = vmatprep.subr.bf16.mxu0 0
    %1311 = vmatpush1.bf16.xpose.msra.mxu0 0
    %1312 = vmatprep.subr.bf16.mxu0 0
    %1313 = vmatpush1.bf16.xpose.msra.mxu0 0
    %1314 = vmatprep.subr.bf16.mxu0 0
    %1315 = vmatpush1.bf16.xpose.msra.mxu0 0
    %1316 = vmatprep.subr.bf16.mxu0 0
    %1317 = vmatpush1.bf16.xpose.msra.mxu0 0
    %1318 = vmatprep.subr.bf16.mxu0 0
    %1319 = vmatpush1.bf16.xpose.msra.mxu0 0
    %1320 = vmatprep.subr.bf16.mxu0 0
    %1321 = vmatpush1.bf16.xpose.msra.mxu0 0
    %1322 = vmatprep.subr.bf16.mxu0 0
    %1323 = vmatpush1.bf16.xpose.msra.mxu0 0
    %1324 = vmatprep.mubr.bf16.mxu0 0
    %1325 = vmatmul.mubr.bf16.gmra.mrb[0].mxu0 %v1287
    %v1326 = vpop.f32.mrb[0].mxu0
    %v1327 = vadd.f32 0.0, %v1326
    %v1328 = vpop.f32.mrb[0].mxu0
    %v1329 = vpop.f32.mrb[0].mxu0
    %v1330 = vpop.f32.mrb[0].mxu0
    %1331 = vdwg.mxu0
    %1333 = vrot.lane.b32.xlu0 %v774, 120
    %v1334 = vpop.permute.xlu0 %1333
    %1335 = vrot.lane.b32.xlu0 %v778, 56
    %v1336 = vpop.permute.xlu0 %1335
    %v1338 = vsel %vm783, %v1334, 0
    %v1341 = vsel %vm783, %v1336, 0
    %1343 = vmatprep.subr.bf16.mxu0 0
    %1344 = vmatpush1.bf16.xpose.msra.mxu0 %v1341
    %1345 = vmatprep.subr.bf16.mxu0 0
    %1346 = vmatpush1.bf16.xpose.msra.mxu0 0
    %1347 = vmatprep.subr.bf16.mxu0 0
    %1348 = vmatpush1.bf16.xpose.msra.mxu0 0
    %1349 = vmatprep.subr.bf16.mxu0 0
    %1350 = vmatpush1.bf16.xpose.msra.mxu0 0
    %1351 = vmatprep.subr.bf16.mxu0 0
    %1352 = vmatpush1.bf16.xpose.msra.mxu0 0
    %1353 = vmatprep.subr.bf16.mxu0 0
    %1354 = vmatpush1.bf16.xpose.msra.mxu0 0
    %1355 = vmatprep.subr.bf16.mxu0 0
    %1356 = vmatpush1.bf16.xpose.msra.mxu0 0
    %1357 = vmatprep.subr.bf16.mxu0 0
    %1358 = vmatpush1.bf16.xpose.msra.mxu0 0
    %1359 = vmatprep.subr.bf16.mxu0 0
    %1360 = vmatpush1.bf16.xpose.msra.mxu0 0
    %1361 = vmatprep.subr.bf16.mxu0 0
    %1362 = vmatpush1.bf16.xpose.msra.mxu0 0
    %1363 = vmatprep.subr.bf16.mxu0 0
    %1364 = vmatpush1.bf16.xpose.msra.mxu0 0
    %1365 = vmatprep.subr.bf16.mxu0 0
    %1366 = vmatpush1.bf16.xpose.msra.mxu0 0
    %1367 = vmatprep.subr.bf16.mxu0 0
    %1368 = vmatpush1.bf16.xpose.msra.mxu0 0
    %1369 = vmatprep.subr.bf16.mxu0 0
    %1370 = vmatpush1.bf16.xpose.msra.mxu0 0
    %1371 = vmatprep.subr.bf16.mxu0 0
    %1372 = vmatpush1.bf16.xpose.msra.mxu0 0
    %1373 = vmatprep.subr.bf16.mxu0 0
    %1374 = vmatpush1.bf16.xpose.msra.mxu0 0
    %1375 = vmatprep.mubr.bf16.mxu0 0
    %1376 = vmatmul.mubr.bf16.gmra.mrb[0].mxu0 %v1338
    %v1377 = vpop.f32.mrb[0].mxu0
    %v1378 = vadd.f32 0.0, %v1377
    %v1379 = vpop.f32.mrb[0].mxu0
    %v1380 = vpop.f32.mrb[0].mxu0
    %v1381 = vpop.f32.mrb[0].mxu0
    %1382 = vdwg.mxu0
    %1384 = vrot.lane.b32.xlu0 %v775, 120
    %v1385 = vpop.permute.xlu0 %1384
    %1386 = vrot.lane.b32.xlu0 %v779, 56
    %v1387 = vpop.permute.xlu0 %1386
    %v1389 = vsel %vm783, %v1385, 0
    %v1392 = vsel %vm783, %v1387, 0
    %1394 = vmatprep.subr.bf16.mxu0 0
    %1395 = vmatpush1.bf16.xpose.msra.mxu0 %v1392
    %1396 = vmatprep.subr.bf16.mxu0 0
    %1397 = vmatpush1.bf16.xpose.msra.mxu0 0
    %1398 = vmatprep.subr.bf16.mxu0 0
    %1399 = vmatpush1.bf16.xpose.msra.mxu0 0
    %1400 = vmatprep.subr.bf16.mxu0 0
    %1401 = vmatpush1.bf16.xpose.msra.mxu0 0
    %1402 = vmatprep.subr.bf16.mxu0 0
    %1403 = vmatpush1.bf16.xpose.msra.mxu0 0
    %1404 = vmatprep.subr.bf16.mxu0 0
    %1405 = vmatpush1.bf16.xpose.msra.mxu0 0
    %1406 = vmatprep.subr.bf16.mxu0 0
    %1407 = vmatpush1.bf16.xpose.msra.mxu0 0
    %1408 = vmatprep.subr.bf16.mxu0 0
    %1409 = vmatpush1.bf16.xpose.msra.mxu0 0
    %1410 = vmatprep.subr.bf16.mxu0 0
    %1411 = vmatpush1.bf16.xpose.msra.mxu0 0
    %1412 = vmatprep.subr.bf16.mxu0 0
    %1413 = vmatpush1.bf16.xpose.msra.mxu0 0
    %1414 = vmatprep.subr.bf16.mxu0 0
    %1415 = vmatpush1.bf16.xpose.msra.mxu0 0
    %1416 = vmatprep.subr.bf16.mxu0 0
    %1417 = vmatpush1.bf16.xpose.msra.mxu0 0
    %1418 = vmatprep.subr.bf16.mxu0 0
    %1419 = vmatpush1.bf16.xpose.msra.mxu0 0
    %1420 = vmatprep.subr.bf16.mxu0 0
    %1421 = vmatpush1.bf16.xpose.msra.mxu0 0
    %1422 = vmatprep.subr.bf16.mxu0 0
    %1423 = vmatpush1.bf16.xpose.msra.mxu0 0
    %1424 = vmatprep.subr.bf16.mxu0 0
    %1425 = vmatpush1.bf16.xpose.msra.mxu0 0
    %1426 = vmatprep.mubr.bf16.mxu0 0
    %1427 = vmatmul.mubr.bf16.gmra.mrb[0].mxu0 %v1389
    %v1428 = vpop.f32.mrb[0].mxu0
    %v1429 = vadd.f32 0.0, %v1428
    %v1430 = vpop.f32.mrb[0].mxu0
    %v1431 = vpop.f32.mrb[0].mxu0
    %v1432 = vpop.f32.mrb[0].mxu0
    %1433 = vdwg.mxu0
    %v1434 = vmul.f32 %v1276, 0.35355338
    %v1435 = vmul.f32 %v1327, 0.35355338
    %v1436 = vmul.f32 %v1378, 0.35355338
    %v1437 = vmul.f32 %v1429, 0.35355338
    %v1438 = vadd.f32 %v1434, %v986
    %v1439 = vadd.f32 %v1435, %v990
    %v1440 = vadd.f32 %v1436, %v986
    %v1441 = vadd.f32 %v1437, %v990
    %v1442 = vsel %vm997, %v1438, -inf
    %1443 = vmax.xlane.f32.xlu0 %v1442
    %v1444 = vpop.xlane.xlu0 %1443
    %v1445 = vsel %vm997, %v1439, -inf
    %1446 = vmax.xlane.f32.xlu0 %v1445
    %v1447 = vpop.xlane.xlu0 %1446
    %v1448 = vsel %vm997, %v1440, -inf
    %1449 = vmax.xlane.f32.xlu0 %v1448
    %v1450 = vpop.xlane.xlu0 %1449
    %v1451 = vsel %vm997, %v1441, -inf
    %1452 = vmax.xlane.f32.xlu0 %v1451
    %v1453 = vpop.xlane.xlu0 %1452
    %v1454 = vsub.f32 %v1438, %v1444
    %v1455 = vsub.f32 %v1439, %v1447
    %v1456 = vsub.f32 %v1440, %v1450
    %v1457 = vsub.f32 %v1441, %v1453
    %v1458 = vmul.f32 %v1454, 1.442695
    %v1459 = vpow.pop %v1458
    %v1460 = vmul.f32 %v1455, 1.442695
    %v1461 = vpow.pop %v1460
    %v1462 = vmul.f32 %v1456, 1.442695
    %v1463 = vpow.pop %v1462
    %v1464 = vmul.f32 %v1457, 1.442695
    %v1465 = vpow.pop %v1464
    %v1466 = vsel %vm997, %v1459, 0.0
    %1467 = vadd.xlane.f32.xlu0 %v1466
    %v1468 = vpop.xlane.xlu0 %1467
    %v1469 = vsel %vm997, %v1461, 0.0
    %1470 = vadd.xlane.f32.xlu0 %v1469
    %v1471 = vpop.xlane.xlu0 %1470
    %v1472 = vsel %vm997, %v1463, 0.0
    %1473 = vadd.xlane.f32.xlu0 %v1472
    %v1474 = vpop.xlane.xlu0 %1473
    %v1475 = vsel %vm997, %v1465, 0.0
    %1476 = vadd.xlane.f32.xlu0 %v1475
    %v1477 = vpop.xlane.xlu0 %1476
    %v1478 = vrcp.pop %v1468
    %v1479 = vmul.f32 %v1459, %v1478
    %v1480 = vrcp.pop %v1471
    %v1481 = vmul.f32 %v1461, %v1480
    %v1482 = vrcp.pop %v1474
    %v1483 = vmul.f32 %v1463, %v1482
    %v1484 = vrcp.pop %v1477
    %v1485 = vmul.f32 %v1465, %v1484
    %v1486 = vpack.c.bf16 %v1479, %v1479
    %v1487 = vpack.c.bf16 %v1481, %v1481
    %v1488 = vpack.c.bf16 %v1483, %v1483
    %v1489 = vpack.c.bf16 %v1485, %v1485
    %1490 = vrot.lane.b32.xlu0 %v776, 24
    %v1491 = vpop.permute.xlu0 %1490
    %v1494 = vsel %vm997, %v1486, 0
    %1496 = vmatprep.subr.bf16.mxu0 0
    %1497 = vmatpush1.bf16.msra.mxu0 %v1491
    %1498 = vmatprep.subr.bf16.mxu0 0
    %1499 = vmatpush1.bf16.msra.mxu0 0
    %1500 = vmatprep.subr.bf16.mxu0 0
    %1501 = vmatpush1.bf16.msra.mxu0 0
    %1502 = vmatprep.subr.bf16.mxu0 0
    %1503 = vmatpush1.bf16.msra.mxu0 0
    %1504 = vmatprep.subr.bf16.mxu0 0
    %1505 = vmatpush1.bf16.msra.mxu0 0
    %1506 = vmatprep.subr.bf16.mxu0 0
    %1507 = vmatpush1.bf16.msra.mxu0 0
    %1508 = vmatprep.subr.bf16.mxu0 0
    %1509 = vmatpush1.bf16.msra.mxu0 0
    %1510 = vmatprep.subr.bf16.mxu0 0
    %1511 = vmatpush1.bf16.msra.mxu0 0
    %1512 = vmatprep.subr.bf16.mxu0 0
    %1513 = vmatpush1.bf16.msra.mxu0 0
    %1514 = vmatprep.subr.bf16.mxu0 0
    %1515 = vmatpush1.bf16.msra.mxu0 0
    %1516 = vmatprep.subr.bf16.mxu0 0
    %1517 = vmatpush1.bf16.msra.mxu0 0
    %1518 = vmatprep.subr.bf16.mxu0 0
    %1519 = vmatpush1.bf16.msra.mxu0 0
    %1520 = vmatprep.subr.bf16.mxu0 0
    %1521 = vmatpush1.bf16.msra.mxu0 0
    %1522 = vmatprep.subr.bf16.mxu0 0
    %1523 = vmatpush1.bf16.msra.mxu0 0
    %1524 = vmatprep.subr.bf16.mxu0 0
    %1525 = vmatpush1.bf16.msra.mxu0 0
    %1526 = vmatprep.subr.bf16.mxu0 0
    %1527 = vmatpush1.bf16.msra.mxu0 0
    %1528 = vmatprep.mubr.bf16.mxu0 0
    %1529 = vmatmul.mubr.bf16.gmra.mrb[0].mxu0 %v1494
    %v1530 = vpop.f32.mrb[0].mxu0
    %v1531 = vadd.f32 0.0, %v1530
    %v1532 = vpop.f32.mrb[0].mxu0
    %v1533 = vpop.f32.mrb[0].mxu0
    %v1534 = vpop.f32.mrb[0].mxu0
    %1535 = vdwg.mxu0
    %1536 = vrot.lane.b32.xlu0 %v777, 24
    %v1537 = vpop.permute.xlu0 %1536
    %v1540 = vsel %vm997, %v1487, 0
    %1542 = vmatprep.subr.bf16.mxu0 0
    %1543 = vmatpush1.bf16.msra.mxu0 %v1537
    %1544 = vmatprep.subr.bf16.mxu0 0
    %1545 = vmatpush1.bf16.msra.mxu0 0
    %1546 = vmatprep.subr.bf16.mxu0 0
    %1547 = vmatpush1.bf16.msra.mxu0 0
    %1548 = vmatprep.subr.bf16.mxu0 0
    %1549 = vmatpush1.bf16.msra.mxu0 0
    %1550 = vmatprep.subr.bf16.mxu0 0
    %1551 = vmatpush1.bf16.msra.mxu0 0
    %1552 = vmatprep.subr.bf16.mxu0 0
    %1553 = vmatpush1.bf16.msra.mxu0 0
    %1554 = vmatprep.subr.bf16.mxu0 0
    %1555 = vmatpush1.bf16.msra.mxu0 0
    %1556 = vmatprep.subr.bf16.mxu0 0
    %1557 = vmatpush1.bf16.msra.mxu0 0
    %1558 = vmatprep.subr.bf16.mxu0 0
    %1559 = vmatpush1.bf16.msra.mxu0 0
    %1560 = vmatprep.subr.bf16.mxu0 0
    %1561 = vmatpush1.bf16.msra.mxu0 0
    %1562 = vmatprep.subr.bf16.mxu0 0
    %1563 = vmatpush1.bf16.msra.mxu0 0
    %1564 = vmatprep.subr.bf16.mxu0 0
    %1565 = vmatpush1.bf16.msra.mxu0 0
    %1566 = vmatprep.subr.bf16.mxu0 0
    %1567 = vmatpush1.bf16.msra.mxu0 0
    %1568 = vmatprep.subr.bf16.mxu0 0
    %1569 = vmatpush1.bf16.msra.mxu0 0
    %1570 = vmatprep.subr.bf16.mxu0 0
    %1571 = vmatpush1.bf16.msra.mxu0 0
    %1572 = vmatprep.subr.bf16.mxu0 0
    %1573 = vmatpush1.bf16.msra.mxu0 0
    %1574 = vmatprep.mubr.bf16.mxu0 0
    %1575 = vmatmul.mubr.bf16.gmra.mrb[0].mxu0 %v1540
    %v1576 = vpop.f32.mrb[0].mxu0
    %v1577 = vadd.f32 0.0, %v1576
    %v1578 = vpop.f32.mrb[0].mxu0
    %v1579 = vpop.f32.mrb[0].mxu0
    %v1580 = vpop.f32.mrb[0].mxu0
    %1581 = vdwg.mxu0
    %1582 = vrot.lane.b32.xlu0 %v778, 24
    %v1583 = vpop.permute.xlu0 %1582
    %v1586 = vsel %vm997, %v1488, 0
    %1588 = vmatprep.subr.bf16.mxu0 0
    %1589 = vmatpush1.bf16.msra.mxu0 %v1583
    %1590 = vmatprep.subr.bf16.mxu0 0
    %1591 = vmatpush1.bf16.msra.mxu0 0
    %1592 = vmatprep.subr.bf16.mxu0 0
    %1593 = vmatpush1.bf16.msra.mxu0 0
    %1594 = vmatprep.subr.bf16.mxu0 0
    %1595 = vmatpush1.bf16.msra.mxu0 0
    %1596 = vmatprep.subr.bf16.mxu0 0
    %1597 = vmatpush1.bf16.msra.mxu0 0
    %1598 = vmatprep.subr.bf16.mxu0 0
    %1599 = vmatpush1.bf16.msra.mxu0 0
    %1600 = vmatprep.subr.bf16.mxu0 0
    %1601 = vmatpush1.bf16.msra.mxu0 0
    %1602 = vmatprep.subr.bf16.mxu0 0
    %1603 = vmatpush1.bf16.msra.mxu0 0
    %1604 = vmatprep.subr.bf16.mxu0 0
    %1605 = vmatpush1.bf16.msra.mxu0 0
    %1606 = vmatprep.subr.bf16.mxu0 0
    %1607 = vmatpush1.bf16.msra.mxu0 0
    %1608 = vmatprep.subr.bf16.mxu0 0
    %1609 = vmatpush1.bf16.msra.mxu0 0
    %1610 = vmatprep.subr.bf16.mxu0 0
    %1611 = vmatpush1.bf16.msra.mxu0 0
    %1612 = vmatprep.subr.bf16.mxu0 0
    %1613 = vmatpush1.bf16.msra.mxu0 0
    %1614 = vmatprep.subr.bf16.mxu0 0
    %1615 = vmatpush1.bf16.msra.mxu0 0
    %1616 = vmatprep.subr.bf16.mxu0 0
    %1617 = vmatpush1.bf16.msra.mxu0 0
    %1618 = vmatprep.subr.bf16.mxu0 0
    %1619 = vmatpush1.bf16.msra.mxu0 0
    %1620 = vmatprep.mubr.bf16.mxu0 0
    %1621 = vmatmul.mubr.bf16.gmra.mrb[0].mxu0 %v1586
    %v1622 = vpop.f32.mrb[0].mxu0
    %v1623 = vadd.f32 0.0, %v1622
    %v1624 = vpop.f32.mrb[0].mxu0
    %v1625 = vpop.f32.mrb[0].mxu0
    %v1626 = vpop.f32.mrb[0].mxu0
    %1627 = vdwg.mxu0
    %1628 = vrot.lane.b32.xlu0 %v779, 24
    %v1629 = vpop.permute.xlu0 %1628
    %v1632 = vsel %vm997, %v1489, 0
    %1634 = vmatprep.subr.bf16.mxu0 0
    %1635 = vmatpush1.bf16.msra.mxu0 %v1629
    %1636 = vmatprep.subr.bf16.mxu0 0
    %1637 = vmatpush1.bf16.msra.mxu0 0
    %1638 = vmatprep.subr.bf16.mxu0 0
    %1639 = vmatpush1.bf16.msra.mxu0 0
    %1640 = vmatprep.subr.bf16.mxu0 0
    %1641 = vmatpush1.bf16.msra.mxu0 0
    %1642 = vmatprep.subr.bf16.mxu0 0
    %1643 = vmatpush1.bf16.msra.mxu0 0
    %1644 = vmatprep.subr.bf16.mxu0 0
    %1645 = vmatpush1.bf16.msra.mxu0 0
    %1646 = vmatprep.subr.bf16.mxu0 0
    %1647 = vmatpush1.bf16.msra.mxu0 0
    %1648 = vmatprep.subr.bf16.mxu0 0
    %1649 = vmatpush1.bf16.msra.mxu0 0
    %1650 = vmatprep.subr.bf16.mxu0 0
    %1651 = vmatpush1.bf16.msra.mxu0 0
    %1652 = vmatprep.subr.bf16.mxu0 0
    %1653 = vmatpush1.bf16.msra.mxu0 0
    %1654 = vmatprep.subr.bf16.mxu0 0
    %1655 = vmatpush1.bf16.msra.mxu0 0
    %1656 = vmatprep.subr.bf16.mxu0 0
    %1657 = vmatpush1.bf16.msra.mxu0 0
    %1658 = vmatprep.subr.bf16.mxu0 0
    %1659 = vmatpush1.bf16.msra.mxu0 0
    %1660 = vmatprep.subr.bf16.mxu0 0
    %1661 = vmatpush1.bf16.msra.mxu0 0
    %1662 = vmatprep.subr.bf16.mxu0 0
    %1663 = vmatpush1.bf16.msra.mxu0 0
    %1664 = vmatprep.subr.bf16.mxu0 0
    %1665 = vmatpush1.bf16.msra.mxu0 0
    %1666 = vmatprep.mubr.bf16.mxu0 0
    %1667 = vmatmul.mubr.bf16.gmra.mrb[0].mxu0 %v1632
    %v1668 = vpop.f32.mrb[0].mxu0
    %v1669 = vadd.f32 0.0, %v1668
    %v1670 = vpop.f32.mrb[0].mxu0
    %v1671 = vpop.f32.mrb[0].mxu0
    %v1672 = vpop.f32.mrb[0].mxu0
    %1673 = vdwg.mxu0
    %1674 = vrot.lane.b32.xlu0 %v772, 112
    %v1675 = vpop.permute.xlu0 %1674
    %1676 = vrot.lane.b32.xlu0 %v776, 48
    %v1677 = vpop.permute.xlu0 %1676
    %v1679 = vsel %vm783, %v1675, 0
    %v1682 = vsel %vm783, %v1677, 0
    %1684 = vmatprep.subr.bf16.mxu0 0
    %1685 = vmatpush1.bf16.xpose.msra.mxu0 %v1682
    %1686 = vmatprep.subr.bf16.mxu0 0
    %1687 = vmatpush1.bf16.xpose.msra.mxu0 0
    %1688 = vmatprep.subr.bf16.mxu0 0
    %1689 = vmatpush1.bf16.xpose.msra.mxu0 0
    %1690 = vmatprep.subr.bf16.mxu0 0
    %1691 = vmatpush1.bf16.xpose.msra.mxu0 0
    %1692 = vmatprep.subr.bf16.mxu0 0
    %1693 = vmatpush1.bf16.xpose.msra.mxu0 0
    %1694 = vmatprep.subr.bf16.mxu0 0
    %1695 = vmatpush1.bf16.xpose.msra.mxu0 0
    %1696 = vmatprep.subr.bf16.mxu0 0
    %1697 = vmatpush1.bf16.xpose.msra.mxu0 0
    %1698 = vmatprep.subr.bf16.mxu0 0
    %1699 = vmatpush1.bf16.xpose.msra.mxu0 0
    %1700 = vmatprep.subr.bf16.mxu0 0
    %1701 = vmatpush1.bf16.xpose.msra.mxu0 0
    %1702 = vmatprep.subr.bf16.mxu0 0
    %1703 = vmatpush1.bf16.xpose.msra.mxu0 0
    %1704 = vmatprep.subr.bf16.mxu0 0
    %1705 = vmatpush1.bf16.xpose.msra.mxu0 0
    %1706 = vmatprep.subr.bf16.mxu0 0
    %1707 = vmatpush1.bf16.xpose.msra.mxu0 0
    %1708 = vmatprep.subr.bf16.mxu0 0
    %1709 = vmatpush1.bf16.xpose.msra.mxu0 0
    %1710 = vmatprep.subr.bf16.mxu0 0
    %1711 = vmatpush1.bf16.xpose.msra.mxu0 0
    %1712 = vmatprep.subr.bf16.mxu0 0
    %1713 = vmatpush1.bf16.xpose.msra.mxu0 0
    %1714 = vmatprep.subr.bf16.mxu0 0
    %1715 = vmatpush1.bf16.xpose.msra.mxu0 0
    %1716 = vmatprep.mubr.bf16.mxu0 0
    %1717 = vmatmul.mubr.bf16.gmra.mrb[0].mxu0 %v1679
    %v1718 = vpop.f32.mrb[0].mxu0
    %v1719 = vadd.f32 0.0, %v1718
    %v1720 = vpop.f32.mrb[0].mxu0
    %v1721 = vpop.f32.mrb[0].mxu0
    %v1722 = vpop.f32.mrb[0].mxu0
    %1723 = vdwg.mxu0
    %1724 = vrot.lane.b32.xlu0 %v773, 112
    %v1725 = vpop.permute.xlu0 %1724
    %1726 = vrot.lane.b32.xlu0 %v777, 48
    %v1727 = vpop.permute.xlu0 %1726
    %v1729 = vsel %vm783, %v1725, 0
    %v1732 = vsel %vm783, %v1727, 0
    %1734 = vmatprep.subr.bf16.mxu0 0
    %1735 = vmatpush1.bf16.xpose.msra.mxu0 %v1732
    %1736 = vmatprep.subr.bf16.mxu0 0
    %1737 = vmatpush1.bf16.xpose.msra.mxu0 0
    %1738 = vmatprep.subr.bf16.mxu0 0
    %1739 = vmatpush1.bf16.xpose.msra.mxu0 0
    %1740 = vmatprep.subr.bf16.mxu0 0
    %1741 = vmatpush1.bf16.xpose.msra.mxu0 0
    %1742 = vmatprep.subr.bf16.mxu0 0
    %1743 = vmatpush1.bf16.xpose.msra.mxu0 0
    %1744 = vmatprep.subr.bf16.mxu0 0
    %1745 = vmatpush1.bf16.xpose.msra.mxu0 0
    %1746 = vmatprep.subr.bf16.mxu0 0
    %1747 = vmatpush1.bf16.xpose.msra.mxu0 0
    %1748 = vmatprep.subr.bf16.mxu0 0
    %1749 = vmatpush1.bf16.xpose.msra.mxu0 0
    %1750 = vmatprep.subr.bf16.mxu0 0
    %1751 = vmatpush1.bf16.xpose.msra.mxu0 0
    %1752 = vmatprep.subr.bf16.mxu0 0
    %1753 = vmatpush1.bf16.xpose.msra.mxu0 0
    %1754 = vmatprep.subr.bf16.mxu0 0
    %1755 = vmatpush1.bf16.xpose.msra.mxu0 0
    %1756 = vmatprep.subr.bf16.mxu0 0
    %1757 = vmatpush1.bf16.xpose.msra.mxu0 0
    %1758 = vmatprep.subr.bf16.mxu0 0
    %1759 = vmatpush1.bf16.xpose.msra.mxu0 0
    %1760 = vmatprep.subr.bf16.mxu0 0
    %1761 = vmatpush1.bf16.xpose.msra.mxu0 0
    %1762 = vmatprep.subr.bf16.mxu0 0
    %1763 = vmatpush1.bf16.xpose.msra.mxu0 0
    %1764 = vmatprep.subr.bf16.mxu0 0
    %1765 = vmatpush1.bf16.xpose.msra.mxu0 0
    %1766 = vmatprep.mubr.bf16.mxu0 0
    %1767 = vmatmul.mubr.bf16.gmra.mrb[0].mxu0 %v1729
    %v1768 = vpop.f32.mrb[0].mxu0
    %v1769 = vadd.f32 0.0, %v1768
    %v1770 = vpop.f32.mrb[0].mxu0
    %v1771 = vpop.f32.mrb[0].mxu0
    %v1772 = vpop.f32.mrb[0].mxu0
    %1773 = vdwg.mxu0
    %1774 = vrot.lane.b32.xlu0 %v774, 112
    %v1775 = vpop.permute.xlu0 %1774
    %1776 = vrot.lane.b32.xlu0 %v778, 48
    %v1777 = vpop.permute.xlu0 %1776
    %v1779 = vsel %vm783, %v1775, 0
    %v1782 = vsel %vm783, %v1777, 0
    %1784 = vmatprep.subr.bf16.mxu0 0
    %1785 = vmatpush1.bf16.xpose.msra.mxu0 %v1782
    %1786 = vmatprep.subr.bf16.mxu0 0
    %1787 = vmatpush1.bf16.xpose.msra.mxu0 0
    %1788 = vmatprep.subr.bf16.mxu0 0
    %1789 = vmatpush1.bf16.xpose.msra.mxu0 0
    %1790 = vmatprep.subr.bf16.mxu0 0
    %1791 = vmatpush1.bf16.xpose.msra.mxu0 0
    %1792 = vmatprep.subr.bf16.mxu0 0
    %1793 = vmatpush1.bf16.xpose.msra.mxu0 0
    %1794 = vmatprep.subr.bf16.mxu0 0
    %1795 = vmatpush1.bf16.xpose.msra.mxu0 0
    %1796 = vmatprep.subr.bf16.mxu0 0
    %1797 = vmatpush1.bf16.xpose.msra.mxu0 0
    %1798 = vmatprep.subr.bf16.mxu0 0
    %1799 = vmatpush1.bf16.xpose.msra.mxu0 0
    %1800 = vmatprep.subr.bf16.mxu0 0
    %1801 = vmatpush1.bf16.xpose.msra.mxu0 0
    %1802 = vmatprep.subr.bf16.mxu0 0
    %1803 = vmatpush1.bf16.xpose.msra.mxu0 0
    %1804 = vmatprep.subr.bf16.mxu0 0
    %1805 = vmatpush1.bf16.xpose.msra.mxu0 0
    %1806 = vmatprep.subr.bf16.mxu0 0
    %1807 = vmatpush1.bf16.xpose.msra.mxu0 0
    %1808 = vmatprep.subr.bf16.mxu0 0
    %1809 = vmatpush1.bf16.xpose.msra.mxu0 0
    %1810 = vmatprep.subr.bf16.mxu0 0
    %1811 = vmatpush1.bf16.xpose.msra.mxu0 0
    %1812 = vmatprep.subr.bf16.mxu0 0
    %1813 = vmatpush1.bf16.xpose.msra.mxu0 0
    %1814 = vmatprep.subr.bf16.mxu0 0
    %1815 = vmatpush1.bf16.xpose.msra.mxu0 0
    %1816 = vmatprep.mubr.bf16.mxu0 0
    %1817 = vmatmul.mubr.bf16.gmra.mrb[0].mxu0 %v1779
    %v1818 = vpop.f32.mrb[0].mxu0
    %v1819 = vadd.f32 0.0, %v1818
    %v1820 = vpop.f32.mrb[0].mxu0
    %v1821 = vpop.f32.mrb[0].mxu0
    %v1822 = vpop.f32.mrb[0].mxu0
    %1823 = vdwg.mxu0
    %1824 = vrot.lane.b32.xlu0 %v775, 112
    %v1825 = vpop.permute.xlu0 %1824
    %1826 = vrot.lane.b32.xlu0 %v779, 48
    %v1827 = vpop.permute.xlu0 %1826
    %v1829 = vsel %vm783, %v1825, 0
    %v1832 = vsel %vm783, %v1827, 0
    %1834 = vmatprep.subr.bf16.mxu0 0
    %1835 = vmatpush1.bf16.xpose.msra.mxu0 %v1832
    %1836 = vmatprep.subr.bf16.mxu0 0
    %1837 = vmatpush1.bf16.xpose.msra.mxu0 0
    %1838 = vmatprep.subr.bf16.mxu0 0
    %1839 = vmatpush1.bf16.xpose.msra.mxu0 0
    %1840 = vmatprep.subr.bf16.mxu0 0
    %1841 = vmatpush1.bf16.xpose.msra.mxu0 0
    %1842 = vmatprep.subr.bf16.mxu0 0
    %1843 = vmatpush1.bf16.xpose.msra.mxu0 0
    %1844 = vmatprep.subr.bf16.mxu0 0
    %1845 = vmatpush1.bf16.xpose.msra.mxu0 0
    %1846 = vmatprep.subr.bf16.mxu0 0
    %1847 = vmatpush1.bf16.xpose.msra.mxu0 0
    %1848 = vmatprep.subr.bf16.mxu0 0
    %1849 = vmatpush1.bf16.xpose.msra.mxu0 0
    %1850 = vmatprep.subr.bf16.mxu0 0
    %1851 = vmatpush1.bf16.xpose.msra.mxu0 0
    %1852 = vmatprep.subr.bf16.mxu0 0
    %1853 = vmatpush1.bf16.xpose.msra.mxu0 0
    %1854 = vmatprep.subr.bf16.mxu0 0
    %1855 = vmatpush1.bf16.xpose.msra.mxu0 0
    %1856 = vmatprep.subr.bf16.mxu0 0
    %1857 = vmatpush1.bf16.xpose.msra.mxu0 0
    %1858 = vmatprep.subr.bf16.mxu0 0
    %1859 = vmatpush1.bf16.xpose.msra.mxu0 0
    %1860 = vmatprep.subr.bf16.mxu0 0
    %1861 = vmatpush1.bf16.xpose.msra.mxu0 0
    %1862 = vmatprep.subr.bf16.mxu0 0
    %1863 = vmatpush1.bf16.xpose.msra.mxu0 0
    %1864 = vmatprep.subr.bf16.mxu0 0
    %1865 = vmatpush1.bf16.xpose.msra.mxu0 0
    %1866 = vmatprep.mubr.bf16.mxu0 0
    %1867 = vmatmul.mubr.bf16.gmra.mrb[0].mxu0 %v1829
    %v1868 = vpop.f32.mrb[0].mxu0
    %v1869 = vadd.f32 0.0, %v1868
    %v1870 = vpop.f32.mrb[0].mxu0
    %v1871 = vpop.f32.mrb[0].mxu0
    %v1872 = vpop.f32.mrb[0].mxu0
    %1873 = vdwg.mxu0
    %v1874 = vmul.f32 %v1719, 0.35355338
    %v1875 = vmul.f32 %v1769, 0.35355338
    %v1876 = vmul.f32 %v1819, 0.35355338
    %v1877 = vmul.f32 %v1869, 0.35355338
    %v1878 = vadd.f32 %v1874, %v986
    %v1879 = vadd.f32 %v1875, %v990
    %v1880 = vadd.f32 %v1876, %v986
    %v1881 = vadd.f32 %v1877, %v990
    %v1882 = vsel %vm997, %v1878, -inf
    %1883 = vmax.xlane.f32.xlu0 %v1882
    %v1884 = vpop.xlane.xlu0 %1883
    %v1885 = vsel %vm997, %v1879, -inf
    %1886 = vmax.xlane.f32.xlu0 %v1885
    %v1887 = vpop.xlane.xlu0 %1886
    %v1888 = vsel %vm997, %v1880, -inf
    %1889 = vmax.xlane.f32.xlu0 %v1888
    %v1890 = vpop.xlane.xlu0 %1889
    %v1891 = vsel %vm997, %v1881, -inf
    %1892 = vmax.xlane.f32.xlu0 %v1891
    %v1893 = vpop.xlane.xlu0 %1892
    %v1894 = vsub.f32 %v1878, %v1884
    %v1895 = vsub.f32 %v1879, %v1887
    %v1896 = vsub.f32 %v1880, %v1890
    %v1897 = vsub.f32 %v1881, %v1893
    %v1898 = vmul.f32 %v1894, 1.442695
    %v1899 = vpow.pop %v1898
    %v1900 = vmul.f32 %v1895, 1.442695
    %v1901 = vpow.pop %v1900
    %v1902 = vmul.f32 %v1896, 1.442695
    %v1903 = vpow.pop %v1902
    %v1904 = vmul.f32 %v1897, 1.442695
    %v1905 = vpow.pop %v1904
    %v1906 = vsel %vm997, %v1899, 0.0
    %1907 = vadd.xlane.f32.xlu0 %v1906
    %v1908 = vpop.xlane.xlu0 %1907
    %v1909 = vsel %vm997, %v1901, 0.0
    %1910 = vadd.xlane.f32.xlu0 %v1909
    %v1911 = vpop.xlane.xlu0 %1910
    %v1912 = vsel %vm997, %v1903, 0.0
    %1913 = vadd.xlane.f32.xlu0 %v1912
    %v1914 = vpop.xlane.xlu0 %1913
    %v1915 = vsel %vm997, %v1905, 0.0
    %1916 = vadd.xlane.f32.xlu0 %v1915
    %v1917 = vpop.xlane.xlu0 %1916
    %v1918 = vrcp.pop %v1908
    %v1919 = vmul.f32 %v1899, %v1918
    %v1920 = vrcp.pop %v1911
    %v1921 = vmul.f32 %v1901, %v1920
    %v1922 = vrcp.pop %v1914
    %v1923 = vmul.f32 %v1903, %v1922
    %v1924 = vrcp.pop %v1917
    %v1925 = vmul.f32 %v1905, %v1924
    %v1926 = vpack.c.bf16 %v1919, %v1919
    %v1927 = vpack.c.bf16 %v1921, %v1921
    %v1928 = vpack.c.bf16 %v1923, %v1923
    %v1929 = vpack.c.bf16 %v1925, %v1925
    %1930 = vrot.lane.b32.xlu0 %v776, 16
    %v1931 = vpop.permute.xlu0 %1930
    %v1934 = vsel %vm997, %v1926, 0
    %1936 = vmatprep.subr.bf16.mxu0 0
    %1937 = vmatpush1.bf16.msra.mxu0 %v1931
    %1938 = vmatprep.subr.bf16.mxu0 0
    %1939 = vmatpush1.bf16.msra.mxu0 0
    %1940 = vmatprep.subr.bf16.mxu0 0
    %1941 = vmatpush1.bf16.msra.mxu0 0
    %1942 = vmatprep.subr.bf16.mxu0 0
    %1943 = vmatpush1.bf16.msra.mxu0 0
    %1944 = vmatprep.subr.bf16.mxu0 0
    %1945 = vmatpush1.bf16.msra.mxu0 0
    %1946 = vmatprep.subr.bf16.mxu0 0
    %1947 = vmatpush1.bf16.msra.mxu0 0
    %1948 = vmatprep.subr.bf16.mxu0 0
    %1949 = vmatpush1.bf16.msra.mxu0 0
    %1950 = vmatprep.subr.bf16.mxu0 0
    %1951 = vmatpush1.bf16.msra.mxu0 0
    %1952 = vmatprep.subr.bf16.mxu0 0
    %1953 = vmatpush1.bf16.msra.mxu0 0
    %1954 = vmatprep.subr.bf16.mxu0 0
    %1955 = vmatpush1.bf16.msra.mxu0 0
    %1956 = vmatprep.subr.bf16.mxu0 0
    %1957 = vmatpush1.bf16.msra.mxu0 0
    %1958 = vmatprep.subr.bf16.mxu0 0
    %1959 = vmatpush1.bf16.msra.mxu0 0
    %1960 = vmatprep.subr.bf16.mxu0 0
    %1961 = vmatpush1.bf16.msra.mxu0 0
    %1962 = vmatprep.subr.bf16.mxu0 0
    %1963 = vmatpush1.bf16.msra.mxu0 0
    %1964 = vmatprep.subr.bf16.mxu0 0
    %1965 = vmatpush1.bf16.msra.mxu0 0
    %1966 = vmatprep.subr.bf16.mxu0 0
    %1967 = vmatpush1.bf16.msra.mxu0 0
    %1968 = vmatprep.mubr.bf16.mxu0 0
    %1969 = vmatmul.mubr.bf16.gmra.mrb[0].mxu0 %v1934
    %v1970 = vpop.f32.mrb[0].mxu0
    %v1971 = vadd.f32 0.0, %v1970
    %v1972 = vpop.f32.mrb[0].mxu0
    %v1973 = vpop.f32.mrb[0].mxu0
    %v1974 = vpop.f32.mrb[0].mxu0
    %1975 = vdwg.mxu0
    %1976 = vrot.lane.b32.xlu0 %v777, 16
    %v1977 = vpop.permute.xlu0 %1976
    %v1980 = vsel %vm997, %v1927, 0
    %1982 = vmatprep.subr.bf16.mxu0 0
    %1983 = vmatpush1.bf16.msra.mxu0 %v1977
    %1984 = vmatprep.subr.bf16.mxu0 0
    %1985 = vmatpush1.bf16.msra.mxu0 0
    %1986 = vmatprep.subr.bf16.mxu0 0
    %1987 = vmatpush1.bf16.msra.mxu0 0
    %1988 = vmatprep.subr.bf16.mxu0 0
    %1989 = vmatpush1.bf16.msra.mxu0 0
    %1990 = vmatprep.subr.bf16.mxu0 0
    %1991 = vmatpush1.bf16.msra.mxu0 0
    %1992 = vmatprep.subr.bf16.mxu0 0
    %1993 = vmatpush1.bf16.msra.mxu0 0
    %1994 = vmatprep.subr.bf16.mxu0 0
    %1995 = vmatpush1.bf16.msra.mxu0 0
    %1996 = vmatprep.subr.bf16.mxu0 0
    %1997 = vmatpush1.bf16.msra.mxu0 0
    %1998 = vmatprep.subr.bf16.mxu0 0
    %1999 = vmatpush1.bf16.msra.mxu0 0
    %2000 = vmatprep.subr.bf16.mxu0 0
    %2001 = vmatpush1.bf16.msra.mxu0 0
    %2002 = vmatprep.subr.bf16.mxu0 0
    %2003 = vmatpush1.bf16.msra.mxu0 0
    %2004 = vmatprep.subr.bf16.mxu0 0
    %2005 = vmatpush1.bf16.msra.mxu0 0
    %2006 = vmatprep.subr.bf16.mxu0 0
    %2007 = vmatpush1.bf16.msra.mxu0 0
    %2008 = vmatprep.subr.bf16.mxu0 0
    %2009 = vmatpush1.bf16.msra.mxu0 0
    %2010 = vmatprep.subr.bf16.mxu0 0
    %2011 = vmatpush1.bf16.msra.mxu0 0
    %2012 = vmatprep.subr.bf16.mxu0 0
    %2013 = vmatpush1.bf16.msra.mxu0 0
    %2014 = vmatprep.mubr.bf16.mxu0 0
    %2015 = vmatmul.mubr.bf16.gmra.mrb[0].mxu0 %v1980
    %v2016 = vpop.f32.mrb[0].mxu0
    %v2017 = vadd.f32 0.0, %v2016
    %v2018 = vpop.f32.mrb[0].mxu0
    %v2019 = vpop.f32.mrb[0].mxu0
    %v2020 = vpop.f32.mrb[0].mxu0
    %2021 = vdwg.mxu0
    %2022 = vrot.lane.b32.xlu0 %v778, 16
    %v2023 = vpop.permute.xlu0 %2022
    %v2026 = vsel %vm997, %v1928, 0
    %2028 = vmatprep.subr.bf16.mxu0 0
    %2029 = vmatpush1.bf16.msra.mxu0 %v2023
    %2030 = vmatprep.subr.bf16.mxu0 0
    %2031 = vmatpush1.bf16.msra.mxu0 0
    %2032 = vmatprep.subr.bf16.mxu0 0
    %2033 = vmatpush1.bf16.msra.mxu0 0
    %2034 = vmatprep.subr.bf16.mxu0 0
    %2035 = vmatpush1.bf16.msra.mxu0 0
    %2036 = vmatprep.subr.bf16.mxu0 0
    %2037 = vmatpush1.bf16.msra.mxu0 0
    %2038 = vmatprep.subr.bf16.mxu0 0
    %2039 = vmatpush1.bf16.msra.mxu0 0
    %2040 = vmatprep.subr.bf16.mxu0 0
    %2041 = vmatpush1.bf16.msra.mxu0 0
    %2042 = vmatprep.subr.bf16.mxu0 0
    %2043 = vmatpush1.bf16.msra.mxu0 0
    %2044 = vmatprep.subr.bf16.mxu0 0
    %2045 = vmatpush1.bf16.msra.mxu0 0
    %2046 = vmatprep.subr.bf16.mxu0 0
    %2047 = vmatpush1.bf16.msra.mxu0 0
    %2048 = vmatprep.subr.bf16.mxu0 0
    %2049 = vmatpush1.bf16.msra.mxu0 0
    %2050 = vmatprep.subr.bf16.mxu0 0
    %2051 = vmatpush1.bf16.msra.mxu0 0
    %2052 = vmatprep.subr.bf16.mxu0 0
    %2053 = vmatpush1.bf16.msra.mxu0 0
    %2054 = vmatprep.subr.bf16.mxu0 0
    %2055 = vmatpush1.bf16.msra.mxu0 0
    %2056 = vmatprep.subr.bf16.mxu0 0
    %2057 = vmatpush1.bf16.msra.mxu0 0
    %2058 = vmatprep.subr.bf16.mxu0 0
    %2059 = vmatpush1.bf16.msra.mxu0 0
    %2060 = vmatprep.mubr.bf16.mxu0 0
    %2061 = vmatmul.mubr.bf16.gmra.mrb[0].mxu0 %v2026
    %v2062 = vpop.f32.mrb[0].mxu0
    %v2063 = vadd.f32 0.0, %v2062
    %v2064 = vpop.f32.mrb[0].mxu0
    %v2065 = vpop.f32.mrb[0].mxu0
    %v2066 = vpop.f32.mrb[0].mxu0
    %2067 = vdwg.mxu0
    %2068 = vrot.lane.b32.xlu0 %v779, 16
    %v2069 = vpop.permute.xlu0 %2068
    %v2072 = vsel %vm997, %v1929, 0
    %2074 = vmatprep.subr.bf16.mxu0 0
    %2075 = vmatpush1.bf16.msra.mxu0 %v2069
    %2076 = vmatprep.subr.bf16.mxu0 0
    %2077 = vmatpush1.bf16.msra.mxu0 0
    %2078 = vmatprep.subr.bf16.mxu0 0
    %2079 = vmatpush1.bf16.msra.mxu0 0
    %2080 = vmatprep.subr.bf16.mxu0 0
    %2081 = vmatpush1.bf16.msra.mxu0 0
    %2082 = vmatprep.subr.bf16.mxu0 0
    %2083 = vmatpush1.bf16.msra.mxu0 0
    %2084 = vmatprep.subr.bf16.mxu0 0
    %2085 = vmatpush1.bf16.msra.mxu0 0
    %2086 = vmatprep.subr.bf16.mxu0 0
    %2087 = vmatpush1.bf16.msra.mxu0 0
    %2088 = vmatprep.subr.bf16.mxu0 0
    %2089 = vmatpush1.bf16.msra.mxu0 0
    %2090 = vmatprep.subr.bf16.mxu0 0
    %2091 = vmatpush1.bf16.msra.mxu0 0
    %2092 = vmatprep.subr.bf16.mxu0 0
    %2093 = vmatpush1.bf16.msra.mxu0 0
    %2094 = vmatprep.subr.bf16.mxu0 0
    %2095 = vmatpush1.bf16.msra.mxu0 0
    %2096 = vmatprep.subr.bf16.mxu0 0
    %2097 = vmatpush1.bf16.msra.mxu0 0
    %2098 = vmatprep.subr.bf16.mxu0 0
    %2099 = vmatpush1.bf16.msra.mxu0 0
    %2100 = vmatprep.subr.bf16.mxu0 0
    %2101 = vmatpush1.bf16.msra.mxu0 0
    %2102 = vmatprep.subr.bf16.mxu0 0
    %2103 = vmatpush1.bf16.msra.mxu0 0
    %2104 = vmatprep.subr.bf16.mxu0 0
    %2105 = vmatpush1.bf16.msra.mxu0 0
    %2106 = vmatprep.mubr.bf16.mxu0 0
    %2107 = vmatmul.mubr.bf16.gmra.mrb[0].mxu0 %v2072
    %v2108 = vpop.f32.mrb[0].mxu0
    %v2109 = vadd.f32 0.0, %v2108
    %v2110 = vpop.f32.mrb[0].mxu0
    %v2111 = vpop.f32.mrb[0].mxu0
    %v2112 = vpop.f32.mrb[0].mxu0
    %2113 = vdwg.mxu0
    %2114 = vrot.lane.b32.xlu0 %v772, 104
    %v2115 = vpop.permute.xlu0 %2114
    %2116 = vrot.lane.b32.xlu0 %v776, 40
    %v2117 = vpop.permute.xlu0 %2116
    %v2119 = vsel %vm783, %v2115, 0
    %v2122 = vsel %vm783, %v2117, 0
    %2124 = vmatprep.subr.bf16.mxu0 0
    %2125 = vmatpush1.bf16.xpose.msra.mxu0 %v2122
    %2126 = vmatprep.subr.bf16.mxu0 0
    %2127 = vmatpush1.bf16.xpose.msra.mxu0 0
    %2128 = vmatprep.subr.bf16.mxu0 0
    %2129 = vmatpush1.bf16.xpose.msra.mxu0 0
    %2130 = vmatprep.subr.bf16.mxu0 0
    %2131 = vmatpush1.bf16.xpose.msra.mxu0 0
    %2132 = vmatprep.subr.bf16.mxu0 0
    %2133 = vmatpush1.bf16.xpose.msra.mxu0 0
    %2134 = vmatprep.subr.bf16.mxu0 0
    %2135 = vmatpush1.bf16.xpose.msra.mxu0 0
    %2136 = vmatprep.subr.bf16.mxu0 0
    %2137 = vmatpush1.bf16.xpose.msra.mxu0 0
    %2138 = vmatprep.subr.bf16.mxu0 0
    %2139 = vmatpush1.bf16.xpose.msra.mxu0 0
    %2140 = vmatprep.subr.bf16.mxu0 0
    %2141 = vmatpush1.bf16.xpose.msra.mxu0 0
    %2142 = vmatprep.subr.bf16.mxu0 0
    %2143 = vmatpush1.bf16.xpose.msra.mxu0 0
    %2144 = vmatprep.subr.bf16.mxu0 0
    %2145 = vmatpush1.bf16.xpose.msra.mxu0 0
    %2146 = vmatprep.subr.bf16.mxu0 0
    %2147 = vmatpush1.bf16.xpose.msra.mxu0 0
    %2148 = vmatprep.subr.bf16.mxu0 0
    %2149 = vmatpush1.bf16.xpose.msra.mxu0 0
    %2150 = vmatprep.subr.bf16.mxu0 0
    %2151 = vmatpush1.bf16.xpose.msra.mxu0 0
    %2152 = vmatprep.subr.bf16.mxu0 0
    %2153 = vmatpush1.bf16.xpose.msra.mxu0 0
    %2154 = vmatprep.subr.bf16.mxu0 0
    %2155 = vmatpush1.bf16.xpose.msra.mxu0 0
    %2156 = vmatprep.mubr.bf16.mxu0 0
    %2157 = vmatmul.mubr.bf16.gmra.mrb[0].mxu0 %v2119
    %v2158 = vpop.f32.mrb[0].mxu0
    %v2159 = vadd.f32 0.0, %v2158
    %v2160 = vpop.f32.mrb[0].mxu0
    %v2161 = vpop.f32.mrb[0].mxu0
    %v2162 = vpop.f32.mrb[0].mxu0
    %2163 = vdwg.mxu0
    %2164 = vrot.lane.b32.xlu0 %v773, 104
    %v2165 = vpop.permute.xlu0 %2164
    %2166 = vrot.lane.b32.xlu0 %v777, 40
    %v2167 = vpop.permute.xlu0 %2166
    %v2169 = vsel %vm783, %v2165, 0
    %v2172 = vsel %vm783, %v2167, 0
    %2174 = vmatprep.subr.bf16.mxu0 0
    %2175 = vmatpush1.bf16.xpose.msra.mxu0 %v2172
    %2176 = vmatprep.subr.bf16.mxu0 0
    %2177 = vmatpush1.bf16.xpose.msra.mxu0 0
    %2178 = vmatprep.subr.bf16.mxu0 0
    %2179 = vmatpush1.bf16.xpose.msra.mxu0 0
    %2180 = vmatprep.subr.bf16.mxu0 0
    %2181 = vmatpush1.bf16.xpose.msra.mxu0 0
    %2182 = vmatprep.subr.bf16.mxu0 0
    %2183 = vmatpush1.bf16.xpose.msra.mxu0 0
    %2184 = vmatprep.subr.bf16.mxu0 0
    %2185 = vmatpush1.bf16.xpose.msra.mxu0 0
    %2186 = vmatprep.subr.bf16.mxu0 0
    %2187 = vmatpush1.bf16.xpose.msra.mxu0 0
    %2188 = vmatprep.subr.bf16.mxu0 0
    %2189 = vmatpush1.bf16.xpose.msra.mxu0 0
    %2190 = vmatprep.subr.bf16.mxu0 0
    %2191 = vmatpush1.bf16.xpose.msra.mxu0 0
    %2192 = vmatprep.subr.bf16.mxu0 0
    %2193 = vmatpush1.bf16.xpose.msra.mxu0 0
    %2194 = vmatprep.subr.bf16.mxu0 0
    %2195 = vmatpush1.bf16.xpose.msra.mxu0 0
    %2196 = vmatprep.subr.bf16.mxu0 0
    %2197 = vmatpush1.bf16.xpose.msra.mxu0 0
    %2198 = vmatprep.subr.bf16.mxu0 0
    %2199 = vmatpush1.bf16.xpose.msra.mxu0 0
    %2200 = vmatprep.subr.bf16.mxu0 0
    %2201 = vmatpush1.bf16.xpose.msra.mxu0 0
    %2202 = vmatprep.subr.bf16.mxu0 0
    %2203 = vmatpush1.bf16.xpose.msra.mxu0 0
    %2204 = vmatprep.subr.bf16.mxu0 0
    %2205 = vmatpush1.bf16.xpose.msra.mxu0 0
    %2206 = vmatprep.mubr.bf16.mxu0 0
    %2207 = vmatmul.mubr.bf16.gmra.mrb[0].mxu0 %v2169
    %v2208 = vpop.f32.mrb[0].mxu0
    %v2209 = vadd.f32 0.0, %v2208
    %v2210 = vpop.f32.mrb[0].mxu0
    %v2211 = vpop.f32.mrb[0].mxu0
    %v2212 = vpop.f32.mrb[0].mxu0
    %2213 = vdwg.mxu0
    %2214 = vrot.lane.b32.xlu0 %v774, 104
    %v2215 = vpop.permute.xlu0 %2214
    %2216 = vrot.lane.b32.xlu0 %v778, 40
    %v2217 = vpop.permute.xlu0 %2216
    %v2219 = vsel %vm783, %v2215, 0
    %v2222 = vsel %vm783, %v2217, 0
    %2224 = vmatprep.subr.bf16.mxu0 0
    %2225 = vmatpush1.bf16.xpose.msra.mxu0 %v2222
    %2226 = vmatprep.subr.bf16.mxu0 0
    %2227 = vmatpush1.bf16.xpose.msra.mxu0 0
    %2228 = vmatprep.subr.bf16.mxu0 0
    %2229 = vmatpush1.bf16.xpose.msra.mxu0 0
    %2230 = vmatprep.subr.bf16.mxu0 0
    %2231 = vmatpush1.bf16.xpose.msra.mxu0 0
    %2232 = vmatprep.subr.bf16.mxu0 0
    %2233 = vmatpush1.bf16.xpose.msra.mxu0 0
    %2234 = vmatprep.subr.bf16.mxu0 0
    %2235 = vmatpush1.bf16.xpose.msra.mxu0 0
    %2236 = vmatprep.subr.bf16.mxu0 0
    %2237 = vmatpush1.bf16.xpose.msra.mxu0 0
    %2238 = vmatprep.subr.bf16.mxu0 0
    %2239 = vmatpush1.bf16.xpose.msra.mxu0 0
    %2240 = vmatprep.subr.bf16.mxu0 0
    %2241 = vmatpush1.bf16.xpose.msra.mxu0 0
    %2242 = vmatprep.subr.bf16.mxu0 0
    %2243 = vmatpush1.bf16.xpose.msra.mxu0 0
    %2244 = vmatprep.subr.bf16.mxu0 0
    %2245 = vmatpush1.bf16.xpose.msra.mxu0 0
    %2246 = vmatprep.subr.bf16.mxu0 0
    %2247 = vmatpush1.bf16.xpose.msra.mxu0 0
    %2248 = vmatprep.subr.bf16.mxu0 0
    %2249 = vmatpush1.bf16.xpose.msra.mxu0 0
    %2250 = vmatprep.subr.bf16.mxu0 0
    %2251 = vmatpush1.bf16.xpose.msra.mxu0 0
    %2252 = vmatprep.subr.bf16.mxu0 0
    %2253 = vmatpush1.bf16.xpose.msra.mxu0 0
    %2254 = vmatprep.subr.bf16.mxu0 0
    %2255 = vmatpush1.bf16.xpose.msra.mxu0 0
    %2256 = vmatprep.mubr.bf16.mxu0 0
    %2257 = vmatmul.mubr.bf16.gmra.mrb[0].mxu0 %v2219
    %v2258 = vpop.f32.mrb[0].mxu0
    %v2259 = vadd.f32 0.0, %v2258
    %v2260 = vpop.f32.mrb[0].mxu0
    %v2261 = vpop.f32.mrb[0].mxu0
    %v2262 = vpop.f32.mrb[0].mxu0
    %2263 = vdwg.mxu0
    %2264 = vrot.lane.b32.xlu0 %v775, 104
    %v2265 = vpop.permute.xlu0 %2264
    %2266 = vrot.lane.b32.xlu0 %v779, 40
    %v2267 = vpop.permute.xlu0 %2266
    %v2269 = vsel %vm783, %v2265, 0
    %v2272 = vsel %vm783, %v2267, 0
    %2274 = vmatprep.subr.bf16.mxu0 0
    %2275 = vmatpush1.bf16.xpose.msra.mxu0 %v2272
    %2276 = vmatprep.subr.bf16.mxu0 0
    %2277 = vmatpush1.bf16.xpose.msra.mxu0 0
    %2278 = vmatprep.subr.bf16.mxu0 0
    %2279 = vmatpush1.bf16.xpose.msra.mxu0 0
    %2280 = vmatprep.subr.bf16.mxu0 0
    %2281 = vmatpush1.bf16.xpose.msra.mxu0 0
    %2282 = vmatprep.subr.bf16.mxu0 0
    %2283 = vmatpush1.bf16.xpose.msra.mxu0 0
    %2284 = vmatprep.subr.bf16.mxu0 0
    %2285 = vmatpush1.bf16.xpose.msra.mxu0 0
    %2286 = vmatprep.subr.bf16.mxu0 0
    %2287 = vmatpush1.bf16.xpose.msra.mxu0 0
    %2288 = vmatprep.subr.bf16.mxu0 0
    %2289 = vmatpush1.bf16.xpose.msra.mxu0 0
    %2290 = vmatprep.subr.bf16.mxu0 0
    %2291 = vmatpush1.bf16.xpose.msra.mxu0 0
    %2292 = vmatprep.subr.bf16.mxu0 0
    %2293 = vmatpush1.bf16.xpose.msra.mxu0 0
    %2294 = vmatprep.subr.bf16.mxu0 0
    %2295 = vmatpush1.bf16.xpose.msra.mxu0 0
    %2296 = vmatprep.subr.bf16.mxu0 0
    %2297 = vmatpush1.bf16.xpose.msra.mxu0 0
    %2298 = vmatprep.subr.bf16.mxu0 0
    %2299 = vmatpush1.bf16.xpose.msra.mxu0 0
    %2300 = vmatprep.subr.bf16.mxu0 0
    %2301 = vmatpush1.bf16.xpose.msra.mxu0 0
    %2302 = vmatprep.subr.bf16.mxu0 0
    %2303 = vmatpush1.bf16.xpose.msra.mxu0 0
    %2304 = vmatprep.subr.bf16.mxu0 0
    %2305 = vmatpush1.bf16.xpose.msra.mxu0 0
    %2306 = vmatprep.mubr.bf16.mxu0 0
    %2307 = vmatmul.mubr.bf16.gmra.mrb[0].mxu0 %v2269
    %v2308 = vpop.f32.mrb[0].mxu0
    %v2309 = vadd.f32 0.0, %v2308
    %v2310 = vpop.f32.mrb[0].mxu0
    %v2311 = vpop.f32.mrb[0].mxu0
    %v2312 = vpop.f32.mrb[0].mxu0
    %2313 = vdwg.mxu0
    %v2314 = vmul.f32 %v2159, 0.35355338
    %v2315 = vmul.f32 %v2209, 0.35355338
    %v2316 = vmul.f32 %v2259, 0.35355338
    %v2317 = vmul.f32 %v2309, 0.35355338
    %v2318 = vadd.f32 %v2314, %v986
    %v2319 = vadd.f32 %v2315, %v990
    %v2320 = vadd.f32 %v2316, %v986
    %v2321 = vadd.f32 %v2317, %v990
    %v2322 = vsel %vm997, %v2318, -inf
    %2323 = vmax.xlane.f32.xlu0 %v2322
    %v2324 = vpop.xlane.xlu0 %2323
    %v2325 = vsel %vm997, %v2319, -inf
    %2326 = vmax.xlane.f32.xlu0 %v2325
    %v2327 = vpop.xlane.xlu0 %2326
    %v2328 = vsel %vm997, %v2320, -inf
    %2329 = vmax.xlane.f32.xlu0 %v2328
    %v2330 = vpop.xlane.xlu0 %2329
    %v2331 = vsel %vm997, %v2321, -inf
    %2332 = vmax.xlane.f32.xlu0 %v2331
    %v2333 = vpop.xlane.xlu0 %2332
    %v2334 = vsub.f32 %v2318, %v2324
    %v2335 = vsub.f32 %v2319, %v2327
    %v2336 = vsub.f32 %v2320, %v2330
    %v2337 = vsub.f32 %v2321, %v2333
    %v2338 = vmul.f32 %v2334, 1.442695
    %v2339 = vpow.pop %v2338
    %v2340 = vmul.f32 %v2335, 1.442695
    %v2341 = vpow.pop %v2340
    %v2342 = vmul.f32 %v2336, 1.442695
    %v2343 = vpow.pop %v2342
    %v2344 = vmul.f32 %v2337, 1.442695
    %v2345 = vpow.pop %v2344
    %v2346 = vsel %vm997, %v2339, 0.0
    %2347 = vadd.xlane.f32.xlu0 %v2346
    %v2348 = vpop.xlane.xlu0 %2347
    %v2349 = vsel %vm997, %v2341, 0.0
    %2350 = vadd.xlane.f32.xlu0 %v2349
    %v2351 = vpop.xlane.xlu0 %2350
    %v2352 = vsel %vm997, %v2343, 0.0
    %2353 = vadd.xlane.f32.xlu0 %v2352
    %v2354 = vpop.xlane.xlu0 %2353
    %v2355 = vsel %vm997, %v2345, 0.0
    %2356 = vadd.xlane.f32.xlu0 %v2355
    %v2357 = vpop.xlane.xlu0 %2356
    %v2358 = vrcp.pop %v2348
    %v2359 = vmul.f32 %v2339, %v2358
    %v2360 = vrcp.pop %v2351
    %v2361 = vmul.f32 %v2341, %v2360
    %v2362 = vrcp.pop %v2354
    %v2363 = vmul.f32 %v2343, %v2362
    %v2364 = vrcp.pop %v2357
    %v2365 = vmul.f32 %v2345, %v2364
    %v2366 = vpack.c.bf16 %v2359, %v2359
    %v2367 = vpack.c.bf16 %v2361, %v2361
    %v2368 = vpack.c.bf16 %v2363, %v2363
    %v2369 = vpack.c.bf16 %v2365, %v2365
    %2370 = vrot.lane.b32.xlu0 %v776, 8
    %v2371 = vpop.permute.xlu0 %2370
    %v2374 = vsel %vm997, %v2366, 0
    %2376 = vmatprep.subr.bf16.mxu0 0
    %2377 = vmatpush1.bf16.msra.mxu0 %v2371
    %2378 = vmatprep.subr.bf16.mxu0 0
    %2379 = vmatpush1.bf16.msra.mxu0 0
    %2380 = vmatprep.subr.bf16.mxu0 0
    %2381 = vmatpush1.bf16.msra.mxu0 0
    %2382 = vmatprep.subr.bf16.mxu0 0
    %2383 = vmatpush1.bf16.msra.mxu0 0
    %2384 = vmatprep.subr.bf16.mxu0 0
    %2385 = vmatpush1.bf16.msra.mxu0 0
    %2386 = vmatprep.subr.bf16.mxu0 0
    %2387 = vmatpush1.bf16.msra.mxu0 0
    %2388 = vmatprep.subr.bf16.mxu0 0
    %2389 = vmatpush1.bf16.msra.mxu0 0
    %2390 = vmatprep.subr.bf16.mxu0 0
    %2391 = vmatpush1.bf16.msra.mxu0 0
    %2392 = vmatprep.subr.bf16.mxu0 0
    %2393 = vmatpush1.bf16.msra.mxu0 0
    %2394 = vmatprep.subr.bf16.mxu0 0
    %2395 = vmatpush1.bf16.msra.mxu0 0
    %2396 = vmatprep.subr.bf16.mxu0 0
    %2397 = vmatpush1.bf16.msra.mxu0 0
    %2398 = vmatprep.subr.bf16.mxu0 0
    %2399 = vmatpush1.bf16.msra.mxu0 0
    %2400 = vmatprep.subr.bf16.mxu0 0
    %2401 = vmatpush1.bf16.msra.mxu0 0
    %2402 = vmatprep.subr.bf16.mxu0 0
    %2403 = vmatpush1.bf16.msra.mxu0 0
    %2404 = vmatprep.subr.bf16.mxu0 0
    %2405 = vmatpush1.bf16.msra.mxu0 0
    %2406 = vmatprep.subr.bf16.mxu0 0
    %2407 = vmatpush1.bf16.msra.mxu0 0
    %2408 = vmatprep.mubr.bf16.mxu0 0
    %2409 = vmatmul.mubr.bf16.gmra.mrb[0].mxu0 %v2374
    %v2410 = vpop.f32.mrb[0].mxu0
    %v2411 = vadd.f32 0.0, %v2410
    %v2412 = vpop.f32.mrb[0].mxu0
    %v2413 = vpop.f32.mrb[0].mxu0
    %v2414 = vpop.f32.mrb[0].mxu0
    %2415 = vdwg.mxu0
    %2416 = vrot.lane.b32.xlu0 %v777, 8
    %v2417 = vpop.permute.xlu0 %2416
    %v2420 = vsel %vm997, %v2367, 0
    %2422 = vmatprep.subr.bf16.mxu0 0
    %2423 = vmatpush1.bf16.msra.mxu0 %v2417
    %2424 = vmatprep.subr.bf16.mxu0 0
    %2425 = vmatpush1.bf16.msra.mxu0 0
    %2426 = vmatprep.subr.bf16.mxu0 0
    %2427 = vmatpush1.bf16.msra.mxu0 0
    %2428 = vmatprep.subr.bf16.mxu0 0
    %2429 = vmatpush1.bf16.msra.mxu0 0
    %2430 = vmatprep.subr.bf16.mxu0 0
    %2431 = vmatpush1.bf16.msra.mxu0 0
    %2432 = vmatprep.subr.bf16.mxu0 0
    %2433 = vmatpush1.bf16.msra.mxu0 0
    %2434 = vmatprep.subr.bf16.mxu0 0
    %2435 = vmatpush1.bf16.msra.mxu0 0
    %2436 = vmatprep.subr.bf16.mxu0 0
    %2437 = vmatpush1.bf16.msra.mxu0 0
    %2438 = vmatprep.subr.bf16.mxu0 0
    %2439 = vmatpush1.bf16.msra.mxu0 0
    %2440 = vmatprep.subr.bf16.mxu0 0
    %2441 = vmatpush1.bf16.msra.mxu0 0
    %2442 = vmatprep.subr.bf16.mxu0 0
    %2443 = vmatpush1.bf16.msra.mxu0 0
    %2444 = vmatprep.subr.bf16.mxu0 0
    %2445 = vmatpush1.bf16.msra.mxu0 0
    %2446 = vmatprep.subr.bf16.mxu0 0
    %2447 = vmatpush1.bf16.msra.mxu0 0
    %2448 = vmatprep.subr.bf16.mxu0 0
    %2449 = vmatpush1.bf16.msra.mxu0 0
    %2450 = vmatprep.subr.bf16.mxu0 0
    %2451 = vmatpush1.bf16.msra.mxu0 0
    %2452 = vmatprep.subr.bf16.mxu0 0
    %2453 = vmatpush1.bf16.msra.mxu0 0
    %2454 = vmatprep.mubr.bf16.mxu0 0
    %2455 = vmatmul.mubr.bf16.gmra.mrb[0].mxu0 %v2420
    %v2456 = vpop.f32.mrb[0].mxu0
    %v2457 = vadd.f32 0.0, %v2456
    %v2458 = vpop.f32.mrb[0].mxu0
    %v2459 = vpop.f32.mrb[0].mxu0
    %v2460 = vpop.f32.mrb[0].mxu0
    %2461 = vdwg.mxu0
    %2462 = vrot.lane.b32.xlu0 %v778, 8
    %v2463 = vpop.permute.xlu0 %2462
    %v2466 = vsel %vm997, %v2368, 0
    %2468 = vmatprep.subr.bf16.mxu0 0
    %2469 = vmatpush1.bf16.msra.mxu0 %v2463
    %2470 = vmatprep.subr.bf16.mxu0 0
    %2471 = vmatpush1.bf16.msra.mxu0 0
    %2472 = vmatprep.subr.bf16.mxu0 0
    %2473 = vmatpush1.bf16.msra.mxu0 0
    %2474 = vmatprep.subr.bf16.mxu0 0
    %2475 = vmatpush1.bf16.msra.mxu0 0
    %2476 = vmatprep.subr.bf16.mxu0 0
    %2477 = vmatpush1.bf16.msra.mxu0 0
    %2478 = vmatprep.subr.bf16.mxu0 0
    %2479 = vmatpush1.bf16.msra.mxu0 0
    %2480 = vmatprep.subr.bf16.mxu0 0
    %2481 = vmatpush1.bf16.msra.mxu0 0
    %2482 = vmatprep.subr.bf16.mxu0 0
    %2483 = vmatpush1.bf16.msra.mxu0 0
    %2484 = vmatprep.subr.bf16.mxu0 0
    %2485 = vmatpush1.bf16.msra.mxu0 0
    %2486 = vmatprep.subr.bf16.mxu0 0
    %2487 = vmatpush1.bf16.msra.mxu0 0
    %2488 = vmatprep.subr.bf16.mxu0 0
    %2489 = vmatpush1.bf16.msra.mxu0 0
    %2490 = vmatprep.subr.bf16.mxu0 0
    %2491 = vmatpush1.bf16.msra.mxu0 0
    %2492 = vmatprep.subr.bf16.mxu0 0
    %2493 = vmatpush1.bf16.msra.mxu0 0
    %2494 = vmatprep.subr.bf16.mxu0 0
    %2495 = vmatpush1.bf16.msra.mxu0 0
    %2496 = vmatprep.subr.bf16.mxu0 0
    %2497 = vmatpush1.bf16.msra.mxu0 0
    %2498 = vmatprep.subr.bf16.mxu0 0
    %2499 = vmatpush1.bf16.msra.mxu0 0
    %2500 = vmatprep.mubr.bf16.mxu0 0
    %2501 = vmatmul.mubr.bf16.gmra.mrb[0].mxu0 %v2466
    %v2502 = vpop.f32.mrb[0].mxu0
    %v2503 = vadd.f32 0.0, %v2502
    %v2504 = vpop.f32.mrb[0].mxu0
    %v2505 = vpop.f32.mrb[0].mxu0
    %v2506 = vpop.f32.mrb[0].mxu0
    %2507 = vdwg.mxu0
    %2508 = vrot.lane.b32.xlu0 %v779, 8
    %v2509 = vpop.permute.xlu0 %2508
    %v2512 = vsel %vm997, %v2369, 0
    %2514 = vmatprep.subr.bf16.mxu0 0
    %2515 = vmatpush1.bf16.msra.mxu0 %v2509
    %2516 = vmatprep.subr.bf16.mxu0 0
    %2517 = vmatpush1.bf16.msra.mxu0 0
    %2518 = vmatprep.subr.bf16.mxu0 0
    %2519 = vmatpush1.bf16.msra.mxu0 0
    %2520 = vmatprep.subr.bf16.mxu0 0
    %2521 = vmatpush1.bf16.msra.mxu0 0
    %2522 = vmatprep.subr.bf16.mxu0 0
    %2523 = vmatpush1.bf16.msra.mxu0 0
    %2524 = vmatprep.subr.bf16.mxu0 0
    %2525 = vmatpush1.bf16.msra.mxu0 0
    %2526 = vmatprep.subr.bf16.mxu0 0
    %2527 = vmatpush1.bf16.msra.mxu0 0
    %2528 = vmatprep.subr.bf16.mxu0 0
    %2529 = vmatpush1.bf16.msra.mxu0 0
    %2530 = vmatprep.subr.bf16.mxu0 0
    %2531 = vmatpush1.bf16.msra.mxu0 0
    %2532 = vmatprep.subr.bf16.mxu0 0
    %2533 = vmatpush1.bf16.msra.mxu0 0
    %2534 = vmatprep.subr.bf16.mxu0 0
    %2535 = vmatpush1.bf16.msra.mxu0 0
    %2536 = vmatprep.subr.bf16.mxu0 0
    %2537 = vmatpush1.bf16.msra.mxu0 0
    %2538 = vmatprep.subr.bf16.mxu0 0
    %2539 = vmatpush1.bf16.msra.mxu0 0
    %2540 = vmatprep.subr.bf16.mxu0 0
    %2541 = vmatpush1.bf16.msra.mxu0 0
    %2542 = vmatprep.subr.bf16.mxu0 0
    %2543 = vmatpush1.bf16.msra.mxu0 0
    %2544 = vmatprep.subr.bf16.mxu0 0
    %2545 = vmatpush1.bf16.msra.mxu0 0
    %2546 = vmatprep.mubr.bf16.mxu0 0
    %2547 = vmatmul.mubr.bf16.gmra.mrb[0].mxu0 %v2512
    %v2548 = vpop.f32.mrb[0].mxu0
    %v2549 = vadd.f32 0.0, %v2548
    %v2550 = vpop.f32.mrb[0].mxu0
    %v2551 = vpop.f32.mrb[0].mxu0
    %v2552 = vpop.f32.mrb[0].mxu0
    %2553 = vdwg.mxu0
    %2558 = vrot.lane.b32.xlu0 %v1531, 8
    %v2559 = vpop.permute.xlu0 %2558
    %2560 = vrot.lane.b32.xlu0 %v1577, 8
    %v2561 = vpop.permute.xlu0 %2560
    %2562 = vrot.lane.b32.xlu0 %v1623, 8
    %v2563 = vpop.permute.xlu0 %2562
    %2564 = vrot.lane.b32.xlu0 %v1669, 8
    %v2565 = vpop.permute.xlu0 %2564
    %2574 = vrot.lane.b32.xlu0 %v1971, 16
    %v2575 = vpop.permute.xlu0 %2574
    %2576 = vrot.lane.b32.xlu0 %v2017, 16
    %v2577 = vpop.permute.xlu0 %2576
    %2578 = vrot.lane.b32.xlu0 %v2063, 16
    %v2579 = vpop.permute.xlu0 %2578
    %2580 = vrot.lane.b32.xlu0 %v2109, 16
    %v2581 = vpop.permute.xlu0 %2580
    %2590 = vrot.lane.b32.xlu0 %v2411, 24
    %v2591 = vpop.permute.xlu0 %2590
    %2592 = vrot.lane.b32.xlu0 %v2457, 24
    %v2593 = vpop.permute.xlu0 %2592
    %2594 = vrot.lane.b32.xlu0 %v2503, 24
    %v2595 = vpop.permute.xlu0 %2594
    %2596 = vrot.lane.b32.xlu0 %v2549, 24
    %v2597 = vpop.permute.xlu0 %2596
    %v2602 = vsel %vm783, %v1087, %v2559
    %v2603 = vsel %vm783, %v1133, %v2561
    %v2604 = vsel %vm783, %v1179, %v2563
    %v2605 = vsel %vm783, %v1225, %v2565
    %v2606 = vsel %vm997, %v2602, %v2575
    %v2607 = vsel %vm997, %v2603, %v2577
    %v2608 = vsel %vm997, %v2604, %v2579
    %v2609 = vsel %vm997, %v2605, %v2581
    %vm2610 = vcmask 195584
    %v2611 = vsel %vm2610, %v2606, %v2591
    %v2612 = vsel %vm2610, %v2607, %v2593
    %v2613 = vsel %vm2610, %v2608, %v2595
    %v2614 = vsel %vm2610, %v2609, %v2597
    %v2615 = vpack.c.bf16 %v2612, %v2611
    %v2616 = vpack.c.bf16 %v2614, %v2613
    %v2621 = vunpack.c.l.b16 %v233
    %v2622 = vunpack.c.l.b16 %v234
    %v2623 = vunpack.c.l.b16 %v235
    %v2624 = vunpack.c.l.b16 %v236
    %v2625 = vpack.c.b16 %v2622, %v2621
    %v2626 = vpack.c.b16 %v2624, %v2623
    %v2630 = vsel %vm582, %v2615, 0
    %2632 = vmatprep.subr.bf16.mxu0 0
    %2633 = vmatpush1.bf16.msra.mxu0 %v2625
    %2634 = vmatprep.subr.bf16.mxu0 0
    %2635 = vmatpush1.bf16.msra.mxu0 %v2626
    %2636 = vmatprep.subr.bf16.mxu0 0
    %2637 = vmatpush1.bf16.msra.mxu0 0
    %2638 = vmatprep.subr.bf16.mxu0 0
    %2639 = vmatpush1.bf16.msra.mxu0 0
    %2640 = vmatprep.subr.bf16.mxu0 0
    %2641 = vmatpush1.bf16.msra.mxu0 0
    %2642 = vmatprep.subr.bf16.mxu0 0
    %2643 = vmatpush1.bf16.msra.mxu0 0
    %2644 = vmatprep.subr.bf16.mxu0 0
    %2645 = vmatpush1.bf16.msra.mxu0 0
    %2646 = vmatprep.subr.bf16.mxu0 0
    %2647 = vmatpush1.bf16.msra.mxu0 0
    %2648 = vmatprep.subr.bf16.mxu0 0
    %2649 = vmatpush1.bf16.msra.mxu0 0
    %2650 = vmatprep.subr.bf16.mxu0 0
    %2651 = vmatpush1.bf16.msra.mxu0 0
    %2652 = vmatprep.subr.bf16.mxu0 0
    %2653 = vmatpush1.bf16.msra.mxu0 0
    %2654 = vmatprep.subr.bf16.mxu0 0
    %2655 = vmatpush1.bf16.msra.mxu0 0
    %2656 = vmatprep.subr.bf16.mxu0 0
    %2657 = vmatpush1.bf16.msra.mxu0 0
    %2658 = vmatprep.subr.bf16.mxu0 0
    %2659 = vmatpush1.bf16.msra.mxu0 0
    %2660 = vmatprep.subr.bf16.mxu0 0
    %2661 = vmatpush1.bf16.msra.mxu0 0
    %2662 = vmatprep.subr.bf16.mxu0 0
    %2663 = vmatpush1.bf16.msra.mxu0 0
    %2664 = vmatprep.mubr.bf16.mxu0 0
    %2665 = vmatmul.mubr.bf16.gmra.mrb[0].mxu0 %v2630
    %v2666 = vpop.f32.mrb[0].mxu0
    %v2667 = vadd.f32 0.0, %v2666
    %v2668 = vpop.f32.mrb[0].mxu0
    %v2669 = vpop.f32.mrb[0].mxu0
    %v2670 = vadd.f32 0.0, %v2669
    %v2671 = vpop.f32.mrb[0].mxu0
    %2672 = vdwg.mxu0
    %v2677 = vunpack.c.l.b16 %v237
    %v2678 = vunpack.c.l.b16 %v238
    %v2679 = vunpack.c.l.b16 %v239
    %v2680 = vunpack.c.l.b16 %v240
    %v2681 = vpack.c.b16 %v2678, %v2677
    %v2682 = vpack.c.b16 %v2680, %v2679
    %v2686 = vsel %vm582, %v2616, 0
    %2688 = vmatprep.subr.bf16.mxu0 0
    %2689 = vmatpush1.bf16.msra.mxu0 %v2681
    %2690 = vmatprep.subr.bf16.mxu0 0
    %2691 = vmatpush1.bf16.msra.mxu0 %v2682
    %2692 = vmatprep.subr.bf16.mxu0 0
    %2693 = vmatpush1.bf16.msra.mxu0 0
    %2694 = vmatprep.subr.bf16.mxu0 0
    %2695 = vmatpush1.bf16.msra.mxu0 0
    %2696 = vmatprep.subr.bf16.mxu0 0
    %2697 = vmatpush1.bf16.msra.mxu0 0
    %2698 = vmatprep.subr.bf16.mxu0 0
    %2699 = vmatpush1.bf16.msra.mxu0 0
    %2700 = vmatprep.subr.bf16.mxu0 0
    %2701 = vmatpush1.bf16.msra.mxu0 0
    %2702 = vmatprep.subr.bf16.mxu0 0
    %2703 = vmatpush1.bf16.msra.mxu0 0
    %2704 = vmatprep.subr.bf16.mxu0 0
    %2705 = vmatpush1.bf16.msra.mxu0 0
    %2706 = vmatprep.subr.bf16.mxu0 0
    %2707 = vmatpush1.bf16.msra.mxu0 0
    %2708 = vmatprep.subr.bf16.mxu0 0
    %2709 = vmatpush1.bf16.msra.mxu0 0
    %2710 = vmatprep.subr.bf16.mxu0 0
    %2711 = vmatpush1.bf16.msra.mxu0 0
    %2712 = vmatprep.subr.bf16.mxu0 0
    %2713 = vmatpush1.bf16.msra.mxu0 0
    %2714 = vmatprep.subr.bf16.mxu0 0
    %2715 = vmatpush1.bf16.msra.mxu0 0
    %2716 = vmatprep.subr.bf16.mxu0 0
    %2717 = vmatpush1.bf16.msra.mxu0 0
    %2718 = vmatprep.subr.bf16.mxu0 0
    %2719 = vmatpush1.bf16.msra.mxu0 0
    %2720 = vmatprep.mubr.bf16.mxu0 0
    %2721 = vmatmul.mubr.bf16.gmra.mrb[0].mxu0 %v2686
    %v2722 = vpop.f32.mrb[0].mxu0
    %v2723 = vadd.f32 0.0, %v2722
    %v2724 = vpop.f32.mrb[0].mxu0
    %v2725 = vpop.f32.mrb[0].mxu0
    %v2726 = vadd.f32 0.0, %v2725
    %v2727 = vpop.f32.mrb[0].mxu0
    %2728 = vdwg.mxu0
    %2730 = vrot.lane.b32.xlu0 %v222, 96
    %v2731 = vpop.permute.xlu0 %2730
    %v2733 = vlaneseq
    %v2734 = vshrl.u32 %v2733, 7
    %v2735 = vsub.s32 2, %v2734
    %v2736 = vrot.slane %v222, %v2735
    %v2737 = vlaneseq
    %v2738 = vshrl.u32 %v2737, 7
    %v2739 = vsub.s32 2, %v2738
    %v2740 = vrot.slane %v2731, %v2739
    %v2741 = vadd.f32 %v2667, %v2736
    %v2742 = vadd.f32 %v2670, %v2736
    %v2743 = vadd.f32 %v2723, %v2740
    %v2744 = vadd.f32 %v2726, %v2740
    %2749 = vrot.lane.b32.xlu0 %v624, 96
    %v2750 = vpop.permute.xlu0 %2749
    %2751 = vrot.lane.b32.xlu0 %v628, 96
    %v2752 = vpop.permute.xlu0 %2751
    %2753 = vrot.lane.b32.xlu0 %v634, 96
    %v2754 = vpop.permute.xlu0 %2753
    %2755 = vrot.lane.b32.xlu0 %v638, 96
    %v2756 = vpop.permute.xlu0 %2755
    %v2761 = vpack.c.bf16 %v2752, %v2750
    %v2762 = vpack.c.bf16 %v2756, %v2754
    %2763 = vrot.lane.b32.xlu0 %v772, 96
    %v2764 = vpop.permute.xlu0 %2763
    %v2766 = vsel %vm783, %v776, 0
    %v2769 = vsel %vm783, %v2764, 0
    %2771 = vmatprep.subr.bf16.mxu0 0
    %2772 = vmatpush1.bf16.xpose.msra.mxu0 %v2769
    %2773 = vmatprep.subr.bf16.mxu0 0
    %2774 = vmatpush1.bf16.xpose.msra.mxu0 0
    %2775 = vmatprep.subr.bf16.mxu0 0
    %2776 = vmatpush1.bf16.xpose.msra.mxu0 0
    %2777 = vmatprep.subr.bf16.mxu0 0
    %2778 = vmatpush1.bf16.xpose.msra.mxu0 0
    %2779 = vmatprep.subr.bf16.mxu0 0
    %2780 = vmatpush1.bf16.xpose.msra.mxu0 0
    %2781 = vmatprep.subr.bf16.mxu0 0
    %2782 = vmatpush1.bf16.xpose.msra.mxu0 0
    %2783 = vmatprep.subr.bf16.mxu0 0
    %2784 = vmatpush1.bf16.xpose.msra.mxu0 0
    %2785 = vmatprep.subr.bf16.mxu0 0
    %2786 = vmatpush1.bf16.xpose.msra.mxu0 0
    %2787 = vmatprep.subr.bf16.mxu0 0
    %2788 = vmatpush1.bf16.xpose.msra.mxu0 0
    %2789 = vmatprep.subr.bf16.mxu0 0
    %2790 = vmatpush1.bf16.xpose.msra.mxu0 0
    %2791 = vmatprep.subr.bf16.mxu0 0
    %2792 = vmatpush1.bf16.xpose.msra.mxu0 0
    %2793 = vmatprep.subr.bf16.mxu0 0
    %2794 = vmatpush1.bf16.xpose.msra.mxu0 0
    %2795 = vmatprep.subr.bf16.mxu0 0
    %2796 = vmatpush1.bf16.xpose.msra.mxu0 0
    %2797 = vmatprep.subr.bf16.mxu0 0
    %2798 = vmatpush1.bf16.xpose.msra.mxu0 0
    %2799 = vmatprep.subr.bf16.mxu0 0
    %2800 = vmatpush1.bf16.xpose.msra.mxu0 0
    %2801 = vmatprep.subr.bf16.mxu0 0
    %2802 = vmatpush1.bf16.xpose.msra.mxu0 0
    %2803 = vmatprep.mubr.bf16.mxu0 0
    %2804 = vmatmul.mubr.bf16.gmra.mrb[0].mxu0 %v2766
    %v2805 = vpop.f32.mrb[0].mxu0
    %v2806 = vadd.f32 0.0, %v2805
    %v2807 = vpop.f32.mrb[0].mxu0
    %v2808 = vpop.f32.mrb[0].mxu0
    %v2809 = vadd.f32 0.0, %v2808
    %v2810 = vpop.f32.mrb[0].mxu0
    %2811 = vdwg.mxu0
    %2812 = vrot.lane.b32.xlu0 %v773, 96
    %v2813 = vpop.permute.xlu0 %2812
    %v2815 = vsel %vm783, %v777, 0
    %v2818 = vsel %vm783, %v2813, 0
    %2820 = vmatprep.subr.bf16.mxu0 0
    %2821 = vmatpush1.bf16.xpose.msra.mxu0 %v2818
    %2822 = vmatprep.subr.bf16.mxu0 0
    %2823 = vmatpush1.bf16.xpose.msra.mxu0 0
    %2824 = vmatprep.subr.bf16.mxu0 0
    %2825 = vmatpush1.bf16.xpose.msra.mxu0 0
    %2826 = vmatprep.subr.bf16.mxu0 0
    %2827 = vmatpush1.bf16.xpose.msra.mxu0 0
    %2828 = vmatprep.subr.bf16.mxu0 0
    %2829 = vmatpush1.bf16.xpose.msra.mxu0 0
    %2830 = vmatprep.subr.bf16.mxu0 0
    %2831 = vmatpush1.bf16.xpose.msra.mxu0 0
    %2832 = vmatprep.subr.bf16.mxu0 0
    %2833 = vmatpush1.bf16.xpose.msra.mxu0 0
    %2834 = vmatprep.subr.bf16.mxu0 0
    %2835 = vmatpush1.bf16.xpose.msra.mxu0 0
    %2836 = vmatprep.subr.bf16.mxu0 0
    %2837 = vmatpush1.bf16.xpose.msra.mxu0 0
    %2838 = vmatprep.subr.bf16.mxu0 0
    %2839 = vmatpush1.bf16.xpose.msra.mxu0 0
    %2840 = vmatprep.subr.bf16.mxu0 0
    %2841 = vmatpush1.bf16.xpose.msra.mxu0 0
    %2842 = vmatprep.subr.bf16.mxu0 0
    %2843 = vmatpush1.bf16.xpose.msra.mxu0 0
    %2844 = vmatprep.subr.bf16.mxu0 0
    %2845 = vmatpush1.bf16.xpose.msra.mxu0 0
    %2846 = vmatprep.subr.bf16.mxu0 0
    %2847 = vmatpush1.bf16.xpose.msra.mxu0 0
    %2848 = vmatprep.subr.bf16.mxu0 0
    %2849 = vmatpush1.bf16.xpose.msra.mxu0 0
    %2850 = vmatprep.subr.bf16.mxu0 0
    %2851 = vmatpush1.bf16.xpose.msra.mxu0 0
    %2852 = vmatprep.mubr.bf16.mxu0 0
    %2853 = vmatmul.mubr.bf16.gmra.mrb[0].mxu0 %v2815
    %v2854 = vpop.f32.mrb[0].mxu0
    %v2855 = vadd.f32 0.0, %v2854
    %v2856 = vpop.f32.mrb[0].mxu0
    %v2857 = vpop.f32.mrb[0].mxu0
    %v2858 = vadd.f32 0.0, %v2857
    %v2859 = vpop.f32.mrb[0].mxu0
    %2860 = vdwg.mxu0
    %2861 = vrot.lane.b32.xlu0 %v774, 96
    %v2862 = vpop.permute.xlu0 %2861
    %v2864 = vsel %vm783, %v2761, 0
    %v2867 = vsel %vm783, %v2862, 0
    %2869 = vmatprep.subr.bf16.mxu0 0
    %2870 = vmatpush1.bf16.xpose.msra.mxu0 %v2867
    %2871 = vmatprep.subr.bf16.mxu0 0
    %2872 = vmatpush1.bf16.xpose.msra.mxu0 0
    %2873 = vmatprep.subr.bf16.mxu0 0
    %2874 = vmatpush1.bf16.xpose.msra.mxu0 0
    %2875 = vmatprep.subr.bf16.mxu0 0
    %2876 = vmatpush1.bf16.xpose.msra.mxu0 0
    %2877 = vmatprep.subr.bf16.mxu0 0
    %2878 = vmatpush1.bf16.xpose.msra.mxu0 0
    %2879 = vmatprep.subr.bf16.mxu0 0
    %2880 = vmatpush1.bf16.xpose.msra.mxu0 0
    %2881 = vmatprep.subr.bf16.mxu0 0
    %2882 = vmatpush1.bf16.xpose.msra.mxu0 0
    %2883 = vmatprep.subr.bf16.mxu0 0
    %2884 = vmatpush1.bf16.xpose.msra.mxu0 0
    %2885 = vmatprep.subr.bf16.mxu0 0
    %2886 = vmatpush1.bf16.xpose.msra.mxu0 0
    %2887 = vmatprep.subr.bf16.mxu0 0
    %2888 = vmatpush1.bf16.xpose.msra.mxu0 0
    %2889 = vmatprep.subr.bf16.mxu0 0
    %2890 = vmatpush1.bf16.xpose.msra.mxu0 0
    %2891 = vmatprep.subr.bf16.mxu0 0
    %2892 = vmatpush1.bf16.xpose.msra.mxu0 0
    %2893 = vmatprep.subr.bf16.mxu0 0
    %2894 = vmatpush1.bf16.xpose.msra.mxu0 0
    %2895 = vmatprep.subr.bf16.mxu0 0
    %2896 = vmatpush1.bf16.xpose.msra.mxu0 0
    %2897 = vmatprep.subr.bf16.mxu0 0
    %2898 = vmatpush1.bf16.xpose.msra.mxu0 0
    %2899 = vmatprep.subr.bf16.mxu0 0
    %2900 = vmatpush1.bf16.xpose.msra.mxu0 0
    %2901 = vmatprep.mubr.bf16.mxu0 0
    %2902 = vmatmul.mubr.bf16.gmra.mrb[0].mxu0 %v2864
    %v2903 = vpop.f32.mrb[0].mxu0
    %v2904 = vadd.f32 0.0, %v2903
    %v2905 = vpop.f32.mrb[0].mxu0
    %v2906 = vpop.f32.mrb[0].mxu0
    %v2907 = vadd.f32 0.0, %v2906
    %v2908 = vpop.f32.mrb[0].mxu0
    %2909 = vdwg.mxu0
    %2910 = vrot.lane.b32.xlu0 %v775, 96
    %v2911 = vpop.permute.xlu0 %2910
    %v2913 = vsel %vm783, %v2762, 0
    %v2916 = vsel %vm783, %v2911, 0
    %2918 = vmatprep.subr.bf16.mxu0 0
    %2919 = vmatpush1.bf16.xpose.msra.mxu0 %v2916
    %2920 = vmatprep.subr.bf16.mxu0 0
    %2921 = vmatpush1.bf16.xpose.msra.mxu0 0
    %2922 = vmatprep.subr.bf16.mxu0 0
    %2923 = vmatpush1.bf16.xpose.msra.mxu0 0
    %2924 = vmatprep.subr.bf16.mxu0 0
    %2925 = vmatpush1.bf16.xpose.msra.mxu0 0
    %2926 = vmatprep.subr.bf16.mxu0 0
    %2927 = vmatpush1.bf16.xpose.msra.mxu0 0
    %2928 = vmatprep.subr.bf16.mxu0 0
    %2929 = vmatpush1.bf16.xpose.msra.mxu0 0
    %2930 = vmatprep.subr.bf16.mxu0 0
    %2931 = vmatpush1.bf16.xpose.msra.mxu0 0
    %2932 = vmatprep.subr.bf16.mxu0 0
    %2933 = vmatpush1.bf16.xpose.msra.mxu0 0
    %2934 = vmatprep.subr.bf16.mxu0 0
    %2935 = vmatpush1.bf16.xpose.msra.mxu0 0
    %2936 = vmatprep.subr.bf16.mxu0 0
    %2937 = vmatpush1.bf16.xpose.msra.mxu0 0
    %2938 = vmatprep.subr.bf16.mxu0 0
    %2939 = vmatpush1.bf16.xpose.msra.mxu0 0
    %2940 = vmatprep.subr.bf16.mxu0 0
    %2941 = vmatpush1.bf16.xpose.msra.mxu0 0
    %2942 = vmatprep.subr.bf16.mxu0 0
    %2943 = vmatpush1.bf16.xpose.msra.mxu0 0
    %2944 = vmatprep.subr.bf16.mxu0 0
    %2945 = vmatpush1.bf16.xpose.msra.mxu0 0
    %2946 = vmatprep.subr.bf16.mxu0 0
    %2947 = vmatpush1.bf16.xpose.msra.mxu0 0
    %2948 = vmatprep.subr.bf16.mxu0 0
    %2949 = vmatpush1.bf16.xpose.msra.mxu0 0
    %2950 = vmatprep.mubr.bf16.mxu0 0
    %2951 = vmatmul.mubr.bf16.gmra.mrb[0].mxu0 %v2913
    %v2952 = vpop.f32.mrb[0].mxu0
    %v2953 = vadd.f32 0.0, %v2952
    %v2954 = vpop.f32.mrb[0].mxu0
    %v2955 = vpop.f32.mrb[0].mxu0
    %v2956 = vadd.f32 0.0, %v2955
    %v2957 = vpop.f32.mrb[0].mxu0
    %2958 = vdwg.mxu0
    %v2959 = vmul.f32 %v2806, 0.35355338
    %v2960 = vmul.f32 %v2809, 0.35355338
    %v2961 = vmul.f32 %v2855, 0.35355338
    %v2962 = vmul.f32 %v2858, 0.35355338
    %v2963 = vmul.f32 %v2904, 0.35355338
    %v2964 = vmul.f32 %v2907, 0.35355338
    %v2965 = vmul.f32 %v2953, 0.35355338
    %v2966 = vmul.f32 %v2956, 0.35355338
    %v2971 = vlaneseq
    %v2972 = vshrl.u32 %v2971, 7
    %v2973 = vsub.s32 0, %v2972
    %v2974 = vrot.slane %v542, %v2973
    %v2975 = vlaneseq
    %v2976 = vshrl.u32 %v2975, 7
    %v2977 = vsub.s32 0, %v2976
    %v2978 = vrot.slane %v543, %v2977
    %v2979 = vlaneseq
    %v2980 = vshrl.u32 %v2979, 7
    %v2981 = vsub.s32 0, %v2980
    %v2982 = vrot.slane %v546, %v2981
    %v2983 = vlaneseq
    %v2984 = vshrl.u32 %v2983, 7
    %v2985 = vsub.s32 0, %v2984
    %v2986 = vrot.slane %v547, %v2985
    %v2991 = vadd.f32 %v2959, %v2974
    %v2992 = vadd.f32 %v2960, %v2974
    %v2993 = vadd.f32 %v2961, %v2978
    %v2994 = vadd.f32 %v2962, %v2978
    %v2995 = vadd.f32 %v2963, %v2982
    %v2996 = vadd.f32 %v2964, %v2982
    %v2997 = vadd.f32 %v2965, %v2986
    %v2998 = vadd.f32 %v2966, %v2986
    %v2999 = vsel %vm783, %v2991, -inf
    %3000 = vmax.xlane.f32.xlu0 %v2999
    %v3001 = vpop.xlane.xlu0 %3000
    %v3002 = vsel %vm783, %v2992, -inf
    %3003 = vmax.xlane.f32.xlu0 %v3002
    %v3004 = vpop.xlane.xlu0 %3003
    %v3005 = vsel %vm783, %v2993, -inf
    %3006 = vmax.xlane.f32.xlu0 %v3005
    %v3007 = vpop.xlane.xlu0 %3006
    %v3008 = vsel %vm783, %v2994, -inf
    %3009 = vmax.xlane.f32.xlu0 %v3008
    %v3010 = vpop.xlane.xlu0 %3009
    %v3011 = vsel %vm783, %v2995, -inf
    %3012 = vmax.xlane.f32.xlu0 %v3011
    %v3013 = vpop.xlane.xlu0 %3012
    %v3014 = vsel %vm783, %v2996, -inf
    %3015 = vmax.xlane.f32.xlu0 %v3014
    %v3016 = vpop.xlane.xlu0 %3015
    %v3017 = vsel %vm783, %v2997, -inf
    %3018 = vmax.xlane.f32.xlu0 %v3017
    %v3019 = vpop.xlane.xlu0 %3018
    %v3020 = vsel %vm783, %v2998, -inf
    %3021 = vmax.xlane.f32.xlu0 %v3020
    %v3022 = vpop.xlane.xlu0 %3021
    %v3023 = vsub.f32 %v2991, %v3001
    %v3024 = vsub.f32 %v2992, %v3004
    %v3025 = vsub.f32 %v2993, %v3007
    %v3026 = vsub.f32 %v2994, %v3010
    %v3027 = vsub.f32 %v2995, %v3013
    %v3028 = vsub.f32 %v2996, %v3016
    %v3029 = vsub.f32 %v2997, %v3019
    %v3030 = vsub.f32 %v2998, %v3022
    %v3031 = vmul.f32 %v3023, 1.442695
    %v3032 = vpow.pop %v3031
    %v3033 = vmul.f32 %v3024, 1.442695
    %v3034 = vpow.pop %v3033
    %v3035 = vmul.f32 %v3025, 1.442695
    %v3036 = vpow.pop %v3035
    %v3037 = vmul.f32 %v3026, 1.442695
    %v3038 = vpow.pop %v3037
    %v3039 = vmul.f32 %v3027, 1.442695
    %v3040 = vpow.pop %v3039
    %v3041 = vmul.f32 %v3028, 1.442695
    %v3042 = vpow.pop %v3041
    %v3043 = vmul.f32 %v3029, 1.442695
    %v3044 = vpow.pop %v3043
    %v3045 = vmul.f32 %v3030, 1.442695
    %v3046 = vpow.pop %v3045
    %v3047 = vsel %vm783, %v3032, 0.0
    %3048 = vadd.xlane.f32.xlu0 %v3047
    %v3049 = vpop.xlane.xlu0 %3048
    %v3050 = vsel %vm783, %v3034, 0.0
    %3051 = vadd.xlane.f32.xlu0 %v3050
    %v3052 = vpop.xlane.xlu0 %3051
    %v3053 = vsel %vm783, %v3036, 0.0
    %3054 = vadd.xlane.f32.xlu0 %v3053
    %v3055 = vpop.xlane.xlu0 %3054
    %v3056 = vsel %vm783, %v3038, 0.0
    %3057 = vadd.xlane.f32.xlu0 %v3056
    %v3058 = vpop.xlane.xlu0 %3057
    %v3059 = vsel %vm783, %v3040, 0.0
    %3060 = vadd.xlane.f32.xlu0 %v3059
    %v3061 = vpop.xlane.xlu0 %3060
    %v3062 = vsel %vm783, %v3042, 0.0
    %3063 = vadd.xlane.f32.xlu0 %v3062
    %v3064 = vpop.xlane.xlu0 %3063
    %v3065 = vsel %vm783, %v3044, 0.0
    %3066 = vadd.xlane.f32.xlu0 %v3065
    %v3067 = vpop.xlane.xlu0 %3066
    %v3068 = vsel %vm783, %v3046, 0.0
    %3069 = vadd.xlane.f32.xlu0 %v3068
    %v3070 = vpop.xlane.xlu0 %3069
    %v3071 = vrcp.pop %v3049
    %v3072 = vmul.f32 %v3032, %v3071
    %v3073 = vrcp.pop %v3052
    %v3074 = vmul.f32 %v3034, %v3073
    %v3075 = vrcp.pop %v3055
    %v3076 = vmul.f32 %v3036, %v3075
    %v3077 = vrcp.pop %v3058
    %v3078 = vmul.f32 %v3038, %v3077
    %v3079 = vrcp.pop %v3061
    %v3080 = vmul.f32 %v3040, %v3079
    %v3081 = vrcp.pop %v3064
    %v3082 = vmul.f32 %v3042, %v3081
    %v3083 = vrcp.pop %v3067
    %v3084 = vmul.f32 %v3044, %v3083
    %v3085 = vrcp.pop %v3070
    %v3086 = vmul.f32 %v3046, %v3085
    %v3087 = vpack.c.bf16 %v3074, %v3072
    %v3088 = vpack.c.bf16 %v3078, %v3076
    %v3089 = vpack.c.bf16 %v3082, %v3080
    %v3090 = vpack.c.bf16 %v3086, %v3084
    %3091 = vrot.lane.b32.xlu0 %v772, 64
    %v3092 = vpop.permute.xlu0 %3091
    %v3094 = vsel %vm783, %v3087, 0
    %vm3096 = vcmask 1043456
    %v3098 = vsel %vm3096, %v3092, 0
    %3100 = vmatprep.subr.bf16.mxu0 0
    %3101 = vmatpush1.bf16.msra.mxu0 %v3098
    %3102 = vmatprep.subr.bf16.mxu0 0
    %3103 = vmatpush1.bf16.msra.mxu0 0
    %3104 = vmatprep.subr.bf16.mxu0 0
    %3105 = vmatpush1.bf16.msra.mxu0 0
    %3106 = vmatprep.subr.bf16.mxu0 0
    %3107 = vmatpush1.bf16.msra.mxu0 0
    %3108 = vmatprep.subr.bf16.mxu0 0
    %3109 = vmatpush1.bf16.msra.mxu0 0
    %3110 = vmatprep.subr.bf16.mxu0 0
    %3111 = vmatpush1.bf16.msra.mxu0 0
    %3112 = vmatprep.subr.bf16.mxu0 0
    %3113 = vmatpush1.bf16.msra.mxu0 0
    %3114 = vmatprep.subr.bf16.mxu0 0
    %3115 = vmatpush1.bf16.msra.mxu0 0
    %3116 = vmatprep.subr.bf16.mxu0 0
    %3117 = vmatpush1.bf16.msra.mxu0 0
    %3118 = vmatprep.subr.bf16.mxu0 0
    %3119 = vmatpush1.bf16.msra.mxu0 0
    %3120 = vmatprep.subr.bf16.mxu0 0
    %3121 = vmatpush1.bf16.msra.mxu0 0
    %3122 = vmatprep.subr.bf16.mxu0 0
    %3123 = vmatpush1.bf16.msra.mxu0 0
    %3124 = vmatprep.subr.bf16.mxu0 0
    %3125 = vmatpush1.bf16.msra.mxu0 0
    %3126 = vmatprep.subr.bf16.mxu0 0
    %3127 = vmatpush1.bf16.msra.mxu0 0
    %3128 = vmatprep.subr.bf16.mxu0 0
    %3129 = vmatpush1.bf16.msra.mxu0 0
    %3130 = vmatprep.subr.bf16.mxu0 0
    %3131 = vmatpush1.bf16.msra.mxu0 0
    %3132 = vmatprep.mubr.bf16.mxu0 0
    %3133 = vmatmul.mubr.bf16.gmra.mrb[0].mxu0 %v3094
    %v3134 = vpop.f32.mrb[0].mxu0
    %v3135 = vadd.f32 0.0, %v3134
    %v3136 = vpop.f32.mrb[0].mxu0
    %v3137 = vpop.f32.mrb[0].mxu0
    %v3138 = vadd.f32 0.0, %v3137
    %v3139 = vpop.f32.mrb[0].mxu0
    %3140 = vdwg.mxu0
    %3141 = vrot.lane.b32.xlu0 %v773, 64
    %v3142 = vpop.permute.xlu0 %3141
    %v3144 = vsel %vm783, %v3088, 0
    %v3147 = vsel %vm3096, %v3142, 0
    %3149 = vmatprep.subr.bf16.mxu0 0
    %3150 = vmatpush1.bf16.msra.mxu0 %v3147
    %3151 = vmatprep.subr.bf16.mxu0 0
    %3152 = vmatpush1.bf16.msra.mxu0 0
    %3153 = vmatprep.subr.bf16.mxu0 0
    %3154 = vmatpush1.bf16.msra.mxu0 0
    %3155 = vmatprep.subr.bf16.mxu0 0
    %3156 = vmatpush1.bf16.msra.mxu0 0
    %3157 = vmatprep.subr.bf16.mxu0 0
    %3158 = vmatpush1.bf16.msra.mxu0 0
    %3159 = vmatprep.subr.bf16.mxu0 0
    %3160 = vmatpush1.bf16.msra.mxu0 0
    %3161 = vmatprep.subr.bf16.mxu0 0
    %3162 = vmatpush1.bf16.msra.mxu0 0
    %3163 = vmatprep.subr.bf16.mxu0 0
    %3164 = vmatpush1.bf16.msra.mxu0 0
    %3165 = vmatprep.subr.bf16.mxu0 0
    %3166 = vmatpush1.bf16.msra.mxu0 0
    %3167 = vmatprep.subr.bf16.mxu0 0
    %3168 = vmatpush1.bf16.msra.mxu0 0
    %3169 = vmatprep.subr.bf16.mxu0 0
    %3170 = vmatpush1.bf16.msra.mxu0 0
    %3171 = vmatprep.subr.bf16.mxu0 0
    %3172 = vmatpush1.bf16.msra.mxu0 0
    %3173 = vmatprep.subr.bf16.mxu0 0
    %3174 = vmatpush1.bf16.msra.mxu0 0
    %3175 = vmatprep.subr.bf16.mxu0 0
    %3176 = vmatpush1.bf16.msra.mxu0 0
    %3177 = vmatprep.subr.bf16.mxu0 0
    %3178 = vmatpush1.bf16.msra.mxu0 0
    %3179 = vmatprep.subr.bf16.mxu0 0
    %3180 = vmatpush1.bf16.msra.mxu0 0
    %3181 = vmatprep.mubr.bf16.mxu0 0
    %3182 = vmatmul.mubr.bf16.gmra.mrb[0].mxu0 %v3144
    %v3183 = vpop.f32.mrb[0].mxu0
    %v3184 = vadd.f32 0.0, %v3183
    %v3185 = vpop.f32.mrb[0].mxu0
    %v3186 = vpop.f32.mrb[0].mxu0
    %v3187 = vadd.f32 0.0, %v3186
    %v3188 = vpop.f32.mrb[0].mxu0
    %3189 = vdwg.mxu0
    %3190 = vrot.lane.b32.xlu0 %v774, 64
    %v3191 = vpop.permute.xlu0 %3190
    %v3193 = vsel %vm783, %v3089, 0
    %v3196 = vsel %vm3096, %v3191, 0
    %3198 = vmatprep.subr.bf16.mxu0 0
    %3199 = vmatpush1.bf16.msra.mxu0 %v3196
    %3200 = vmatprep.subr.bf16.mxu0 0
    %3201 = vmatpush1.bf16.msra.mxu0 0
    %3202 = vmatprep.subr.bf16.mxu0 0
    %3203 = vmatpush1.bf16.msra.mxu0 0
    %3204 = vmatprep.subr.bf16.mxu0 0
    %3205 = vmatpush1.bf16.msra.mxu0 0
    %3206 = vmatprep.subr.bf16.mxu0 0
    %3207 = vmatpush1.bf16.msra.mxu0 0
    %3208 = vmatprep.subr.bf16.mxu0 0
    %3209 = vmatpush1.bf16.msra.mxu0 0
    %3210 = vmatprep.subr.bf16.mxu0 0
    %3211 = vmatpush1.bf16.msra.mxu0 0
    %3212 = vmatprep.subr.bf16.mxu0 0
    %3213 = vmatpush1.bf16.msra.mxu0 0
    %3214 = vmatprep.subr.bf16.mxu0 0
    %3215 = vmatpush1.bf16.msra.mxu0 0
    %3216 = vmatprep.subr.bf16.mxu0 0
    %3217 = vmatpush1.bf16.msra.mxu0 0
    %3218 = vmatprep.subr.bf16.mxu0 0
    %3219 = vmatpush1.bf16.msra.mxu0 0
    %3220 = vmatprep.subr.bf16.mxu0 0
    %3221 = vmatpush1.bf16.msra.mxu0 0
    %3222 = vmatprep.subr.bf16.mxu0 0
    %3223 = vmatpush1.bf16.msra.mxu0 0
    %3224 = vmatprep.subr.bf16.mxu0 0
    %3225 = vmatpush1.bf16.msra.mxu0 0
    %3226 = vmatprep.subr.bf16.mxu0 0
    %3227 = vmatpush1.bf16.msra.mxu0 0
    %3228 = vmatprep.subr.bf16.mxu0 0
    %3229 = vmatpush1.bf16.msra.mxu0 0
    %3230 = vmatprep.mubr.bf16.mxu0 0
    %3231 = vmatmul.mubr.bf16.gmra.mrb[0].mxu0 %v3193
    %v3232 = vpop.f32.mrb[0].mxu0
    %v3233 = vadd.f32 0.0, %v3232
    %v3234 = vpop.f32.mrb[0].mxu0
    %v3235 = vpop.f32.mrb[0].mxu0
    %v3236 = vadd.f32 0.0, %v3235
    %v3237 = vpop.f32.mrb[0].mxu0
    %3238 = vdwg.mxu0
    %3239 = vrot.lane.b32.xlu0 %v775, 64
    %v3240 = vpop.permute.xlu0 %3239
    %v3242 = vsel %vm783, %v3090, 0
    %v3245 = vsel %vm3096, %v3240, 0
    %3247 = vmatprep.subr.bf16.mxu0 0
    %3248 = vmatpush1.bf16.msra.mxu0 %v3245
    %3249 = vmatprep.subr.bf16.mxu0 0
    %3250 = vmatpush1.bf16.msra.mxu0 0
    %3251 = vmatprep.subr.bf16.mxu0 0
    %3252 = vmatpush1.bf16.msra.mxu0 0
    %3253 = vmatprep.subr.bf16.mxu0 0
    %3254 = vmatpush1.bf16.msra.mxu0 0
    %3255 = vmatprep.subr.bf16.mxu0 0
    %3256 = vmatpush1.bf16.msra.mxu0 0
    %3257 = vmatprep.subr.bf16.mxu0 0
    %3258 = vmatpush1.bf16.msra.mxu0 0
    %3259 = vmatprep.subr.bf16.mxu0 0
    %3260 = vmatpush1.bf16.msra.mxu0 0
    %3261 = vmatprep.subr.bf16.mxu0 0
    %3262 = vmatpush1.bf16.msra.mxu0 0
    %3263 = vmatprep.subr.bf16.mxu0 0
    %3264 = vmatpush1.bf16.msra.mxu0 0
    %3265 = vmatprep.subr.bf16.mxu0 0
    %3266 = vmatpush1.bf16.msra.mxu0 0
    %3267 = vmatprep.subr.bf16.mxu0 0
    %3268 = vmatpush1.bf16.msra.mxu0 0
    %3269 = vmatprep.subr.bf16.mxu0 0
    %3270 = vmatpush1.bf16.msra.mxu0 0
    %3271 = vmatprep.subr.bf16.mxu0 0
    %3272 = vmatpush1.bf16.msra.mxu0 0
    %3273 = vmatprep.subr.bf16.mxu0 0
    %3274 = vmatpush1.bf16.msra.mxu0 0
    %3275 = vmatprep.subr.bf16.mxu0 0
    %3276 = vmatpush1.bf16.msra.mxu0 0
    %3277 = vmatprep.subr.bf16.mxu0 0
    %3278 = vmatpush1.bf16.msra.mxu0 0
    %3279 = vmatprep.mubr.bf16.mxu0 0
    %3280 = vmatmul.mubr.bf16.gmra.mrb[0].mxu0 %v3242
    %v3281 = vpop.f32.mrb[0].mxu0
    %v3282 = vadd.f32 0.0, %v3281
    %v3283 = vpop.f32.mrb[0].mxu0
    %v3284 = vpop.f32.mrb[0].mxu0
    %v3285 = vadd.f32 0.0, %v3284
    %v3286 = vpop.f32.mrb[0].mxu0
    %3287 = vdwg.mxu0
    %3288 = vrot.lane.b32.xlu0 %v776, 120
    %v3289 = vpop.permute.xlu0 %3288
    %3290 = vrot.lane.b32.xlu0 %v772, 88
    %v3291 = vpop.permute.xlu0 %3290
    %v3293 = vsel %vm783, %v3289, 0
    %v3296 = vsel %vm783, %v3291, 0
    %3298 = vmatprep.subr.bf16.mxu0 0
    %3299 = vmatpush1.bf16.xpose.msra.mxu0 %v3296
    %3300 = vmatprep.subr.bf16.mxu0 0
    %3301 = vmatpush1.bf16.xpose.msra.mxu0 0
    %3302 = vmatprep.subr.bf16.mxu0 0
    %3303 = vmatpush1.bf16.xpose.msra.mxu0 0
    %3304 = vmatprep.subr.bf16.mxu0 0
    %3305 = vmatpush1.bf16.xpose.msra.mxu0 0
    %3306 = vmatprep.subr.bf16.mxu0 0
    %3307 = vmatpush1.bf16.xpose.msra.mxu0 0
    %3308 = vmatprep.subr.bf16.mxu0 0
    %3309 = vmatpush1.bf16.xpose.msra.mxu0 0
    %3310 = vmatprep.subr.bf16.mxu0 0
    %3311 = vmatpush1.bf16.xpose.msra.mxu0 0
    %3312 = vmatprep.subr.bf16.mxu0 0
    %3313 = vmatpush1.bf16.xpose.msra.mxu0 0
    %3314 = vmatprep.subr.bf16.mxu0 0
    %3315 = vmatpush1.bf16.xpose.msra.mxu0 0
    %3316 = vmatprep.subr.bf16.mxu0 0
    %3317 = vmatpush1.bf16.xpose.msra.mxu0 0
    %3318 = vmatprep.subr.bf16.mxu0 0
    %3319 = vmatpush1.bf16.xpose.msra.mxu0 0
    %3320 = vmatprep.subr.bf16.mxu0 0
    %3321 = vmatpush1.bf16.xpose.msra.mxu0 0
    %3322 = vmatprep.subr.bf16.mxu0 0
    %3323 = vmatpush1.bf16.xpose.msra.mxu0 0
    %3324 = vmatprep.subr.bf16.mxu0 0
    %3325 = vmatpush1.bf16.xpose.msra.mxu0 0
    %3326 = vmatprep.subr.bf16.mxu0 0
    %3327 = vmatpush1.bf16.xpose.msra.mxu0 0
    %3328 = vmatprep.subr.bf16.mxu0 0
    %3329 = vmatpush1.bf16.xpose.msra.mxu0 0
    %3330 = vmatprep.mubr.bf16.mxu0 0
    %3331 = vmatmul.mubr.bf16.gmra.mrb[0].mxu0 %v3293
    %v3332 = vpop.f32.mrb[0].mxu0
    %v3333 = vadd.f32 0.0, %v3332
    %v3334 = vpop.f32.mrb[0].mxu0
    %v3335 = vpop.f32.mrb[0].mxu0
    %v3336 = vadd.f32 0.0, %v3335
    %v3337 = vpop.f32.mrb[0].mxu0
    %3338 = vdwg.mxu0
    %3339 = vrot.lane.b32.xlu0 %v777, 120
    %v3340 = vpop.permute.xlu0 %3339
    %3341 = vrot.lane.b32.xlu0 %v773, 88
    %v3342 = vpop.permute.xlu0 %3341
    %v3344 = vsel %vm783, %v3340, 0
    %v3347 = vsel %vm783, %v3342, 0
    %3349 = vmatprep.subr.bf16.mxu0 0
    %3350 = vmatpush1.bf16.xpose.msra.mxu0 %v3347
    %3351 = vmatprep.subr.bf16.mxu0 0
    %3352 = vmatpush1.bf16.xpose.msra.mxu0 0
    %3353 = vmatprep.subr.bf16.mxu0 0
    %3354 = vmatpush1.bf16.xpose.msra.mxu0 0
    %3355 = vmatprep.subr.bf16.mxu0 0
    %3356 = vmatpush1.bf16.xpose.msra.mxu0 0
    %3357 = vmatprep.subr.bf16.mxu0 0
    %3358 = vmatpush1.bf16.xpose.msra.mxu0 0
    %3359 = vmatprep.subr.bf16.mxu0 0
    %3360 = vmatpush1.bf16.xpose.msra.mxu0 0
    %3361 = vmatprep.subr.bf16.mxu0 0
    %3362 = vmatpush1.bf16.xpose.msra.mxu0 0
    %3363 = vmatprep.subr.bf16.mxu0 0
    %3364 = vmatpush1.bf16.xpose.msra.mxu0 0
    %3365 = vmatprep.subr.bf16.mxu0 0
    %3366 = vmatpush1.bf16.xpose.msra.mxu0 0
    %3367 = vmatprep.subr.bf16.mxu0 0
    %3368 = vmatpush1.bf16.xpose.msra.mxu0 0
    %3369 = vmatprep.subr.bf16.mxu0 0
    %3370 = vmatpush1.bf16.xpose.msra.mxu0 0
    %3371 = vmatprep.subr.bf16.mxu0 0
    %3372 = vmatpush1.bf16.xpose.msra.mxu0 0
    %3373 = vmatprep.subr.bf16.mxu0 0
    %3374 = vmatpush1.bf16.xpose.msra.mxu0 0
    %3375 = vmatprep.subr.bf16.mxu0 0
    %3376 = vmatpush1.bf16.xpose.msra.mxu0 0
    %3377 = vmatprep.subr.bf16.mxu0 0
    %3378 = vmatpush1.bf16.xpose.msra.mxu0 0
    %3379 = vmatprep.subr.bf16.mxu0 0
    %3380 = vmatpush1.bf16.xpose.msra.mxu0 0
    %3381 = vmatprep.mubr.bf16.mxu0 0
    %3382 = vmatmul.mubr.bf16.gmra.mrb[0].mxu0 %v3344
    %v3383 = vpop.f32.mrb[0].mxu0
    %v3384 = vadd.f32 0.0, %v3383
    %v3385 = vpop.f32.mrb[0].mxu0
    %v3386 = vpop.f32.mrb[0].mxu0
    %v3387 = vadd.f32 0.0, %v3386
    %v3388 = vpop.f32.mrb[0].mxu0
    %3389 = vdwg.mxu0
    %3391 = vrot.lane.b32.xlu0 %v2761, 120
    %v3392 = vpop.permute.xlu0 %3391
    %3393 = vrot.lane.b32.xlu0 %v774, 88
    %v3394 = vpop.permute.xlu0 %3393
    %v3396 = vsel %vm783, %v3392, 0
    %v3399 = vsel %vm783, %v3394, 0
    %3401 = vmatprep.subr.bf16.mxu0 0
    %3402 = vmatpush1.bf16.xpose.msra.mxu0 %v3399
    %3403 = vmatprep.subr.bf16.mxu0 0
    %3404 = vmatpush1.bf16.xpose.msra.mxu0 0
    %3405 = vmatprep.subr.bf16.mxu0 0
    %3406 = vmatpush1.bf16.xpose.msra.mxu0 0
    %3407 = vmatprep.subr.bf16.mxu0 0
    %3408 = vmatpush1.bf16.xpose.msra.mxu0 0
    %3409 = vmatprep.subr.bf16.mxu0 0
    %3410 = vmatpush1.bf16.xpose.msra.mxu0 0
    %3411 = vmatprep.subr.bf16.mxu0 0
    %3412 = vmatpush1.bf16.xpose.msra.mxu0 0
    %3413 = vmatprep.subr.bf16.mxu0 0
    %3414 = vmatpush1.bf16.xpose.msra.mxu0 0
    %3415 = vmatprep.subr.bf16.mxu0 0
    %3416 = vmatpush1.bf16.xpose.msra.mxu0 0
    %3417 = vmatprep.subr.bf16.mxu0 0
    %3418 = vmatpush1.bf16.xpose.msra.mxu0 0
    %3419 = vmatprep.subr.bf16.mxu0 0
    %3420 = vmatpush1.bf16.xpose.msra.mxu0 0
    %3421 = vmatprep.subr.bf16.mxu0 0
    %3422 = vmatpush1.bf16.xpose.msra.mxu0 0
    %3423 = vmatprep.subr.bf16.mxu0 0
    %3424 = vmatpush1.bf16.xpose.msra.mxu0 0
    %3425 = vmatprep.subr.bf16.mxu0 0
    %3426 = vmatpush1.bf16.xpose.msra.mxu0 0
    %3427 = vmatprep.subr.bf16.mxu0 0
    %3428 = vmatpush1.bf16.xpose.msra.mxu0 0
    %3429 = vmatprep.subr.bf16.mxu0 0
    %3430 = vmatpush1.bf16.xpose.msra.mxu0 0
    %3431 = vmatprep.subr.bf16.mxu0 0
    %3432 = vmatpush1.bf16.xpose.msra.mxu0 0
    %3433 = vmatprep.mubr.bf16.mxu0 0
    %3434 = vmatmul.mubr.bf16.gmra.mrb[0].mxu0 %v3396
    %v3435 = vpop.f32.mrb[0].mxu0
    %v3436 = vadd.f32 0.0, %v3435
    %v3437 = vpop.f32.mrb[0].mxu0
    %v3438 = vpop.f32.mrb[0].mxu0
    %v3439 = vadd.f32 0.0, %v3438
    %v3440 = vpop.f32.mrb[0].mxu0
    %3441 = vdwg.mxu0
    %3443 = vrot.lane.b32.xlu0 %v2762, 120
    %v3444 = vpop.permute.xlu0 %3443
    %3445 = vrot.lane.b32.xlu0 %v775, 88
    %v3446 = vpop.permute.xlu0 %3445
    %v3448 = vsel %vm783, %v3444, 0
    %v3451 = vsel %vm783, %v3446, 0
    %3453 = vmatprep.subr.bf16.mxu0 0
    %3454 = vmatpush1.bf16.xpose.msra.mxu0 %v3451
    %3455 = vmatprep.subr.bf16.mxu0 0
    %3456 = vmatpush1.bf16.xpose.msra.mxu0 0
    %3457 = vmatprep.subr.bf16.mxu0 0
    %3458 = vmatpush1.bf16.xpose.msra.mxu0 0
    %3459 = vmatprep.subr.bf16.mxu0 0
    %3460 = vmatpush1.bf16.xpose.msra.mxu0 0
    %3461 = vmatprep.subr.bf16.mxu0 0
    %3462 = vmatpush1.bf16.xpose.msra.mxu0 0
    %3463 = vmatprep.subr.bf16.mxu0 0
    %3464 = vmatpush1.bf16.xpose.msra.mxu0 0
    %3465 = vmatprep.subr.bf16.mxu0 0
    %3466 = vmatpush1.bf16.xpose.msra.mxu0 0
    %3467 = vmatprep.subr.bf16.mxu0 0
    %3468 = vmatpush1.bf16.xpose.msra.mxu0 0
    %3469 = vmatprep.subr.bf16.mxu0 0
    %3470 = vmatpush1.bf16.xpose.msra.mxu0 0
    %3471 = vmatprep.subr.bf16.mxu0 0
    %3472 = vmatpush1.bf16.xpose.msra.mxu0 0
    %3473 = vmatprep.subr.bf16.mxu0 0
    %3474 = vmatpush1.bf16.xpose.msra.mxu0 0
    %3475 = vmatprep.subr.bf16.mxu0 0
    %3476 = vmatpush1.bf16.xpose.msra.mxu0 0
    %3477 = vmatprep.subr.bf16.mxu0 0
    %3478 = vmatpush1.bf16.xpose.msra.mxu0 0
    %3479 = vmatprep.subr.bf16.mxu0 0
    %3480 = vmatpush1.bf16.xpose.msra.mxu0 0
    %3481 = vmatprep.subr.bf16.mxu0 0
    %3482 = vmatpush1.bf16.xpose.msra.mxu0 0
    %3483 = vmatprep.subr.bf16.mxu0 0
    %3484 = vmatpush1.bf16.xpose.msra.mxu0 0
    %3485 = vmatprep.mubr.bf16.mxu0 0
    %3486 = vmatmul.mubr.bf16.gmra.mrb[0].mxu0 %v3448
    %v3487 = vpop.f32.mrb[0].mxu0
    %v3488 = vadd.f32 0.0, %v3487
    %v3489 = vpop.f32.mrb[0].mxu0
    %v3490 = vpop.f32.mrb[0].mxu0
    %v3491 = vadd.f32 0.0, %v3490
    %v3492 = vpop.f32.mrb[0].mxu0
    %3493 = vdwg.mxu0
    %v3494 = vmul.f32 %v3333, 0.35355338
    %v3495 = vmul.f32 %v3336, 0.35355338
    %v3496 = vmul.f32 %v3384, 0.35355338
    %v3497 = vmul.f32 %v3387, 0.35355338
    %v3498 = vmul.f32 %v3436, 0.35355338
    %v3499 = vmul.f32 %v3439, 0.35355338
    %v3500 = vmul.f32 %v3488, 0.35355338
    %v3501 = vmul.f32 %v3491, 0.35355338
    %v3502 = vadd.f32 %v3494, %v2974
    %v3503 = vadd.f32 %v3495, %v2974
    %v3504 = vadd.f32 %v3496, %v2978
    %v3505 = vadd.f32 %v3497, %v2978
    %v3506 = vadd.f32 %v3498, %v2982
    %v3507 = vadd.f32 %v3499, %v2982
    %v3508 = vadd.f32 %v3500, %v2986
    %v3509 = vadd.f32 %v3501, %v2986
    %v3510 = vsel %vm783, %v3502, -inf
    %3511 = vmax.xlane.f32.xlu0 %v3510
    %v3512 = vpop.xlane.xlu0 %3511
    %v3513 = vsel %vm783, %v3503, -inf
    %3514 = vmax.xlane.f32.xlu0 %v3513
    %v3515 = vpop.xlane.xlu0 %3514
    %v3516 = vsel %vm783, %v3504, -inf
    %3517 = vmax.xlane.f32.xlu0 %v3516
    %v3518 = vpop.xlane.xlu0 %3517
    %v3519 = vsel %vm783, %v3505, -inf
    %3520 = vmax.xlane.f32.xlu0 %v3519
    %v3521 = vpop.xlane.xlu0 %3520
    %v3522 = vsel %vm783, %v3506, -inf
    %3523 = vmax.xlane.f32.xlu0 %v3522
    %v3524 = vpop.xlane.xlu0 %3523
    %v3525 = vsel %vm783, %v3507, -inf
    %3526 = vmax.xlane.f32.xlu0 %v3525
    %v3527 = vpop.xlane.xlu0 %3526
    %v3528 = vsel %vm783, %v3508, -inf
    %3529 = vmax.xlane.f32.xlu0 %v3528
    %v3530 = vpop.xlane.xlu0 %3529
    %v3531 = vsel %vm783, %v3509, -inf
    %3532 = vmax.xlane.f32.xlu0 %v3531
    %v3533 = vpop.xlane.xlu0 %3532
    %v3534 = vsub.f32 %v3502, %v3512
    %v3535 = vsub.f32 %v3503, %v3515
    %v3536 = vsub.f32 %v3504, %v3518
    %v3537 = vsub.f32 %v3505, %v3521
    %v3538 = vsub.f32 %v3506, %v3524
    %v3539 = vsub.f32 %v3507, %v3527
    %v3540 = vsub.f32 %v3508, %v3530
    %v3541 = vsub.f32 %v3509, %v3533
    %v3542 = vmul.f32 %v3534, 1.442695
    %v3543 = vpow.pop %v3542
    %v3544 = vmul.f32 %v3535, 1.442695
    %v3545 = vpow.pop %v3544
    %v3546 = vmul.f32 %v3536, 1.442695
    %v3547 = vpow.pop %v3546
    %v3548 = vmul.f32 %v3537, 1.442695
    %v3549 = vpow.pop %v3548
    %v3550 = vmul.f32 %v3538, 1.442695
    %v3551 = vpow.pop %v3550
    %v3552 = vmul.f32 %v3539, 1.442695
    %v3553 = vpow.pop %v3552
    %v3554 = vmul.f32 %v3540, 1.442695
    %v3555 = vpow.pop %v3554
    %v3556 = vmul.f32 %v3541, 1.442695
    %v3557 = vpow.pop %v3556
    %v3558 = vsel %vm783, %v3543, 0.0
    %3559 = vadd.xlane.f32.xlu0 %v3558
    %v3560 = vpop.xlane.xlu0 %3559
    %v3561 = vsel %vm783, %v3545, 0.0
    %3562 = vadd.xlane.f32.xlu0 %v3561
    %v3563 = vpop.xlane.xlu0 %3562
    %v3564 = vsel %vm783, %v3547, 0.0
    %3565 = vadd.xlane.f32.xlu0 %v3564
    %v3566 = vpop.xlane.xlu0 %3565
    %v3567 = vsel %vm783, %v3549, 0.0
    %3568 = vadd.xlane.f32.xlu0 %v3567
    %v3569 = vpop.xlane.xlu0 %3568
    %v3570 = vsel %vm783, %v3551, 0.0
    %3571 = vadd.xlane.f32.xlu0 %v3570
    %v3572 = vpop.xlane.xlu0 %3571
    %v3573 = vsel %vm783, %v3553, 0.0
    %3574 = vadd.xlane.f32.xlu0 %v3573
    %v3575 = vpop.xlane.xlu0 %3574
    %v3576 = vsel %vm783, %v3555, 0.0
    %3577 = vadd.xlane.f32.xlu0 %v3576
    %v3578 = vpop.xlane.xlu0 %3577
    %v3579 = vsel %vm783, %v3557, 0.0
    %3580 = vadd.xlane.f32.xlu0 %v3579
    %v3581 = vpop.xlane.xlu0 %3580
    %v3582 = vrcp.pop %v3560
    %v3583 = vmul.f32 %v3543, %v3582
    %v3584 = vrcp.pop %v3563
    %v3585 = vmul.f32 %v3545, %v3584
    %v3586 = vrcp.pop %v3566
    %v3587 = vmul.f32 %v3547, %v3586
    %v3588 = vrcp.pop %v3569
    %v3589 = vmul.f32 %v3549, %v3588
    %v3590 = vrcp.pop %v3572
    %v3591 = vmul.f32 %v3551, %v3590
    %v3592 = vrcp.pop %v3575
    %v3593 = vmul.f32 %v3553, %v3592
    %v3594 = vrcp.pop %v3578
    %v3595 = vmul.f32 %v3555, %v3594
    %v3596 = vrcp.pop %v3581
    %v3597 = vmul.f32 %v3557, %v3596
    %v3598 = vpack.c.bf16 %v3585, %v3583
    %v3599 = vpack.c.bf16 %v3589, %v3587
    %v3600 = vpack.c.bf16 %v3593, %v3591
    %v3601 = vpack.c.bf16 %v3597, %v3595
    %3602 = vrot.lane.b32.xlu0 %v772, 56
    %v3603 = vpop.permute.xlu0 %3602
    %v3605 = vsel %vm783, %v3598, 0
    %v3608 = vsel %vm3096, %v3603, 0
    %3610 = vmatprep.subr.bf16.mxu0 0
    %3611 = vmatpush1.bf16.msra.mxu0 %v3608
    %3612 = vmatprep.subr.bf16.mxu0 0
    %3613 = vmatpush1.bf16.msra.mxu0 0
    %3614 = vmatprep.subr.bf16.mxu0 0
    %3615 = vmatpush1.bf16.msra.mxu0 0
    %3616 = vmatprep.subr.bf16.mxu0 0
    %3617 = vmatpush1.bf16.msra.mxu0 0
    %3618 = vmatprep.subr.bf16.mxu0 0
    %3619 = vmatpush1.bf16.msra.mxu0 0
    %3620 = vmatprep.subr.bf16.mxu0 0
    %3621 = vmatpush1.bf16.msra.mxu0 0
    %3622 = vmatprep.subr.bf16.mxu0 0
    %3623 = vmatpush1.bf16.msra.mxu0 0
    %3624 = vmatprep.subr.bf16.mxu0 0
    %3625 = vmatpush1.bf16.msra.mxu0 0
    %3626 = vmatprep.subr.bf16.mxu0 0
    %3627 = vmatpush1.bf16.msra.mxu0 0
    %3628 = vmatprep.subr.bf16.mxu0 0
    %3629 = vmatpush1.bf16.msra.mxu0 0
    %3630 = vmatprep.subr.bf16.mxu0 0
    %3631 = vmatpush1.bf16.msra.mxu0 0
    %3632 = vmatprep.subr.bf16.mxu0 0
    %3633 = vmatpush1.bf16.msra.mxu0 0
    %3634 = vmatprep.subr.bf16.mxu0 0
    %3635 = vmatpush1.bf16.msra.mxu0 0
    %3636 = vmatprep.subr.bf16.mxu0 0
    %3637 = vmatpush1.bf16.msra.mxu0 0
    %3638 = vmatprep.subr.bf16.mxu0 0
    %3639 = vmatpush1.bf16.msra.mxu0 0
    %3640 = vmatprep.subr.bf16.mxu0 0
    %3641 = vmatpush1.bf16.msra.mxu0 0
    %3642 = vmatprep.mubr.bf16.mxu0 0
    %3643 = vmatmul.mubr.bf16.gmra.mrb[0].mxu0 %v3605
    %v3644 = vpop.f32.mrb[0].mxu0
    %v3645 = vadd.f32 0.0, %v3644
    %v3646 = vpop.f32.mrb[0].mxu0
    %v3647 = vpop.f32.mrb[0].mxu0
    %v3648 = vadd.f32 0.0, %v3647
    %v3649 = vpop.f32.mrb[0].mxu0
    %3650 = vdwg.mxu0
    %3651 = vrot.lane.b32.xlu0 %v773, 56
    %v3652 = vpop.permute.xlu0 %3651
    %v3654 = vsel %vm783, %v3599, 0
    %v3657 = vsel %vm3096, %v3652, 0
    %3659 = vmatprep.subr.bf16.mxu0 0
    %3660 = vmatpush1.bf16.msra.mxu0 %v3657
    %3661 = vmatprep.subr.bf16.mxu0 0
    %3662 = vmatpush1.bf16.msra.mxu0 0
    %3663 = vmatprep.subr.bf16.mxu0 0
    %3664 = vmatpush1.bf16.msra.mxu0 0
    %3665 = vmatprep.subr.bf16.mxu0 0
    %3666 = vmatpush1.bf16.msra.mxu0 0
    %3667 = vmatprep.subr.bf16.mxu0 0
    %3668 = vmatpush1.bf16.msra.mxu0 0
    %3669 = vmatprep.subr.bf16.mxu0 0
    %3670 = vmatpush1.bf16.msra.mxu0 0
    %3671 = vmatprep.subr.bf16.mxu0 0
    %3672 = vmatpush1.bf16.msra.mxu0 0
    %3673 = vmatprep.subr.bf16.mxu0 0
    %3674 = vmatpush1.bf16.msra.mxu0 0
    %3675 = vmatprep.subr.bf16.mxu0 0
    %3676 = vmatpush1.bf16.msra.mxu0 0
    %3677 = vmatprep.subr.bf16.mxu0 0
    %3678 = vmatpush1.bf16.msra.mxu0 0
    %3679 = vmatprep.subr.bf16.mxu0 0
    %3680 = vmatpush1.bf16.msra.mxu0 0
    %3681 = vmatprep.subr.bf16.mxu0 0
    %3682 = vmatpush1.bf16.msra.mxu0 0
    %3683 = vmatprep.subr.bf16.mxu0 0
    %3684 = vmatpush1.bf16.msra.mxu0 0
    %3685 = vmatprep.subr.bf16.mxu0 0
    %3686 = vmatpush1.bf16.msra.mxu0 0
    %3687 = vmatprep.subr.bf16.mxu0 0
    %3688 = vmatpush1.bf16.msra.mxu0 0
    %3689 = vmatprep.subr.bf16.mxu0 0
    %3690 = vmatpush1.bf16.msra.mxu0 0
    %3691 = vmatprep.mubr.bf16.mxu0 0
    %3692 = vmatmul.mubr.bf16.gmra.mrb[0].mxu0 %v3654
    %v3693 = vpop.f32.mrb[0].mxu0
    %v3694 = vadd.f32 0.0, %v3693
    %v3695 = vpop.f32.mrb[0].mxu0
    %v3696 = vpop.f32.mrb[0].mxu0
    %v3697 = vadd.f32 0.0, %v3696
    %v3698 = vpop.f32.mrb[0].mxu0
    %3699 = vdwg.mxu0
    %3700 = vrot.lane.b32.xlu0 %v774, 56
    %v3701 = vpop.permute.xlu0 %3700
    %v3703 = vsel %vm783, %v3600, 0
    %v3706 = vsel %vm3096, %v3701, 0
    %3708 = vmatprep.subr.bf16.mxu0 0
    %3709 = vmatpush1.bf16.msra.mxu0 %v3706
    %3710 = vmatprep.subr.bf16.mxu0 0
    %3711 = vmatpush1.bf16.msra.mxu0 0
    %3712 = vmatprep.subr.bf16.mxu0 0
    %3713 = vmatpush1.bf16.msra.mxu0 0
    %3714 = vmatprep.subr.bf16.mxu0 0
    %3715 = vmatpush1.bf16.msra.mxu0 0
    %3716 = vmatprep.subr.bf16.mxu0 0
    %3717 = vmatpush1.bf16.msra.mxu0 0
    %3718 = vmatprep.subr.bf16.mxu0 0
    %3719 = vmatpush1.bf16.msra.mxu0 0
    %3720 = vmatprep.subr.bf16.mxu0 0
    %3721 = vmatpush1.bf16.msra.mxu0 0
    %3722 = vmatprep.subr.bf16.mxu0 0
    %3723 = vmatpush1.bf16.msra.mxu0 0
    %3724 = vmatprep.subr.bf16.mxu0 0
    %3725 = vmatpush1.bf16.msra.mxu0 0
    %3726 = vmatprep.subr.bf16.mxu0 0
    %3727 = vmatpush1.bf16.msra.mxu0 0
    %3728 = vmatprep.subr.bf16.mxu0 0
    %3729 = vmatpush1.bf16.msra.mxu0 0
    %3730 = vmatprep.subr.bf16.mxu0 0
    %3731 = vmatpush1.bf16.msra.mxu0 0
    %3732 = vmatprep.subr.bf16.mxu0 0
    %3733 = vmatpush1.bf16.msra.mxu0 0
    %3734 = vmatprep.subr.bf16.mxu0 0
    %3735 = vmatpush1.bf16.msra.mxu0 0
    %3736 = vmatprep.subr.bf16.mxu0 0
    %3737 = vmatpush1.bf16.msra.mxu0 0
    %3738 = vmatprep.subr.bf16.mxu0 0
    %3739 = vmatpush1.bf16.msra.mxu0 0
    %3740 = vmatprep.mubr.bf16.mxu0 0
    %3741 = vmatmul.mubr.bf16.gmra.mrb[0].mxu0 %v3703
    %v3742 = vpop.f32.mrb[0].mxu0
    %v3743 = vadd.f32 0.0, %v3742
    %v3744 = vpop.f32.mrb[0].mxu0
    %v3745 = vpop.f32.mrb[0].mxu0
    %v3746 = vadd.f32 0.0, %v3745
    %v3747 = vpop.f32.mrb[0].mxu0
    %3748 = vdwg.mxu0
    %3749 = vrot.lane.b32.xlu0 %v775, 56
    %v3750 = vpop.permute.xlu0 %3749
    %v3752 = vsel %vm783, %v3601, 0
    %v3755 = vsel %vm3096, %v3750, 0
    %3757 = vmatprep.subr.bf16.mxu0 0
    %3758 = vmatpush1.bf16.msra.mxu0 %v3755
    %3759 = vmatprep.subr.bf16.mxu0 0
    %3760 = vmatpush1.bf16.msra.mxu0 0
    %3761 = vmatprep.subr.bf16.mxu0 0
    %3762 = vmatpush1.bf16.msra.mxu0 0
    %3763 = vmatprep.subr.bf16.mxu0 0
    %3764 = vmatpush1.bf16.msra.mxu0 0
    %3765 = vmatprep.subr.bf16.mxu0 0
    %3766 = vmatpush1.bf16.msra.mxu0 0
    %3767 = vmatprep.subr.bf16.mxu0 0
    %3768 = vmatpush1.bf16.msra.mxu0 0
    %3769 = vmatprep.subr.bf16.mxu0 0
    %3770 = vmatpush1.bf16.msra.mxu0 0
    %3771 = vmatprep.subr.bf16.mxu0 0
    %3772 = vmatpush1.bf16.msra.mxu0 0
    %3773 = vmatprep.subr.bf16.mxu0 0
    %3774 = vmatpush1.bf16.msra.mxu0 0
    %3775 = vmatprep.subr.bf16.mxu0 0
    %3776 = vmatpush1.bf16.msra.mxu0 0
    %3777 = vmatprep.subr.bf16.mxu0 0
    %3778 = vmatpush1.bf16.msra.mxu0 0
    %3779 = vmatprep.subr.bf16.mxu0 0
    %3780 = vmatpush1.bf16.msra.mxu0 0
    %3781 = vmatprep.subr.bf16.mxu0 0
    %3782 = vmatpush1.bf16.msra.mxu0 0
    %3783 = vmatprep.subr.bf16.mxu0 0
    %3784 = vmatpush1.bf16.msra.mxu0 0
    %3785 = vmatprep.subr.bf16.mxu0 0
    %3786 = vmatpush1.bf16.msra.mxu0 0
    %3787 = vmatprep.subr.bf16.mxu0 0
    %3788 = vmatpush1.bf16.msra.mxu0 0
    %3789 = vmatprep.mubr.bf16.mxu0 0
    %3790 = vmatmul.mubr.bf16.gmra.mrb[0].mxu0 %v3752
    %v3791 = vpop.f32.mrb[0].mxu0
    %v3792 = vadd.f32 0.0, %v3791
    %v3793 = vpop.f32.mrb[0].mxu0
    %v3794 = vpop.f32.mrb[0].mxu0
    %v3795 = vadd.f32 0.0, %v3794
    %v3796 = vpop.f32.mrb[0].mxu0
    %3797 = vdwg.mxu0
    %3798 = vrot.lane.b32.xlu0 %v776, 112
    %v3799 = vpop.permute.xlu0 %3798
    %3800 = vrot.lane.b32.xlu0 %v772, 80
    %v3801 = vpop.permute.xlu0 %3800
    %v3803 = vsel %vm783, %v3799, 0
    %v3806 = vsel %vm783, %v3801, 0
    %3808 = vmatprep.subr.bf16.mxu0 0
    %3809 = vmatpush1.bf16.xpose.msra.mxu0 %v3806
    %3810 = vmatprep.subr.bf16.mxu0 0
    %3811 = vmatpush1.bf16.xpose.msra.mxu0 0
    %3812 = vmatprep.subr.bf16.mxu0 0
    %3813 = vmatpush1.bf16.xpose.msra.mxu0 0
    %3814 = vmatprep.subr.bf16.mxu0 0
    %3815 = vmatpush1.bf16.xpose.msra.mxu0 0
    %3816 = vmatprep.subr.bf16.mxu0 0
    %3817 = vmatpush1.bf16.xpose.msra.mxu0 0
    %3818 = vmatprep.subr.bf16.mxu0 0
    %3819 = vmatpush1.bf16.xpose.msra.mxu0 0
    %3820 = vmatprep.subr.bf16.mxu0 0
    %3821 = vmatpush1.bf16.xpose.msra.mxu0 0
    %3822 = vmatprep.subr.bf16.mxu0 0
    %3823 = vmatpush1.bf16.xpose.msra.mxu0 0
    %3824 = vmatprep.subr.bf16.mxu0 0
    %3825 = vmatpush1.bf16.xpose.msra.mxu0 0
    %3826 = vmatprep.subr.bf16.mxu0 0
    %3827 = vmatpush1.bf16.xpose.msra.mxu0 0
    %3828 = vmatprep.subr.bf16.mxu0 0
    %3829 = vmatpush1.bf16.xpose.msra.mxu0 0
    %3830 = vmatprep.subr.bf16.mxu0 0
    %3831 = vmatpush1.bf16.xpose.msra.mxu0 0
    %3832 = vmatprep.subr.bf16.mxu0 0
    %3833 = vmatpush1.bf16.xpose.msra.mxu0 0
    %3834 = vmatprep.subr.bf16.mxu0 0
    %3835 = vmatpush1.bf16.xpose.msra.mxu0 0
    %3836 = vmatprep.subr.bf16.mxu0 0
    %3837 = vmatpush1.bf16.xpose.msra.mxu0 0
    %3838 = vmatprep.subr.bf16.mxu0 0
    %3839 = vmatpush1.bf16.xpose.msra.mxu0 0
    %3840 = vmatprep.mubr.bf16.mxu0 0
    %3841 = vmatmul.mubr.bf16.gmra.mrb[0].mxu0 %v3803
    %v3842 = vpop.f32.mrb[0].mxu0
    %v3843 = vadd.f32 0.0, %v3842
    %v3844 = vpop.f32.mrb[0].mxu0
    %v3845 = vpop.f32.mrb[0].mxu0
    %v3846 = vadd.f32 0.0, %v3845
    %v3847 = vpop.f32.mrb[0].mxu0
    %3848 = vdwg.mxu0
    %3849 = vrot.lane.b32.xlu0 %v777, 112
    %v3850 = vpop.permute.xlu0 %3849
    %3851 = vrot.lane.b32.xlu0 %v773, 80
    %v3852 = vpop.permute.xlu0 %3851
    %v3854 = vsel %vm783, %v3850, 0
    %v3857 = vsel %vm783, %v3852, 0
    %3859 = vmatprep.subr.bf16.mxu0 0
    %3860 = vmatpush1.bf16.xpose.msra.mxu0 %v3857
    %3861 = vmatprep.subr.bf16.mxu0 0
    %3862 = vmatpush1.bf16.xpose.msra.mxu0 0
    %3863 = vmatprep.subr.bf16.mxu0 0
    %3864 = vmatpush1.bf16.xpose.msra.mxu0 0
    %3865 = vmatprep.subr.bf16.mxu0 0
    %3866 = vmatpush1.bf16.xpose.msra.mxu0 0
    %3867 = vmatprep.subr.bf16.mxu0 0
    %3868 = vmatpush1.bf16.xpose.msra.mxu0 0
    %3869 = vmatprep.subr.bf16.mxu0 0
    %3870 = vmatpush1.bf16.xpose.msra.mxu0 0
    %3871 = vmatprep.subr.bf16.mxu0 0
    %3872 = vmatpush1.bf16.xpose.msra.mxu0 0
    %3873 = vmatprep.subr.bf16.mxu0 0
    %3874 = vmatpush1.bf16.xpose.msra.mxu0 0
    %3875 = vmatprep.subr.bf16.mxu0 0
    %3876 = vmatpush1.bf16.xpose.msra.mxu0 0
    %3877 = vmatprep.subr.bf16.mxu0 0
    %3878 = vmatpush1.bf16.xpose.msra.mxu0 0
    %3879 = vmatprep.subr.bf16.mxu0 0
    %3880 = vmatpush1.bf16.xpose.msra.mxu0 0
    %3881 = vmatprep.subr.bf16.mxu0 0
    %3882 = vmatpush1.bf16.xpose.msra.mxu0 0
    %3883 = vmatprep.subr.bf16.mxu0 0
    %3884 = vmatpush1.bf16.xpose.msra.mxu0 0
    %3885 = vmatprep.subr.bf16.mxu0 0
    %3886 = vmatpush1.bf16.xpose.msra.mxu0 0
    %3887 = vmatprep.subr.bf16.mxu0 0
    %3888 = vmatpush1.bf16.xpose.msra.mxu0 0
    %3889 = vmatprep.subr.bf16.mxu0 0
    %3890 = vmatpush1.bf16.xpose.msra.mxu0 0
    %3891 = vmatprep.mubr.bf16.mxu0 0
    %3892 = vmatmul.mubr.bf16.gmra.mrb[0].mxu0 %v3854
    %v3893 = vpop.f32.mrb[0].mxu0
    %v3894 = vadd.f32 0.0, %v3893
    %v3895 = vpop.f32.mrb[0].mxu0
    %v3896 = vpop.f32.mrb[0].mxu0
    %v3897 = vadd.f32 0.0, %v3896
    %v3898 = vpop.f32.mrb[0].mxu0
    %3899 = vdwg.mxu0
    %3900 = vrot.lane.b32.xlu0 %v2761, 112
    %v3901 = vpop.permute.xlu0 %3900
    %3902 = vrot.lane.b32.xlu0 %v774, 80
    %v3903 = vpop.permute.xlu0 %3902
    %v3905 = vsel %vm783, %v3901, 0
    %v3908 = vsel %vm783, %v3903, 0
    %3910 = vmatprep.subr.bf16.mxu0 0
    %3911 = vmatpush1.bf16.xpose.msra.mxu0 %v3908
    %3912 = vmatprep.subr.bf16.mxu0 0
    %3913 = vmatpush1.bf16.xpose.msra.mxu0 0
    %3914 = vmatprep.subr.bf16.mxu0 0
    %3915 = vmatpush1.bf16.xpose.msra.mxu0 0
    %3916 = vmatprep.subr.bf16.mxu0 0
    %3917 = vmatpush1.bf16.xpose.msra.mxu0 0
    %3918 = vmatprep.subr.bf16.mxu0 0
    %3919 = vmatpush1.bf16.xpose.msra.mxu0 0
    %3920 = vmatprep.subr.bf16.mxu0 0
    %3921 = vmatpush1.bf16.xpose.msra.mxu0 0
    %3922 = vmatprep.subr.bf16.mxu0 0
    %3923 = vmatpush1.bf16.xpose.msra.mxu0 0
    %3924 = vmatprep.subr.bf16.mxu0 0
    %3925 = vmatpush1.bf16.xpose.msra.mxu0 0
    %3926 = vmatprep.subr.bf16.mxu0 0
    %3927 = vmatpush1.bf16.xpose.msra.mxu0 0
    %3928 = vmatprep.subr.bf16.mxu0 0
    %3929 = vmatpush1.bf16.xpose.msra.mxu0 0
    %3930 = vmatprep.subr.bf16.mxu0 0
    %3931 = vmatpush1.bf16.xpose.msra.mxu0 0
    %3932 = vmatprep.subr.bf16.mxu0 0
    %3933 = vmatpush1.bf16.xpose.msra.mxu0 0
    %3934 = vmatprep.subr.bf16.mxu0 0
    %3935 = vmatpush1.bf16.xpose.msra.mxu0 0
    %3936 = vmatprep.subr.bf16.mxu0 0
    %3937 = vmatpush1.bf16.xpose.msra.mxu0 0
    %3938 = vmatprep.subr.bf16.mxu0 0
    %3939 = vmatpush1.bf16.xpose.msra.mxu0 0
    %3940 = vmatprep.subr.bf16.mxu0 0
    %3941 = vmatpush1.bf16.xpose.msra.mxu0 0
    %3942 = vmatprep.mubr.bf16.mxu0 0
    %3943 = vmatmul.mubr.bf16.gmra.mrb[0].mxu0 %v3905
    %v3944 = vpop.f32.mrb[0].mxu0
    %v3945 = vadd.f32 0.0, %v3944
    %v3946 = vpop.f32.mrb[0].mxu0
    %v3947 = vpop.f32.mrb[0].mxu0
    %v3948 = vadd.f32 0.0, %v3947
    %v3949 = vpop.f32.mrb[0].mxu0
    %3950 = vdwg.mxu0
    %3951 = vrot.lane.b32.xlu0 %v2762, 112
    %v3952 = vpop.permute.xlu0 %3951
    %3953 = vrot.lane.b32.xlu0 %v775, 80
    %v3954 = vpop.permute.xlu0 %3953
    %v3956 = vsel %vm783, %v3952, 0
    %v3959 = vsel %vm783, %v3954, 0
    %3961 = vmatprep.subr.bf16.mxu0 0
    %3962 = vmatpush1.bf16.xpose.msra.mxu0 %v3959
    %3963 = vmatprep.subr.bf16.mxu0 0
    %3964 = vmatpush1.bf16.xpose.msra.mxu0 0
    %3965 = vmatprep.subr.bf16.mxu0 0
    %3966 = vmatpush1.bf16.xpose.msra.mxu0 0
    %3967 = vmatprep.subr.bf16.mxu0 0
    %3968 = vmatpush1.bf16.xpose.msra.mxu0 0
    %3969 = vmatprep.subr.bf16.mxu0 0
    %3970 = vmatpush1.bf16.xpose.msra.mxu0 0
    %3971 = vmatprep.subr.bf16.mxu0 0
    %3972 = vmatpush1.bf16.xpose.msra.mxu0 0
    %3973 = vmatprep.subr.bf16.mxu0 0
    %3974 = vmatpush1.bf16.xpose.msra.mxu0 0
    %3975 = vmatprep.subr.bf16.mxu0 0
    %3976 = vmatpush1.bf16.xpose.msra.mxu0 0
    %3977 = vmatprep.subr.bf16.mxu0 0
    %3978 = vmatpush1.bf16.xpose.msra.mxu0 0
    %3979 = vmatprep.subr.bf16.mxu0 0
    %3980 = vmatpush1.bf16.xpose.msra.mxu0 0
    %3981 = vmatprep.subr.bf16.mxu0 0
    %3982 = vmatpush1.bf16.xpose.msra.mxu0 0
    %3983 = vmatprep.subr.bf16.mxu0 0
    %3984 = vmatpush1.bf16.xpose.msra.mxu0 0
    %3985 = vmatprep.subr.bf16.mxu0 0
    %3986 = vmatpush1.bf16.xpose.msra.mxu0 0
    %3987 = vmatprep.subr.bf16.mxu0 0
    %3988 = vmatpush1.bf16.xpose.msra.mxu0 0
    %3989 = vmatprep.subr.bf16.mxu0 0
    %3990 = vmatpush1.bf16.xpose.msra.mxu0 0
    %3991 = vmatprep.subr.bf16.mxu0 0
    %3992 = vmatpush1.bf16.xpose.msra.mxu0 0
    %3993 = vmatprep.mubr.bf16.mxu0 0
    %3994 = vmatmul.mubr.bf16.gmra.mrb[0].mxu0 %v3956
    %v3995 = vpop.f32.mrb[0].mxu0
    %v3996 = vadd.f32 0.0, %v3995
    %v3997 = vpop.f32.mrb[0].mxu0
    %v3998 = vpop.f32.mrb[0].mxu0
    %v3999 = vadd.f32 0.0, %v3998
    %v4000 = vpop.f32.mrb[0].mxu0
    %4001 = vdwg.mxu0
    %v4002 = vmul.f32 %v3843, 0.35355338
    %v4003 = vmul.f32 %v3846, 0.35355338
    %v4004 = vmul.f32 %v3894, 0.35355338
    %v4005 = vmul.f32 %v3897, 0.35355338
    %v4006 = vmul.f32 %v3945, 0.35355338
    %v4007 = vmul.f32 %v3948, 0.35355338
    %v4008 = vmul.f32 %v3996, 0.35355338
    %v4009 = vmul.f32 %v3999, 0.35355338
    %v4010 = vadd.f32 %v4002, %v2974
    %v4011 = vadd.f32 %v4003, %v2974
    %v4012 = vadd.f32 %v4004, %v2978
    %v4013 = vadd.f32 %v4005, %v2978
    %v4014 = vadd.f32 %v4006, %v2982
    %v4015 = vadd.f32 %v4007, %v2982
    %v4016 = vadd.f32 %v4008, %v2986
    %v4017 = vadd.f32 %v4009, %v2986
    %v4018 = vsel %vm783, %v4010, -inf
    %4019 = vmax.xlane.f32.xlu0 %v4018
    %v4020 = vpop.xlane.xlu0 %4019
    %v4021 = vsel %vm783, %v4011, -inf
    %4022 = vmax.xlane.f32.xlu0 %v4021
    %v4023 = vpop.xlane.xlu0 %4022
    %v4024 = vsel %vm783, %v4012, -inf
    %4025 = vmax.xlane.f32.xlu0 %v4024
    %v4026 = vpop.xlane.xlu0 %4025
    %v4027 = vsel %vm783, %v4013, -inf
    %4028 = vmax.xlane.f32.xlu0 %v4027
    %v4029 = vpop.xlane.xlu0 %4028
    %v4030 = vsel %vm783, %v4014, -inf
    %4031 = vmax.xlane.f32.xlu0 %v4030
    %v4032 = vpop.xlane.xlu0 %4031
    %v4033 = vsel %vm783, %v4015, -inf
    %4034 = vmax.xlane.f32.xlu0 %v4033
    %v4035 = vpop.xlane.xlu0 %4034
    %v4036 = vsel %vm783, %v4016, -inf
    %4037 = vmax.xlane.f32.xlu0 %v4036
    %v4038 = vpop.xlane.xlu0 %4037
    %v4039 = vsel %vm783, %v4017, -inf
    %4040 = vmax.xlane.f32.xlu0 %v4039
    %v4041 = vpop.xlane.xlu0 %4040
    %v4042 = vsub.f32 %v4010, %v4020
    %v4043 = vsub.f32 %v4011, %v4023
    %v4044 = vsub.f32 %v4012, %v4026
    %v4045 = vsub.f32 %v4013, %v4029
    %v4046 = vsub.f32 %v4014, %v4032
    %v4047 = vsub.f32 %v4015, %v4035
    %v4048 = vsub.f32 %v4016, %v4038
    %v4049 = vsub.f32 %v4017, %v4041
    %v4050 = vmul.f32 %v4042, 1.442695
    %v4051 = vpow.pop %v4050
    %v4052 = vmul.f32 %v4043, 1.442695
    %v4053 = vpow.pop %v4052
    %v4054 = vmul.f32 %v4044, 1.442695
    %v4055 = vpow.pop %v4054
    %v4056 = vmul.f32 %v4045, 1.442695
    %v4057 = vpow.pop %v4056
    %v4058 = vmul.f32 %v4046, 1.442695
    %v4059 = vpow.pop %v4058
    %v4060 = vmul.f32 %v4047, 1.442695
    %v4061 = vpow.pop %v4060
    %v4062 = vmul.f32 %v4048, 1.442695
    %v4063 = vpow.pop %v4062
    %v4064 = vmul.f32 %v4049, 1.442695
    %v4065 = vpow.pop %v4064
    %v4066 = vsel %vm783, %v4051, 0.0
    %4067 = vadd.xlane.f32.xlu0 %v4066
    %v4068 = vpop.xlane.xlu0 %4067
    %v4069 = vsel %vm783, %v4053, 0.0
    %4070 = vadd.xlane.f32.xlu0 %v4069
    %v4071 = vpop.xlane.xlu0 %4070
    %v4072 = vsel %vm783, %v4055, 0.0
    %4073 = vadd.xlane.f32.xlu0 %v4072
    %v4074 = vpop.xlane.xlu0 %4073
    %v4075 = vsel %vm783, %v4057, 0.0
    %4076 = vadd.xlane.f32.xlu0 %v4075
    %v4077 = vpop.xlane.xlu0 %4076
    %v4078 = vsel %vm783, %v4059, 0.0
    %4079 = vadd.xlane.f32.xlu0 %v4078
    %v4080 = vpop.xlane.xlu0 %4079
    %v4081 = vsel %vm783, %v4061, 0.0
    %4082 = vadd.xlane.f32.xlu0 %v4081
    %v4083 = vpop.xlane.xlu0 %4082
    %v4084 = vsel %vm783, %v4063, 0.0
    %4085 = vadd.xlane.f32.xlu0 %v4084
    %v4086 = vpop.xlane.xlu0 %4085
    %v4087 = vsel %vm783, %v4065, 0.0
    %4088 = vadd.xlane.f32.xlu0 %v4087
    %v4089 = vpop.xlane.xlu0 %4088
    %v4090 = vrcp.pop %v4068
    %v4091 = vmul.f32 %v4051, %v4090
    %v4092 = vrcp.pop %v4071
    %v4093 = vmul.f32 %v4053, %v4092
    %v4094 = vrcp.pop %v4074
    %v4095 = vmul.f32 %v4055, %v4094
    %v4096 = vrcp.pop %v4077
    %v4097 = vmul.f32 %v4057, %v4096
    %v4098 = vrcp.pop %v4080
    %v4099 = vmul.f32 %v4059, %v4098
    %v4100 = vrcp.pop %v4083
    %v4101 = vmul.f32 %v4061, %v4100
    %v4102 = vrcp.pop %v4086
    %v4103 = vmul.f32 %v4063, %v4102
    %v4104 = vrcp.pop %v4089
    %v4105 = vmul.f32 %v4065, %v4104
    %v4106 = vpack.c.bf16 %v4093, %v4091
    %v4107 = vpack.c.bf16 %v4097, %v4095
    %v4108 = vpack.c.bf16 %v4101, %v4099
    %v4109 = vpack.c.bf16 %v4105, %v4103
    %4110 = vrot.lane.b32.xlu0 %v772, 48
    %v4111 = vpop.permute.xlu0 %4110
    %v4113 = vsel %vm783, %v4106, 0
    %v4116 = vsel %vm3096, %v4111, 0
    %4118 = vmatprep.subr.bf16.mxu0 0
    %4119 = vmatpush1.bf16.msra.mxu0 %v4116
    %4120 = vmatprep.subr.bf16.mxu0 0
    %4121 = vmatpush1.bf16.msra.mxu0 0
    %4122 = vmatprep.subr.bf16.mxu0 0
    %4123 = vmatpush1.bf16.msra.mxu0 0
    %4124 = vmatprep.subr.bf16.mxu0 0
    %4125 = vmatpush1.bf16.msra.mxu0 0
    %4126 = vmatprep.subr.bf16.mxu0 0
    %4127 = vmatpush1.bf16.msra.mxu0 0
    %4128 = vmatprep.subr.bf16.mxu0 0
    %4129 = vmatpush1.bf16.msra.mxu0 0
    %4130 = vmatprep.subr.bf16.mxu0 0
    %4131 = vmatpush1.bf16.msra.mxu0 0
    %4132 = vmatprep.subr.bf16.mxu0 0
    %4133 = vmatpush1.bf16.msra.mxu0 0
    %4134 = vmatprep.subr.bf16.mxu0 0
    %4135 = vmatpush1.bf16.msra.mxu0 0
    %4136 = vmatprep.subr.bf16.mxu0 0
    %4137 = vmatpush1.bf16.msra.mxu0 0
    %4138 = vmatprep.subr.bf16.mxu0 0
    %4139 = vmatpush1.bf16.msra.mxu0 0
    %4140 = vmatprep.subr.bf16.mxu0 0
    %4141 = vmatpush1.bf16.msra.mxu0 0
    %4142 = vmatprep.subr.bf16.mxu0 0
    %4143 = vmatpush1.bf16.msra.mxu0 0
    %4144 = vmatprep.subr.bf16.mxu0 0
    %4145 = vmatpush1.bf16.msra.mxu0 0
    %4146 = vmatprep.subr.bf16.mxu0 0
    %4147 = vmatpush1.bf16.msra.mxu0 0
    %4148 = vmatprep.subr.bf16.mxu0 0
    %4149 = vmatpush1.bf16.msra.mxu0 0
    %4150 = vmatprep.mubr.bf16.mxu0 0
    %4151 = vmatmul.mubr.bf16.gmra.mrb[0].mxu0 %v4113
    %v4152 = vpop.f32.mrb[0].mxu0
    %v4153 = vadd.f32 0.0, %v4152
    %v4154 = vpop.f32.mrb[0].mxu0
    %v4155 = vpop.f32.mrb[0].mxu0
    %v4156 = vadd.f32 0.0, %v4155
    %v4157 = vpop.f32.mrb[0].mxu0
    %4158 = vdwg.mxu0
    %4159 = vrot.lane.b32.xlu0 %v773, 48
    %v4160 = vpop.permute.xlu0 %4159
    %v4162 = vsel %vm783, %v4107, 0
    %v4165 = vsel %vm3096, %v4160, 0
    %4167 = vmatprep.subr.bf16.mxu0 0
    %4168 = vmatpush1.bf16.msra.mxu0 %v4165
    %4169 = vmatprep.subr.bf16.mxu0 0
    %4170 = vmatpush1.bf16.msra.mxu0 0
    %4171 = vmatprep.subr.bf16.mxu0 0
    %4172 = vmatpush1.bf16.msra.mxu0 0
    %4173 = vmatprep.subr.bf16.mxu0 0
    %4174 = vmatpush1.bf16.msra.mxu0 0
    %4175 = vmatprep.subr.bf16.mxu0 0
    %4176 = vmatpush1.bf16.msra.mxu0 0
    %4177 = vmatprep.subr.bf16.mxu0 0
    %4178 = vmatpush1.bf16.msra.mxu0 0
    %4179 = vmatprep.subr.bf16.mxu0 0
    %4180 = vmatpush1.bf16.msra.mxu0 0
    %4181 = vmatprep.subr.bf16.mxu0 0
    %4182 = vmatpush1.bf16.msra.mxu0 0
    %4183 = vmatprep.subr.bf16.mxu0 0
    %4184 = vmatpush1.bf16.msra.mxu0 0
    %4185 = vmatprep.subr.bf16.mxu0 0
    %4186 = vmatpush1.bf16.msra.mxu0 0
    %4187 = vmatprep.subr.bf16.mxu0 0
    %4188 = vmatpush1.bf16.msra.mxu0 0
    %4189 = vmatprep.subr.bf16.mxu0 0
    %4190 = vmatpush1.bf16.msra.mxu0 0
    %4191 = vmatprep.subr.bf16.mxu0 0
    %4192 = vmatpush1.bf16.msra.mxu0 0
    %4193 = vmatprep.subr.bf16.mxu0 0
    %4194 = vmatpush1.bf16.msra.mxu0 0
    %4195 = vmatprep.subr.bf16.mxu0 0
    %4196 = vmatpush1.bf16.msra.mxu0 0
    %4197 = vmatprep.subr.bf16.mxu0 0
    %4198 = vmatpush1.bf16.msra.mxu0 0
    %4199 = vmatprep.mubr.bf16.mxu0 0
    %4200 = vmatmul.mubr.bf16.gmra.mrb[0].mxu0 %v4162
    %v4201 = vpop.f32.mrb[0].mxu0
    %v4202 = vadd.f32 0.0, %v4201
    %v4203 = vpop.f32.mrb[0].mxu0
    %v4204 = vpop.f32.mrb[0].mxu0
    %v4205 = vadd.f32 0.0, %v4204
    %v4206 = vpop.f32.mrb[0].mxu0
    %4207 = vdwg.mxu0
    %4208 = vrot.lane.b32.xlu0 %v774, 48
    %v4209 = vpop.permute.xlu0 %4208
    %v4211 = vsel %vm783, %v4108, 0
    %v4214 = vsel %vm3096, %v4209, 0
    %4216 = vmatprep.subr.bf16.mxu0 0
    %4217 = vmatpush1.bf16.msra.mxu0 %v4214
    %4218 = vmatprep.subr.bf16.mxu0 0
    %4219 = vmatpush1.bf16.msra.mxu0 0
    %4220 = vmatprep.subr.bf16.mxu0 0
    %4221 = vmatpush1.bf16.msra.mxu0 0
    %4222 = vmatprep.subr.bf16.mxu0 0
    %4223 = vmatpush1.bf16.msra.mxu0 0
    %4224 = vmatprep.subr.bf16.mxu0 0
    %4225 = vmatpush1.bf16.msra.mxu0 0
    %4226 = vmatprep.subr.bf16.mxu0 0
    %4227 = vmatpush1.bf16.msra.mxu0 0
    %4228 = vmatprep.subr.bf16.mxu0 0
    %4229 = vmatpush1.bf16.msra.mxu0 0
    %4230 = vmatprep.subr.bf16.mxu0 0
    %4231 = vmatpush1.bf16.msra.mxu0 0
    %4232 = vmatprep.subr.bf16.mxu0 0
    %4233 = vmatpush1.bf16.msra.mxu0 0
    %4234 = vmatprep.subr.bf16.mxu0 0
    %4235 = vmatpush1.bf16.msra.mxu0 0
    %4236 = vmatprep.subr.bf16.mxu0 0
    %4237 = vmatpush1.bf16.msra.mxu0 0
    %4238 = vmatprep.subr.bf16.mxu0 0
    %4239 = vmatpush1.bf16.msra.mxu0 0
    %4240 = vmatprep.subr.bf16.mxu0 0
    %4241 = vmatpush1.bf16.msra.mxu0 0
    %4242 = vmatprep.subr.bf16.mxu0 0
    %4243 = vmatpush1.bf16.msra.mxu0 0
    %4244 = vmatprep.subr.bf16.mxu0 0
    %4245 = vmatpush1.bf16.msra.mxu0 0
    %4246 = vmatprep.subr.bf16.mxu0 0
    %4247 = vmatpush1.bf16.msra.mxu0 0
    %4248 = vmatprep.mubr.bf16.mxu0 0
    %4249 = vmatmul.mubr.bf16.gmra.mrb[0].mxu0 %v4211
    %v4250 = vpop.f32.mrb[0].mxu0
    %v4251 = vadd.f32 0.0, %v4250
    %v4252 = vpop.f32.mrb[0].mxu0
    %v4253 = vpop.f32.mrb[0].mxu0
    %v4254 = vadd.f32 0.0, %v4253
    %v4255 = vpop.f32.mrb[0].mxu0
    %4256 = vdwg.mxu0
    %4257 = vrot.lane.b32.xlu0 %v775, 48
    %v4258 = vpop.permute.xlu0 %4257
    %v4260 = vsel %vm783, %v4109, 0
    %v4263 = vsel %vm3096, %v4258, 0
    %4265 = vmatprep.subr.bf16.mxu0 0
    %4266 = vmatpush1.bf16.msra.mxu0 %v4263
    %4267 = vmatprep.subr.bf16.mxu0 0
    %4268 = vmatpush1.bf16.msra.mxu0 0
    %4269 = vmatprep.subr.bf16.mxu0 0
    %4270 = vmatpush1.bf16.msra.mxu0 0
    %4271 = vmatprep.subr.bf16.mxu0 0
    %4272 = vmatpush1.bf16.msra.mxu0 0
    %4273 = vmatprep.subr.bf16.mxu0 0
    %4274 = vmatpush1.bf16.msra.mxu0 0
    %4275 = vmatprep.subr.bf16.mxu0 0
    %4276 = vmatpush1.bf16.msra.mxu0 0
    %4277 = vmatprep.subr.bf16.mxu0 0
    %4278 = vmatpush1.bf16.msra.mxu0 0
    %4279 = vmatprep.subr.bf16.mxu0 0
    %4280 = vmatpush1.bf16.msra.mxu0 0
    %4281 = vmatprep.subr.bf16.mxu0 0
    %4282 = vmatpush1.bf16.msra.mxu0 0
    %4283 = vmatprep.subr.bf16.mxu0 0
    %4284 = vmatpush1.bf16.msra.mxu0 0
    %4285 = vmatprep.subr.bf16.mxu0 0
    %4286 = vmatpush1.bf16.msra.mxu0 0
    %4287 = vmatprep.subr.bf16.mxu0 0
    %4288 = vmatpush1.bf16.msra.mxu0 0
    %4289 = vmatprep.subr.bf16.mxu0 0
    %4290 = vmatpush1.bf16.msra.mxu0 0
    %4291 = vmatprep.subr.bf16.mxu0 0
    %4292 = vmatpush1.bf16.msra.mxu0 0
    %4293 = vmatprep.subr.bf16.mxu0 0
    %4294 = vmatpush1.bf16.msra.mxu0 0
    %4295 = vmatprep.subr.bf16.mxu0 0
    %4296 = vmatpush1.bf16.msra.mxu0 0
    %4297 = vmatprep.mubr.bf16.mxu0 0
    %4298 = vmatmul.mubr.bf16.gmra.mrb[0].mxu0 %v4260
    %v4299 = vpop.f32.mrb[0].mxu0
    %v4300 = vadd.f32 0.0, %v4299
    %v4301 = vpop.f32.mrb[0].mxu0
    %v4302 = vpop.f32.mrb[0].mxu0
    %v4303 = vadd.f32 0.0, %v4302
    %v4304 = vpop.f32.mrb[0].mxu0
    %4305 = vdwg.mxu0
    %4306 = vrot.lane.b32.xlu0 %v776, 104
    %v4307 = vpop.permute.xlu0 %4306
    %4308 = vrot.lane.b32.xlu0 %v772, 72
    %v4309 = vpop.permute.xlu0 %4308
    %v4311 = vsel %vm783, %v4307, 0
    %v4314 = vsel %vm783, %v4309, 0
    %4316 = vmatprep.subr.bf16.mxu0 0
    %4317 = vmatpush1.bf16.xpose.msra.mxu0 %v4314
    %4318 = vmatprep.subr.bf16.mxu0 0
    %4319 = vmatpush1.bf16.xpose.msra.mxu0 0
    %4320 = vmatprep.subr.bf16.mxu0 0
    %4321 = vmatpush1.bf16.xpose.msra.mxu0 0
    %4322 = vmatprep.subr.bf16.mxu0 0
    %4323 = vmatpush1.bf16.xpose.msra.mxu0 0
    %4324 = vmatprep.subr.bf16.mxu0 0
    %4325 = vmatpush1.bf16.xpose.msra.mxu0 0
    %4326 = vmatprep.subr.bf16.mxu0 0
    %4327 = vmatpush1.bf16.xpose.msra.mxu0 0
    %4328 = vmatprep.subr.bf16.mxu0 0
    %4329 = vmatpush1.bf16.xpose.msra.mxu0 0
    %4330 = vmatprep.subr.bf16.mxu0 0
    %4331 = vmatpush1.bf16.xpose.msra.mxu0 0
    %4332 = vmatprep.subr.bf16.mxu0 0
    %4333 = vmatpush1.bf16.xpose.msra.mxu0 0
    %4334 = vmatprep.subr.bf16.mxu0 0
    %4335 = vmatpush1.bf16.xpose.msra.mxu0 0
    %4336 = vmatprep.subr.bf16.mxu0 0
    %4337 = vmatpush1.bf16.xpose.msra.mxu0 0
    %4338 = vmatprep.subr.bf16.mxu0 0
    %4339 = vmatpush1.bf16.xpose.msra.mxu0 0
    %4340 = vmatprep.subr.bf16.mxu0 0
    %4341 = vmatpush1.bf16.xpose.msra.mxu0 0
    %4342 = vmatprep.subr.bf16.mxu0 0
    %4343 = vmatpush1.bf16.xpose.msra.mxu0 0
    %4344 = vmatprep.subr.bf16.mxu0 0
    %4345 = vmatpush1.bf16.xpose.msra.mxu0 0
    %4346 = vmatprep.subr.bf16.mxu0 0
    %4347 = vmatpush1.bf16.xpose.msra.mxu0 0
    %4348 = vmatprep.mubr.bf16.mxu0 0
    %4349 = vmatmul.mubr.bf16.gmra.mrb[0].mxu0 %v4311
    %v4350 = vpop.f32.mrb[0].mxu0
    %v4351 = vadd.f32 0.0, %v4350
    %v4352 = vpop.f32.mrb[0].mxu0
    %v4353 = vpop.f32.mrb[0].mxu0
    %v4354 = vadd.f32 0.0, %v4353
    %v4355 = vpop.f32.mrb[0].mxu0
    %4356 = vdwg.mxu0
    %4357 = vrot.lane.b32.xlu0 %v777, 104
    %v4358 = vpop.permute.xlu0 %4357
    %4359 = vrot.lane.b32.xlu0 %v773, 72
    %v4360 = vpop.permute.xlu0 %4359
    %v4362 = vsel %vm783, %v4358, 0
    %v4365 = vsel %vm783, %v4360, 0
    %4367 = vmatprep.subr.bf16.mxu0 0
    %4368 = vmatpush1.bf16.xpose.msra.mxu0 %v4365
    %4369 = vmatprep.subr.bf16.mxu0 0
    %4370 = vmatpush1.bf16.xpose.msra.mxu0 0
    %4371 = vmatprep.subr.bf16.mxu0 0
    %4372 = vmatpush1.bf16.xpose.msra.mxu0 0
    %4373 = vmatprep.subr.bf16.mxu0 0
    %4374 = vmatpush1.bf16.xpose.msra.mxu0 0
    %4375 = vmatprep.subr.bf16.mxu0 0
    %4376 = vmatpush1.bf16.xpose.msra.mxu0 0
    %4377 = vmatprep.subr.bf16.mxu0 0
    %4378 = vmatpush1.bf16.xpose.msra.mxu0 0
    %4379 = vmatprep.subr.bf16.mxu0 0
    %4380 = vmatpush1.bf16.xpose.msra.mxu0 0
    %4381 = vmatprep.subr.bf16.mxu0 0
    %4382 = vmatpush1.bf16.xpose.msra.mxu0 0
    %4383 = vmatprep.subr.bf16.mxu0 0
    %4384 = vmatpush1.bf16.xpose.msra.mxu0 0
    %4385 = vmatprep.subr.bf16.mxu0 0
    %4386 = vmatpush1.bf16.xpose.msra.mxu0 0
    %4387 = vmatprep.subr.bf16.mxu0 0
    %4388 = vmatpush1.bf16.xpose.msra.mxu0 0
    %4389 = vmatprep.subr.bf16.mxu0 0
    %4390 = vmatpush1.bf16.xpose.msra.mxu0 0
    %4391 = vmatprep.subr.bf16.mxu0 0
    %4392 = vmatpush1.bf16.xpose.msra.mxu0 0
    %4393 = vmatprep.subr.bf16.mxu0 0
    %4394 = vmatpush1.bf16.xpose.msra.mxu0 0
    %4395 = vmatprep.subr.bf16.mxu0 0
    %4396 = vmatpush1.bf16.xpose.msra.mxu0 0
    %4397 = vmatprep.subr.bf16.mxu0 0
    %4398 = vmatpush1.bf16.xpose.msra.mxu0 0
    %4399 = vmatprep.mubr.bf16.mxu0 0
    %4400 = vmatmul.mubr.bf16.gmra.mrb[0].mxu0 %v4362
    %v4401 = vpop.f32.mrb[0].mxu0
    %v4402 = vadd.f32 0.0, %v4401
    %v4403 = vpop.f32.mrb[0].mxu0
    %v4404 = vpop.f32.mrb[0].mxu0
    %v4405 = vadd.f32 0.0, %v4404
    %v4406 = vpop.f32.mrb[0].mxu0
    %4407 = vdwg.mxu0
    %4408 = vrot.lane.b32.xlu0 %v2761, 104
    %v4409 = vpop.permute.xlu0 %4408
    %4410 = vrot.lane.b32.xlu0 %v774, 72
    %v4411 = vpop.permute.xlu0 %4410
    %v4413 = vsel %vm783, %v4409, 0
    %v4416 = vsel %vm783, %v4411, 0
    %4418 = vmatprep.subr.bf16.mxu0 0
    %4419 = vmatpush1.bf16.xpose.msra.mxu0 %v4416
    %4420 = vmatprep.subr.bf16.mxu0 0
    %4421 = vmatpush1.bf16.xpose.msra.mxu0 0
    %4422 = vmatprep.subr.bf16.mxu0 0
    %4423 = vmatpush1.bf16.xpose.msra.mxu0 0
    %4424 = vmatprep.subr.bf16.mxu0 0
    %4425 = vmatpush1.bf16.xpose.msra.mxu0 0
    %4426 = vmatprep.subr.bf16.mxu0 0
    %4427 = vmatpush1.bf16.xpose.msra.mxu0 0
    %4428 = vmatprep.subr.bf16.mxu0 0
    %4429 = vmatpush1.bf16.xpose.msra.mxu0 0
    %4430 = vmatprep.subr.bf16.mxu0 0
    %4431 = vmatpush1.bf16.xpose.msra.mxu0 0
    %4432 = vmatprep.subr.bf16.mxu0 0
    %4433 = vmatpush1.bf16.xpose.msra.mxu0 0
    %4434 = vmatprep.subr.bf16.mxu0 0
    %4435 = vmatpush1.bf16.xpose.msra.mxu0 0
    %4436 = vmatprep.subr.bf16.mxu0 0
    %4437 = vmatpush1.bf16.xpose.msra.mxu0 0
    %4438 = vmatprep.subr.bf16.mxu0 0
    %4439 = vmatpush1.bf16.xpose.msra.mxu0 0
    %4440 = vmatprep.subr.bf16.mxu0 0
    %4441 = vmatpush1.bf16.xpose.msra.mxu0 0
    %4442 = vmatprep.subr.bf16.mxu0 0
    %4443 = vmatpush1.bf16.xpose.msra.mxu0 0
    %4444 = vmatprep.subr.bf16.mxu0 0
    %4445 = vmatpush1.bf16.xpose.msra.mxu0 0
    %4446 = vmatprep.subr.bf16.mxu0 0
    %4447 = vmatpush1.bf16.xpose.msra.mxu0 0
    %4448 = vmatprep.subr.bf16.mxu0 0
    %4449 = vmatpush1.bf16.xpose.msra.mxu0 0
    %4450 = vmatprep.mubr.bf16.mxu0 0
    %4451 = vmatmul.mubr.bf16.gmra.mrb[0].mxu0 %v4413
    %v4452 = vpop.f32.mrb[0].mxu0
    %v4453 = vadd.f32 0.0, %v4452
    %v4454 = vpop.f32.mrb[0].mxu0
    %v4455 = vpop.f32.mrb[0].mxu0
    %v4456 = vadd.f32 0.0, %v4455
    %v4457 = vpop.f32.mrb[0].mxu0
    %4458 = vdwg.mxu0
    %4459 = vrot.lane.b32.xlu0 %v2762, 104
    %v4460 = vpop.permute.xlu0 %4459
    %4461 = vrot.lane.b32.xlu0 %v775, 72
    %v4462 = vpop.permute.xlu0 %4461
    %v4464 = vsel %vm783, %v4460, 0
    %v4467 = vsel %vm783, %v4462, 0
    %4469 = vmatprep.subr.bf16.mxu0 0
    %4470 = vmatpush1.bf16.xpose.msra.mxu0 %v4467
    %4471 = vmatprep.subr.bf16.mxu0 0
    %4472 = vmatpush1.bf16.xpose.msra.mxu0 0
    %4473 = vmatprep.subr.bf16.mxu0 0
    %4474 = vmatpush1.bf16.xpose.msra.mxu0 0
    %4475 = vmatprep.subr.bf16.mxu0 0
    %4476 = vmatpush1.bf16.xpose.msra.mxu0 0
    %4477 = vmatprep.subr.bf16.mxu0 0
    %4478 = vmatpush1.bf16.xpose.msra.mxu0 0
    %4479 = vmatprep.subr.bf16.mxu0 0
    %4480 = vmatpush1.bf16.xpose.msra.mxu0 0
    %4481 = vmatprep.subr.bf16.mxu0 0
    %4482 = vmatpush1.bf16.xpose.msra.mxu0 0
    %4483 = vmatprep.subr.bf16.mxu0 0
    %4484 = vmatpush1.bf16.xpose.msra.mxu0 0
    %4485 = vmatprep.subr.bf16.mxu0 0
    %4486 = vmatpush1.bf16.xpose.msra.mxu0 0
    %4487 = vmatprep.subr.bf16.mxu0 0
    %4488 = vmatpush1.bf16.xpose.msra.mxu0 0
    %4489 = vmatprep.subr.bf16.mxu0 0
    %4490 = vmatpush1.bf16.xpose.msra.mxu0 0
    %4491 = vmatprep.subr.bf16.mxu0 0
    %4492 = vmatpush1.bf16.xpose.msra.mxu0 0
    %4493 = vmatprep.subr.bf16.mxu0 0
    %4494 = vmatpush1.bf16.xpose.msra.mxu0 0
    %4495 = vmatprep.subr.bf16.mxu0 0
    %4496 = vmatpush1.bf16.xpose.msra.mxu0 0
    %4497 = vmatprep.subr.bf16.mxu0 0
    %4498 = vmatpush1.bf16.xpose.msra.mxu0 0
    %4499 = vmatprep.subr.bf16.mxu0 0
    %4500 = vmatpush1.bf16.xpose.msra.mxu0 0
    %4501 = vmatprep.mubr.bf16.mxu0 0
    %4502 = vmatmul.mubr.bf16.gmra.mrb[0].mxu0 %v4464
    %v4503 = vpop.f32.mrb[0].mxu0
    %v4504 = vadd.f32 0.0, %v4503
    %v4505 = vpop.f32.mrb[0].mxu0
    %v4506 = vpop.f32.mrb[0].mxu0
    %v4507 = vadd.f32 0.0, %v4506
    %v4508 = vpop.f32.mrb[0].mxu0
    %4509 = vdwg.mxu0
    %v4510 = vmul.f32 %v4351, 0.35355338
    %v4511 = vmul.f32 %v4354, 0.35355338
    %v4512 = vmul.f32 %v4402, 0.35355338
    %v4513 = vmul.f32 %v4405, 0.35355338
    %v4514 = vmul.f32 %v4453, 0.35355338
    %v4515 = vmul.f32 %v4456, 0.35355338
    %v4516 = vmul.f32 %v4504, 0.35355338
    %v4517 = vmul.f32 %v4507, 0.35355338
    %v4518 = vadd.f32 %v4510, %v2974
    %v4519 = vadd.f32 %v4511, %v2974
    %v4520 = vadd.f32 %v4512, %v2978
    %v4521 = vadd.f32 %v4513, %v2978
    %v4522 = vadd.f32 %v4514, %v2982
    %v4523 = vadd.f32 %v4515, %v2982
    %v4524 = vadd.f32 %v4516, %v2986
    %v4525 = vadd.f32 %v4517, %v2986
    %v4526 = vsel %vm783, %v4518, -inf
    %4527 = vmax.xlane.f32.xlu0 %v4526
    %v4528 = vpop.xlane.xlu0 %4527
    %v4529 = vsel %vm783, %v4519, -inf
    %4530 = vmax.xlane.f32.xlu0 %v4529
    %v4531 = vpop.xlane.xlu0 %4530
    %v4532 = vsel %vm783, %v4520, -inf
    %4533 = vmax.xlane.f32.xlu0 %v4532
    %v4534 = vpop.xlane.xlu0 %4533
    %v4535 = vsel %vm783, %v4521, -inf
    %4536 = vmax.xlane.f32.xlu0 %v4535
    %v4537 = vpop.xlane.xlu0 %4536
    %v4538 = vsel %vm783, %v4522, -inf
    %4539 = vmax.xlane.f32.xlu0 %v4538
    %v4540 = vpop.xlane.xlu0 %4539
    %v4541 = vsel %vm783, %v4523, -inf
    %4542 = vmax.xlane.f32.xlu0 %v4541
    %v4543 = vpop.xlane.xlu0 %4542
    %v4544 = vsel %vm783, %v4524, -inf
    %4545 = vmax.xlane.f32.xlu0 %v4544
    %v4546 = vpop.xlane.xlu0 %4545
    %v4547 = vsel %vm783, %v4525, -inf
    %4548 = vmax.xlane.f32.xlu0 %v4547
    %v4549 = vpop.xlane.xlu0 %4548
    %v4550 = vsub.f32 %v4518, %v4528
    %v4551 = vsub.f32 %v4519, %v4531
    %v4552 = vsub.f32 %v4520, %v4534
    %v4553 = vsub.f32 %v4521, %v4537
    %v4554 = vsub.f32 %v4522, %v4540
    %v4555 = vsub.f32 %v4523, %v4543
    %v4556 = vsub.f32 %v4524, %v4546
    %v4557 = vsub.f32 %v4525, %v4549
    %v4558 = vmul.f32 %v4550, 1.442695
    %v4559 = vpow.pop %v4558
    %v4560 = vmul.f32 %v4551, 1.442695
    %v4561 = vpow.pop %v4560
    %v4562 = vmul.f32 %v4552, 1.442695
    %v4563 = vpow.pop %v4562
    %v4564 = vmul.f32 %v4553, 1.442695
    %v4565 = vpow.pop %v4564
    %v4566 = vmul.f32 %v4554, 1.442695
    %v4567 = vpow.pop %v4566
    %v4568 = vmul.f32 %v4555, 1.442695
    %v4569 = vpow.pop %v4568
    %v4570 = vmul.f32 %v4556, 1.442695
    %v4571 = vpow.pop %v4570
    %v4572 = vmul.f32 %v4557, 1.442695
    %v4573 = vpow.pop %v4572
    %v4574 = vsel %vm783, %v4559, 0.0
    %4575 = vadd.xlane.f32.xlu0 %v4574
    %v4576 = vpop.xlane.xlu0 %4575
    %v4577 = vsel %vm783, %v4561, 0.0
    %4578 = vadd.xlane.f32.xlu0 %v4577
    %v4579 = vpop.xlane.xlu0 %4578
    %v4580 = vsel %vm783, %v4563, 0.0
    %4581 = vadd.xlane.f32.xlu0 %v4580
    %v4582 = vpop.xlane.xlu0 %4581
    %v4583 = vsel %vm783, %v4565, 0.0
    %4584 = vadd.xlane.f32.xlu0 %v4583
    %v4585 = vpop.xlane.xlu0 %4584
    %v4586 = vsel %vm783, %v4567, 0.0
    %4587 = vadd.xlane.f32.xlu0 %v4586
    %v4588 = vpop.xlane.xlu0 %4587
    %v4589 = vsel %vm783, %v4569, 0.0
    %4590 = vadd.xlane.f32.xlu0 %v4589
    %v4591 = vpop.xlane.xlu0 %4590
    %v4592 = vsel %vm783, %v4571, 0.0
    %4593 = vadd.xlane.f32.xlu0 %v4592
    %v4594 = vpop.xlane.xlu0 %4593
    %v4595 = vsel %vm783, %v4573, 0.0
    %4596 = vadd.xlane.f32.xlu0 %v4595
    %v4597 = vpop.xlane.xlu0 %4596
    %v4598 = vrcp.pop %v4576
    %v4599 = vmul.f32 %v4559, %v4598
    %v4600 = vrcp.pop %v4579
    %v4601 = vmul.f32 %v4561, %v4600
    %v4602 = vrcp.pop %v4582
    %v4603 = vmul.f32 %v4563, %v4602
    %v4604 = vrcp.pop %v4585
    %v4605 = vmul.f32 %v4565, %v4604
    %v4606 = vrcp.pop %v4588
    %v4607 = vmul.f32 %v4567, %v4606
    %v4608 = vrcp.pop %v4591
    %v4609 = vmul.f32 %v4569, %v4608
    %v4610 = vrcp.pop %v4594
    %v4611 = vmul.f32 %v4571, %v4610
    %v4612 = vrcp.pop %v4597
    %v4613 = vmul.f32 %v4573, %v4612
    %v4614 = vpack.c.bf16 %v4601, %v4599
    %v4615 = vpack.c.bf16 %v4605, %v4603
    %v4616 = vpack.c.bf16 %v4609, %v4607
    %v4617 = vpack.c.bf16 %v4613, %v4611
    %4618 = vrot.lane.b32.xlu0 %v772, 40
    %v4619 = vpop.permute.xlu0 %4618
    %v4621 = vsel %vm783, %v4614, 0
    %v4624 = vsel %vm3096, %v4619, 0
    %4626 = vmatprep.subr.bf16.mxu0 0
    %4627 = vmatpush1.bf16.msra.mxu0 %v4624
    %4628 = vmatprep.subr.bf16.mxu0 0
    %4629 = vmatpush1.bf16.msra.mxu0 0
    %4630 = vmatprep.subr.bf16.mxu0 0
    %4631 = vmatpush1.bf16.msra.mxu0 0
    %4632 = vmatprep.subr.bf16.mxu0 0
    %4633 = vmatpush1.bf16.msra.mxu0 0
    %4634 = vmatprep.subr.bf16.mxu0 0
    %4635 = vmatpush1.bf16.msra.mxu0 0
    %4636 = vmatprep.subr.bf16.mxu0 0
    %4637 = vmatpush1.bf16.msra.mxu0 0
    %4638 = vmatprep.subr.bf16.mxu0 0
    %4639 = vmatpush1.bf16.msra.mxu0 0
    %4640 = vmatprep.subr.bf16.mxu0 0
    %4641 = vmatpush1.bf16.msra.mxu0 0
    %4642 = vmatprep.subr.bf16.mxu0 0
    %4643 = vmatpush1.bf16.msra.mxu0 0
    %4644 = vmatprep.subr.bf16.mxu0 0
    %4645 = vmatpush1.bf16.msra.mxu0 0
    %4646 = vmatprep.subr.bf16.mxu0 0
    %4647 = vmatpush1.bf16.msra.mxu0 0
    %4648 = vmatprep.subr.bf16.mxu0 0
    %4649 = vmatpush1.bf16.msra.mxu0 0
    %4650 = vmatprep.subr.bf16.mxu0 0
    %4651 = vmatpush1.bf16.msra.mxu0 0
    %4652 = vmatprep.subr.bf16.mxu0 0
    %4653 = vmatpush1.bf16.msra.mxu0 0
    %4654 = vmatprep.subr.bf16.mxu0 0
    %4655 = vmatpush1.bf16.msra.mxu0 0
    %4656 = vmatprep.subr.bf16.mxu0 0
    %4657 = vmatpush1.bf16.msra.mxu0 0
    %4658 = vmatprep.mubr.bf16.mxu0 0
    %4659 = vmatmul.mubr.bf16.gmra.mrb[0].mxu0 %v4621
    %v4660 = vpop.f32.mrb[0].mxu0
    %v4661 = vadd.f32 0.0, %v4660
    %v4662 = vpop.f32.mrb[0].mxu0
    %v4663 = vpop.f32.mrb[0].mxu0
    %v4664 = vadd.f32 0.0, %v4663
    %v4665 = vpop.f32.mrb[0].mxu0
    %4666 = vdwg.mxu0
    %4667 = vrot.lane.b32.xlu0 %v773, 40
    %v4668 = vpop.permute.xlu0 %4667
    %v4670 = vsel %vm783, %v4615, 0
    %v4673 = vsel %vm3096, %v4668, 0
    %4675 = vmatprep.subr.bf16.mxu0 0
    %4676 = vmatpush1.bf16.msra.mxu0 %v4673
    %4677 = vmatprep.subr.bf16.mxu0 0
    %4678 = vmatpush1.bf16.msra.mxu0 0
    %4679 = vmatprep.subr.bf16.mxu0 0
    %4680 = vmatpush1.bf16.msra.mxu0 0
    %4681 = vmatprep.subr.bf16.mxu0 0
    %4682 = vmatpush1.bf16.msra.mxu0 0
    %4683 = vmatprep.subr.bf16.mxu0 0
    %4684 = vmatpush1.bf16.msra.mxu0 0
    %4685 = vmatprep.subr.bf16.mxu0 0
    %4686 = vmatpush1.bf16.msra.mxu0 0
    %4687 = vmatprep.subr.bf16.mxu0 0
    %4688 = vmatpush1.bf16.msra.mxu0 0
    %4689 = vmatprep.subr.bf16.mxu0 0
    %4690 = vmatpush1.bf16.msra.mxu0 0
    %4691 = vmatprep.subr.bf16.mxu0 0
    %4692 = vmatpush1.bf16.msra.mxu0 0
    %4693 = vmatprep.subr.bf16.mxu0 0
    %4694 = vmatpush1.bf16.msra.mxu0 0
    %4695 = vmatprep.subr.bf16.mxu0 0
    %4696 = vmatpush1.bf16.msra.mxu0 0
    %4697 = vmatprep.subr.bf16.mxu0 0
    %4698 = vmatpush1.bf16.msra.mxu0 0
    %4699 = vmatprep.subr.bf16.mxu0 0
    %4700 = vmatpush1.bf16.msra.mxu0 0
    %4701 = vmatprep.subr.bf16.mxu0 0
    %4702 = vmatpush1.bf16.msra.mxu0 0
    %4703 = vmatprep.subr.bf16.mxu0 0
    %4704 = vmatpush1.bf16.msra.mxu0 0
    %4705 = vmatprep.subr.bf16.mxu0 0
    %4706 = vmatpush1.bf16.msra.mxu0 0
    %4707 = vmatprep.mubr.bf16.mxu0 0
    %4708 = vmatmul.mubr.bf16.gmra.mrb[0].mxu0 %v4670
    %v4709 = vpop.f32.mrb[0].mxu0
    %v4710 = vadd.f32 0.0, %v4709
    %v4711 = vpop.f32.mrb[0].mxu0
    %v4712 = vpop.f32.mrb[0].mxu0
    %v4713 = vadd.f32 0.0, %v4712
    %v4714 = vpop.f32.mrb[0].mxu0
    %4715 = vdwg.mxu0
    %4716 = vrot.lane.b32.xlu0 %v774, 40
    %v4717 = vpop.permute.xlu0 %4716
    %v4719 = vsel %vm783, %v4616, 0
    %v4722 = vsel %vm3096, %v4717, 0
    %4724 = vmatprep.subr.bf16.mxu0 0
    %4725 = vmatpush1.bf16.msra.mxu0 %v4722
    %4726 = vmatprep.subr.bf16.mxu0 0
    %4727 = vmatpush1.bf16.msra.mxu0 0
    %4728 = vmatprep.subr.bf16.mxu0 0
    %4729 = vmatpush1.bf16.msra.mxu0 0
    %4730 = vmatprep.subr.bf16.mxu0 0
    %4731 = vmatpush1.bf16.msra.mxu0 0
    %4732 = vmatprep.subr.bf16.mxu0 0
    %4733 = vmatpush1.bf16.msra.mxu0 0
    %4734 = vmatprep.subr.bf16.mxu0 0
    %4735 = vmatpush1.bf16.msra.mxu0 0
    %4736 = vmatprep.subr.bf16.mxu0 0
    %4737 = vmatpush1.bf16.msra.mxu0 0
    %4738 = vmatprep.subr.bf16.mxu0 0
    %4739 = vmatpush1.bf16.msra.mxu0 0
    %4740 = vmatprep.subr.bf16.mxu0 0
    %4741 = vmatpush1.bf16.msra.mxu0 0
    %4742 = vmatprep.subr.bf16.mxu0 0
    %4743 = vmatpush1.bf16.msra.mxu0 0
    %4744 = vmatprep.subr.bf16.mxu0 0
    %4745 = vmatpush1.bf16.msra.mxu0 0
    %4746 = vmatprep.subr.bf16.mxu0 0
    %4747 = vmatpush1.bf16.msra.mxu0 0
    %4748 = vmatprep.subr.bf16.mxu0 0
    %4749 = vmatpush1.bf16.msra.mxu0 0
    %4750 = vmatprep.subr.bf16.mxu0 0
    %4751 = vmatpush1.bf16.msra.mxu0 0
    %4752 = vmatprep.subr.bf16.mxu0 0
    %4753 = vmatpush1.bf16.msra.mxu0 0
    %4754 = vmatprep.subr.bf16.mxu0 0
    %4755 = vmatpush1.bf16.msra.mxu0 0
    %4756 = vmatprep.mubr.bf16.mxu0 0
    %4757 = vmatmul.mubr.bf16.gmra.mrb[0].mxu0 %v4719
    %v4758 = vpop.f32.mrb[0].mxu0
    %v4759 = vadd.f32 0.0, %v4758
    %v4760 = vpop.f32.mrb[0].mxu0
    %v4761 = vpop.f32.mrb[0].mxu0
    %v4762 = vadd.f32 0.0, %v4761
    %v4763 = vpop.f32.mrb[0].mxu0
    %4764 = vdwg.mxu0
    %4765 = vrot.lane.b32.xlu0 %v775, 40
    %v4766 = vpop.permute.xlu0 %4765
    %v4768 = vsel %vm783, %v4617, 0
    %v4771 = vsel %vm3096, %v4766, 0
    %4773 = vmatprep.subr.bf16.mxu0 0
    %4774 = vmatpush1.bf16.msra.mxu0 %v4771
    %4775 = vmatprep.subr.bf16.mxu0 0
    %4776 = vmatpush1.bf16.msra.mxu0 0
    %4777 = vmatprep.subr.bf16.mxu0 0
    %4778 = vmatpush1.bf16.msra.mxu0 0
    %4779 = vmatprep.subr.bf16.mxu0 0
    %4780 = vmatpush1.bf16.msra.mxu0 0
    %4781 = vmatprep.subr.bf16.mxu0 0
    %4782 = vmatpush1.bf16.msra.mxu0 0
    %4783 = vmatprep.subr.bf16.mxu0 0
    %4784 = vmatpush1.bf16.msra.mxu0 0
    %4785 = vmatprep.subr.bf16.mxu0 0
    %4786 = vmatpush1.bf16.msra.mxu0 0
    %4787 = vmatprep.subr.bf16.mxu0 0
    %4788 = vmatpush1.bf16.msra.mxu0 0
    %4789 = vmatprep.subr.bf16.mxu0 0
    %4790 = vmatpush1.bf16.msra.mxu0 0
    %4791 = vmatprep.subr.bf16.mxu0 0
    %4792 = vmatpush1.bf16.msra.mxu0 0
    %4793 = vmatprep.subr.bf16.mxu0 0
    %4794 = vmatpush1.bf16.msra.mxu0 0
    %4795 = vmatprep.subr.bf16.mxu0 0
    %4796 = vmatpush1.bf16.msra.mxu0 0
    %4797 = vmatprep.subr.bf16.mxu0 0
    %4798 = vmatpush1.bf16.msra.mxu0 0
    %4799 = vmatprep.subr.bf16.mxu0 0
    %4800 = vmatpush1.bf16.msra.mxu0 0
    %4801 = vmatprep.subr.bf16.mxu0 0
    %4802 = vmatpush1.bf16.msra.mxu0 0
    %4803 = vmatprep.subr.bf16.mxu0 0
    %4804 = vmatpush1.bf16.msra.mxu0 0
    %4805 = vmatprep.mubr.bf16.mxu0 0
    %4806 = vmatmul.mubr.bf16.gmra.mrb[0].mxu0 %v4768
    %v4807 = vpop.f32.mrb[0].mxu0
    %v4808 = vadd.f32 0.0, %v4807
    %v4809 = vpop.f32.mrb[0].mxu0
    %v4810 = vpop.f32.mrb[0].mxu0
    %v4811 = vadd.f32 0.0, %v4810
    %v4812 = vpop.f32.mrb[0].mxu0
    %4813 = vdwg.mxu0
    %4822 = vrot.lane.b32.xlu0 %v3645, 8
    %v4823 = vpop.permute.xlu0 %4822
    %4824 = vrot.lane.b32.xlu0 %v3648, 8
    %v4825 = vpop.permute.xlu0 %4824
    %4826 = vrot.lane.b32.xlu0 %v3694, 8
    %v4827 = vpop.permute.xlu0 %4826
    %4828 = vrot.lane.b32.xlu0 %v3697, 8
    %v4829 = vpop.permute.xlu0 %4828
    %4830 = vrot.lane.b32.xlu0 %v3743, 8
    %v4831 = vpop.permute.xlu0 %4830
    %4832 = vrot.lane.b32.xlu0 %v3746, 8
    %v4833 = vpop.permute.xlu0 %4832
    %4834 = vrot.lane.b32.xlu0 %v3792, 8
    %v4835 = vpop.permute.xlu0 %4834
    %4836 = vrot.lane.b32.xlu0 %v3795, 8
    %v4837 = vpop.permute.xlu0 %4836
    %4854 = vrot.lane.b32.xlu0 %v4153, 16
    %v4855 = vpop.permute.xlu0 %4854
    %4856 = vrot.lane.b32.xlu0 %v4156, 16
    %v4857 = vpop.permute.xlu0 %4856
    %4858 = vrot.lane.b32.xlu0 %v4202, 16
    %v4859 = vpop.permute.xlu0 %4858
    %4860 = vrot.lane.b32.xlu0 %v4205, 16
    %v4861 = vpop.permute.xlu0 %4860
    %4862 = vrot.lane.b32.xlu0 %v4251, 16
    %v4863 = vpop.permute.xlu0 %4862
    %4864 = vrot.lane.b32.xlu0 %v4254, 16
    %v4865 = vpop.permute.xlu0 %4864
    %4866 = vrot.lane.b32.xlu0 %v4300, 16
    %v4867 = vpop.permute.xlu0 %4866
    %4868 = vrot.lane.b32.xlu0 %v4303, 16
    %v4869 = vpop.permute.xlu0 %4868
    %4886 = vrot.lane.b32.xlu0 %v4661, 24
    %v4887 = vpop.permute.xlu0 %4886
    %4888 = vrot.lane.b32.xlu0 %v4664, 24
    %v4889 = vpop.permute.xlu0 %4888
    %4890 = vrot.lane.b32.xlu0 %v4710, 24
    %v4891 = vpop.permute.xlu0 %4890
    %4892 = vrot.lane.b32.xlu0 %v4713, 24
    %v4893 = vpop.permute.xlu0 %4892
    %4894 = vrot.lane.b32.xlu0 %v4759, 24
    %v4895 = vpop.permute.xlu0 %4894
    %4896 = vrot.lane.b32.xlu0 %v4762, 24
    %v4897 = vpop.permute.xlu0 %4896
    %4898 = vrot.lane.b32.xlu0 %v4808, 24
    %v4899 = vpop.permute.xlu0 %4898
    %4900 = vrot.lane.b32.xlu0 %v4811, 24
    %v4901 = vpop.permute.xlu0 %4900
    %v4910 = vsel %vm783, %v3135, %v4823
    %v4911 = vsel %vm783, %v3138, %v4825
    %v4912 = vsel %vm783, %v3184, %v4827
    %v4913 = vsel %vm783, %v3187, %v4829
    %v4914 = vsel %vm783, %v3233, %v4831
    %v4915 = vsel %vm783, %v3236, %v4833
    %v4916 = vsel %vm783, %v3282, %v4835
    %v4917 = vsel %vm783, %v3285, %v4837
    %v4918 = vsel %vm997, %v4910, %v4855
    %v4919 = vsel %vm997, %v4911, %v4857
    %v4920 = vsel %vm997, %v4912, %v4859
    %v4921 = vsel %vm997, %v4913, %v4861
    %v4922 = vsel %vm997, %v4914, %v4863
    %v4923 = vsel %vm997, %v4915, %v4865
    %v4924 = vsel %vm997, %v4916, %v4867
    %v4925 = vsel %vm997, %v4917, %v4869
    %v4926 = vsel %vm2610, %v4918, %v4887
    %v4927 = vsel %vm2610, %v4919, %v4889
    %v4928 = vsel %vm2610, %v4920, %v4891
    %v4929 = vsel %vm2610, %v4921, %v4893
    %v4930 = vsel %vm2610, %v4922, %v4895
    %v4931 = vsel %vm2610, %v4923, %v4897
    %v4932 = vsel %vm2610, %v4924, %v4899
    %v4933 = vsel %vm2610, %v4925, %v4901
    %v4934 = vpack.c.bf16 %v4927, %v4926
    %v4935 = vpack.c.bf16 %v4929, %v4928
    %v4936 = vpack.c.bf16 %v4931, %v4930
    %v4937 = vpack.c.bf16 %v4933, %v4932
    %v4942 = vunpack.c.l.b16 %v241
    %v4943 = vunpack.c.l.b16 %v242
    %v4944 = vunpack.c.l.b16 %v243
    %v4945 = vunpack.c.l.b16 %v244
    %v4946 = vpack.c.b16 %v4943, %v4942
    %v4947 = vpack.c.b16 %v4945, %v4944
    %v4951 = vsel %vm582, %v4934, 0
    %v4954 = vsel %vm582, %v4935, 0
    %4956 = vmatprep.subr.bf16.mxu0 0
    %4957 = vmatpush1.bf16.msra.mxu0 %v4946
    %4958 = vmatprep.subr.bf16.mxu0 0
    %4959 = vmatpush1.bf16.msra.mxu0 %v4947
    %4960 = vmatprep.subr.bf16.mxu0 0
    %4961 = vmatpush1.bf16.msra.mxu0 0
    %4962 = vmatprep.subr.bf16.mxu0 0
    %4963 = vmatpush1.bf16.msra.mxu0 0
    %4964 = vmatprep.subr.bf16.mxu0 0
    %4965 = vmatpush1.bf16.msra.mxu0 0
    %4966 = vmatprep.subr.bf16.mxu0 0
    %4967 = vmatpush1.bf16.msra.mxu0 0
    %4968 = vmatprep.subr.bf16.mxu0 0
    %4969 = vmatpush1.bf16.msra.mxu0 0
    %4970 = vmatprep.subr.bf16.mxu0 0
    %4971 = vmatpush1.bf16.msra.mxu0 0
    %4972 = vmatprep.subr.bf16.mxu0 0
    %4973 = vmatpush1.bf16.msra.mxu0 0
    %4974 = vmatprep.subr.bf16.mxu0 0
    %4975 = vmatpush1.bf16.msra.mxu0 0
    %4976 = vmatprep.subr.bf16.mxu0 0
    %4977 = vmatpush1.bf16.msra.mxu0 0
    %4978 = vmatprep.subr.bf16.mxu0 0
    %4979 = vmatpush1.bf16.msra.mxu0 0
    %4980 = vmatprep.subr.bf16.mxu0 0
    %4981 = vmatpush1.bf16.msra.mxu0 0
    %4982 = vmatprep.subr.bf16.mxu0 0
    %4983 = vmatpush1.bf16.msra.mxu0 0
    %4984 = vmatprep.subr.bf16.mxu0 0
    %4985 = vmatpush1.bf16.msra.mxu0 0
    %4986 = vmatprep.subr.bf16.mxu0 0
    %4987 = vmatpush1.bf16.msra.mxu0 0
    %4988 = vmatprep.mubr.bf16.mxu0 0
    %4989 = vmatmul.mubr.bf16.gmra.mrb[0].mxu0 %v4951
    %v4990 = vpop.f32.mrb[0].mxu0
    %v4991 = vadd.f32 0.0, %v4990
    %v4992 = vpop.f32.mrb[0].mxu0
    %v4993 = vpop.f32.mrb[0].mxu0
    %v4994 = vadd.f32 0.0, %v4993
    %v4995 = vpop.f32.mrb[0].mxu0
    %4996 = vmatprep.mubr.bf16.mxu0 0
    %4997 = vmatmul.mubr.bf16.gmra.mrb[0].mxu0 %v4954
    %v4998 = vpop.f32.mrb[0].mxu0
    %v4999 = vadd.f32 0.0, %v4998
    %v5000 = vpop.f32.mrb[0].mxu0
    %v5001 = vpop.f32.mrb[0].mxu0
    %v5002 = vadd.f32 0.0, %v5001
    %v5003 = vpop.f32.mrb[0].mxu0
    %5004 = vdwg.mxu0
    %v5009 = vunpack.c.l.b16 %v245
    %v5010 = vunpack.c.l.b16 %v246
    %v5011 = vunpack.c.l.b16 %v247
    %v5012 = vunpack.c.l.b16 %v248
    %v5013 = vpack.c.b16 %v5010, %v5009
    %v5014 = vpack.c.b16 %v5012, %v5011
    %v5018 = vsel %vm582, %v4936, 0
    %v5021 = vsel %vm582, %v4937, 0
    %5023 = vmatprep.subr.bf16.mxu0 0
    %5024 = vmatpush1.bf16.msra.mxu0 %v5013
    %5025 = vmatprep.subr.bf16.mxu0 0
    %5026 = vmatpush1.bf16.msra.mxu0 %v5014
    %5027 = vmatprep.subr.bf16.mxu0 0
    %5028 = vmatpush1.bf16.msra.mxu0 0
    %5029 = vmatprep.subr.bf16.mxu0 0
    %5030 = vmatpush1.bf16.msra.mxu0 0
    %5031 = vmatprep.subr.bf16.mxu0 0
    %5032 = vmatpush1.bf16.msra.mxu0 0
    %5033 = vmatprep.subr.bf16.mxu0 0
    %5034 = vmatpush1.bf16.msra.mxu0 0
    %5035 = vmatprep.subr.bf16.mxu0 0
    %5036 = vmatpush1.bf16.msra.mxu0 0
    %5037 = vmatprep.subr.bf16.mxu0 0
    %5038 = vmatpush1.bf16.msra.mxu0 0
    %5039 = vmatprep.subr.bf16.mxu0 0
    %5040 = vmatpush1.bf16.msra.mxu0 0
    %5041 = vmatprep.subr.bf16.mxu0 0
    %5042 = vmatpush1.bf16.msra.mxu0 0
    %5043 = vmatprep.subr.bf16.mxu0 0
    %5044 = vmatpush1.bf16.msra.mxu0 0
    %5045 = vmatprep.subr.bf16.mxu0 0
    %5046 = vmatpush1.bf16.msra.mxu0 0
    %5047 = vmatprep.subr.bf16.mxu0 0
    %5048 = vmatpush1.bf16.msra.mxu0 0
    %5049 = vmatprep.subr.bf16.mxu0 0
    %5050 = vmatpush1.bf16.msra.mxu0 0
    %5051 = vmatprep.subr.bf16.mxu0 0
    %5052 = vmatpush1.bf16.msra.mxu0 0
    %5053 = vmatprep.subr.bf16.mxu0 0
    %5054 = vmatpush1.bf16.msra.mxu0 0
    %5055 = vmatprep.mubr.bf16.mxu0 0
    %5056 = vmatmul.mubr.bf16.gmra.mrb[0].mxu0 %v5018
    %v5057 = vpop.f32.mrb[0].mxu0
    %v5058 = vadd.f32 0.0, %v5057
    %v5059 = vpop.f32.mrb[0].mxu0
    %v5060 = vpop.f32.mrb[0].mxu0
    %v5061 = vadd.f32 0.0, %v5060
    %v5062 = vpop.f32.mrb[0].mxu0
    %5063 = vmatprep.mubr.bf16.mxu0 0
    %5064 = vmatmul.mubr.bf16.gmra.mrb[0].mxu0 %v5021
    %v5065 = vpop.f32.mrb[0].mxu0
    %v5066 = vadd.f32 0.0, %v5065
    %v5067 = vpop.f32.mrb[0].mxu0
    %v5068 = vpop.f32.mrb[0].mxu0
    %v5069 = vadd.f32 0.0, %v5068
    %v5070 = vpop.f32.mrb[0].mxu0
    %5071 = vdwg.mxu0
    %v5072 = vlaneseq
    %v5073 = vshrl.u32 %v5072, 7
    %v5074 = vsub.s32 3, %v5073
    %v5075 = vrot.slane %v222, %v5074
    %v5076 = vlaneseq
    %v5077 = vshrl.u32 %v5076, 7
    %v5078 = vsub.s32 3, %v5077
    %v5079 = vrot.slane %v2731, %v5078
    %v5080 = vadd.f32 %v4991, %v5075
    %v5081 = vadd.f32 %v4994, %v5075
    %v5082 = vadd.f32 %v4999, %v5075
    %v5083 = vadd.f32 %v5002, %v5075
    %v5084 = vadd.f32 %v5058, %v5079
    %v5085 = vadd.f32 %v5061, %v5079
    %v5086 = vadd.f32 %v5066, %v5079
    %v5087 = vadd.f32 %v5069, %v5079
    %v5088 = vpack.c.bf16 %v532, %v532
    %v5089 = vpack.c.bf16 %v533, %v533
    %v5090 = vpack.c.bf16 %v534, %v534
    %v5091 = vpack.c.bf16 %v535, %v535
    %v5092 = vpack.c.bf16 %v2741, %v2741
    %v5093 = vpack.c.bf16 %v2742, %v2742
    %v5094 = vpack.c.bf16 %v2743, %v2743
    %v5095 = vpack.c.bf16 %v2744, %v2744
    %v5097 = vsel %vm783, %v5088, 0
    %v5100 = vsel %vm3096, %v5092, 0
    %5102 = vmatprep.subr.bf16.mxu0 0
    %5103 = vmatpush1.bf16.msra.mxu0 %v5100
    %5104 = vmatprep.subr.bf16.mxu0 0
    %5105 = vmatpush1.bf16.msra.mxu0 0
    %5106 = vmatprep.subr.bf16.mxu0 0
    %5107 = vmatpush1.bf16.msra.mxu0 0
    %5108 = vmatprep.subr.bf16.mxu0 0
    %5109 = vmatpush1.bf16.msra.mxu0 0
    %5110 = vmatprep.subr.bf16.mxu0 0
    %5111 = vmatpush1.bf16.msra.mxu0 0
    %5112 = vmatprep.subr.bf16.mxu0 0
    %5113 = vmatpush1.bf16.msra.mxu0 0
    %5114 = vmatprep.subr.bf16.mxu0 0
    %5115 = vmatpush1.bf16.msra.mxu0 0
    %5116 = vmatprep.subr.bf16.mxu0 0
    %5117 = vmatpush1.bf16.msra.mxu0 0
    %5118 = vmatprep.subr.bf16.mxu0 0
    %5119 = vmatpush1.bf16.msra.mxu0 0
    %5120 = vmatprep.subr.bf16.mxu0 0
    %5121 = vmatpush1.bf16.msra.mxu0 0
    %5122 = vmatprep.subr.bf16.mxu0 0
    %5123 = vmatpush1.bf16.msra.mxu0 0
    %5124 = vmatprep.subr.bf16.mxu0 0
    %5125 = vmatpush1.bf16.msra.mxu0 0
    %5126 = vmatprep.subr.bf16.mxu0 0
    %5127 = vmatpush1.bf16.msra.mxu0 0
    %5128 = vmatprep.subr.bf16.mxu0 0
    %5129 = vmatpush1.bf16.msra.mxu0 0
    %5130 = vmatprep.subr.bf16.mxu0 0
    %5131 = vmatpush1.bf16.msra.mxu0 0
    %5132 = vmatprep.subr.bf16.mxu0 0
    %5133 = vmatpush1.bf16.msra.mxu0 0
    %5134 = vmatprep.mubr.bf16.mxu0 0
    %5135 = vmatmul.mubr.bf16.gmra.mrb[0].mxu0 %v5097
    %v5136 = vpop.f32.mrb[0].mxu0
    %v5137 = vadd.f32 0.0, %v5136
    %v5138 = vpop.f32.mrb[0].mxu0
    %v5139 = vpop.f32.mrb[0].mxu0
    %v5140 = vpop.f32.mrb[0].mxu0
    %5141 = vdwg.mxu0
    %v5143 = vsel %vm783, %v5089, 0
    %v5146 = vsel %vm3096, %v5093, 0
    %5148 = vmatprep.subr.bf16.mxu0 0
    %5149 = vmatpush1.bf16.msra.mxu0 %v5146
    %5150 = vmatprep.subr.bf16.mxu0 0
    %5151 = vmatpush1.bf16.msra.mxu0 0
    %5152 = vmatprep.subr.bf16.mxu0 0
    %5153 = vmatpush1.bf16.msra.mxu0 0
    %5154 = vmatprep.subr.bf16.mxu0 0
    %5155 = vmatpush1.bf16.msra.mxu0 0
    %5156 = vmatprep.subr.bf16.mxu0 0
    %5157 = vmatpush1.bf16.msra.mxu0 0
    %5158 = vmatprep.subr.bf16.mxu0 0
    %5159 = vmatpush1.bf16.msra.mxu0 0
    %5160 = vmatprep.subr.bf16.mxu0 0
    %5161 = vmatpush1.bf16.msra.mxu0 0
    %5162 = vmatprep.subr.bf16.mxu0 0
    %5163 = vmatpush1.bf16.msra.mxu0 0
    %5164 = vmatprep.subr.bf16.mxu0 0
    %5165 = vmatpush1.bf16.msra.mxu0 0
    %5166 = vmatprep.subr.bf16.mxu0 0
    %5167 = vmatpush1.bf16.msra.mxu0 0
    %5168 = vmatprep.subr.bf16.mxu0 0
    %5169 = vmatpush1.bf16.msra.mxu0 0
    %5170 = vmatprep.subr.bf16.mxu0 0
    %5171 = vmatpush1.bf16.msra.mxu0 0
    %5172 = vmatprep.subr.bf16.mxu0 0
    %5173 = vmatpush1.bf16.msra.mxu0 0
    %5174 = vmatprep.subr.bf16.mxu0 0
    %5175 = vmatpush1.bf16.msra.mxu0 0
    %5176 = vmatprep.subr.bf16.mxu0 0
    %5177 = vmatpush1.bf16.msra.mxu0 0
    %5178 = vmatprep.subr.bf16.mxu0 0
    %5179 = vmatpush1.bf16.msra.mxu0 0
    %5180 = vmatprep.mubr.bf16.mxu0 0
    %5181 = vmatmul.mubr.bf16.gmra.mrb[0].mxu0 %v5143
    %v5182 = vpop.f32.mrb[0].mxu0
    %v5183 = vadd.f32 0.0, %v5182
    %v5184 = vpop.f32.mrb[0].mxu0
    %v5185 = vpop.f32.mrb[0].mxu0
    %v5186 = vpop.f32.mrb[0].mxu0
    %5187 = vdwg.mxu0
    %v5189 = vsel %vm783, %v5090, 0
    %v5192 = vsel %vm3096, %v5094, 0
    %5194 = vmatprep.subr.bf16.mxu0 0
    %5195 = vmatpush1.bf16.msra.mxu0 %v5192
    %5196 = vmatprep.subr.bf16.mxu0 0
    %5197 = vmatpush1.bf16.msra.mxu0 0
    %5198 = vmatprep.subr.bf16.mxu0 0
    %5199 = vmatpush1.bf16.msra.mxu0 0
    %5200 = vmatprep.subr.bf16.mxu0 0
    %5201 = vmatpush1.bf16.msra.mxu0 0
    %5202 = vmatprep.subr.bf16.mxu0 0
    %5203 = vmatpush1.bf16.msra.mxu0 0
    %5204 = vmatprep.subr.bf16.mxu0 0
    %5205 = vmatpush1.bf16.msra.mxu0 0
    %5206 = vmatprep.subr.bf16.mxu0 0
    %5207 = vmatpush1.bf16.msra.mxu0 0
    %5208 = vmatprep.subr.bf16.mxu0 0
    %5209 = vmatpush1.bf16.msra.mxu0 0
    %5210 = vmatprep.subr.bf16.mxu0 0
    %5211 = vmatpush1.bf16.msra.mxu0 0
    %5212 = vmatprep.subr.bf16.mxu0 0
    %5213 = vmatpush1.bf16.msra.mxu0 0
    %5214 = vmatprep.subr.bf16.mxu0 0
    %5215 = vmatpush1.bf16.msra.mxu0 0
    %5216 = vmatprep.subr.bf16.mxu0 0
    %5217 = vmatpush1.bf16.msra.mxu0 0
    %5218 = vmatprep.subr.bf16.mxu0 0
    %5219 = vmatpush1.bf16.msra.mxu0 0
    %5220 = vmatprep.subr.bf16.mxu0 0
    %5221 = vmatpush1.bf16.msra.mxu0 0
    %5222 = vmatprep.subr.bf16.mxu0 0
    %5223 = vmatpush1.bf16.msra.mxu0 0
    %5224 = vmatprep.subr.bf16.mxu0 0
    %5225 = vmatpush1.bf16.msra.mxu0 0
    %5226 = vmatprep.mubr.bf16.mxu0 0
    %5227 = vmatmul.mubr.bf16.gmra.mrb[0].mxu0 %v5189
    %v5228 = vpop.f32.mrb[0].mxu0
    %v5229 = vadd.f32 0.0, %v5228
    %v5230 = vpop.f32.mrb[0].mxu0
    %v5231 = vpop.f32.mrb[0].mxu0
    %v5232 = vpop.f32.mrb[0].mxu0
    %5233 = vdwg.mxu0
    %v5235 = vsel %vm783, %v5091, 0
    %v5238 = vsel %vm3096, %v5095, 0
    %5240 = vmatprep.subr.bf16.mxu0 0
    %5241 = vmatpush1.bf16.msra.mxu0 %v5238
    %5242 = vmatprep.subr.bf16.mxu0 0
    %5243 = vmatpush1.bf16.msra.mxu0 0
    %5244 = vmatprep.subr.bf16.mxu0 0
    %5245 = vmatpush1.bf16.msra.mxu0 0
    %5246 = vmatprep.subr.bf16.mxu0 0
    %5247 = vmatpush1.bf16.msra.mxu0 0
    %5248 = vmatprep.subr.bf16.mxu0 0
    %5249 = vmatpush1.bf16.msra.mxu0 0
    %5250 = vmatprep.subr.bf16.mxu0 0
    %5251 = vmatpush1.bf16.msra.mxu0 0
    %5252 = vmatprep.subr.bf16.mxu0 0
    %5253 = vmatpush1.bf16.msra.mxu0 0
    %5254 = vmatprep.subr.bf16.mxu0 0
    %5255 = vmatpush1.bf16.msra.mxu0 0
    %5256 = vmatprep.subr.bf16.mxu0 0
    %5257 = vmatpush1.bf16.msra.mxu0 0
    %5258 = vmatprep.subr.bf16.mxu0 0
    %5259 = vmatpush1.bf16.msra.mxu0 0
    %5260 = vmatprep.subr.bf16.mxu0 0
    %5261 = vmatpush1.bf16.msra.mxu0 0
    %5262 = vmatprep.subr.bf16.mxu0 0
    %5263 = vmatpush1.bf16.msra.mxu0 0
    %5264 = vmatprep.subr.bf16.mxu0 0
    %5265 = vmatpush1.bf16.msra.mxu0 0
    %5266 = vmatprep.subr.bf16.mxu0 0
    %5267 = vmatpush1.bf16.msra.mxu0 0
    %5268 = vmatprep.subr.bf16.mxu0 0
    %5269 = vmatpush1.bf16.msra.mxu0 0
    %5270 = vmatprep.subr.bf16.mxu0 0
    %5271 = vmatpush1.bf16.msra.mxu0 0
    %5272 = vmatprep.mubr.bf16.mxu0 0
    %5273 = vmatmul.mubr.bf16.gmra.mrb[0].mxu0 %v5235
    %v5274 = vpop.f32.mrb[0].mxu0
    %v5275 = vadd.f32 0.0, %v5274
    %v5276 = vpop.f32.mrb[0].mxu0
    %v5277 = vpop.f32.mrb[0].mxu0
    %v5278 = vpop.f32.mrb[0].mxu0
    %5279 = vdwg.mxu0
    %vm5280 = vcmask 57344
    %v5281 = vsel %vm5280, %v532, 0.0
    %5282 = vadd.xlane.f32.xlu0 %v5281
    %v5283 = vpop.xlane.xlu0 %5282
    %v5284 = vsel %vm5280, %v533, 0.0
    %5285 = vadd.xlane.f32.xlu0 %v5284
    %v5286 = vpop.xlane.xlu0 %5285
    %v5287 = vsel %vm5280, %v534, 0.0
    %5288 = vadd.xlane.f32.xlu0 %v5287
    %v5289 = vpop.xlane.xlu0 %5288
    %v5290 = vsel %vm5280, %v535, 0.0
    %5291 = vadd.xlane.f32.xlu0 %v5290
    %v5292 = vpop.xlane.xlu0 %5291
    %v5293 = vrcp.pop %v5283
    %v5294 = vmul.f32 %v5137, %v5293
    %v5295 = vrcp.pop %v5286
    %v5296 = vmul.f32 %v5183, %v5295
    %v5297 = vrcp.pop %v5289
    %v5298 = vmul.f32 %v5229, %v5297
    %v5299 = vrcp.pop %v5292
    %v5300 = vmul.f32 %v5275, %v5299
    %v5301 = vpack.c.bf16 %v530, %v530
    %v5302 = vpack.c.bf16 %v531, %v531
    %v5303 = vpack.c.bf16 %v5081, %v5080
    %v5304 = vpack.c.bf16 %v5083, %v5082
    %v5305 = vpack.c.bf16 %v5085, %v5084
    %v5306 = vpack.c.bf16 %v5087, %v5086
    %v5308 = vsel %vm997, %v5301, 0
    %5310 = vmatprep.subr.bf16.mxu0 0
    %5311 = vmatpush1.bf16.msra.mxu0 %v5303
    %5312 = vmatprep.subr.bf16.mxu0 0
    %5313 = vmatpush1.bf16.msra.mxu0 0
    %5314 = vmatprep.subr.bf16.mxu0 0
    %5315 = vmatpush1.bf16.msra.mxu0 0
    %5316 = vmatprep.subr.bf16.mxu0 0
    %5317 = vmatpush1.bf16.msra.mxu0 0
    %5318 = vmatprep.subr.bf16.mxu0 0
    %5319 = vmatpush1.bf16.msra.mxu0 0
    %5320 = vmatprep.subr.bf16.mxu0 0
    %5321 = vmatpush1.bf16.msra.mxu0 0
    %5322 = vmatprep.subr.bf16.mxu0 0
    %5323 = vmatpush1.bf16.msra.mxu0 0
    %5324 = vmatprep.subr.bf16.mxu0 0
    %5325 = vmatpush1.bf16.msra.mxu0 0
    %5326 = vmatprep.subr.bf16.mxu0 0
    %5327 = vmatpush1.bf16.msra.mxu0 0
    %5328 = vmatprep.subr.bf16.mxu0 0
    %5329 = vmatpush1.bf16.msra.mxu0 0
    %5330 = vmatprep.subr.bf16.mxu0 0
    %5331 = vmatpush1.bf16.msra.mxu0 0
    %5332 = vmatprep.subr.bf16.mxu0 0
    %5333 = vmatpush1.bf16.msra.mxu0 0
    %5334 = vmatprep.subr.bf16.mxu0 0
    %5335 = vmatpush1.bf16.msra.mxu0 0
    %5336 = vmatprep.subr.bf16.mxu0 0
    %5337 = vmatpush1.bf16.msra.mxu0 0
    %5338 = vmatprep.subr.bf16.mxu0 0
    %5339 = vmatpush1.bf16.msra.mxu0 0
    %5340 = vmatprep.subr.bf16.mxu0 0
    %5341 = vmatpush1.bf16.msra.mxu0 0
    %5342 = vmatprep.mubr.bf16.mxu0 0
    %5343 = vmatmul.mubr.bf16.gmra.mrb[0].mxu0 %v5308
    %v5344 = vpop.f32.mrb[0].mxu0
    %v5345 = vadd.f32 0.0, %v5344
    %v5346 = vpop.f32.mrb[0].mxu0
    %v5347 = vpop.f32.mrb[0].mxu0
    %v5348 = vpop.f32.mrb[0].mxu0
    %5349 = vdwg.mxu0
    %v5351 = vsel %vm997, %v5302, 0
    %5353 = vmatprep.subr.bf16.mxu0 0
    %5354 = vmatpush1.bf16.msra.mxu0 %v5304
    %5355 = vmatprep.subr.bf16.mxu0 0
    %5356 = vmatpush1.bf16.msra.mxu0 0
    %5357 = vmatprep.subr.bf16.mxu0 0
    %5358 = vmatpush1.bf16.msra.mxu0 0
    %5359 = vmatprep.subr.bf16.mxu0 0
    %5360 = vmatpush1.bf16.msra.mxu0 0
    %5361 = vmatprep.subr.bf16.mxu0 0
    %5362 = vmatpush1.bf16.msra.mxu0 0
    %5363 = vmatprep.subr.bf16.mxu0 0
    %5364 = vmatpush1.bf16.msra.mxu0 0
    %5365 = vmatprep.subr.bf16.mxu0 0
    %5366 = vmatpush1.bf16.msra.mxu0 0
    %5367 = vmatprep.subr.bf16.mxu0 0
    %5368 = vmatpush1.bf16.msra.mxu0 0
    %5369 = vmatprep.subr.bf16.mxu0 0
    %5370 = vmatpush1.bf16.msra.mxu0 0
    %5371 = vmatprep.subr.bf16.mxu0 0
    %5372 = vmatpush1.bf16.msra.mxu0 0
    %5373 = vmatprep.subr.bf16.mxu0 0
    %5374 = vmatpush1.bf16.msra.mxu0 0
    %5375 = vmatprep.subr.bf16.mxu0 0
    %5376 = vmatpush1.bf16.msra.mxu0 0
    %5377 = vmatprep.subr.bf16.mxu0 0
    %5378 = vmatpush1.bf16.msra.mxu0 0
    %5379 = vmatprep.subr.bf16.mxu0 0
    %5380 = vmatpush1.bf16.msra.mxu0 0
    %5381 = vmatprep.subr.bf16.mxu0 0
    %5382 = vmatpush1.bf16.msra.mxu0 0
    %5383 = vmatprep.subr.bf16.mxu0 0
    %5384 = vmatpush1.bf16.msra.mxu0 0
    %5385 = vmatprep.mubr.bf16.mxu0 0
    %5386 = vmatmul.mubr.bf16.gmra.mrb[0].mxu0 %v5351
    %v5387 = vpop.f32.mrb[0].mxu0
    %v5388 = vadd.f32 0.0, %v5387
    %v5389 = vpop.f32.mrb[0].mxu0
    %v5390 = vpop.f32.mrb[0].mxu0
    %v5391 = vpop.f32.mrb[0].mxu0
    %5392 = vdwg.mxu0
    %5393 = vmatprep.subr.bf16.mxu0 0
    %5394 = vmatpush1.bf16.msra.mxu0 %v5305
    %5395 = vmatprep.subr.bf16.mxu0 0
    %5396 = vmatpush1.bf16.msra.mxu0 0
    %5397 = vmatprep.subr.bf16.mxu0 0
    %5398 = vmatpush1.bf16.msra.mxu0 0
    %5399 = vmatprep.subr.bf16.mxu0 0
    %5400 = vmatpush1.bf16.msra.mxu0 0
    %5401 = vmatprep.subr.bf16.mxu0 0
    %5402 = vmatpush1.bf16.msra.mxu0 0
    %5403 = vmatprep.subr.bf16.mxu0 0
    %5404 = vmatpush1.bf16.msra.mxu0 0
    %5405 = vmatprep.subr.bf16.mxu0 0
    %5406 = vmatpush1.bf16.msra.mxu0 0
    %5407 = vmatprep.subr.bf16.mxu0 0
    %5408 = vmatpush1.bf16.msra.mxu0 0
    %5409 = vmatprep.subr.bf16.mxu0 0
    %5410 = vmatpush1.bf16.msra.mxu0 0
    %5411 = vmatprep.subr.bf16.mxu0 0
    %5412 = vmatpush1.bf16.msra.mxu0 0
    %5413 = vmatprep.subr.bf16.mxu0 0
    %5414 = vmatpush1.bf16.msra.mxu0 0
    %5415 = vmatprep.subr.bf16.mxu0 0
    %5416 = vmatpush1.bf16.msra.mxu0 0
    %5417 = vmatprep.subr.bf16.mxu0 0
    %5418 = vmatpush1.bf16.msra.mxu0 0
    %5419 = vmatprep.subr.bf16.mxu0 0
    %5420 = vmatpush1.bf16.msra.mxu0 0
    %5421 = vmatprep.subr.bf16.mxu0 0
    %5422 = vmatpush1.bf16.msra.mxu0 0
    %5423 = vmatprep.subr.bf16.mxu0 0
    %5424 = vmatpush1.bf16.msra.mxu0 0
    %5425 = vmatprep.mubr.bf16.mxu0 0
    %5426 = vmatmul.mubr.bf16.gmra.mrb[0].mxu0 %v5308
    %v5427 = vpop.f32.mrb[0].mxu0
    %v5428 = vadd.f32 0.0, %v5427
    %v5429 = vpop.f32.mrb[0].mxu0
    %v5430 = vpop.f32.mrb[0].mxu0
    %v5431 = vpop.f32.mrb[0].mxu0
    %5432 = vdwg.mxu0
    %5433 = vmatprep.subr.bf16.mxu0 0
    %5434 = vmatpush1.bf16.msra.mxu0 %v5306
    %5435 = vmatprep.subr.bf16.mxu0 0
    %5436 = vmatpush1.bf16.msra.mxu0 0
    %5437 = vmatprep.subr.bf16.mxu0 0
    %5438 = vmatpush1.bf16.msra.mxu0 0
    %5439 = vmatprep.subr.bf16.mxu0 0
    %5440 = vmatpush1.bf16.msra.mxu0 0
    %5441 = vmatprep.subr.bf16.mxu0 0
    %5442 = vmatpush1.bf16.msra.mxu0 0
    %5443 = vmatprep.subr.bf16.mxu0 0
    %5444 = vmatpush1.bf16.msra.mxu0 0
    %5445 = vmatprep.subr.bf16.mxu0 0
    %5446 = vmatpush1.bf16.msra.mxu0 0
    %5447 = vmatprep.subr.bf16.mxu0 0
    %5448 = vmatpush1.bf16.msra.mxu0 0
    %5449 = vmatprep.subr.bf16.mxu0 0
    %5450 = vmatpush1.bf16.msra.mxu0 0
    %5451 = vmatprep.subr.bf16.mxu0 0
    %5452 = vmatpush1.bf16.msra.mxu0 0
    %5453 = vmatprep.subr.bf16.mxu0 0
    %5454 = vmatpush1.bf16.msra.mxu0 0
    %5455 = vmatprep.subr.bf16.mxu0 0
    %5456 = vmatpush1.bf16.msra.mxu0 0
    %5457 = vmatprep.subr.bf16.mxu0 0
    %5458 = vmatpush1.bf16.msra.mxu0 0
    %5459 = vmatprep.subr.bf16.mxu0 0
    %5460 = vmatpush1.bf16.msra.mxu0 0
    %5461 = vmatprep.subr.bf16.mxu0 0
    %5462 = vmatpush1.bf16.msra.mxu0 0
    %5463 = vmatprep.subr.bf16.mxu0 0
    %5464 = vmatpush1.bf16.msra.mxu0 0
    %5465 = vmatprep.mubr.bf16.mxu0 0
    %5466 = vmatmul.mubr.bf16.gmra.mrb[0].mxu0 %v5351
    %v5467 = vpop.f32.mrb[0].mxu0
    %v5468 = vadd.f32 0.0, %v5467
    %v5469 = vpop.f32.mrb[0].mxu0
    %v5470 = vpop.f32.mrb[0].mxu0
    %v5471 = vpop.f32.mrb[0].mxu0
    %5472 = vdwg.mxu0
    %vm5473 = vcmask 122880
    %v5474 = vsel %vm5473, %v530, 0.0
    %5475 = vadd.xlane.f32.xlu0 %v5474
    %v5476 = vpop.xlane.xlu0 %5475
    %v5477 = vsel %vm5473, %v531, 0.0
    %5478 = vadd.xlane.f32.xlu0 %v5477
    %v5479 = vpop.xlane.xlu0 %5478
    %v5480 = vrcp.pop %v5476
    %v5481 = vmul.f32 %v5345, %v5480
    %v5482 = vrcp.pop %v5479
    %v5483 = vmul.f32 %v5388, %v5482
    %v5484 = vmul.f32 %v5428, %v5480
    %v5485 = vmul.f32 %v5468, %v5482
    %v5486 = vtanh.pop %v748
    %v5487 = vtanh.pop %v752
    %v5488 = vtanh.pop %v750
    %v5489 = vtanh.pop %v754
    %5490 = vrot.lane.b32.xlu0 %v222, 127
    %v5491 = vpop.permute.xlu0 %5490
    %v5492 = vpack.c.bf16 %v222, %v222
    %v5493 = vpack.c.bf16 %v2731, %v2731
    %v5494 = vpack.c.bf16 %v5486, %v5486
    %v5495 = vpack.c.bf16 %v5487, %v5487
    %v5496 = vpack.c.bf16 %v5488, %v5488
    %v5497 = vpack.c.bf16 %v5489, %v5489
    %5498 = vset.pattern.permute.xlu0 0
    %5499 = vperm.xlu0 %5498, %v222
    %v5500 = vpop.permute.xlu0 %5499
    %5501 = vset.pattern.permute.xlu0 0
    %5502 = vperm.xlu0 %5501, %v5491
    %v5503 = vpop.permute.xlu0 %5502
    %v5505 = vrot.slane %v5492, 2
    %5507 = vrot.lane.b32.xlu0 %v5494, 32
    %v5508 = vpop.permute.xlu0 %5507
    %v5509 = vrot.slane %v5500, 5
    %v5512 = vsel %vm582, %v5505, 0
    %v5515 = vsel %vm582, %v5508, 0
    %5517 = vmatprep.subr.bf16.mxu0 0
    %5518 = vmatpush1.bf16.xpose.msra.mxu0 %v5515
    %5519 = vmatprep.subr.bf16.mxu0 0
    %5520 = vmatpush1.bf16.xpose.msra.mxu0 0
    %5521 = vmatprep.subr.bf16.mxu0 0
    %5522 = vmatpush1.bf16.xpose.msra.mxu0 0
    %5523 = vmatprep.subr.bf16.mxu0 0
    %5524 = vmatpush1.bf16.xpose.msra.mxu0 0
    %5525 = vmatprep.subr.bf16.mxu0 0
    %5526 = vmatpush1.bf16.xpose.msra.mxu0 0
    %5527 = vmatprep.subr.bf16.mxu0 0
    %5528 = vmatpush1.bf16.xpose.msra.mxu0 0
    %5529 = vmatprep.subr.bf16.mxu0 0
    %5530 = vmatpush1.bf16.xpose.msra.mxu0 0
    %5531 = vmatprep.subr.bf16.mxu0 0
    %5532 = vmatpush1.bf16.xpose.msra.mxu0 0
    %5533 = vmatprep.subr.bf16.mxu0 0
    %5534 = vmatpush1.bf16.xpose.msra.mxu0 0
    %5535 = vmatprep.subr.bf16.mxu0 0
    %5536 = vmatpush1.bf16.xpose.msra.mxu0 0
    %5537 = vmatprep.subr.bf16.mxu0 0
    %5538 = vmatpush1.bf16.xpose.msra.mxu0 0
    %5539 = vmatprep.subr.bf16.mxu0 0
    %5540 = vmatpush1.bf16.xpose.msra.mxu0 0
    %5541 = vmatprep.subr.bf16.mxu0 0
    %5542 = vmatpush1.bf16.xpose.msra.mxu0 0
    %5543 = vmatprep.subr.bf16.mxu0 0
    %5544 = vmatpush1.bf16.xpose.msra.mxu0 0
    %5545 = vmatprep.subr.bf16.mxu0 0
    %5546 = vmatpush1.bf16.xpose.msra.mxu0 0
    %5547 = vmatprep.subr.bf16.mxu0 0
    %5548 = vmatpush1.bf16.xpose.msra.mxu0 0
    %5549 = vmatprep.mubr.bf16.mxu0 0
    %5550 = vmatmul.mubr.bf16.gmra.mrb[0].mxu0 %v5512
    %v5551 = vpop.f32.mrb[0].mxu0
    %v5552 = vadd.f32 %v5509, %v5551
    %v5553 = vpop.f32.mrb[0].mxu0
    %v5554 = vpop.f32.mrb[0].mxu0
    %v5555 = vpop.f32.mrb[0].mxu0
    %5556 = vdwg.mxu0
    %5558 = vrot.lane.b32.xlu0 %v5495, 32
    %v5559 = vpop.permute.xlu0 %5558
    %v5561 = vsel %vm582, %v5559, 0
    %5563 = vmatprep.subr.bf16.mxu0 0
    %5564 = vmatpush1.bf16.xpose.msra.mxu0 %v5561
    %5565 = vmatprep.subr.bf16.mxu0 0
    %5566 = vmatpush1.bf16.xpose.msra.mxu0 0
    %5567 = vmatprep.subr.bf16.mxu0 0
    %5568 = vmatpush1.bf16.xpose.msra.mxu0 0
    %5569 = vmatprep.subr.bf16.mxu0 0
    %5570 = vmatpush1.bf16.xpose.msra.mxu0 0
    %5571 = vmatprep.subr.bf16.mxu0 0
    %5572 = vmatpush1.bf16.xpose.msra.mxu0 0
    %5573 = vmatprep.subr.bf16.mxu0 0
    %5574 = vmatpush1.bf16.xpose.msra.mxu0 0
    %5575 = vmatprep.subr.bf16.mxu0 0
    %5576 = vmatpush1.bf16.xpose.msra.mxu0 0
    %5577 = vmatprep.subr.bf16.mxu0 0
    %5578 = vmatpush1.bf16.xpose.msra.mxu0 0
    %5579 = vmatprep.subr.bf16.mxu0 0
    %5580 = vmatpush1.bf16.xpose.msra.mxu0 0
    %5581 = vmatprep.subr.bf16.mxu0 0
    %5582 = vmatpush1.bf16.xpose.msra.mxu0 0
    %5583 = vmatprep.subr.bf16.mxu0 0
    %5584 = vmatpush1.bf16.xpose.msra.mxu0 0
    %5585 = vmatprep.subr.bf16.mxu0 0
    %5586 = vmatpush1.bf16.xpose.msra.mxu0 0
    %5587 = vmatprep.subr.bf16.mxu0 0
    %5588 = vmatpush1.bf16.xpose.msra.mxu0 0
    %5589 = vmatprep.subr.bf16.mxu0 0
    %5590 = vmatpush1.bf16.xpose.msra.mxu0 0
    %5591 = vmatprep.subr.bf16.mxu0 0
    %5592 = vmatpush1.bf16.xpose.msra.mxu0 0
    %5593 = vmatprep.subr.bf16.mxu0 0
    %5594 = vmatpush1.bf16.xpose.msra.mxu0 0
    %5595 = vmatprep.mubr.bf16.mxu0 0
    %5596 = vmatmul.mubr.bf16.gmra.mrb[0].mxu0 %v5512
    %v5597 = vpop.f32.mrb[0].mxu0
    %v5598 = vadd.f32 %v5509, %v5597
    %v5599 = vpop.f32.mrb[0].mxu0
    %v5600 = vpop.f32.mrb[0].mxu0
    %v5601 = vpop.f32.mrb[0].mxu0
    %5602 = vdwg.mxu0
    %v5604 = vrot.slane %v5493, 2
    %5606 = vrot.lane.b32.xlu0 %v5496, 32
    %v5607 = vpop.permute.xlu0 %5606
    %v5608 = vrot.slane %v5503, 5
    %v5611 = vsel %vm582, %v5604, 0
    %v5614 = vsel %vm582, %v5607, 0
    %5616 = vmatprep.subr.bf16.mxu0 0
    %5617 = vmatpush1.bf16.xpose.msra.mxu0 %v5614
    %5618 = vmatprep.subr.bf16.mxu0 0
    %5619 = vmatpush1.bf16.xpose.msra.mxu0 0
    %5620 = vmatprep.subr.bf16.mxu0 0
    %5621 = vmatpush1.bf16.xpose.msra.mxu0 0
    %5622 = vmatprep.subr.bf16.mxu0 0
    %5623 = vmatpush1.bf16.xpose.msra.mxu0 0
    %5624 = vmatprep.subr.bf16.mxu0 0
    %5625 = vmatpush1.bf16.xpose.msra.mxu0 0
    %5626 = vmatprep.subr.bf16.mxu0 0
    %5627 = vmatpush1.bf16.xpose.msra.mxu0 0
    %5628 = vmatprep.subr.bf16.mxu0 0
    %5629 = vmatpush1.bf16.xpose.msra.mxu0 0
    %5630 = vmatprep.subr.bf16.mxu0 0
    %5631 = vmatpush1.bf16.xpose.msra.mxu0 0
    %5632 = vmatprep.subr.bf16.mxu0 0
    %5633 = vmatpush1.bf16.xpose.msra.mxu0 0
    %5634 = vmatprep.subr.bf16.mxu0 0
    %5635 = vmatpush1.bf16.xpose.msra.mxu0 0
    %5636 = vmatprep.subr.bf16.mxu0 0
    %5637 = vmatpush1.bf16.xpose.msra.mxu0 0
    %5638 = vmatprep.subr.bf16.mxu0 0
    %5639 = vmatpush1.bf16.xpose.msra.mxu0 0
    %5640 = vmatprep.subr.bf16.mxu0 0
    %5641 = vmatpush1.bf16.xpose.msra.mxu0 0
    %5642 = vmatprep.subr.bf16.mxu0 0
    %5643 = vmatpush1.bf16.xpose.msra.mxu0 0
    %5644 = vmatprep.subr.bf16.mxu0 0
    %5645 = vmatpush1.bf16.xpose.msra.mxu0 0
    %5646 = vmatprep.subr.bf16.mxu0 0
    %5647 = vmatpush1.bf16.xpose.msra.mxu0 0
    %5648 = vmatprep.mubr.bf16.mxu0 0
    %5649 = vmatmul.mubr.bf16.gmra.mrb[0].mxu0 %v5611
    %v5650 = vpop.f32.mrb[0].mxu0
    %v5651 = vadd.f32 %v5608, %v5650
    %v5652 = vpop.f32.mrb[0].mxu0
    %v5653 = vpop.f32.mrb[0].mxu0
    %v5654 = vpop.f32.mrb[0].mxu0
    %5655 = vdwg.mxu0
    %5657 = vrot.lane.b32.xlu0 %v5497, 32
    %v5658 = vpop.permute.xlu0 %5657
    %v5660 = vsel %vm582, %v5658, 0
    %5662 = vmatprep.subr.bf16.mxu0 0
    %5663 = vmatpush1.bf16.xpose.msra.mxu0 %v5660
    %5664 = vmatprep.subr.bf16.mxu0 0
    %5665 = vmatpush1.bf16.xpose.msra.mxu0 0
    %5666 = vmatprep.subr.bf16.mxu0 0
    %5667 = vmatpush1.bf16.xpose.msra.mxu0 0
    %5668 = vmatprep.subr.bf16.mxu0 0
    %5669 = vmatpush1.bf16.xpose.msra.mxu0 0
    %5670 = vmatprep.subr.bf16.mxu0 0
    %5671 = vmatpush1.bf16.xpose.msra.mxu0 0
    %5672 = vmatprep.subr.bf16.mxu0 0
    %5673 = vmatpush1.bf16.xpose.msra.mxu0 0
    %5674 = vmatprep.subr.bf16.mxu0 0
    %5675 = vmatpush1.bf16.xpose.msra.mxu0 0
    %5676 = vmatprep.subr.bf16.mxu0 0
    %5677 = vmatpush1.bf16.xpose.msra.mxu0 0
    %5678 = vmatprep.subr.bf16.mxu0 0
    %5679 = vmatpush1.bf16.xpose.msra.mxu0 0
    %5680 = vmatprep.subr.bf16.mxu0 0
    %5681 = vmatpush1.bf16.xpose.msra.mxu0 0
    %5682 = vmatprep.subr.bf16.mxu0 0
    %5683 = vmatpush1.bf16.xpose.msra.mxu0 0
    %5684 = vmatprep.subr.bf16.mxu0 0
    %5685 = vmatpush1.bf16.xpose.msra.mxu0 0
    %5686 = vmatprep.subr.bf16.mxu0 0
    %5687 = vmatpush1.bf16.xpose.msra.mxu0 0
    %5688 = vmatprep.subr.bf16.mxu0 0
    %5689 = vmatpush1.bf16.xpose.msra.mxu0 0
    %5690 = vmatprep.subr.bf16.mxu0 0
    %5691 = vmatpush1.bf16.xpose.msra.mxu0 0
    %5692 = vmatprep.subr.bf16.mxu0 0
    %5693 = vmatpush1.bf16.xpose.msra.mxu0 0
    %5694 = vmatprep.mubr.bf16.mxu0 0
    %5695 = vmatmul.mubr.bf16.gmra.mrb[0].mxu0 %v5611
    %v5696 = vpop.f32.mrb[0].mxu0
    %v5697 = vadd.f32 %v5608, %v5696
    %v5698 = vpop.f32.mrb[0].mxu0
    %v5699 = vpop.f32.mrb[0].mxu0
    %v5700 = vpop.f32.mrb[0].mxu0
    %5701 = vdwg.mxu0
    %v5702 = vsel %vm5280, %v5552, -inf
    %5703 = vmax.xlane.f32.xlu0 %v5702
    %v5704 = vpop.xlane.xlu0 %5703
    %v5705 = vsel %vm5280, %v5598, -inf
    %5706 = vmax.xlane.f32.xlu0 %v5705
    %v5707 = vpop.xlane.xlu0 %5706
    %v5708 = vsel %vm5280, %v5651, -inf
    %5709 = vmax.xlane.f32.xlu0 %v5708
    %v5710 = vpop.xlane.xlu0 %5709
    %v5711 = vsel %vm5280, %v5697, -inf
    %5712 = vmax.xlane.f32.xlu0 %v5711
    %v5713 = vpop.xlane.xlu0 %5712
    %v5714 = vsub.f32 %v5552, %v5704
    %v5715 = vsub.f32 %v5598, %v5707
    %v5716 = vsub.f32 %v5651, %v5710
    %v5717 = vsub.f32 %v5697, %v5713
    %v5718 = vmul.f32 %v5714, 1.442695
    %v5719 = vpow.pop %v5718
    %v5720 = vmul.f32 %v5715, 1.442695
    %v5721 = vpow.pop %v5720
    %v5722 = vmul.f32 %v5716, 1.442695
    %v5723 = vpow.pop %v5722
    %v5724 = vmul.f32 %v5717, 1.442695
    %v5725 = vpow.pop %v5724
    %v5726 = vmul.f32 %v5719, %v532
    %v5727 = vmul.f32 %v5721, %v533
    %v5728 = vmul.f32 %v5723, %v534
    %v5729 = vmul.f32 %v5725, %v535
    %v5730 = vsel %vm5280, %v5726, 0.0
    %5731 = vadd.xlane.f32.xlu0 %v5730
    %v5732 = vpop.xlane.xlu0 %5731
    %v5733 = vsel %vm5280, %v5727, 0.0
    %5734 = vadd.xlane.f32.xlu0 %v5733
    %v5735 = vpop.xlane.xlu0 %5734
    %v5736 = vsel %vm5280, %v5728, 0.0
    %5737 = vadd.xlane.f32.xlu0 %v5736
    %v5738 = vpop.xlane.xlu0 %5737
    %v5739 = vsel %vm5280, %v5729, 0.0
    %5740 = vadd.xlane.f32.xlu0 %v5739
    %v5741 = vpop.xlane.xlu0 %5740
    %v5742 = vadd.f32 %v5732, 1e-08
    %v5743 = vadd.f32 %v5735, 1e-08
    %v5744 = vadd.f32 %v5738, 1e-08
    %v5745 = vadd.f32 %v5741, 1e-08
    %v5746 = vrcp.pop %v5742
    %v5747 = vmul.f32 %v5726, %v5746
    %v5748 = vrcp.pop %v5743
    %v5749 = vmul.f32 %v5727, %v5748
    %v5750 = vrcp.pop %v5744
    %v5751 = vmul.f32 %v5728, %v5750
    %v5752 = vrcp.pop %v5745
    %v5753 = vmul.f32 %v5729, %v5752
    %v5754 = vpack.c.bf16 %v5747, %v5747
    %v5755 = vpack.c.bf16 %v5749, %v5749
    %v5756 = vpack.c.bf16 %v5751, %v5751
    %v5757 = vpack.c.bf16 %v5753, %v5753
    %v5758 = vpack.c.bf16 %v516, %v516
    %v5759 = vpack.c.bf16 %v519, %v519
    %v5760 = vpack.c.bf16 %v524, %v524
    %v5761 = vpack.c.bf16 %v527, %v527
    %v5763 = vsel %vm783, %v5754, 0
    %v5766 = vsel %vm3096, %v5758, 0
    %5768 = vmatprep.subr.bf16.mxu0 0
    %5769 = vmatpush1.bf16.msra.mxu0 %v5766
    %5770 = vmatprep.subr.bf16.mxu0 0
    %5771 = vmatpush1.bf16.msra.mxu0 0
    %5772 = vmatprep.subr.bf16.mxu0 0
    %5773 = vmatpush1.bf16.msra.mxu0 0
    %5774 = vmatprep.subr.bf16.mxu0 0
    %5775 = vmatpush1.bf16.msra.mxu0 0
    %5776 = vmatprep.subr.bf16.mxu0 0
    %5777 = vmatpush1.bf16.msra.mxu0 0
    %5778 = vmatprep.subr.bf16.mxu0 0
    %5779 = vmatpush1.bf16.msra.mxu0 0
    %5780 = vmatprep.subr.bf16.mxu0 0
    %5781 = vmatpush1.bf16.msra.mxu0 0
    %5782 = vmatprep.subr.bf16.mxu0 0
    %5783 = vmatpush1.bf16.msra.mxu0 0
    %5784 = vmatprep.subr.bf16.mxu0 0
    %5785 = vmatpush1.bf16.msra.mxu0 0
    %5786 = vmatprep.subr.bf16.mxu0 0
    %5787 = vmatpush1.bf16.msra.mxu0 0
    %5788 = vmatprep.subr.bf16.mxu0 0
    %5789 = vmatpush1.bf16.msra.mxu0 0
    %5790 = vmatprep.subr.bf16.mxu0 0
    %5791 = vmatpush1.bf16.msra.mxu0 0
    %5792 = vmatprep.subr.bf16.mxu0 0
    %5793 = vmatpush1.bf16.msra.mxu0 0
    %5794 = vmatprep.subr.bf16.mxu0 0
    %5795 = vmatpush1.bf16.msra.mxu0 0
    %5796 = vmatprep.subr.bf16.mxu0 0
    %5797 = vmatpush1.bf16.msra.mxu0 0
    %5798 = vmatprep.subr.bf16.mxu0 0
    %5799 = vmatpush1.bf16.msra.mxu0 0
    %5800 = vmatprep.mubr.bf16.mxu0 0
    %5801 = vmatmul.mubr.bf16.gmra.mrb[0].mxu0 %v5763
    %v5802 = vpop.f32.mrb[0].mxu0
    %v5803 = vadd.f32 0.0, %v5802
    %v5804 = vpop.f32.mrb[0].mxu0
    %v5805 = vpop.f32.mrb[0].mxu0
    %v5806 = vpop.f32.mrb[0].mxu0
    %5807 = vdwg.mxu0
    %v5809 = vsel %vm783, %v5755, 0
    %v5812 = vsel %vm3096, %v5759, 0
    %5814 = vmatprep.subr.bf16.mxu0 0
    %5815 = vmatpush1.bf16.msra.mxu0 %v5812
    %5816 = vmatprep.subr.bf16.mxu0 0
    %5817 = vmatpush1.bf16.msra.mxu0 0
    %5818 = vmatprep.subr.bf16.mxu0 0
    %5819 = vmatpush1.bf16.msra.mxu0 0
    %5820 = vmatprep.subr.bf16.mxu0 0
    %5821 = vmatpush1.bf16.msra.mxu0 0
    %5822 = vmatprep.subr.bf16.mxu0 0
    %5823 = vmatpush1.bf16.msra.mxu0 0
    %5824 = vmatprep.subr.bf16.mxu0 0
    %5825 = vmatpush1.bf16.msra.mxu0 0
    %5826 = vmatprep.subr.bf16.mxu0 0
    %5827 = vmatpush1.bf16.msra.mxu0 0
    %5828 = vmatprep.subr.bf16.mxu0 0
    %5829 = vmatpush1.bf16.msra.mxu0 0
    %5830 = vmatprep.subr.bf16.mxu0 0
    %5831 = vmatpush1.bf16.msra.mxu0 0
    %5832 = vmatprep.subr.bf16.mxu0 0
    %5833 = vmatpush1.bf16.msra.mxu0 0
    %5834 = vmatprep.subr.bf16.mxu0 0
    %5835 = vmatpush1.bf16.msra.mxu0 0
    %5836 = vmatprep.subr.bf16.mxu0 0
    %5837 = vmatpush1.bf16.msra.mxu0 0
    %5838 = vmatprep.subr.bf16.mxu0 0
    %5839 = vmatpush1.bf16.msra.mxu0 0
    %5840 = vmatprep.subr.bf16.mxu0 0
    %5841 = vmatpush1.bf16.msra.mxu0 0
    %5842 = vmatprep.subr.bf16.mxu0 0
    %5843 = vmatpush1.bf16.msra.mxu0 0
    %5844 = vmatprep.subr.bf16.mxu0 0
    %5845 = vmatpush1.bf16.msra.mxu0 0
    %5846 = vmatprep.mubr.bf16.mxu0 0
    %5847 = vmatmul.mubr.bf16.gmra.mrb[0].mxu0 %v5809
    %v5848 = vpop.f32.mrb[0].mxu0
    %v5849 = vadd.f32 0.0, %v5848
    %v5850 = vpop.f32.mrb[0].mxu0
    %v5851 = vpop.f32.mrb[0].mxu0
    %v5852 = vpop.f32.mrb[0].mxu0
    %5853 = vdwg.mxu0
    %v5855 = vsel %vm783, %v5756, 0
    %v5858 = vsel %vm3096, %v5760, 0
    %5860 = vmatprep.subr.bf16.mxu0 0
    %5861 = vmatpush1.bf16.msra.mxu0 %v5858
    %5862 = vmatprep.subr.bf16.mxu0 0
    %5863 = vmatpush1.bf16.msra.mxu0 0
    %5864 = vmatprep.subr.bf16.mxu0 0
    %5865 = vmatpush1.bf16.msra.mxu0 0
    %5866 = vmatprep.subr.bf16.mxu0 0
    %5867 = vmatpush1.bf16.msra.mxu0 0
    %5868 = vmatprep.subr.bf16.mxu0 0
    %5869 = vmatpush1.bf16.msra.mxu0 0
    %5870 = vmatprep.subr.bf16.mxu0 0
    %5871 = vmatpush1.bf16.msra.mxu0 0
    %5872 = vmatprep.subr.bf16.mxu0 0
    %5873 = vmatpush1.bf16.msra.mxu0 0
    %5874 = vmatprep.subr.bf16.mxu0 0
    %5875 = vmatpush1.bf16.msra.mxu0 0
    %5876 = vmatprep.subr.bf16.mxu0 0
    %5877 = vmatpush1.bf16.msra.mxu0 0
    %5878 = vmatprep.subr.bf16.mxu0 0
    %5879 = vmatpush1.bf16.msra.mxu0 0
    %5880 = vmatprep.subr.bf16.mxu0 0
    %5881 = vmatpush1.bf16.msra.mxu0 0
    %5882 = vmatprep.subr.bf16.mxu0 0
    %5883 = vmatpush1.bf16.msra.mxu0 0
    %5884 = vmatprep.subr.bf16.mxu0 0
    %5885 = vmatpush1.bf16.msra.mxu0 0
    %5886 = vmatprep.subr.bf16.mxu0 0
    %5887 = vmatpush1.bf16.msra.mxu0 0
    %5888 = vmatprep.subr.bf16.mxu0 0
    %5889 = vmatpush1.bf16.msra.mxu0 0
    %5890 = vmatprep.subr.bf16.mxu0 0
    %5891 = vmatpush1.bf16.msra.mxu0 0
    %5892 = vmatprep.mubr.bf16.mxu0 0
    %5893 = vmatmul.mubr.bf16.gmra.mrb[0].mxu0 %v5855
    %v5894 = vpop.f32.mrb[0].mxu0
    %v5895 = vadd.f32 0.0, %v5894
    %v5896 = vpop.f32.mrb[0].mxu0
    %v5897 = vpop.f32.mrb[0].mxu0
    %v5898 = vpop.f32.mrb[0].mxu0
    %5899 = vdwg.mxu0
    %v5901 = vsel %vm783, %v5757, 0
    %v5904 = vsel %vm3096, %v5761, 0
    %5906 = vmatprep.subr.bf16.mxu0 0
    %5907 = vmatpush1.bf16.msra.mxu0 %v5904
    %5908 = vmatprep.subr.bf16.mxu0 0
    %5909 = vmatpush1.bf16.msra.mxu0 0
    %5910 = vmatprep.subr.bf16.mxu0 0
    %5911 = vmatpush1.bf16.msra.mxu0 0
    %5912 = vmatprep.subr.bf16.mxu0 0
    %5913 = vmatpush1.bf16.msra.mxu0 0
    %5914 = vmatprep.subr.bf16.mxu0 0
    %5915 = vmatpush1.bf16.msra.mxu0 0
    %5916 = vmatprep.subr.bf16.mxu0 0
    %5917 = vmatpush1.bf16.msra.mxu0 0
    %5918 = vmatprep.subr.bf16.mxu0 0
    %5919 = vmatpush1.bf16.msra.mxu0 0
    %5920 = vmatprep.subr.bf16.mxu0 0
    %5921 = vmatpush1.bf16.msra.mxu0 0
    %5922 = vmatprep.subr.bf16.mxu0 0
    %5923 = vmatpush1.bf16.msra.mxu0 0
    %5924 = vmatprep.subr.bf16.mxu0 0
    %5925 = vmatpush1.bf16.msra.mxu0 0
    %5926 = vmatprep.subr.bf16.mxu0 0
    %5927 = vmatpush1.bf16.msra.mxu0 0
    %5928 = vmatprep.subr.bf16.mxu0 0
    %5929 = vmatpush1.bf16.msra.mxu0 0
    %5930 = vmatprep.subr.bf16.mxu0 0
    %5931 = vmatpush1.bf16.msra.mxu0 0
    %5932 = vmatprep.subr.bf16.mxu0 0
    %5933 = vmatpush1.bf16.msra.mxu0 0
    %5934 = vmatprep.subr.bf16.mxu0 0
    %5935 = vmatpush1.bf16.msra.mxu0 0
    %5936 = vmatprep.subr.bf16.mxu0 0
    %5937 = vmatpush1.bf16.msra.mxu0 0
    %5938 = vmatprep.mubr.bf16.mxu0 0
    %5939 = vmatmul.mubr.bf16.gmra.mrb[0].mxu0 %v5901
    %v5940 = vpop.f32.mrb[0].mxu0
    %v5941 = vadd.f32 0.0, %v5940
    %v5942 = vpop.f32.mrb[0].mxu0
    %v5943 = vpop.f32.mrb[0].mxu0
    %v5944 = vpop.f32.mrb[0].mxu0
    %5945 = vdwg.mxu0
    %v5946 = vtanh.pop %v626
    %v5947 = vtanh.pop %v630
    %v5948 = vtanh.pop %v636
    %v5949 = vtanh.pop %v640
    %v5950 = vpack.c.bf16 %v5947, %v5946
    %v5951 = vpack.c.bf16 %v5949, %v5948
    %5952 = vset.pattern.permute.xlu0 2
    %5953 = vperm.xlu0 %5952, %v222
    %v5954 = vpop.permute.xlu0 %5953
    %5955 = vrot.lane.b32.xlu0 %v5505, 64
    %v5956 = vpop.permute.xlu0 %5955
    %5958 = vrot.lane.b32.xlu0 %v5950, 64
    %v5959 = vpop.permute.xlu0 %5958
    %v5960 = vrot.slane %v5954, 5
    %v5963 = vsel %vm582, %v5956, 0
    %v5966 = vsel %vm582, %v5959, 0
    %5968 = vmatprep.subr.bf16.mxu0 0
    %5969 = vmatpush1.bf16.xpose.msra.mxu0 %v5966
    %5970 = vmatprep.subr.bf16.mxu0 0
    %5971 = vmatpush1.bf16.xpose.msra.mxu0 0
    %5972 = vmatprep.subr.bf16.mxu0 0
    %5973 = vmatpush1.bf16.xpose.msra.mxu0 0
    %5974 = vmatprep.subr.bf16.mxu0 0
    %5975 = vmatpush1.bf16.xpose.msra.mxu0 0
    %5976 = vmatprep.subr.bf16.mxu0 0
    %5977 = vmatpush1.bf16.xpose.msra.mxu0 0
    %5978 = vmatprep.subr.bf16.mxu0 0
    %5979 = vmatpush1.bf16.xpose.msra.mxu0 0
    %5980 = vmatprep.subr.bf16.mxu0 0
    %5981 = vmatpush1.bf16.xpose.msra.mxu0 0
    %5982 = vmatprep.subr.bf16.mxu0 0
    %5983 = vmatpush1.bf16.xpose.msra.mxu0 0
    %5984 = vmatprep.subr.bf16.mxu0 0
    %5985 = vmatpush1.bf16.xpose.msra.mxu0 0
    %5986 = vmatprep.subr.bf16.mxu0 0
    %5987 = vmatpush1.bf16.xpose.msra.mxu0 0
    %5988 = vmatprep.subr.bf16.mxu0 0
    %5989 = vmatpush1.bf16.xpose.msra.mxu0 0
    %5990 = vmatprep.subr.bf16.mxu0 0
    %5991 = vmatpush1.bf16.xpose.msra.mxu0 0
    %5992 = vmatprep.subr.bf16.mxu0 0
    %5993 = vmatpush1.bf16.xpose.msra.mxu0 0
    %5994 = vmatprep.subr.bf16.mxu0 0
    %5995 = vmatpush1.bf16.xpose.msra.mxu0 0
    %5996 = vmatprep.subr.bf16.mxu0 0
    %5997 = vmatpush1.bf16.xpose.msra.mxu0 0
    %5998 = vmatprep.subr.bf16.mxu0 0
    %5999 = vmatpush1.bf16.xpose.msra.mxu0 0
    %6000 = vmatprep.mubr.bf16.mxu0 0
    %6001 = vmatmul.mubr.bf16.gmra.mrb[0].mxu0 %v5963
    %v6002 = vpop.f32.mrb[0].mxu0
    %v6003 = vadd.f32 %v5960, %v6002
    %v6004 = vpop.f32.mrb[0].mxu0
    %v6005 = vpop.f32.mrb[0].mxu0
    %v6006 = vpop.f32.mrb[0].mxu0
    %6007 = vdwg.mxu0
    %6009 = vrot.lane.b32.xlu0 %v5951, 64
    %v6010 = vpop.permute.xlu0 %6009
    %v6012 = vsel %vm582, %v6010, 0
    %6014 = vmatprep.subr.bf16.mxu0 0
    %6015 = vmatpush1.bf16.xpose.msra.mxu0 %v6012
    %6016 = vmatprep.subr.bf16.mxu0 0
    %6017 = vmatpush1.bf16.xpose.msra.mxu0 0
    %6018 = vmatprep.subr.bf16.mxu0 0
    %6019 = vmatpush1.bf16.xpose.msra.mxu0 0
    %6020 = vmatprep.subr.bf16.mxu0 0
    %6021 = vmatpush1.bf16.xpose.msra.mxu0 0
    %6022 = vmatprep.subr.bf16.mxu0 0
    %6023 = vmatpush1.bf16.xpose.msra.mxu0 0
    %6024 = vmatprep.subr.bf16.mxu0 0
    %6025 = vmatpush1.bf16.xpose.msra.mxu0 0
    %6026 = vmatprep.subr.bf16.mxu0 0
    %6027 = vmatpush1.bf16.xpose.msra.mxu0 0
    %6028 = vmatprep.subr.bf16.mxu0 0
    %6029 = vmatpush1.bf16.xpose.msra.mxu0 0
    %6030 = vmatprep.subr.bf16.mxu0 0
    %6031 = vmatpush1.bf16.xpose.msra.mxu0 0
    %6032 = vmatprep.subr.bf16.mxu0 0
    %6033 = vmatpush1.bf16.xpose.msra.mxu0 0
    %6034 = vmatprep.subr.bf16.mxu0 0
    %6035 = vmatpush1.bf16.xpose.msra.mxu0 0
    %6036 = vmatprep.subr.bf16.mxu0 0
    %6037 = vmatpush1.bf16.xpose.msra.mxu0 0
    %6038 = vmatprep.subr.bf16.mxu0 0
    %6039 = vmatpush1.bf16.xpose.msra.mxu0 0
    %6040 = vmatprep.subr.bf16.mxu0 0
    %6041 = vmatpush1.bf16.xpose.msra.mxu0 0
    %6042 = vmatprep.subr.bf16.mxu0 0
    %6043 = vmatpush1.bf16.xpose.msra.mxu0 0
    %6044 = vmatprep.subr.bf16.mxu0 0
    %6045 = vmatpush1.bf16.xpose.msra.mxu0 0
    %6046 = vmatprep.mubr.bf16.mxu0 0
    %6047 = vmatmul.mubr.bf16.gmra.mrb[0].mxu0 %v5963
    %v6048 = vpop.f32.mrb[0].mxu0
    %v6049 = vadd.f32 %v5960, %v6048
    %v6050 = vpop.f32.mrb[0].mxu0
    %v6051 = vpop.f32.mrb[0].mxu0
    %v6052 = vpop.f32.mrb[0].mxu0
    %6053 = vdwg.mxu0
    %v6054 = vsel %vm5473, %v6003, -inf
    %6055 = vmax.xlane.f32.xlu0 %v6054
    %v6056 = vpop.xlane.xlu0 %6055
    %v6057 = vsel %vm5473, %v6049, -inf
    %6058 = vmax.xlane.f32.xlu0 %v6057
    %v6059 = vpop.xlane.xlu0 %6058
    %v6060 = vsub.f32 %v6003, %v6056
    %v6061 = vsub.f32 %v6049, %v6059
    %v6062 = vmul.f32 %v6060, 1.442695
    %v6063 = vpow.pop %v6062
    %v6064 = vmul.f32 %v6061, 1.442695
    %v6065 = vpow.pop %v6064
    %v6066 = vmul.f32 %v6063, %v530
    %v6067 = vmul.f32 %v6065, %v531
    %v6068 = vsel %vm5473, %v6066, 0.0
    %6069 = vadd.xlane.f32.xlu0 %v6068
    %v6070 = vpop.xlane.xlu0 %6069
    %v6071 = vsel %vm5473, %v6067, 0.0
    %6072 = vadd.xlane.f32.xlu0 %v6071
    %v6073 = vpop.xlane.xlu0 %6072
    %v6074 = vadd.f32 %v6070, 1e-08
    %v6075 = vadd.f32 %v6073, 1e-08
    %v6076 = vrcp.pop %v6074
    %v6077 = vmul.f32 %v6066, %v6076
    %v6078 = vrcp.pop %v6075
    %v6079 = vmul.f32 %v6067, %v6078
    %v6080 = vpack.c.bf16 %v6077, %v6077
    %v6081 = vpack.c.bf16 %v6079, %v6079
    %v6083 = vsel %vm997, %v6080, 0
    %6085 = vmatprep.subr.bf16.mxu0 0
    %6086 = vmatpush1.bf16.msra.mxu0 %v548
    %6087 = vmatprep.subr.bf16.mxu0 0
    %6088 = vmatpush1.bf16.msra.mxu0 0
    %6089 = vmatprep.subr.bf16.mxu0 0
    %6090 = vmatpush1.bf16.msra.mxu0 0
    %6091 = vmatprep.subr.bf16.mxu0 0
    %6092 = vmatpush1.bf16.msra.mxu0 0
    %6093 = vmatprep.subr.bf16.mxu0 0
    %6094 = vmatpush1.bf16.msra.mxu0 0
    %6095 = vmatprep.subr.bf16.mxu0 0
    %6096 = vmatpush1.bf16.msra.mxu0 0
    %6097 = vmatprep.subr.bf16.mxu0 0
    %6098 = vmatpush1.bf16.msra.mxu0 0
    %6099 = vmatprep.subr.bf16.mxu0 0
    %6100 = vmatpush1.bf16.msra.mxu0 0
    %6101 = vmatprep.subr.bf16.mxu0 0
    %6102 = vmatpush1.bf16.msra.mxu0 0
    %6103 = vmatprep.subr.bf16.mxu0 0
    %6104 = vmatpush1.bf16.msra.mxu0 0
    %6105 = vmatprep.subr.bf16.mxu0 0
    %6106 = vmatpush1.bf16.msra.mxu0 0
    %6107 = vmatprep.subr.bf16.mxu0 0
    %6108 = vmatpush1.bf16.msra.mxu0 0
    %6109 = vmatprep.subr.bf16.mxu0 0
    %6110 = vmatpush1.bf16.msra.mxu0 0
    %6111 = vmatprep.subr.bf16.mxu0 0
    %6112 = vmatpush1.bf16.msra.mxu0 0
    %6113 = vmatprep.subr.bf16.mxu0 0
    %6114 = vmatpush1.bf16.msra.mxu0 0
    %6115 = vmatprep.subr.bf16.mxu0 0
    %6116 = vmatpush1.bf16.msra.mxu0 0
    %6117 = vmatprep.mubr.bf16.mxu0 0
    %6118 = vmatmul.mubr.bf16.gmra.mrb[0].mxu0 %v6083
    %v6119 = vpop.f32.mrb[0].mxu0
    %v6120 = vadd.f32 0.0, %v6119
    %v6121 = vpop.f32.mrb[0].mxu0
    %v6122 = vpop.f32.mrb[0].mxu0
    %v6123 = vpop.f32.mrb[0].mxu0
    %6124 = vdwg.mxu0
    %v6126 = vsel %vm997, %v6081, 0
    %6128 = vmatprep.subr.bf16.mxu0 0
    %6129 = vmatpush1.bf16.msra.mxu0 %v549
    %6130 = vmatprep.subr.bf16.mxu0 0
    %6131 = vmatpush1.bf16.msra.mxu0 0
    %6132 = vmatprep.subr.bf16.mxu0 0
    %6133 = vmatpush1.bf16.msra.mxu0 0
    %6134 = vmatprep.subr.bf16.mxu0 0
    %6135 = vmatpush1.bf16.msra.mxu0 0
    %6136 = vmatprep.subr.bf16.mxu0 0
    %6137 = vmatpush1.bf16.msra.mxu0 0
    %6138 = vmatprep.subr.bf16.mxu0 0
    %6139 = vmatpush1.bf16.msra.mxu0 0
    %6140 = vmatprep.subr.bf16.mxu0 0
    %6141 = vmatpush1.bf16.msra.mxu0 0
    %6142 = vmatprep.subr.bf16.mxu0 0
    %6143 = vmatpush1.bf16.msra.mxu0 0
    %6144 = vmatprep.subr.bf16.mxu0 0
    %6145 = vmatpush1.bf16.msra.mxu0 0
    %6146 = vmatprep.subr.bf16.mxu0 0
    %6147 = vmatpush1.bf16.msra.mxu0 0
    %6148 = vmatprep.subr.bf16.mxu0 0
    %6149 = vmatpush1.bf16.msra.mxu0 0
    %6150 = vmatprep.subr.bf16.mxu0 0
    %6151 = vmatpush1.bf16.msra.mxu0 0
    %6152 = vmatprep.subr.bf16.mxu0 0
    %6153 = vmatpush1.bf16.msra.mxu0 0
    %6154 = vmatprep.subr.bf16.mxu0 0
    %6155 = vmatpush1.bf16.msra.mxu0 0
    %6156 = vmatprep.subr.bf16.mxu0 0
    %6157 = vmatpush1.bf16.msra.mxu0 0
    %6158 = vmatprep.subr.bf16.mxu0 0
    %6159 = vmatpush1.bf16.msra.mxu0 0
    %6160 = vmatprep.mubr.bf16.mxu0 0
    %6161 = vmatmul.mubr.bf16.gmra.mrb[0].mxu0 %v6126
    %v6162 = vpop.f32.mrb[0].mxu0
    %v6163 = vadd.f32 0.0, %v6162
    %v6164 = vpop.f32.mrb[0].mxu0
    %v6165 = vpop.f32.mrb[0].mxu0
    %v6166 = vpop.f32.mrb[0].mxu0
    %6167 = vdwg.mxu0
    %v6170 = vrot.slane %v5483, 7
    %vm6171 = vcmask 1041409
    %v6172 = vsel %vm6171, %v6170, %v5481
    %v6176 = vrot.slane %v5485, 7
    %v6177 = vsel %vm6171, %v6176, %v5484
    %6178 = vrot.lane.b32.xlu0 %v6177, 32
    %v6179 = vpop.permute.xlu0 %6178
    %v6183 = vrot.slane %v5849, 7
    %v6184 = vsel %vm6171, %v6183, %v5803
    %6185 = vrot.lane.b32.xlu0 %v6184, 64
    %v6186 = vpop.permute.xlu0 %6185
    %v6190 = vrot.slane %v5941, 7
    %v6191 = vsel %vm6171, %v6190, %v5895
    %6192 = vrot.lane.b32.xlu0 %v6191, 96
    %v6193 = vpop.permute.xlu0 %6192
    %v6195 = vsel %vm582, %v6172, %v6179
    %v6196 = vsel %vm709, %v6195, %v6186
    %vm6197 = vcmask 785408
    %v6198 = vsel %vm6197, %v6196, %v6193
    %v6199 = vpack.c.bf16 %v6198, %v6198
    %v6200 = vld [vmem:[#allocation19] sm:$0xff]
    %v6201 = vld [vmem:[#allocation19 + $0x8] sm:$0xff]
    %v6202 = vld [vmem:[#allocation19 + $0x10] sm:$0xff]
    %v6203 = vld [vmem:[#allocation19 + $0x18] sm:$0xff]
    %v6204 = vld [vmem:[#allocation19 + $0x20] sm:$0xff]
    %v6205 = vld [vmem:[#allocation19 + $0x28] sm:$0xff]
    %v6206 = vld [vmem:[#allocation19 + $0x30] sm:$0xff]
    %v6207 = vld [vmem:[#allocation19 + $0x38] sm:$0xff]
    %v6208 = vld [vmem:[#allocation19 + $0x40] sm:$0xff]
    %v6209 = vld [vmem:[#allocation19 + $0x48] sm:$0xff]
    %v6210 = vld [vmem:[#allocation19 + $0x50] sm:$0xff]
    %v6211 = vld [vmem:[#allocation19 + $0x58] sm:$0xff]
    %v6212 = vld [vmem:[#allocation19 + $0x60] sm:$0xff]
    %v6213 = vld [vmem:[#allocation19 + $0x68] sm:$0xff]
    %v6214 = vld [vmem:[#allocation19 + $0x70] sm:$0xff]
    %v6215 = vld [vmem:[#allocation19 + $0x78] sm:$0xff]
    %v6216 = vlaneseq
    %v6217 = vshrl.u32 %v6216, 7
    %v6218 = vsub.s32 6, %v6217
    %v6219 = vrot.slane %v222, %v6218
    %v6220 = vlaneseq
    %v6221 = vshrl.u32 %v6220, 7
    %v6222 = vsub.s32 6, %v6221
    %v6223 = vrot.slane %v223, %v6222
    %v6240 = vunpack.c.l.b16 %v6200
    %v6241 = vunpack.c.h.b16 %v6200
    %v6242 = vunpack.c.l.b16 %v6201
    %v6243 = vunpack.c.h.b16 %v6201
    %v6244 = vunpack.c.l.b16 %v6202
    %v6245 = vunpack.c.h.b16 %v6202
    %v6246 = vunpack.c.l.b16 %v6203
    %v6247 = vunpack.c.h.b16 %v6203
    %v6248 = vunpack.c.l.b16 %v6204
    %v6249 = vunpack.c.h.b16 %v6204
    %v6250 = vunpack.c.l.b16 %v6205
    %v6251 = vunpack.c.h.b16 %v6205
    %v6252 = vunpack.c.l.b16 %v6206
    %v6253 = vunpack.c.h.b16 %v6206
    %v6254 = vunpack.c.l.b16 %v6207
    %v6255 = vunpack.c.h.b16 %v6207
    %v6256 = vunpack.c.l.b16 %v6208
    %v6257 = vunpack.c.h.b16 %v6208
    %v6258 = vunpack.c.l.b16 %v6209
    %v6259 = vunpack.c.h.b16 %v6209
    %v6260 = vunpack.c.l.b16 %v6210
    %v6261 = vunpack.c.h.b16 %v6210
    %v6262 = vunpack.c.l.b16 %v6211
    %v6263 = vunpack.c.h.b16 %v6211
    %v6264 = vunpack.c.l.b16 %v6212
    %v6265 = vunpack.c.h.b16 %v6212
    %v6266 = vunpack.c.l.b16 %v6213
    %v6267 = vunpack.c.h.b16 %v6213
    %v6268 = vunpack.c.l.b16 %v6214
    %v6269 = vunpack.c.h.b16 %v6214
    %v6270 = vunpack.c.l.b16 %v6215
    %v6271 = vunpack.c.h.b16 %v6215
    %v6272 = vpack.c.b16 %v6242, %v6240
    %v6273 = vpack.c.b16 %v6243, %v6241
    %v6274 = vpack.c.b16 %v6246, %v6244
    %v6275 = vpack.c.b16 %v6247, %v6245
    %v6276 = vpack.c.b16 %v6250, %v6248
    %v6277 = vpack.c.b16 %v6251, %v6249
    %v6278 = vpack.c.b16 %v6254, %v6252
    %v6279 = vpack.c.b16 %v6255, %v6253
    %v6280 = vpack.c.b16 %v6258, %v6256
    %v6281 = vpack.c.b16 %v6259, %v6257
    %v6282 = vpack.c.b16 %v6262, %v6260
    %v6283 = vpack.c.b16 %v6263, %v6261
    %v6284 = vpack.c.b16 %v6266, %v6264
    %v6285 = vpack.c.b16 %v6267, %v6265
    %v6286 = vpack.c.b16 %v6270, %v6268
    %v6287 = vpack.c.b16 %v6271, %v6269
    %6304 = vmatprep.subr.bf16.mxu0 %v6273
    %6305 = vmatpush1.bf16.msra.mxu0 %v6272
    %6306 = vmatprep.subr.bf16.mxu0 %v6275
    %6307 = vmatpush1.bf16.msra.mxu0 %v6274
    %6308 = vmatprep.subr.bf16.mxu0 %v6277
    %6309 = vmatpush1.bf16.msra.mxu0 %v6276
    %6310 = vmatprep.subr.bf16.mxu0 %v6279
    %6311 = vmatpush1.bf16.msra.mxu0 %v6278
    %6312 = vmatprep.subr.bf16.mxu0 %v6281
    %6313 = vmatpush1.bf16.msra.mxu0 %v6280
    %6314 = vmatprep.subr.bf16.mxu0 %v6283
    %6315 = vmatpush1.bf16.msra.mxu0 %v6282
    %6316 = vmatprep.subr.bf16.mxu0 %v6285
    %6317 = vmatpush1.bf16.msra.mxu0 %v6284
    %6318 = vmatprep.subr.bf16.mxu0 %v6287
    %6319 = vmatpush1.bf16.msra.mxu0 %v6286
    %6320 = vmatprep.subr.bf16.mxu0 0
    %6321 = vmatpush1.bf16.msra.mxu0 0
    %6322 = vmatprep.subr.bf16.mxu0 0
    %6323 = vmatpush1.bf16.msra.mxu0 0
    %6324 = vmatprep.subr.bf16.mxu0 0
    %6325 = vmatpush1.bf16.msra.mxu0 0
    %6326 = vmatprep.subr.bf16.mxu0 0
    %6327 = vmatpush1.bf16.msra.mxu0 0
    %6328 = vmatprep.subr.bf16.mxu0 0
    %6329 = vmatpush1.bf16.msra.mxu0 0
    %6330 = vmatprep.subr.bf16.mxu0 0
    %6331 = vmatpush1.bf16.msra.mxu0 0
    %6332 = vmatprep.subr.bf16.mxu0 0
    %6333 = vmatpush1.bf16.msra.mxu0 0
    %6334 = vmatprep.subr.bf16.mxu0 0
    %6335 = vmatpush1.bf16.msra.mxu0 0
    %6336 = vmatprep.mubr.bf16.mxu0 0
    %6337 = vmatmul.mubr.bf16.gmra.mrb[0].mxu0 %v6199
    %v6338 = vpop.f32.mrb[0].mxu0
    %v6339 = vadd.f32 %v6219, %v6338
    %v6340 = vpop.f32.mrb[0].mxu0
    %v6341 = vadd.f32 %v6223, %v6340
    %v6342 = vpop.f32.mrb[0].mxu0
    %v6343 = vpop.f32.mrb[0].mxu0
    %6344 = vdwg.mxu0
    %v6345 = vmax.f32 %v6339, 0.0
    %v6346 = vmax.f32 %v6341, 0.0
    %v6347 = vlaneseq
    %v6348 = vshrl.u32 %v6347, 7
    %v6349 = vsub.s32 7, %v6348
    %v6350 = vrot.slane %v222, %v6349
    %v6351 = vmul.f32 %v6345, %v6350
    %vm6352 = vcmask 254976
    %v6353 = vsel %vm6352, %v6351, 0.0
    %6354 = vadd.xlane.f32.xlu0 %v6353
    %v6355 = vpop.xlane.xlu0 %6354
    %v6356 = vlaneseq
    %v6357 = vshrl.u32 %v6356, 7
    %v6358 = vsub.s32 5, %v6357
    %v6359 = vrot.slane %v222, %v6358
    %v6360 = vadd.f32 %v6355, %v6359
    %v6361 = vxor.u32 %v6360, 2147483648
    %v6362 = vmul.f32 %v6361, 1.442695
    %v6363 = vpow.pop %v6362
    %v6364 = vadd.f32 %v6363, 1.0
    %v6365 = vrcp.pop %v6364
    %v6366 = vmul.f32 1.0, %v6365
    %6368 = vrot.lane.b32.xlu0 %v6350, 32
    %v6369 = vpop.permute.xlu0 %6368
    %v6371 = vmul.f32 %v6345, %v6369
    %6373 = vrot.lane.b32.xlu0 %v6371, 64
    %v6374 = vpop.permute.xlu0 %6373
    %v6376 = vsel %vm6352, %v6374, 0.0
    %6377 = vadd.xlane.f32.xlu0 %v6376
    %v6378 = vpop.xlane.xlu0 %6377
    %v6379 = vadd.f32 %v6378, %v6359
    %v6380 = vxor.u32 %v6379, 2147483648
    %v6381 = vmul.f32 %v6380, 1.442695
    %v6382 = vpow.pop %v6381
    %v6383 = vadd.f32 %v6382, 1.0
    %v6384 = vrcp.pop %v6383
    %v6385 = vmul.f32 1.0, %v6384
    %v6386 = vpack.c.bf16 %v6346, %v6346
    %v6395 = vunpack.c.h.b16 %v225
    %v6396 = vunpack.c.h.b16 %v226
    %v6397 = vunpack.c.h.b16 %v227
    %v6398 = vunpack.c.h.b16 %v228
    %v6399 = vunpack.c.h.b16 %v229
    %v6400 = vunpack.c.h.b16 %v230
    %v6401 = vunpack.c.h.b16 %v231
    %v6402 = vunpack.c.h.b16 %v232
    %v6403 = vpack.c.b16 %v6396, %v6395
    %v6404 = vpack.c.b16 %v6398, %v6397
    %v6405 = vpack.c.b16 %v6400, %v6399
    %v6406 = vpack.c.b16 %v6402, %v6401
    %v6412 = vsel %vm709, %v6386, 0
    %6414 = vmatprep.subr.bf16.mxu0 0
    %6415 = vmatpush1.bf16.msra.mxu0 %v6403
    %6416 = vmatprep.subr.bf16.mxu0 0
    %6417 = vmatpush1.bf16.msra.mxu0 %v6404
    %6418 = vmatprep.subr.bf16.mxu0 0
    %6419 = vmatpush1.bf16.msra.mxu0 %v6405
    %6420 = vmatprep.subr.bf16.mxu0 0
    %6421 = vmatpush1.bf16.msra.mxu0 %v6406
    %6422 = vmatprep.subr.bf16.mxu0 0
    %6423 = vmatpush1.bf16.msra.mxu0 0
    %6424 = vmatprep.subr.bf16.mxu0 0
    %6425 = vmatpush1.bf16.msra.mxu0 0
    %6426 = vmatprep.subr.bf16.mxu0 0
    %6427 = vmatpush1.bf16.msra.mxu0 0
    %6428 = vmatprep.subr.bf16.mxu0 0
    %6429 = vmatpush1.bf16.msra.mxu0 0
    %6430 = vmatprep.subr.bf16.mxu0 0
    %6431 = vmatpush1.bf16.msra.mxu0 0
    %6432 = vmatprep.subr.bf16.mxu0 0
    %6433 = vmatpush1.bf16.msra.mxu0 0
    %6434 = vmatprep.subr.bf16.mxu0 0
    %6435 = vmatpush1.bf16.msra.mxu0 0
    %6436 = vmatprep.subr.bf16.mxu0 0
    %6437 = vmatpush1.bf16.msra.mxu0 0
    %6438 = vmatprep.subr.bf16.mxu0 0
    %6439 = vmatpush1.bf16.msra.mxu0 0
    %6440 = vmatprep.subr.bf16.mxu0 0
    %6441 = vmatpush1.bf16.msra.mxu0 0
    %6442 = vmatprep.subr.bf16.mxu0 0
    %6443 = vmatpush1.bf16.msra.mxu0 0
    %6444 = vmatprep.subr.bf16.mxu0 0
    %6445 = vmatpush1.bf16.msra.mxu0 0
    %6446 = vmatprep.mubr.bf16.mxu0 0
    %6447 = vmatmul.mubr.bf16.gmra.mrb[0].mxu0 %v6412
    %v6448 = vpop.f32.mrb[0].mxu0
    %v6449 = vadd.f32 0.0, %v6448
    %v6450 = vpop.f32.mrb[0].mxu0
    %v6451 = vpop.f32.mrb[0].mxu0
    %v6452 = vpop.f32.mrb[0].mxu0
    %6453 = vdwg.mxu0
    %6455 = vrot.lane.b32.xlu0 %v6359, 112
    %v6456 = vpop.permute.xlu0 %6455
    %v6458 = vadd.f32 %v6449, %v6456
    %6460 = vrot.lane.b32.xlu0 %v6339, 96
    %v6461 = vpop.permute.xlu0 %6460
    %v6463 = vsel %vm6352, %v6461, 0.0
    %6464 = vadd.xlane.f32.xlu0 %v6463
    %v6465 = vpop.xlane.xlu0 %6464
    %v6466 = vrcp.pop 32.0
    %v6467 = vmul.f32 %v6465, %v6466
    %v6468 = vsub.f32 %v6339, %v6467
    %v6469 = vmul.f32 %v6468, %v6468
    %6471 = vrot.lane.b32.xlu0 %v6469, 96
    %v6472 = vpop.permute.xlu0 %6471
    %v6474 = vsel %vm6352, %v6472, 0.0
    %6475 = vadd.xlane.f32.xlu0 %v6474
    %v6476 = vpop.xlane.xlu0 %6475
    %v6477 = vmul.f32 %v6476, %v6466
    %v6478 = vadd.f32 %v6477, 1e-05
    %v6479 = vrsqrt.pop %v6478
    %v6480 = vmul.f32 %v6468, %v6479
    %v6481 = vlaneseq
    %v6482 = vshrl.u32 %v6481, 7
    %v6483 = vsub.s32 0, %v6482
    %v6484 = vrot.slane %v224, %v6483
    %6486 = vrot.lane.b32.xlu0 %v6484, 32
    %v6487 = vpop.permute.xlu0 %6486
    %v6489 = vmul.f32 %v6480, %v6487
    %6490 = vrot.lane.b32.xlu0 %v6484, 96
    %v6491 = vpop.permute.xlu0 %6490
    %v6493 = vadd.f32 %v6489, %v6491
    %v6494 = vmax.f32 %v6493, 0.0
    %6495 = vrot.lane.b32.xlu0 %v6339, 32
    %v6496 = vpop.permute.xlu0 %6495
    %v6498 = vsel %vm6352, %v6496, 0.0
    %6499 = vadd.xlane.f32.xlu0 %v6498
    %v6500 = vpop.xlane.xlu0 %6499
    %v6501 = vmul.f32 %v6500, %v6466
    %v6502 = vsub.f32 %v6339, %v6501
    %v6503 = vmul.f32 %v6502, %v6502
    %6505 = vrot.lane.b32.xlu0 %v6503, 32
    %v6506 = vpop.permute.xlu0 %6505
    %v6508 = vsel %vm6352, %v6506, 0.0
    %6509 = vadd.xlane.f32.xlu0 %v6508
    %v6510 = vpop.xlane.xlu0 %6509
    %v6511 = vmul.f32 %v6510, %v6466
    %v6512 = vadd.f32 %v6511, 1e-05
    %v6513 = vrsqrt.pop %v6512
    %v6514 = vmul.f32 %v6502, %v6513
    %6515 = vrot.lane.b32.xlu0 %v6484, 64
    %v6516 = vpop.permute.xlu0 %6515
    %v6518 = vmul.f32 %v6514, %v6516
    %v6519 = vadd.f32 %v6518, %v6484
    %v6520 = vmax.f32 %v6519, 0.0
    %6522 = vrot.lane.b32.xlu0 %v6494, 96
    %v6523 = vpop.permute.xlu0 %6522
    %6526 = vrot.lane.b32.xlu0 %v6520, 64
    %v6527 = vpop.permute.xlu0 %6526
    %v6529 = vsel %vm582, %v6523, %v6527
    %v6530 = vpack.c.bf16 %v6529, %v6529
    %v6531 = vlaneseq
    %v6532 = vshrl.u32 %v6531, 7
    %v6533 = vsub.s32 1, %v6532
    %v6534 = vrot.slane %v224, %v6533
    %v6535 = vunpack.c.l.b16 %v225
    %v6536 = vunpack.c.l.b16 %v226
    %v6537 = vunpack.c.l.b16 %v227
    %v6538 = vunpack.c.l.b16 %v228
    %v6539 = vunpack.c.l.b16 %v229
    %v6540 = vunpack.c.l.b16 %v230
    %v6541 = vunpack.c.l.b16 %v231
    %v6542 = vunpack.c.l.b16 %v232
    %v6543 = vpack.c.b16 %v6536, %v6535
    %v6544 = vpack.c.b16 %v6538, %v6537
    %v6545 = vpack.c.b16 %v6540, %v6539
    %v6546 = vpack.c.b16 %v6542, %v6541
    %v6552 = vsel %vm709, %v6530, 0
    %6554 = vmatprep.subr.bf16.mxu0 0
    %6555 = vmatpush1.bf16.msra.mxu0 %v6543
    %6556 = vmatprep.subr.bf16.mxu0 0
    %6557 = vmatpush1.bf16.msra.mxu0 %v6544
    %6558 = vmatprep.subr.bf16.mxu0 0
    %6559 = vmatpush1.bf16.msra.mxu0 %v6545
    %6560 = vmatprep.subr.bf16.mxu0 0
    %6561 = vmatpush1.bf16.msra.mxu0 %v6546
    %6562 = vmatprep.subr.bf16.mxu0 0
    %6563 = vmatpush1.bf16.msra.mxu0 0
    %6564 = vmatprep.subr.bf16.mxu0 0
    %6565 = vmatpush1.bf16.msra.mxu0 0
    %6566 = vmatprep.subr.bf16.mxu0 0
    %6567 = vmatpush1.bf16.msra.mxu0 0
    %6568 = vmatprep.subr.bf16.mxu0 0
    %6569 = vmatpush1.bf16.msra.mxu0 0
    %6570 = vmatprep.subr.bf16.mxu0 0
    %6571 = vmatpush1.bf16.msra.mxu0 0
    %6572 = vmatprep.subr.bf16.mxu0 0
    %6573 = vmatpush1.bf16.msra.mxu0 0
    %6574 = vmatprep.subr.bf16.mxu0 0
    %6575 = vmatpush1.bf16.msra.mxu0 0
    %6576 = vmatprep.subr.bf16.mxu0 0
    %6577 = vmatpush1.bf16.msra.mxu0 0
    %6578 = vmatprep.subr.bf16.mxu0 0
    %6579 = vmatpush1.bf16.msra.mxu0 0
    %6580 = vmatprep.subr.bf16.mxu0 0
    %6581 = vmatpush1.bf16.msra.mxu0 0
    %6582 = vmatprep.subr.bf16.mxu0 0
    %6583 = vmatpush1.bf16.msra.mxu0 0
    %6584 = vmatprep.subr.bf16.mxu0 0
    %6585 = vmatpush1.bf16.msra.mxu0 0
    %6586 = vmatprep.mubr.bf16.mxu0 0
    %6587 = vmatmul.mubr.bf16.gmra.mrb[0].mxu0 %v6552
    %v6588 = vpop.f32.mrb[0].mxu0
    %v6589 = vadd.f32 %v6534, %v6588
    %v6590 = vpop.f32.mrb[0].mxu0
    %v6591 = vpop.f32.mrb[0].mxu0
    %v6592 = vpop.f32.mrb[0].mxu0
    %6593 = vdwg.mxu0
    %vm6594 = vcmask 517120
    %v6595 = vsel %vm6594, %v6589, 0.0
    %6596 = vadd.xlane.f32.xlu0 %v6595
    %v6597 = vpop.xlane.xlu0 %6596
    %v6598 = vrcp.pop 64.0
    %v6599 = vmul.f32 %v6597, %v6598
    %v6600 = vsub.f32 %v6589, %v6599
    %v6601 = vmul.f32 %v6600, %v6600
    %v6602 = vsel %vm6594, %v6601, 0.0
    %6603 = vadd.xlane.f32.xlu0 %v6602
    %v6604 = vpop.xlane.xlu0 %6603
    %v6605 = vmul.f32 %v6604, %v6598
    %v6606 = vadd.f32 %v6605, 1e-05
    %v6607 = vrsqrt.pop %v6606
    %v6608 = vmul.f32 %v6600, %v6607
    %v6609 = vlaneseq
    %v6610 = vshrl.u32 %v6609, 7
    %v6611 = vsub.s32 2, %v6610
    %v6612 = vrot.slane %v224, %v6611
    %v6613 = vmul.f32 %v6608, %v6612
    %v6614 = vlaneseq
    %v6615 = vshrl.u32 %v6614, 7
    %v6616 = vsub.s32 3, %v6615
    %v6617 = vrot.slane %v224, %v6616
    %v6618 = vadd.f32 %v6613, %v6617
    %v6619 = vmax.f32 %v6618, 0.0
    %6621 = vrot.lane.b32.xlu0 %v6589, 64
    %v6622 = vpop.permute.xlu0 %6621
    %v6624 = vsel %vm6594, %v6622, 0.0
    %6625 = vadd.xlane.f32.xlu0 %v6624
    %v6626 = vpop.xlane.xlu0 %6625
    %v6627 = vmul.f32 %v6626, %v6598
    %v6628 = vsub.f32 %v6589, %v6627
    %v6629 = vmul.f32 %v6628, %v6628
    %6631 = vrot.lane.b32.xlu0 %v6629, 64
    %v6632 = vpop.permute.xlu0 %6631
    %v6634 = vsel %vm6594, %v6632, 0.0
    %6635 = vadd.xlane.f32.xlu0 %v6634
    %v6636 = vpop.xlane.xlu0 %6635
    %v6637 = vmul.f32 %v6636, %v6598
    %v6638 = vadd.f32 %v6637, 1e-05
    %v6639 = vrsqrt.pop %v6638
    %v6640 = vmul.f32 %v6628, %v6639
    %v6641 = vmul.f32 %v6640, %v6612
    %v6642 = vadd.f32 %v6641, %v6617
    %v6643 = vmax.f32 %v6642, 0.0
    %v6644 = vlaneseq
    %v6645 = vshrl.u32 %v6644, 7
    %v6646 = vsub.s32 4, %v6645
    %v6647 = vrot.slane %v224, %v6646
    %v6648 = vmul.f32 %v6619, %v6647
    %v6649 = vsel %vm6594, %v6648, 0.0
    %6650 = vadd.xlane.f32.xlu0 %v6649
    %v6651 = vpop.xlane.xlu0 %6650
    %v6652 = vadd.f32 %v6651, %v6359
    %v6653 = vxor.u32 %v6652, 2147483648
    %v6654 = vmul.f32 %v6653, 1.442695
    %v6655 = vpow.pop %v6654
    %v6656 = vadd.f32 %v6655, 1.0
    %v6657 = vrcp.pop %v6656
    %v6658 = vmul.f32 1.0, %v6657
    %v6659 = vmul.f32 %v6643, %v6647
    %6661 = vrot.lane.b32.xlu0 %v6659, 64
    %v6662 = vpop.permute.xlu0 %6661
    %v6664 = vsel %vm6594, %v6662, 0.0
    %6665 = vadd.xlane.f32.xlu0 %v6664
    %v6666 = vpop.xlane.xlu0 %6665
    %v6667 = vadd.f32 %v6666, %v6359
    %v6668 = vxor.u32 %v6667, 2147483648
    %v6669 = vmul.f32 %v6668, 1.442695
    %v6670 = vpow.pop %v6669
    %v6671 = vadd.f32 %v6670, 1.0
    %v6672 = vrcp.pop %v6671
    %v6673 = vmul.f32 1.0, %v6672
    %6675 = vset.pattern.permute.xlu0 7
    %6676 = vperm.xlu0 %6675, %v6658
    %v6677 = vpop.permute.xlu0 %6676
    %v6681 = vrot.slane %v5296, 7
    %v6682 = vsel %vm6171, %v6681, %v5294
    %v6684 = vmul.f32 %v6677, %v6682
    %6686 = vset.pattern.permute.xlu0 8
    %6687 = vperm.xlu0 %6686, %v6673
    %v6688 = vpop.permute.xlu0 %6687
    %v6692 = vrot.slane %v5300, 7
    %v6693 = vsel %vm6171, %v6692, %v5298
    %v6695 = vmul.f32 %v6688, %v6693
    %v6698 = vrot.slane %v6163, 7
    %v6699 = vsel %vm6171, %v6698, %v6120
    %v6702 = vrot.slane %v6684, 6
    %v6705 = vrot.slane %v6695, 4
    %vm6707 = vcmask 1041408
    %v6708 = vsel %vm6707, %v6699, %v6702
    %v6709 = vsel %vm3096, %v6708, %v6705
    %v6710 = vpack.c.bf16 %v6709, %v6709
    %v6711 = vlaneseq
    %v6712 = vshrl.u32 %v6711, 7
    %v6713 = vsub.s32 5, %v6712
    %v6714 = vrot.slane %v224, %v6713
    %6715 = vrot.lane.b32.xlu0 %v6403, 112
    %v6716 = vpop.permute.xlu0 %6715
    %6717 = vrot.lane.b32.xlu0 %v6404, 112
    %v6718 = vpop.permute.xlu0 %6717
    %v6722 = vsel %vm582, %v6710, 0
    %6724 = vmatprep.subr.bf16.mxu0 0
    %6725 = vmatpush1.bf16.msra.mxu0 %v6716
    %6726 = vmatprep.subr.bf16.mxu0 0
    %6727 = vmatpush1.bf16.msra.mxu0 %v6718
    %6728 = vmatprep.subr.bf16.mxu0 0
    %6729 = vmatpush1.bf16.msra.mxu0 0
    %6730 = vmatprep.subr.bf16.mxu0 0
    %6731 = vmatpush1.bf16.msra.mxu0 0
    %6732 = vmatprep.subr.bf16.mxu0 0
    %6733 = vmatpush1.bf16.msra.mxu0 0
    %6734 = vmatprep.subr.bf16.mxu0 0
    %6735 = vmatpush1.bf16.msra.mxu0 0
    %6736 = vmatprep.subr.bf16.mxu0 0
    %6737 = vmatpush1.bf16.msra.mxu0 0
    %6738 = vmatprep.subr.bf16.mxu0 0
    %6739 = vmatpush1.bf16.msra.mxu0 0
    %6740 = vmatprep.subr.bf16.mxu0 0
    %6741 = vmatpush1.bf16.msra.mxu0 0
    %6742 = vmatprep.subr.bf16.mxu0 0
    %6743 = vmatpush1.bf16.msra.mxu0 0
    %6744 = vmatprep.subr.bf16.mxu0 0
    %6745 = vmatpush1.bf16.msra.mxu0 0
    %6746 = vmatprep.subr.bf16.mxu0 0
    %6747 = vmatpush1.bf16.msra.mxu0 0
    %6748 = vmatprep.subr.bf16.mxu0 0
    %6749 = vmatpush1.bf16.msra.mxu0 0
    %6750 = vmatprep.subr.bf16.mxu0 0
    %6751 = vmatpush1.bf16.msra.mxu0 0
    %6752 = vmatprep.subr.bf16.mxu0 0
    %6753 = vmatpush1.bf16.msra.mxu0 0
    %6754 = vmatprep.subr.bf16.mxu0 0
    %6755 = vmatpush1.bf16.msra.mxu0 0
    %6756 = vmatprep.mubr.bf16.mxu0 0
    %6757 = vmatmul.mubr.bf16.gmra.mrb[0].mxu0 %v6722
    %v6758 = vpop.f32.mrb[0].mxu0
    %v6759 = vadd.f32 %v6714, %v6758
    %v6760 = vpop.f32.mrb[0].mxu0
    %v6761 = vpop.f32.mrb[0].mxu0
    %v6762 = vpop.f32.mrb[0].mxu0
    %6763 = vdwg.mxu0
    %v6764 = vtanh.pop %v6759
    %v6765 = vlaneseq
    %v6766 = vshrl.u32 %v6765, 7
    %v6767 = vsub.s32 4, %v6766
    %v6768 = vrot.slane %v222, %v6767
    %6770 = vrot.lane.b32.xlu0 %v6768, 32
    %v6771 = vpop.permute.xlu0 %6770
    %v6773 = vmul.f32 %v6764, %v6771
    %vm6774 = vcmask 259072
    %v6775 = vsel %vm6774, %v6773, 0.0
    %6776 = vadd.xlane.f32.xlu0 %v6775
    %v6777 = vpop.xlane.xlu0 %6776
    %v6778 = vadd.f32 %v6777, %v6359
    %v6780 = vrot.slane %v6778, 2
    %v6782 = vmax.f32 %v6778, %v6780
    %v6783 = vrot.slane %v6778, 4
    %v6785 = vmax.f32 %v6782, %v6783
    %v6786 = vsub.f32 %v6778, %v6785
    %v6787 = vmul.f32 %v6786, 1.442695
    %v6788 = vpow.pop %v6787
    %v6790 = vrot.slane %v6785, 6
    %v6792 = vsub.f32 %v6778, %v6790
    %v6793 = vmul.f32 %v6792, 1.442695
    %v6794 = vpow.pop %v6793
    %v6795 = vrot.slane %v6785, 4
    %v6797 = vsub.f32 %v6778, %v6795
    %v6798 = vmul.f32 %v6797, 1.442695
    %v6799 = vpow.pop %v6798
    %v6801 = vrot.slane %v6794, 2
    %v6803 = vadd.f32 %v6788, %v6801
    %v6805 = vrot.slane %v6799, 4
    %v6807 = vadd.f32 %v6803, %v6805
    %v6808 = vadd.f32 %v6807, 1e-08
    %v6809 = vrcp.pop %v6808
    %v6810 = vmul.f32 1.0, %v6809
    %6812 = vset.pattern.permute.xlu0 3
    %6813 = vperm.xlu0 %6812, %v6788
    %v6814 = vpop.permute.xlu0 %6813
    %v6816 = vmul.f32 %v6814, %v6699
    %6817 = vset.pattern.permute.xlu0 3
    %6818 = vperm.xlu0 %6817, %v6794
    %v6819 = vpop.permute.xlu0 %6818
    %v6821 = vmul.f32 %v6819, %v6702
    %v6823 = vrot.slane %v6821, 2
    %v6825 = vadd.f32 %v6816, %v6823
    %6826 = vset.pattern.permute.xlu0 3
    %6827 = vperm.xlu0 %6826, %v6799
    %v6828 = vpop.permute.xlu0 %6827
    %v6830 = vmul.f32 %v6828, %v6705
    %v6832 = vrot.slane %v6830, 4
    %v6834 = vadd.f32 %v6825, %v6832
    %6836 = vset.pattern.permute.xlu0 3
    %6837 = vperm.xlu0 %6836, %v6810
    %v6838 = vpop.permute.xlu0 %6837
    %v6840 = vmul.f32 %v6834, %v6838
    %v6841 = vpack.c.bf16 %v6840, %v6840
    %6842 = vrot.lane.b32.xlu0 %v6403, 80
    %v6843 = vpop.permute.xlu0 %6842
    %6844 = vrot.lane.b32.xlu0 %v6404, 80
    %v6845 = vpop.permute.xlu0 %6844
    %6849 = vrot.lane.b32.xlu0 %v6714, 96
    %v6850 = vpop.permute.xlu0 %6849
    %v6853 = vsel %vm582, %v6841, 0
    %6855 = vmatprep.subr.bf16.mxu0 0
    %6856 = vmatpush1.bf16.msra.mxu0 %v6843
    %6857 = vmatprep.subr.bf16.mxu0 0
    %6858 = vmatpush1.bf16.msra.mxu0 %v6845
    %6859 = vmatprep.subr.bf16.mxu0 0
    %6860 = vmatpush1.bf16.msra.mxu0 0
    %6861 = vmatprep.subr.bf16.mxu0 0
    %6862 = vmatpush1.bf16.msra.mxu0 0
    %6863 = vmatprep.subr.bf16.mxu0 0
    %6864 = vmatpush1.bf16.msra.mxu0 0
    %6865 = vmatprep.subr.bf16.mxu0 0
    %6866 = vmatpush1.bf16.msra.mxu0 0
    %6867 = vmatprep.subr.bf16.mxu0 0
    %6868 = vmatpush1.bf16.msra.mxu0 0
    %6869 = vmatprep.subr.bf16.mxu0 0
    %6870 = vmatpush1.bf16.msra.mxu0 0
    %6871 = vmatprep.subr.bf16.mxu0 0
    %6872 = vmatpush1.bf16.msra.mxu0 0
    %6873 = vmatprep.subr.bf16.mxu0 0
    %6874 = vmatpush1.bf16.msra.mxu0 0
    %6875 = vmatprep.subr.bf16.mxu0 0
    %6876 = vmatpush1.bf16.msra.mxu0 0
    %6877 = vmatprep.subr.bf16.mxu0 0
    %6878 = vmatpush1.bf16.msra.mxu0 0
    %6879 = vmatprep.subr.bf16.mxu0 0
    %6880 = vmatpush1.bf16.msra.mxu0 0
    %6881 = vmatprep.subr.bf16.mxu0 0
    %6882 = vmatpush1.bf16.msra.mxu0 0
    %6883 = vmatprep.subr.bf16.mxu0 0
    %6884 = vmatpush1.bf16.msra.mxu0 0
    %6885 = vmatprep.subr.bf16.mxu0 0
    %6886 = vmatpush1.bf16.msra.mxu0 0
    %6887 = vmatprep.mubr.bf16.mxu0 0
    %6888 = vmatmul.mubr.bf16.gmra.mrb[0].mxu0 %v6853
    %v6889 = vpop.f32.mrb[0].mxu0
    %v6890 = vadd.f32 %v6850, %v6889
    %v6891 = vpop.f32.mrb[0].mxu0
    %v6892 = vpop.f32.mrb[0].mxu0
    %v6893 = vpop.f32.mrb[0].mxu0
    %6894 = vdwg.mxu0
    %v6895 = vmax.f32 %v6890, 0.0
    %6896 = vrot.lane.b32.xlu0 %v6350, 64
    %v6897 = vpop.permute.xlu0 %6896
    %v6899 = vmul.f32 %v6895, %v6897
    %v6900 = vsel %vm6352, %v6899, 0.0
    %6901 = vadd.xlane.f32.xlu0 %v6900
    %v6902 = vpop.xlane.xlu0 %6901
    %v6903 = vadd.f32 %v6902, %v6359
    %v6904 = vxor.u32 %v6903, 2147483648
    %v6905 = vmul.f32 %v6904, 1.442695
    %v6906 = vpow.pop %v6905
    %v6907 = vadd.f32 %v6906, 1.0
    %v6908 = vrcp.pop %v6907
    %v6909 = vmul.f32 1.0, %v6908
    %6911 = vrot.lane.b32.xlu0 %v6909, 122
    %v6912 = vpop.permute.xlu0 %6911
    %6914 = vrot.lane.b32.xlu0 %v6658, 122
    %v6915 = vpop.permute.xlu0 %6914
    %6917 = vrot.lane.b32.xlu0 %v6673, 122
    %v6918 = vpop.permute.xlu0 %6917
    %6921 = vrot.lane.b32.xlu0 %v6366, 127
    %v6922 = vpop.permute.xlu0 %6921
    %6925 = vrot.lane.b32.xlu0 %v6385, 127
    %v6926 = vpop.permute.xlu0 %6925
    %6929 = vrot.lane.b32.xlu0 %v6458, 5
    %v6930 = vpop.permute.xlu0 %6929
    %vm6932 = vcmask 7168
    %v6933 = vsel %vm6932, %v6912, %v6915
    %vm6934 = vcmask 15360
    %v6935 = vsel %vm6934, %v6933, %v6918
    %vm6936 = vcmask 23552
    %v6937 = vsel %vm6936, %v6935, %v6922
    %vm6938 = vcmask 31744
    %v6939 = vsel %vm6938, %v6937, %v6926
    %vm6940 = vcmask 39936
    %v6941 = vsel %vm6940, %v6939, %v6930
    %v6942 = vsel %vm783, %v6941, %v6930
    %vm6943 = vcmask 89088
    %v6944 = vsel %vm6943, %v6942, 0.0
    %6945 = vst [vmem:[#allocation23] sm:$0x3] %v6944
    // Predicated region
    $region106: #{arg_forward.1} parent=1 // pred_check
      _
    $region107: #{arg_forward.1} parent=1 // pred_check_branch
      %6947 = sbr.rel (0) target = $region109
    $region108: #{arg_forward.1} parent=1 // pred_region
      %s6949 = ssub.s32 32, 32
      %6950 = vsyncadd [#allocation4], %s6949
      %s6952 = sshll.u32 [#allocation23], 4
      %s6953 = int_to_ptr.vmem [resolvable:$true] %s6952
      %6955 = dma.vmem_to_hbm [thread:$0]  %s6953, 32, %s13, [#allocation4]
    $region109: #{arg_forward.1} parent=1 // pred_fallthru
      _
    // Predicated region
    $region110: #{arg_forward.1} parent=1 // pred_check
      _
    $region111: #{arg_forward.1} parent=1 // pred_check_branch
      %6957 = sbr.rel (0) target = $region113
    $region112: #{arg_forward.1} parent=1 // pred_region
      %6958 = dma.done [#allocation4], 32
    $region113: #{arg_forward.1} parent=1 // pred_fallthru
      _
    %6959 = vsyncpa [#allocation3], 1
    %6960 = vsyncpa [#allocation6], 1
    %6961 = vsyncpa [#allocation9], 1
    %6962 = vsyncpa [#allocation12], 1
    %6963 = vsyncpa [#allocation15], 1
    %6964 = vsyncpa [#allocation18], 1
    %6965 = vsyncpa [#allocation21], 1
    %6966 = vsyncpa [#allocation4], 1

</llo_original>
